<compile_context>
chip_gen: v7x
topology: tpu7x:2x2x1
jax: 0.10.0
libtpu: 0.0.40
codegen_flags: <defaults>
</compile_context>

<pallas_src>
import math
import functools

import jax
import jax.numpy as jnp
from jax import lax
from jax.experimental import pallas as pl
from jax.experimental.pallas import tpu as pltpu


def _kde_kernel(test_ref, train_ref, out_ref, m_sc, l_sc, xx_sc, *,
                coeff, z_const, tn_inner, n_inner):
    """Grid = (test_row_tiles, train_row_tiles); axis 1 (train) is the reduction.

    test_ref : (tm, D)  tile of test points                   (VMEM)
    train_ref: (tn, D)  tile of train points                  (VMEM)
    out_ref  : (1, tm)  lane-dense log p(x) for this tile     (VMEM, written at last k)
    m_sc,l_sc: (1, tm)  running max / running sum             (VMEM scratch)
    xx_sc    : (1, tm)  ||x||^2 per test row (k-invariant)    (VMEM scratch)
    """
    k = pl.program_id(1)

    x = test_ref[...].astype(jnp.float32)                     # (tm, D), raw (no 1/h)

    @pl.when(k == 0)
    def _init():
        # ||x||^2 per test row, produced lane-dense (1, tm) directly on the MXU.
        # k-invariant -> computed once per test tile and cached in scratch.
        ones_row = jnp.ones((1, x.shape[-1]), jnp.float32)
        xx_sc[...] = lax.dot_general(ones_row, x * x, (((1,), (1,)), ((), ())),
                                     preferred_element_type=jnp.float32,
                                     precision=lax.Precision.HIGHEST)
        m_sc[...] = jnp.full(m_sc.shape, -jnp.inf, dtype=jnp.float32)
        l_sc[...] = jnp.zeros(l_sc.shape, dtype=jnp.float32)

    xx = xx_sc[...]                                            # (1, tm)
    m = m_sc[...]                                              # (1, tm)
    l = l_sc[...]                                              # (1, tm)

    # Inner loop over tn_inner-row sub-chunks of the (tn, D) train block.
    # n_inner is small and static -> fully unrolled straight-line region (the perf
    # review's "inner unrolled loop"): amortizes grid-step overhead over 4x+ rows
    # while keeping the per-chunk scores tile at <= 32 vregs.
    for j in range(n_inner):
        y = train_ref[pl.ds(j * tn_inner, tn_inner), :].astype(jnp.float32)  # (tn_inner, D)

        # Cross term on the MXU: xy[n, m] = sum_d y[n, d] * x[m, d] -> (tn_inner, tm)
        xy = lax.dot_general(y, x, (((1,), (1,)), ((), ())),
                             preferred_element_type=jnp.float32,
                             precision=lax.Precision.HIGHEST)
        yy = jnp.sum(y * y, axis=-1, keepdims=True)            # (tn_inner, 1)

        sq = jnp.maximum(yy + xx - 2.0 * xy, 0.0)              # (tn_inner, tm), raw units
        scores = coeff * sq - z_const                          # bandwidth folded into coeff

        # Online logsumexp over the train (sublane) axis; test rows stay on lanes.
        m_new = jnp.maximum(m, jnp.max(scores, axis=0, keepdims=True))
        l = jnp.exp(m - m_new) * l + jnp.sum(jnp.exp(scores - m_new),
                                             axis=0, keepdims=True)
        m = m_new

    # Single scratch writeback per grid step.
    m_sc[...] = m
    l_sc[...] = l

    @pl.when(k == pl.num_programs(1) - 1)
    def _finalize():
        out_ref[...] = (m + jnp.log(l)).astype(out_ref.dtype)


def kde_forward(test_Xs, train_Xs, bandwidth=1.0, *, tm=256, tn=512, tn_inner=128):
    """Pallas KDE forward.  test_Xs: (M, D), train_Xs: (N, D) -> (M,) float32.

    Defaults target v6e/v7x (tm=256). On v5e use tm=128 (4x128^2 MXU).
    """
    M, D = test_Xs.shape
    N, D2 = train_Xs.shape
    assert D == D2, "feature dims must match"
    assert tm % 128 == 0, "test tile must be lane-aligned (multiple of 128)"
    assert tn % tn_inner == 0, "train tile must be a multiple of the inner chunk"
    assert tn_inner % 8 == 0, "inner train chunk must be sublane-aligned"

    h = float(bandwidth)
    z_const = 0.5 * D * math.log(2.0 * math.pi) + D * math.log(h) + math.log(float(N))
    coeff = -0.5 / (h * h)   # fold 1/h^2 into the score scale (no per-tile scaling)

    # Pad to tile multiples.  Padded test rows are dropped in the wrapper.  Padded
    # train rows are filled with a large constant so their distance is enormous and
    # exp(score - m) underflows to 0 -> no runtime mask needed in the kernel.
    PAD_VAL = 1e6
    m_pad = pl.cdiv(M, tm) * tm
    n_pad = pl.cdiv(N, tn) * tn
    test_p = test_Xs if m_pad == M else jnp.pad(test_Xs, ((0, m_pad - M), (0, 0)))
    train_p = (train_Xs if n_pad == N
               else jnp.pad(train_Xs, ((0, n_pad - N), (0, 0)),
                            constant_values=PAD_VAL))

    n_row_tiles = m_pad // tm
    n_col_tiles = n_pad // tn
    n_inner = tn // tn_inner

    kernel = functools.partial(_kde_kernel, coeff=coeff, z_const=z_const,
                               tn_inner=tn_inner, n_inner=n_inner)

    out = pl.pallas_call(
        kernel,
        out_shape=jax.ShapeDtypeStruct((1, m_pad), jnp.float32),
        grid_spec=pltpu.PrefetchScalarGridSpec(
            num_scalar_prefetch=0,
            grid=(n_row_tiles, n_col_tiles),
            in_specs=[
                # tile of test rows (constant across the reduction axis -> stays resident)
                pl.BlockSpec((tm, D), lambda i, k: (i, 0)),
                # big tile of train rows (marches along the reduction axis)
                pl.BlockSpec((tn, D), lambda i, k: (k, 0)),
            ],
            # lane-dense output: test rows live on the lane axis
            out_specs=pl.BlockSpec((1, tm), lambda i, k: (0, i)),
            scratch_shapes=[pltpu.VMEM((1, tm), jnp.float32),   # running max
                            pltpu.VMEM((1, tm), jnp.float32),   # running sum
                            pltpu.VMEM((1, tm), jnp.float32)],  # cached ||x||^2
        ),
        compiler_params=pltpu.CompilerParams(
            dimension_semantics=("parallel", "arbitrary"),
        ),
    )(test_p, train_p)

    return out[0, :M]


def kde_reference(test_Xs, train_Xs, bandwidth=1.0):
    """Pure-JAX reference mirroring the PyTorch GaussianKernel.forward."""
    n, d = train_Xs.shape
    h = jnp.float32(bandwidth)
    z = (0.5 * d * jnp.log(2.0 * jnp.float32(math.pi))
         + d * jnp.log(h) + jnp.log(jnp.float32(n)))
    diffs = (test_Xs[:, None, :] - train_Xs[None, :, :]) / h
    log_exp = -0.5 * jnp.sum(diffs * diffs, axis=-1)
    return jax.nn.logsumexp(log_exp - z, axis=-1)


if __name__ == "__main__":
    key = jax.random.PRNGKey(0)
    k_train, k_test = jax.random.split(key)

    # "Training" data held by the estimator and a batch of query points.  Sizes chosen
    # small but so the kernel exercises: 2 test-row tiles (tm=256), 2 train grid tiles
    # (tn=512) each with a 4-deep unrolled inner loop, and padding on both axes.
    N, M, D = 700, 300, 16
    train_Xs = jax.random.normal(k_train, (N, D), dtype=jnp.float32)
    test_Xs = jax.random.normal(k_test, (M, D), dtype=jnp.float32) * 0.5

    out = kde_forward(test_Xs, train_Xs, bandwidth=1.0)
    out = jax.block_until_ready(out)

    ref = jax.block_until_ready(kde_reference(test_Xs, train_Xs, bandwidth=1.0))
    assert out.shape == (M,)
    assert jnp.allclose(out, ref, rtol=2e-5, atol=2e-3), (out, ref)

    print("KERNEL_OK")
</pallas_src>

<mosaic_0001>
module attributes {stable_mosaic.version = 11 : i64} {
  func.func @_kde_kernel(%arg0: i32, %arg1: i32, %arg2: memref<256x16xf32, #tpu.memory_space<vmem>>, %arg3: memref<512x16xf32, #tpu.memory_space<vmem>>, %arg4: memref<1x256xf32, #tpu.memory_space<vmem>>, %arg5: memref<1x256xf32, #tpu.memory_space<vmem>>, %arg6: memref<1x256xf32, #tpu.memory_space<vmem>>, %arg7: memref<1x256xf32, #tpu.memory_space<vmem>>) attributes {dimension_semantics = [#tpu.dimension_semantics<parallel>, #tpu.dimension_semantics<arbitrary>], iteration_bounds = array<i64: 2, 2>, scalar_prefetch = 0 : i64, scratch_operands = 3 : i64, tpu.core_type = #tpu.core_type<tc>, window_params = [{transform_indices = @transform_0, window_bounds = array<i64: 256, 16>}, {transform_indices = @transform_1, window_bounds = array<i64: 512, 16>}, {transform_indices = @transform_2, window_bounds = array<i64: 1, 256>}]} {
    %c0 = arith.constant 0 : index
    %c0_0 = arith.constant 0 : index
    %0 = vector.load %arg2[%c0, %c0_0] : memref<256x16xf32, #tpu.memory_space<vmem>>, vector<256x16xf32>
    %c0_i32 = arith.constant 0 : i32
    %1 = arith.cmpi eq, %arg1, %c0_i32 : i32
    %2 = arith.extui %1 : i1 to i32
    %c0_i32_1 = arith.constant 0 : i32
    %3 = arith.cmpi ne, %2, %c0_i32_1 : i32
    scf.if %3 {
      %cst_49 = arith.constant 1.000000e+00 : f32
      %128 = vector.broadcast %cst_49 : f32 to vector<1x16xf32>
      %129 = arith.mulf %0, %0 : vector<256x16xf32>
      %cst_50 = arith.constant dense<0.000000e+00> : vector<1x256xf32>
      %130 = tpu.matmul %128, %129, %cst_50 {dimension_numbers = #tpu.dot_dimension_numbers<[1], [1], [0], [0], [0, 0, 1, 0], [], []>, precision = #tpu.contract_precision<fp32>} : vector<1x16xf32>, vector<256x16xf32>, vector<1x256xf32> -> vector<1x256xf32>
      %c0_51 = arith.constant 0 : index
      %c0_52 = arith.constant 0 : index
      %131 = vector.load %arg7[%c0_51, %c0_52] : memref<1x256xf32, #tpu.memory_space<vmem>>, vector<1x256xf32>
      tpu.vector_store %arg7[%c0_51, %c0_52], %130 {strides = array<i32>} : memref<1x256xf32, #tpu.memory_space<vmem>>, vector<1x256xf32>,
      %cst_53 = arith.constant 0xFF800000 : f32
      %132 = vector.broadcast %cst_53 : f32 to vector<1x256xf32>
      %c0_54 = arith.constant 0 : index
      %c0_55 = arith.constant 0 : index
      %133 = vector.load %arg5[%c0_54, %c0_55] : memref<1x256xf32, #tpu.memory_space<vmem>>, vector<1x256xf32>
      tpu.vector_store %arg5[%c0_54, %c0_55], %132 {strides = array<i32>} : memref<1x256xf32, #tpu.memory_space<vmem>>, vector<1x256xf32>,
      %cst_56 = arith.constant 0.000000e+00 : f32
      %134 = vector.broadcast %cst_56 : f32 to vector<1x256xf32>
      %c0_57 = arith.constant 0 : index
      %c0_58 = arith.constant 0 : index
      %135 = vector.load %arg6[%c0_57, %c0_58] : memref<1x256xf32, #tpu.memory_space<vmem>>, vector<1x256xf32>
      tpu.vector_store %arg6[%c0_57, %c0_58], %134 {strides = array<i32>} : memref<1x256xf32, #tpu.memory_space<vmem>>, vector<1x256xf32>,
    } else {
    }
    %c0_2 = arith.constant 0 : index
    %c0_3 = arith.constant 0 : index
    %4 = vector.load %arg7[%c0_2, %c0_3] : memref<1x256xf32, #tpu.memory_space<vmem>>, vector<1x256xf32>
    %c0_4 = arith.constant 0 : index
    %c0_5 = arith.constant 0 : index
    %5 = vector.load %arg5[%c0_4, %c0_5] : memref<1x256xf32, #tpu.memory_space<vmem>>, vector<1x256xf32>
    %c0_6 = arith.constant 0 : index
    %c0_7 = arith.constant 0 : index
    %6 = vector.load %arg6[%c0_6, %c0_7] : memref<1x256xf32, #tpu.memory_space<vmem>>, vector<1x256xf32>
    %c0_8 = arith.constant 0 : index
    %c0_9 = arith.constant 0 : index
    %7 = vector.load %arg3[%c0_8, %c0_9] : memref<512x16xf32, #tpu.memory_space<vmem>>, vector<128x16xf32>
    %cst = arith.constant dense<0.000000e+00> : vector<128x256xf32>
    %8 = tpu.matmul %7, %0, %cst {dimension_numbers = #tpu.dot_dimension_numbers<[1], [1], [0], [0], [0, 0, 1, 0], [], []>, precision = #tpu.contract_precision<fp32>} : vector<128x16xf32>, vector<256x16xf32>, vector<128x256xf32> -> vector<128x256xf32>
    %9 = arith.mulf %7, %7 : vector<128x16xf32>
    %cst_10 = arith.constant dense<0.000000e+00> : vector<128xf32>
    %10 = vector.multi_reduction <add>, %9, %cst_10 [1] : vector<128x16xf32> to vector<128xf32>
    %11 = vector.shape_cast %10 : vector<128xf32> to vector<128x1xf32>
    %12 = vector.broadcast %11 : vector<128x1xf32> to vector<128x256xf32>
    %13 = vector.broadcast %4 : vector<1x256xf32> to vector<128x256xf32>
    %14 = arith.addf %12, %13 : vector<128x256xf32>
    %cst_11 = arith.constant 2.000000e+00 : f32
    %15 = vector.broadcast %cst_11 : f32 to vector<128x256xf32>
    %16 = arith.mulf %15, %8 : vector<128x256xf32>
    %17 = arith.subf %14, %16 : vector<128x256xf32>
    %cst_12 = arith.constant 0.000000e+00 : f32
    %18 = vector.broadcast %cst_12 : f32 to vector<128x256xf32>
    %19 = arith.maximumf %17, %18 : vector<128x256xf32>
    %cst_13 = arith.constant -5.000000e-01 : f32
    %20 = vector.broadcast %cst_13 : f32 to vector<128x256xf32>
    %21 = arith.mulf %20, %19 : vector<128x256xf32>
    %cst_14 = arith.constant 21.254097 : f32
    %22 = vector.broadcast %cst_14 : f32 to vector<128x256xf32>
    %23 = arith.subf %21, %22 : vector<128x256xf32>
    %cst_15 = arith.constant dense<0xFF800000> : vector<256xf32>
    %24 = vector.multi_reduction <maximumf>, %23, %cst_15 [0] : vector<128x256xf32> to vector<256xf32>
    %25 = vector.shape_cast %24 : vector<256xf32> to vector<1x256xf32>
    %26 = arith.maximumf %5, %25 : vector<1x256xf32>
    %27 = arith.subf %5, %26 : vector<1x256xf32>
    %28 = math.exp %27 : vector<1x256xf32>
    %29 = arith.mulf %28, %6 : vector<1x256xf32>
    %30 = vector.broadcast %26 : vector<1x256xf32> to vector<128x256xf32>
    %31 = arith.subf %23, %30 : vector<128x256xf32>
    %32 = math.exp %31 : vector<128x256xf32>
    %cst_16 = arith.constant dense<0.000000e+00> : vector<256xf32>
    %33 = vector.multi_reduction <add>, %32, %cst_16 [0] : vector<128x256xf32> to vector<256xf32>
    %34 = vector.shape_cast %33 : vector<256xf32> to vector<1x256xf32>
    %35 = arith.addf %29, %34 : vector<1x256xf32>
    %c128 = arith.constant 128 : index
    %c0_17 = arith.constant 0 : index
    %36 = vector.load %arg3[%c128, %c0_17] : memref<512x16xf32, #tpu.memory_space<vmem>>, vector<128x16xf32>
    %cst_18 = arith.constant dense<0.000000e+00> : vector<128x256xf32>
    %37 = tpu.matmul %36, %0, %cst_18 {dimension_numbers = #tpu.dot_dimension_numbers<[1], [1], [0], [0], [0, 0, 1, 0], [], []>, precision = #tpu.contract_precision<fp32>} : vector<128x16xf32>, vector<256x16xf32>, vector<128x256xf32> -> vector<128x256xf32>
    %38 = arith.mulf %36, %36 : vector<128x16xf32>
    %cst_19 = arith.constant dense<0.000000e+00> : vector<128xf32>
    %39 = vector.multi_reduction <add>, %38, %cst_19 [1] : vector<128x16xf32> to vector<128xf32>
    %40 = vector.shape_cast %39 : vector<128xf32> to vector<128x1xf32>
    %41 = vector.broadcast %40 : vector<128x1xf32> to vector<128x256xf32>
    %42 = vector.broadcast %4 : vector<1x256xf32> to vector<128x256xf32>
    %43 = arith.addf %41, %42 : vector<128x256xf32>
    %cst_20 = arith.constant 2.000000e+00 : f32
    %44 = vector.broadcast %cst_20 : f32 to vector<128x256xf32>
    %45 = arith.mulf %44, %37 : vector<128x256xf32>
    %46 = arith.subf %43, %45 : vector<128x256xf32>
    %cst_21 = arith.constant 0.000000e+00 : f32
    %47 = vector.broadcast %cst_21 : f32 to vector<128x256xf32>
    %48 = arith.maximumf %46, %47 : vector<128x256xf32>
    %cst_22 = arith.constant -5.000000e-01 : f32
    %49 = vector.broadcast %cst_22 : f32 to vector<128x256xf32>
    %50 = arith.mulf %49, %48 : vector<128x256xf32>
    %cst_23 = arith.constant 21.254097 : f32
    %51 = vector.broadcast %cst_23 : f32 to vector<128x256xf32>
    %52 = arith.subf %50, %51 : vector<128x256xf32>
    %cst_24 = arith.constant dense<0xFF800000> : vector<256xf32>
    %53 = vector.multi_reduction <maximumf>, %52, %cst_24 [0] : vector<128x256xf32> to vector<256xf32>
    %54 = vector.shape_cast %53 : vector<256xf32> to vector<1x256xf32>
    %55 = arith.maximumf %26, %54 : vector<1x256xf32>
    %56 = arith.subf %26, %55 : vector<1x256xf32>
    %57 = math.exp %56 : vector<1x256xf32>
    %58 = arith.mulf %57, %35 : vector<1x256xf32>
    %59 = vector.broadcast %55 : vector<1x256xf32> to vector<128x256xf32>
    %60 = arith.subf %52, %59 : vector<128x256xf32>
    %61 = math.exp %60 : vector<128x256xf32>
    %cst_25 = arith.constant dense<0.000000e+00> : vector<256xf32>
    %62 = vector.multi_reduction <add>, %61, %cst_25 [0] : vector<128x256xf32> to vector<256xf32>
    %63 = vector.shape_cast %62 : vector<256xf32> to vector<1x256xf32>
    %64 = arith.addf %58, %63 : vector<1x256xf32>
    %c256 = arith.constant 256 : index
    %c0_26 = arith.constant 0 : index
    %65 = vector.load %arg3[%c256, %c0_26] : memref<512x16xf32, #tpu.memory_space<vmem>>, vector<128x16xf32>
    %cst_27 = arith.constant dense<0.000000e+00> : vector<128x256xf32>
    %66 = tpu.matmul %65, %0, %cst_27 {dimension_numbers = #tpu.dot_dimension_numbers<[1], [1], [0], [0], [0, 0, 1, 0], [], []>, precision = #tpu.contract_precision<fp32>} : vector<128x16xf32>, vector<256x16xf32>, vector<128x256xf32> -> vector<128x256xf32>
    %67 = arith.mulf %65, %65 : vector<128x16xf32>
    %cst_28 = arith.constant dense<0.000000e+00> : vector<128xf32>
    %68 = vector.multi_reduction <add>, %67, %cst_28 [1] : vector<128x16xf32> to vector<128xf32>
    %69 = vector.shape_cast %68 : vector<128xf32> to vector<128x1xf32>
    %70 = vector.broadcast %69 : vector<128x1xf32> to vector<128x256xf32>
    %71 = vector.broadcast %4 : vector<1x256xf32> to vector<128x256xf32>
    %72 = arith.addf %70, %71 : vector<128x256xf32>
    %cst_29 = arith.constant 2.000000e+00 : f32
    %73 = vector.broadcast %cst_29 : f32 to vector<128x256xf32>
    %74 = arith.mulf %73, %66 : vector<128x256xf32>
    %75 = arith.subf %72, %74 : vector<128x256xf32>
    %cst_30 = arith.constant 0.000000e+00 : f32
    %76 = vector.broadcast %cst_30 : f32 to vector<128x256xf32>
    %77 = arith.maximumf %75, %76 : vector<128x256xf32>
    %cst_31 = arith.constant -5.000000e-01 : f32
    %78 = vector.broadcast %cst_31 : f32 to vector<128x256xf32>
    %79 = arith.mulf %78, %77 : vector<128x256xf32>
    %cst_32 = arith.constant 21.254097 : f32
    %80 = vector.broadcast %cst_32 : f32 to vector<128x256xf32>
    %81 = arith.subf %79, %80 : vector<128x256xf32>
    %cst_33 = arith.constant dense<0xFF800000> : vector<256xf32>
    %82 = vector.multi_reduction <maximumf>, %81, %cst_33 [0] : vector<128x256xf32> to vector<256xf32>
    %83 = vector.shape_cast %82 : vector<256xf32> to vector<1x256xf32>
    %84 = arith.maximumf %55, %83 : vector<1x256xf32>
    %85 = arith.subf %55, %84 : vector<1x256xf32>
    %86 = math.exp %85 : vector<1x256xf32>
    %87 = arith.mulf %86, %64 : vector<1x256xf32>
    %88 = vector.broadcast %84 : vector<1x256xf32> to vector<128x256xf32>
    %89 = arith.subf %81, %88 : vector<128x256xf32>
    %90 = math.exp %89 : vector<128x256xf32>
    %cst_34 = arith.constant dense<0.000000e+00> : vector<256xf32>
    %91 = vector.multi_reduction <add>, %90, %cst_34 [0] : vector<128x256xf32> to vector<256xf32>
    %92 = vector.shape_cast %91 : vector<256xf32> to vector<1x256xf32>
    %93 = arith.addf %87, %92 : vector<1x256xf32>
    %c384 = arith.constant 384 : index
    %c0_35 = arith.constant 0 : index
    %94 = vector.load %arg3[%c384, %c0_35] : memref<512x16xf32, #tpu.memory_space<vmem>>, vector<128x16xf32>
    %cst_36 = arith.constant dense<0.000000e+00> : vector<128x256xf32>
    %95 = tpu.matmul %94, %0, %cst_36 {dimension_numbers = #tpu.dot_dimension_numbers<[1], [1], [0], [0], [0, 0, 1, 0], [], []>, precision = #tpu.contract_precision<fp32>} : vector<128x16xf32>, vector<256x16xf32>, vector<128x256xf32> -> vector<128x256xf32>
    %96 = arith.mulf %94, %94 : vector<128x16xf32>
    %cst_37 = arith.constant dense<0.000000e+00> : vector<128xf32>
    %97 = vector.multi_reduction <add>, %96, %cst_37 [1] : vector<128x16xf32> to vector<128xf32>
    %98 = vector.shape_cast %97 : vector<128xf32> to vector<128x1xf32>
    %99 = vector.broadcast %98 : vector<128x1xf32> to vector<128x256xf32>
    %100 = vector.broadcast %4 : vector<1x256xf32> to vector<128x256xf32>
    %101 = arith.addf %99, %100 : vector<128x256xf32>
    %cst_38 = arith.constant 2.000000e+00 : f32
    %102 = vector.broadcast %cst_38 : f32 to vector<128x256xf32>
    %103 = arith.mulf %102, %95 : vector<128x256xf32>
    %104 = arith.subf %101, %103 : vector<128x256xf32>
    %cst_39 = arith.constant 0.000000e+00 : f32
    %105 = vector.broadcast %cst_39 : f32 to vector<128x256xf32>
    %106 = arith.maximumf %104, %105 : vector<128x256xf32>
    %cst_40 = arith.constant -5.000000e-01 : f32
    %107 = vector.broadcast %cst_40 : f32 to vector<128x256xf32>
    %108 = arith.mulf %107, %106 : vector<128x256xf32>
    %cst_41 = arith.constant 21.254097 : f32
    %109 = vector.broadcast %cst_41 : f32 to vector<128x256xf32>
    %110 = arith.subf %108, %109 : vector<128x256xf32>
    %cst_42 = arith.constant dense<0xFF800000> : vector<256xf32>
    %111 = vector.multi_reduction <maximumf>, %110, %cst_42 [0] : vector<128x256xf32> to vector<256xf32>
    %112 = vector.shape_cast %111 : vector<256xf32> to vector<1x256xf32>
    %113 = arith.maximumf %84, %112 : vector<1x256xf32>
    %114 = arith.subf %84, %113 : vector<1x256xf32>
    %115 = math.exp %114 : vector<1x256xf32>
    %116 = arith.mulf %115, %93 : vector<1x256xf32>
    %117 = vector.broadcast %113 : vector<1x256xf32> to vector<128x256xf32>
    %118 = arith.subf %110, %117 : vector<128x256xf32>
    %119 = math.exp %118 : vector<128x256xf32>
    %cst_43 = arith.constant dense<0.000000e+00> : vector<256xf32>
    %120 = vector.multi_reduction <add>, %119, %cst_43 [0] : vector<128x256xf32> to vector<256xf32>
    %121 = vector.shape_cast %120 : vector<256xf32> to vector<1x256xf32>
    %122 = arith.addf %116, %121 : vector<1x256xf32>
    %c0_44 = arith.constant 0 : index
    %c0_45 = arith.constant 0 : index
    %123 = vector.load %arg5[%c0_44, %c0_45] : memref<1x256xf32, #tpu.memory_space<vmem>>, vector<1x256xf32>
    tpu.vector_store %arg5[%c0_44, %c0_45], %113 {strides = array<i32>} : memref<1x256xf32, #tpu.memory_space<vmem>>, vector<1x256xf32>,
    %c0_46 = arith.constant 0 : index
    %c0_47 = arith.constant 0 : index
    %124 = vector.load %arg6[%c0_46, %c0_47] : memref<1x256xf32, #tpu.memory_space<vmem>>, vector<1x256xf32>
    tpu.vector_store %arg6[%c0_46, %c0_47], %122 {strides = array<i32>} : memref<1x256xf32, #tpu.memory_space<vmem>>, vector<1x256xf32>,
    %c1_i32 = arith.constant 1 : i32
    %125 = arith.cmpi eq, %arg1, %c1_i32 : i32
    %126 = arith.extui %125 : i1 to i32
    %c0_i32_48 = arith.constant 0 : i32
    %127 = arith.cmpi ne, %126, %c0_i32_48 : i32
    scf.if %127 {
      %128 = math.log %122 : vector<1x256xf32>
      %129 = arith.addf %113, %128 : vector<1x256xf32>
      %c0_49 = arith.constant 0 : index
      %c0_50 = arith.constant 0 : index
      %130 = vector.load %arg4[%c0_49, %c0_50] : memref<1x256xf32, #tpu.memory_space<vmem>>, vector<1x256xf32>
      tpu.vector_store %arg4[%c0_49, %c0_50], %129 {strides = array<i32>} : memref<1x256xf32, #tpu.memory_space<vmem>>, vector<1x256xf32>,
    } else {
    }
    return
  }
  func.func @transform_0(%arg0: i32, %arg1: i32) -> (i32, i32) {
    %c0_i32 = arith.constant 0 : i32
    %c0_i32_0 = arith.constant 0 : i32
    return %arg0, %c0_i32 : i32, i32
  }
  func.func @transform_1(%arg0: i32, %arg1: i32) -> (i32, i32) {
    %c0_i32 = arith.constant 0 : i32
    %c0_i32_0 = arith.constant 0 : i32
    return %arg1, %c0_i32 : i32, i32
  }
  func.func @transform_2(%arg0: i32, %arg1: i32) -> (i32, i32) {
    %c0_i32 = arith.constant 0 : i32
    %c0_i32_0 = arith.constant 0 : i32
    return %c0_i32, %arg0 : i32, i32
  }
}

</mosaic_0001>

<llo_original>
// kernel: tpu_custom_call.1
$region0: #{tpu_custom_call.1}
  #allocation0 [shape = 'u32[]', space=smem, size = 0x4, offset = 0x4, fixed_abs, tag = 'smem constant byte address 0x4 - core index']
  #allocation1 [shape = 'u32[144,128]{1,0:T(1,128)}', space=vmem, size = 0x12000, scoped, tag = 'internal scratch']
  #allocation2 [shape = 'f32[1,256]{1,0:T(1,128)}', space=vmem, size = 0x400, scoped, tag = 'scratch operand']
  #allocation3 [shape = 'f32[1,256]{1,0:T(1,128)}', space=vmem, size = 0x400, scoped, tag = 'scratch operand']
  #allocation4 [shape = 'f32[1,256]{1,0:T(1,128)}', space=vmem, size = 0x400, scoped, tag = 'scratch operand']
  %s0 = inlined_call_operand.vmem [shape: f32[512,16], index: 0, kind: input, shape index: {}]
  %s1 = inlined_call_operand.vmem [shape: f32[1024,16], index: 1, kind: input, shape index: {}]
  %s2 = inlined_call_operand.hbm [shape: f32[1,512], index: 2, kind: output, shape index: {}]
  %s3 = sld [smem:[#allocation0]]
  $region49: #{tpu_custom_call.1} parent=0
    _
  %s5 = ssub.s32 1, %s3
  %s6 = scalar_select 0, %s5, %s3
  $region1: #{tpu_custom_call.1} parent=0
    #allocation5 [shape = 'u8[2048]{0}', space=vmem, size = 0x800, scoped, tag = 'output window, operand 0']
    #allocation6 [shape = 's32[2]{0}', space=sflag, size = 0x8, scoped, tag = 'scoped memory for tpu_custom_call.1']
    %7 = vsyncpa [#allocation6], 0
    %s8 = scalar_lea.sflag [#allocation6], 1
    %9 = vsyncpa %s8, 0
    loop: start=0, step=1, limit=6
    $region2: #{tpu_custom_call.1} parent=1 // loop_pre_header
      _
    $region3: #{tpu_custom_call.1} parent=1 // loop_header
      %s11 = sphi 0, %s15
      %p12 = scmp.ge.s32.totalorder %s11, 6
      %s18 = sphi 0, %s30
      %s19 = sphi 0, %s26
      %s20 = sphi 0, %s18
      %s21 = sphi 0, %s19
      %s22 = sphi 0, %s20
      %s23 = sphi 0, %s21
      %s33 = sphi 0, %s35
      %s36 = sphi 0, %s33
      %s37 = sphi 0, %s36
      %s53 = sphi 0, %s37
      %s59 = sphi 0, %s61
      %s62 = sphi 0, %s59
      %s63 = sphi 0, %s62
      %s79 = sphi 0, %s63
      %s85 = sphi 0, %s87
      %s88 = sphi 0, %s85
      %s89 = sphi 0, %s88
      %s105 = sphi 0, %s89
    $region4: #{tpu_custom_call.1} parent=1 // loop_header_branch
      %14 = sbr.rel (%p12) target = $region8
    $region5: #{tpu_custom_call.1} parent=1 // loop_body
      %s16 = ssub.s32 %s11, 1
      %s17 = ssub.s32 %s11, 2
      %s24 = sadd.s32 1, %s19
      %p25 = scmp.ge.s32.totalorder %s24, 2
      %s26 = scalar_select %p25, 0, %s24
      %s27 = sadd.s32 1, %s18
      %s28 = scalar_select %p25, %s27, %s18
      %p29 = scmp.ge.s32.totalorder %s28, 2
      %s30 = scalar_select %p29, 0, %s28
      %s31 = ssub.s32 %s18, %s30
      %p32 = scmp.eq.s32.totalorder %s31, 0
      %s34 = sadd.s32 %s33, 1
      %s35 = scalar_select %p32, %s33, %s34
      %p38 = pneg %p32
      %p39 = scmp.eq.s32.totalorder %s11, 3
      %p40 = por %p38, %p39
      %p41 = scmp.ne.s32.totalorder %s33, %s36
      %p42 = scmp.eq.s32.totalorder %s11, 0
      %p43 = por %p41, %p42
      %p44 = scmp.ne.s32.totalorder %s33, %s36
      %p45 = scmp.eq.s32.totalorder %s16, 3
      %p46 = por %p44, %p45
      %p47 = scmp.ne.s32.totalorder %s36, %s37
      %p48 = scmp.eq.s32.totalorder %s16, 0
      %p49 = por %p47, %p48
      %p50 = scmp.ne.s32.totalorder %s36, %s37
      %p51 = scmp.eq.s32.totalorder %s17, 3
      %p52 = por %p50, %p51
      %p54 = scmp.ne.s32.totalorder %s37, %s53
      %p55 = scmp.eq.s32.totalorder %s17, 0
      %p56 = por %p54, %p55
      %s57 = ssub.s32 %s19, %s26
      %p58 = scmp.eq.s32.totalorder %s57, 0
      %s60 = sadd.s32 %s59, 1
      %s61 = scalar_select %p58, %s59, %s60
      %p64 = pneg %p58
      %p65 = scmp.eq.s32.totalorder %s11, 3
      %p66 = por %p64, %p65
      %p67 = scmp.ne.s32.totalorder %s59, %s62
      %p68 = scmp.eq.s32.totalorder %s11, 0
      %p69 = por %p67, %p68
      %p70 = scmp.ne.s32.totalorder %s59, %s62
      %p71 = scmp.eq.s32.totalorder %s16, 3
      %p72 = por %p70, %p71
      %p73 = scmp.ne.s32.totalorder %s62, %s63
      %p74 = scmp.eq.s32.totalorder %s16, 0
      %p75 = por %p73, %p74
      %p76 = scmp.ne.s32.totalorder %s62, %s63
      %p77 = scmp.eq.s32.totalorder %s17, 3
      %p78 = por %p76, %p77
      %p80 = scmp.ne.s32.totalorder %s63, %s79
      %p81 = scmp.eq.s32.totalorder %s17, 0
      %p82 = por %p80, %p81
      %s83 = ssub.s32 %s18, %s30
      %p84 = scmp.eq.s32.totalorder %s83, 0
      %s86 = sadd.s32 %s85, 1
      %s87 = scalar_select %p84, %s85, %s86
      %p90 = pneg %p84
      %p91 = scmp.eq.s32.totalorder %s11, 3
      %p92 = por %p90, %p91
      %p93 = scmp.ne.s32.totalorder %s85, %s88
      %p94 = scmp.eq.s32.totalorder %s11, 0
      %p95 = por %p93, %p94
      %p96 = scmp.ne.s32.totalorder %s85, %s88
      %p97 = scmp.eq.s32.totalorder %s16, 3
      %p98 = por %p96, %p97
      %p99 = scmp.ne.s32.totalorder %s88, %s89
      %p100 = scmp.eq.s32.totalorder %s16, 0
      %p101 = por %p99, %p100
      %p102 = scmp.ne.s32.totalorder %s88, %s89
      %p103 = scmp.eq.s32.totalorder %s17, 3
      %p104 = por %p102, %p103
      %p106 = scmp.ne.s32.totalorder %s89, %s105
      %p107 = scmp.eq.s32.totalorder %s17, 0
      %p108 = por %p106, %p107
      %p109 = scmp.le.s32.totalorder 1, %s11
      %p110 = scmp.lt.s32.totalorder %s11, 5
      %p111 = pnand %p109, %p110
      %p112 = pneg %p111
      // Predicated region
      $region9: #{tpu_custom_call.1} parent=5 // pred_check
        _
      $region10: #{tpu_custom_call.1} parent=5 // pred_check_branch
        %114 = sbr.rel (%p111) target = $region12
      $region11: #{tpu_custom_call.1} parent=5 // pred_region
        %s115 = ssub.s32 %s11, 1
      $region12: #{tpu_custom_call.1} parent=5 // pred_fallthru
        _
      %p116 = scmp.lt.s32.totalorder %s11, 4
      // Predicated region
      $region13: #{tpu_custom_call.1} parent=5 // pred_check
        %p117 = pneg %p116
      $region14: #{tpu_custom_call.1} parent=5 // pred_check_branch
        %119 = sbr.rel (%p117) target = $region16
      $region15: #{tpu_custom_call.1} parent=5 // pred_region
        // Predicated region
        $region17: #{tpu_custom_call.1} parent=15 // pred_check
          %p120 = pneg %p43
        $region18: #{tpu_custom_call.1} parent=15 // pred_check_branch
          %122 = sbr.rel (%p120) target = $region20
        $region19: #{tpu_custom_call.1} parent=15 // pred_region
          %s123 = smul.u32 32, %s18
          %p124 = scmp.lt.s32.totalorder %s123, 63
          %s125 = scalar_select %p124, %s123, 63
          %s126 = smul.addr %s125, 8
          %s127 = scalar_lea.vmem %s0, %s126
          %s128 = smul.u32 32, %s18
        $region20: #{tpu_custom_call.1} parent=15 // pred_fallthru
          _
        // Predicated region
        $region21: #{tpu_custom_call.1} parent=15 // pred_check
          %p129 = pneg %p69
        $region22: #{tpu_custom_call.1} parent=15 // pred_check_branch
          %131 = sbr.rel (%p129) target = $region24
        $region23: #{tpu_custom_call.1} parent=15 // pred_region
          %s132 = smul.u32 64, %s19
          %p133 = scmp.lt.s32.totalorder %s132, 127
          %s134 = scalar_select %p133, %s132, 127
          %s135 = smul.addr %s134, 8
          %s136 = scalar_lea.vmem %s1, %s135
          %s137 = smul.u32 64, %s19
        $region24: #{tpu_custom_call.1} parent=15 // pred_fallthru
          _
      $region16: #{tpu_custom_call.1} parent=5 // pred_fallthru
        _
      %p138 = scmp.le.s32.totalorder 1, %s11
      %p139 = scmp.lt.s32.totalorder %s11, 5
      %p140 = pnand %p138, %p139
      %p141 = pneg %p140
      // Predicated region
      $region25: #{tpu_custom_call.1} parent=5 // pred_check
        _
      $region26: #{tpu_custom_call.1} parent=5 // pred_check_branch
        %143 = sbr.rel (%p140) target = $region28
      $region27: #{tpu_custom_call.1} parent=5 // pred_region
        %s144 = ssub.s32 %s11, 1
        %s145 = smul.u32 32, %s20
        %p146 = scmp.lt.s32.totalorder %s145, 63
        %s147 = scalar_select %p146, %s145, 63
        %s148 = smul.addr %s147, 8
        %s149 = scalar_lea.vmem %s0, %s148
        %p150 = pneg %p49
        %p151 = pneg %p46
        %s152 = smul.u32 64, %s21
        %p153 = scmp.lt.s32.totalorder %s152, 127
        %s154 = scalar_select %p153, %s152, 127
        %s155 = smul.addr %s154, 8
        %s156 = scalar_lea.vmem %s1, %s155
        %p157 = pneg %p75
        %p158 = pneg %p72
        %p159 = pneg %p101
        %p160 = pneg %p98
        %s161 = sand.u32 %s88, 1
        %s162 = scalar_lea.sflag [#allocation6], %s161
        %s163 = sand.u32 %s88, 1
        %s164 = smul.addr %s163, 2
        %s165 = scalar_lea.vmem [#allocation5], %s164
        %s166 = smul.u32 32, %s20
        %p167 = scmp.lt.s32.totalorder %s166, 63
        %s168 = scalar_select %p167, %s166, 63
        %s169 = smul.addr %s168, 8
        %s170 = scalar_lea.vmem %s0, %s169
        %s171 = smul.u32 32, %s20
        %s172 = smul.u32 64, %s21
        %p173 = scmp.lt.s32.totalorder %s172, 127
        %s174 = scalar_select %p173, %s172, 127
        %s175 = smul.addr %s174, 8
        %s176 = scalar_lea.vmem %s1, %s175
        %s177 = smul.u32 64, %s21
        %s178 = smul.u32 2, %s20
        %v179 = vld [vmem:[%s170] sm:$0xff]
        %v180 = vld [vmem:[%s170 + $0x8] sm:$0xff]
        %v181 = vld [vmem:[%s170 + $0x10] sm:$0xff]
        %v182 = vld [vmem:[%s170 + $0x18] sm:$0xff]
        %v183 = vld [vmem:[%s170 + $0x20] sm:$0xff]
        %v184 = vld [vmem:[%s170 + $0x28] sm:$0xff]
        %v185 = vld [vmem:[%s170 + $0x30] sm:$0xff]
        %v186 = vld [vmem:[%s170 + $0x38] sm:$0xff]
        %v187 = vld [vmem:[%s170 + $0x40] sm:$0xff]
        %v188 = vld [vmem:[%s170 + $0x48] sm:$0xff]
        %v189 = vld [vmem:[%s170 + $0x50] sm:$0xff]
        %v190 = vld [vmem:[%s170 + $0x58] sm:$0xff]
        %v191 = vld [vmem:[%s170 + $0x60] sm:$0xff]
        %v192 = vld [vmem:[%s170 + $0x68] sm:$0xff]
        %v193 = vld [vmem:[%s170 + $0x70] sm:$0xff]
        %v194 = vld [vmem:[%s170 + $0x78] sm:$0xff]
        %v195 = vld [vmem:[%s170 + $0x80] sm:$0xff]
        %v196 = vld [vmem:[%s170 + $0x88] sm:$0xff]
        %v197 = vld [vmem:[%s170 + $0x90] sm:$0xff]
        %v198 = vld [vmem:[%s170 + $0x98] sm:$0xff]
        %v199 = vld [vmem:[%s170 + $0xa0] sm:$0xff]
        %v200 = vld [vmem:[%s170 + $0xa8] sm:$0xff]
        %v201 = vld [vmem:[%s170 + $0xb0] sm:$0xff]
        %v202 = vld [vmem:[%s170 + $0xb8] sm:$0xff]
        %v203 = vld [vmem:[%s170 + $0xc0] sm:$0xff]
        %v204 = vld [vmem:[%s170 + $0xc8] sm:$0xff]
        %v205 = vld [vmem:[%s170 + $0xd0] sm:$0xff]
        %v206 = vld [vmem:[%s170 + $0xd8] sm:$0xff]
        %v207 = vld [vmem:[%s170 + $0xe0] sm:$0xff]
        %v208 = vld [vmem:[%s170 + $0xe8] sm:$0xff]
        %v209 = vld [vmem:[%s170 + $0xf0] sm:$0xff]
        %v210 = vld [vmem:[%s170 + $0xf8] sm:$0xff]
        %p211 = scmp.eq.s32.totalorder %s21, 0
        // Predicated region
        $region29: #{tpu_custom_call.1} parent=27 // pred_check
          %p212 = pneg %p211
        $region30: #{tpu_custom_call.1} parent=27 // pred_check_branch
          %214 = sbr.rel (%p212) target = $region32
        $region31: #{tpu_custom_call.1} parent=27 // pred_region
          %v215 = vmul.f32 %v179, %v179
          %v216 = vmul.f32 %v180, %v180
          %v217 = vmul.f32 %v181, %v181
          %v218 = vmul.f32 %v182, %v182
          %v219 = vmul.f32 %v183, %v183
          %v220 = vmul.f32 %v184, %v184
          %v221 = vmul.f32 %v185, %v185
          %v222 = vmul.f32 %v186, %v186
          %v223 = vmul.f32 %v187, %v187
          %v224 = vmul.f32 %v188, %v188
          %v225 = vmul.f32 %v189, %v189
          %v226 = vmul.f32 %v190, %v190
          %v227 = vmul.f32 %v191, %v191
          %v228 = vmul.f32 %v192, %v192
          %v229 = vmul.f32 %v193, %v193
          %v230 = vmul.f32 %v194, %v194
          %v231 = vmul.f32 %v195, %v195
          %v232 = vmul.f32 %v196, %v196
          %v233 = vmul.f32 %v197, %v197
          %v234 = vmul.f32 %v198, %v198
          %v235 = vmul.f32 %v199, %v199
          %v236 = vmul.f32 %v200, %v200
          %v237 = vmul.f32 %v201, %v201
          %v238 = vmul.f32 %v202, %v202
          %v239 = vmul.f32 %v203, %v203
          %v240 = vmul.f32 %v204, %v204
          %v241 = vmul.f32 %v205, %v205
          %v242 = vmul.f32 %v206, %v206
          %v243 = vmul.f32 %v207, %v207
          %v244 = vmul.f32 %v208, %v208
          %v245 = vmul.f32 %v209, %v209
          %v246 = vmul.f32 %v210, %v210
          %vm247 = vcmask 130048
          %v249 = vsel %vm247, 1.0, 0
          %v252 = vsel %vm247, %v215, 0
          %v255 = vsel %vm247, %v216, 0
          %v258 = vsel %vm247, %v217, 0
          %v261 = vsel %vm247, %v218, 0
          %v264 = vsel %vm247, %v219, 0
          %v267 = vsel %vm247, %v220, 0
          %v270 = vsel %vm247, %v221, 0
          %v273 = vsel %vm247, %v222, 0
          %v276 = vsel %vm247, %v223, 0
          %v279 = vsel %vm247, %v224, 0
          %v282 = vsel %vm247, %v225, 0
          %v285 = vsel %vm247, %v226, 0
          %v288 = vsel %vm247, %v227, 0
          %v291 = vsel %vm247, %v228, 0
          %v294 = vsel %vm247, %v229, 0
          %v297 = vsel %vm247, %v230, 0
          %v300 = vsel %vm247, %v231, 0
          %v303 = vsel %vm247, %v232, 0
          %v306 = vsel %vm247, %v233, 0
          %v309 = vsel %vm247, %v234, 0
          %v312 = vsel %vm247, %v235, 0
          %v315 = vsel %vm247, %v236, 0
          %v318 = vsel %vm247, %v237, 0
          %v321 = vsel %vm247, %v238, 0
          %v324 = vsel %vm247, %v239, 0
          %v327 = vsel %vm247, %v240, 0
          %v330 = vsel %vm247, %v241, 0
          %v333 = vsel %vm247, %v242, 0
          %v336 = vsel %vm247, %v243, 0
          %v339 = vsel %vm247, %v244, 0
          %v342 = vsel %vm247, %v245, 0
          %v345 = vsel %vm247, %v246, 0
          %347 = vmatprep.subr.mxu0 0.0
          %v348 = vand.u32 %v252, 4294901760
          %349 = vmatpush1.xpose.msra.mxu0 %v348
          %350 = vmatprep.subr.mxu0 0.0
          %v351 = vand.u32 %v255, 4294901760
          %352 = vmatpush1.xpose.msra.mxu0 %v351
          %353 = vmatprep.subr.mxu0 0.0
          %v354 = vand.u32 %v258, 4294901760
          %355 = vmatpush1.xpose.msra.mxu0 %v354
          %356 = vmatprep.subr.mxu0 0.0
          %v357 = vand.u32 %v261, 4294901760
          %358 = vmatpush1.xpose.msra.mxu0 %v357
          %359 = vmatprep.subr.mxu0 0.0
          %v360 = vand.u32 %v264, 4294901760
          %361 = vmatpush1.xpose.msra.mxu0 %v360
          %362 = vmatprep.subr.mxu0 0.0
          %v363 = vand.u32 %v267, 4294901760
          %364 = vmatpush1.xpose.msra.mxu0 %v363
          %365 = vmatprep.subr.mxu0 0.0
          %v366 = vand.u32 %v270, 4294901760
          %367 = vmatpush1.xpose.msra.mxu0 %v366
          %368 = vmatprep.subr.mxu0 0.0
          %v369 = vand.u32 %v273, 4294901760
          %370 = vmatpush1.xpose.msra.mxu0 %v369
          %371 = vmatprep.subr.mxu0 0.0
          %v372 = vand.u32 %v276, 4294901760
          %373 = vmatpush1.xpose.msra.mxu0 %v372
          %374 = vmatprep.subr.mxu0 0.0
          %v375 = vand.u32 %v279, 4294901760
          %376 = vmatpush1.xpose.msra.mxu0 %v375
          %377 = vmatprep.subr.mxu0 0.0
          %v378 = vand.u32 %v282, 4294901760
          %379 = vmatpush1.xpose.msra.mxu0 %v378
          %380 = vmatprep.subr.mxu0 0.0
          %v381 = vand.u32 %v285, 4294901760
          %382 = vmatpush1.xpose.msra.mxu0 %v381
          %383 = vmatprep.subr.mxu0 0.0
          %v384 = vand.u32 %v288, 4294901760
          %385 = vmatpush1.xpose.msra.mxu0 %v384
          %386 = vmatprep.subr.mxu0 0.0
          %v387 = vand.u32 %v291, 4294901760
          %388 = vmatpush1.xpose.msra.mxu0 %v387
          %389 = vmatprep.subr.mxu0 0.0
          %v390 = vand.u32 %v294, 4294901760
          %391 = vmatpush1.xpose.msra.mxu0 %v390
          %392 = vmatprep.subr.mxu0 0.0
          %v393 = vand.u32 %v297, 4294901760
          %394 = vmatpush1.xpose.msra.mxu0 %v393
          %395 = vmatprep.subr.mxu0 0.0
          %v396 = vand.u32 %v300, 4294901760
          %397 = vmatpush1.xpose.msra.mxu0 %v396
          %398 = vmatprep.subr.mxu0 0.0
          %v399 = vand.u32 %v303, 4294901760
          %400 = vmatpush1.xpose.msra.mxu0 %v399
          %401 = vmatprep.subr.mxu0 0.0
          %v402 = vand.u32 %v306, 4294901760
          %403 = vmatpush1.xpose.msra.mxu0 %v402
          %404 = vmatprep.subr.mxu0 0.0
          %v405 = vand.u32 %v309, 4294901760
          %406 = vmatpush1.xpose.msra.mxu0 %v405
          %407 = vmatprep.subr.mxu0 0.0
          %v408 = vand.u32 %v312, 4294901760
          %409 = vmatpush1.xpose.msra.mxu0 %v408
          %410 = vmatprep.subr.mxu0 0.0
          %v411 = vand.u32 %v315, 4294901760
          %412 = vmatpush1.xpose.msra.mxu0 %v411
          %413 = vmatprep.subr.mxu0 0.0
          %v414 = vand.u32 %v318, 4294901760
          %415 = vmatpush1.xpose.msra.mxu0 %v414
          %416 = vmatprep.subr.mxu0 0.0
          %v417 = vand.u32 %v321, 4294901760
          %418 = vmatpush1.xpose.msra.mxu0 %v417
          %419 = vmatprep.subr.mxu0 0.0
          %v420 = vand.u32 %v324, 4294901760
          %421 = vmatpush1.xpose.msra.mxu0 %v420
          %422 = vmatprep.subr.mxu0 0.0
          %v423 = vand.u32 %v327, 4294901760
          %424 = vmatpush1.xpose.msra.mxu0 %v423
          %425 = vmatprep.subr.mxu0 0.0
          %v426 = vand.u32 %v330, 4294901760
          %427 = vmatpush1.xpose.msra.mxu0 %v426
          %428 = vmatprep.subr.mxu0 0.0
          %v429 = vand.u32 %v333, 4294901760
          %430 = vmatpush1.xpose.msra.mxu0 %v429
          %431 = vmatprep.subr.mxu0 0.0
          %v432 = vand.u32 %v336, 4294901760
          %433 = vmatpush1.xpose.msra.mxu0 %v432
          %434 = vmatprep.subr.mxu0 0.0
          %v435 = vand.u32 %v339, 4294901760
          %436 = vmatpush1.xpose.msra.mxu0 %v435
          %437 = vmatprep.subr.mxu0 0.0
          %v438 = vand.u32 %v342, 4294901760
          %439 = vmatpush1.xpose.msra.mxu0 %v438
          %440 = vmatprep.subr.mxu0 0.0
          %v441 = vand.u32 %v345, 4294901760
          %442 = vmatpush1.xpose.msra.mxu0 %v441
          %443 = vmatprep.mubr.f32.mxu0 0.0
          %v444 = vand.u32 %v249, 4294901760
          %v445 = vsub.f32 %v249, %v444
          %v446 = vand.u32 %v445, 4294901760
          %v447 = vsub.f32 %v445, %v446
          %v448 = vand.u32 %v447, 4294901760
          %449 = vmatmul.mubr.f32.gmra.mrb[0].mxu0 %v448
          %v450 = vpop.f32.mrb[0].mxu0
          %v451 = vadd.f32 0.0, %v450
          %v452 = vpop.f32.mrb[0].mxu0
          %v453 = vadd.f32 0.0, %v452
          %454 = vdwg.mxu0
          %455 = vmatprep.subr.mxu0 0.0
          %v456 = vand.u32 %v252, 4294901760
          %v457 = vsub.f32 %v252, %v456
          %v458 = vand.u32 %v457, 4294901760
          %v459 = vsub.f32 %v457, %v458
          %v460 = vand.u32 %v459, 4294901760
          %461 = vmatpush1.xpose.msra.mxu0 %v460
          %462 = vmatprep.subr.mxu0 0.0
          %v463 = vand.u32 %v255, 4294901760
          %v464 = vsub.f32 %v255, %v463
          %v465 = vand.u32 %v464, 4294901760
          %v466 = vsub.f32 %v464, %v465
          %v467 = vand.u32 %v466, 4294901760
          %468 = vmatpush1.xpose.msra.mxu0 %v467
          %469 = vmatprep.subr.mxu0 0.0
          %v470 = vand.u32 %v258, 4294901760
          %v471 = vsub.f32 %v258, %v470
          %v472 = vand.u32 %v471, 4294901760
          %v473 = vsub.f32 %v471, %v472
          %v474 = vand.u32 %v473, 4294901760
          %475 = vmatpush1.xpose.msra.mxu0 %v474
          %476 = vmatprep.subr.mxu0 0.0
          %v477 = vand.u32 %v261, 4294901760
          %v478 = vsub.f32 %v261, %v477
          %v479 = vand.u32 %v478, 4294901760
          %v480 = vsub.f32 %v478, %v479
          %v481 = vand.u32 %v480, 4294901760
          %482 = vmatpush1.xpose.msra.mxu0 %v481
          %483 = vmatprep.subr.mxu0 0.0
          %v484 = vand.u32 %v264, 4294901760
          %v485 = vsub.f32 %v264, %v484
          %v486 = vand.u32 %v485, 4294901760
          %v487 = vsub.f32 %v485, %v486
          %v488 = vand.u32 %v487, 4294901760
          %489 = vmatpush1.xpose.msra.mxu0 %v488
          %490 = vmatprep.subr.mxu0 0.0
          %v491 = vand.u32 %v267, 4294901760
          %v492 = vsub.f32 %v267, %v491
          %v493 = vand.u32 %v492, 4294901760
          %v494 = vsub.f32 %v492, %v493
          %v495 = vand.u32 %v494, 4294901760
          %496 = vmatpush1.xpose.msra.mxu0 %v495
          %497 = vmatprep.subr.mxu0 0.0
          %v498 = vand.u32 %v270, 4294901760
          %v499 = vsub.f32 %v270, %v498
          %v500 = vand.u32 %v499, 4294901760
          %v501 = vsub.f32 %v499, %v500
          %v502 = vand.u32 %v501, 4294901760
          %503 = vmatpush1.xpose.msra.mxu0 %v502
          %504 = vmatprep.subr.mxu0 0.0
          %v505 = vand.u32 %v273, 4294901760
          %v506 = vsub.f32 %v273, %v505
          %v507 = vand.u32 %v506, 4294901760
          %v508 = vsub.f32 %v506, %v507
          %v509 = vand.u32 %v508, 4294901760
          %510 = vmatpush1.xpose.msra.mxu0 %v509
          %511 = vmatprep.subr.mxu0 0.0
          %v512 = vand.u32 %v276, 4294901760
          %v513 = vsub.f32 %v276, %v512
          %v514 = vand.u32 %v513, 4294901760
          %v515 = vsub.f32 %v513, %v514
          %v516 = vand.u32 %v515, 4294901760
          %517 = vmatpush1.xpose.msra.mxu0 %v516
          %518 = vmatprep.subr.mxu0 0.0
          %v519 = vand.u32 %v279, 4294901760
          %v520 = vsub.f32 %v279, %v519
          %v521 = vand.u32 %v520, 4294901760
          %v522 = vsub.f32 %v520, %v521
          %v523 = vand.u32 %v522, 4294901760
          %524 = vmatpush1.xpose.msra.mxu0 %v523
          %525 = vmatprep.subr.mxu0 0.0
          %v526 = vand.u32 %v282, 4294901760
          %v527 = vsub.f32 %v282, %v526
          %v528 = vand.u32 %v527, 4294901760
          %v529 = vsub.f32 %v527, %v528
          %v530 = vand.u32 %v529, 4294901760
          %531 = vmatpush1.xpose.msra.mxu0 %v530
          %532 = vmatprep.subr.mxu0 0.0
          %v533 = vand.u32 %v285, 4294901760
          %v534 = vsub.f32 %v285, %v533
          %v535 = vand.u32 %v534, 4294901760
          %v536 = vsub.f32 %v534, %v535
          %v537 = vand.u32 %v536, 4294901760
          %538 = vmatpush1.xpose.msra.mxu0 %v537
          %539 = vmatprep.subr.mxu0 0.0
          %v540 = vand.u32 %v288, 4294901760
          %v541 = vsub.f32 %v288, %v540
          %v542 = vand.u32 %v541, 4294901760
          %v543 = vsub.f32 %v541, %v542
          %v544 = vand.u32 %v543, 4294901760
          %545 = vmatpush1.xpose.msra.mxu0 %v544
          %546 = vmatprep.subr.mxu0 0.0
          %v547 = vand.u32 %v291, 4294901760
          %v548 = vsub.f32 %v291, %v547
          %v549 = vand.u32 %v548, 4294901760
          %v550 = vsub.f32 %v548, %v549
          %v551 = vand.u32 %v550, 4294901760
          %552 = vmatpush1.xpose.msra.mxu0 %v551
          %553 = vmatprep.subr.mxu0 0.0
          %v554 = vand.u32 %v294, 4294901760
          %v555 = vsub.f32 %v294, %v554
          %v556 = vand.u32 %v555, 4294901760
          %v557 = vsub.f32 %v555, %v556
          %v558 = vand.u32 %v557, 4294901760
          %559 = vmatpush1.xpose.msra.mxu0 %v558
          %560 = vmatprep.subr.mxu0 0.0
          %v561 = vand.u32 %v297, 4294901760
          %v562 = vsub.f32 %v297, %v561
          %v563 = vand.u32 %v562, 4294901760
          %v564 = vsub.f32 %v562, %v563
          %v565 = vand.u32 %v564, 4294901760
          %566 = vmatpush1.xpose.msra.mxu0 %v565
          %567 = vmatprep.subr.mxu0 0.0
          %v568 = vand.u32 %v300, 4294901760
          %v569 = vsub.f32 %v300, %v568
          %v570 = vand.u32 %v569, 4294901760
          %v571 = vsub.f32 %v569, %v570
          %v572 = vand.u32 %v571, 4294901760
          %573 = vmatpush1.xpose.msra.mxu0 %v572
          %574 = vmatprep.subr.mxu0 0.0
          %v575 = vand.u32 %v303, 4294901760
          %v576 = vsub.f32 %v303, %v575
          %v577 = vand.u32 %v576, 4294901760
          %v578 = vsub.f32 %v576, %v577
          %v579 = vand.u32 %v578, 4294901760
          %580 = vmatpush1.xpose.msra.mxu0 %v579
          %581 = vmatprep.subr.mxu0 0.0
          %v582 = vand.u32 %v306, 4294901760
          %v583 = vsub.f32 %v306, %v582
          %v584 = vand.u32 %v583, 4294901760
          %v585 = vsub.f32 %v583, %v584
          %v586 = vand.u32 %v585, 4294901760
          %587 = vmatpush1.xpose.msra.mxu0 %v586
          %588 = vmatprep.subr.mxu0 0.0
          %v589 = vand.u32 %v309, 4294901760
          %v590 = vsub.f32 %v309, %v589
          %v591 = vand.u32 %v590, 4294901760
          %v592 = vsub.f32 %v590, %v591
          %v593 = vand.u32 %v592, 4294901760
          %594 = vmatpush1.xpose.msra.mxu0 %v593
          %595 = vmatprep.subr.mxu0 0.0
          %v596 = vand.u32 %v312, 4294901760
          %v597 = vsub.f32 %v312, %v596
          %v598 = vand.u32 %v597, 4294901760
          %v599 = vsub.f32 %v597, %v598
          %v600 = vand.u32 %v599, 4294901760
          %601 = vmatpush1.xpose.msra.mxu0 %v600
          %602 = vmatprep.subr.mxu0 0.0
          %v603 = vand.u32 %v315, 4294901760
          %v604 = vsub.f32 %v315, %v603
          %v605 = vand.u32 %v604, 4294901760
          %v606 = vsub.f32 %v604, %v605
          %v607 = vand.u32 %v606, 4294901760
          %608 = vmatpush1.xpose.msra.mxu0 %v607
          %609 = vmatprep.subr.mxu0 0.0
          %v610 = vand.u32 %v318, 4294901760
          %v611 = vsub.f32 %v318, %v610
          %v612 = vand.u32 %v611, 4294901760
          %v613 = vsub.f32 %v611, %v612
          %v614 = vand.u32 %v613, 4294901760
          %615 = vmatpush1.xpose.msra.mxu0 %v614
          %616 = vmatprep.subr.mxu0 0.0
          %v617 = vand.u32 %v321, 4294901760
          %v618 = vsub.f32 %v321, %v617
          %v619 = vand.u32 %v618, 4294901760
          %v620 = vsub.f32 %v618, %v619
          %v621 = vand.u32 %v620, 4294901760
          %622 = vmatpush1.xpose.msra.mxu0 %v621
          %623 = vmatprep.subr.mxu0 0.0
          %v624 = vand.u32 %v324, 4294901760
          %v625 = vsub.f32 %v324, %v624
          %v626 = vand.u32 %v625, 4294901760
          %v627 = vsub.f32 %v625, %v626
          %v628 = vand.u32 %v627, 4294901760
          %629 = vmatpush1.xpose.msra.mxu0 %v628
          %630 = vmatprep.subr.mxu0 0.0
          %v631 = vand.u32 %v327, 4294901760
          %v632 = vsub.f32 %v327, %v631
          %v633 = vand.u32 %v632, 4294901760
          %v634 = vsub.f32 %v632, %v633
          %v635 = vand.u32 %v634, 4294901760
          %636 = vmatpush1.xpose.msra.mxu0 %v635
          %637 = vmatprep.subr.mxu0 0.0
          %v638 = vand.u32 %v330, 4294901760
          %v639 = vsub.f32 %v330, %v638
          %v640 = vand.u32 %v639, 4294901760
          %v641 = vsub.f32 %v639, %v640
          %v642 = vand.u32 %v641, 4294901760
          %643 = vmatpush1.xpose.msra.mxu0 %v642
          %644 = vmatprep.subr.mxu0 0.0
          %v645 = vand.u32 %v333, 4294901760
          %v646 = vsub.f32 %v333, %v645
          %v647 = vand.u32 %v646, 4294901760
          %v648 = vsub.f32 %v646, %v647
          %v649 = vand.u32 %v648, 4294901760
          %650 = vmatpush1.xpose.msra.mxu0 %v649
          %651 = vmatprep.subr.mxu0 0.0
          %v652 = vand.u32 %v336, 4294901760
          %v653 = vsub.f32 %v336, %v652
          %v654 = vand.u32 %v653, 4294901760
          %v655 = vsub.f32 %v653, %v654
          %v656 = vand.u32 %v655, 4294901760
          %657 = vmatpush1.xpose.msra.mxu0 %v656
          %658 = vmatprep.subr.mxu0 0.0
          %v659 = vand.u32 %v339, 4294901760
          %v660 = vsub.f32 %v339, %v659
          %v661 = vand.u32 %v660, 4294901760
          %v662 = vsub.f32 %v660, %v661
          %v663 = vand.u32 %v662, 4294901760
          %664 = vmatpush1.xpose.msra.mxu0 %v663
          %665 = vmatprep.subr.mxu0 0.0
          %v666 = vand.u32 %v342, 4294901760
          %v667 = vsub.f32 %v342, %v666
          %v668 = vand.u32 %v667, 4294901760
          %v669 = vsub.f32 %v667, %v668
          %v670 = vand.u32 %v669, 4294901760
          %671 = vmatpush1.xpose.msra.mxu0 %v670
          %672 = vmatprep.subr.mxu0 0.0
          %v673 = vand.u32 %v345, 4294901760
          %v674 = vsub.f32 %v345, %v673
          %v675 = vand.u32 %v674, 4294901760
          %v676 = vsub.f32 %v674, %v675
          %v677 = vand.u32 %v676, 4294901760
          %678 = vmatpush1.xpose.msra.mxu0 %v677
          %679 = vmatprep.mubr.f32.mxu0 0.0
          %v680 = vand.u32 %v249, 4294901760
          %681 = vmatmul.mubr.f32.gmra.mrb[0].mxu0 %v680
          %v682 = vpop.f32.mrb[0].mxu0
          %v683 = vadd.f32 %v451, %v682
          %v684 = vpop.f32.mrb[0].mxu0
          %v685 = vadd.f32 %v453, %v684
          %686 = vdwg.mxu0
          %687 = vmatprep.subr.mxu0 0.0
          %v688 = vand.u32 %v252, 4294901760
          %v689 = vsub.f32 %v252, %v688
          %690 = vmatpush1.xpose.msra.mxu0 %v689
          %691 = vmatprep.subr.mxu0 0.0
          %v692 = vand.u32 %v255, 4294901760
          %v693 = vsub.f32 %v255, %v692
          %694 = vmatpush1.xpose.msra.mxu0 %v693
          %695 = vmatprep.subr.mxu0 0.0
          %v696 = vand.u32 %v258, 4294901760
          %v697 = vsub.f32 %v258, %v696
          %698 = vmatpush1.xpose.msra.mxu0 %v697
          %699 = vmatprep.subr.mxu0 0.0
          %v700 = vand.u32 %v261, 4294901760
          %v701 = vsub.f32 %v261, %v700
          %702 = vmatpush1.xpose.msra.mxu0 %v701
          %703 = vmatprep.subr.mxu0 0.0
          %v704 = vand.u32 %v264, 4294901760
          %v705 = vsub.f32 %v264, %v704
          %706 = vmatpush1.xpose.msra.mxu0 %v705
          %707 = vmatprep.subr.mxu0 0.0
          %v708 = vand.u32 %v267, 4294901760
          %v709 = vsub.f32 %v267, %v708
          %710 = vmatpush1.xpose.msra.mxu0 %v709
          %711 = vmatprep.subr.mxu0 0.0
          %v712 = vand.u32 %v270, 4294901760
          %v713 = vsub.f32 %v270, %v712
          %714 = vmatpush1.xpose.msra.mxu0 %v713
          %715 = vmatprep.subr.mxu0 0.0
          %v716 = vand.u32 %v273, 4294901760
          %v717 = vsub.f32 %v273, %v716
          %718 = vmatpush1.xpose.msra.mxu0 %v717
          %719 = vmatprep.subr.mxu0 0.0
          %v720 = vand.u32 %v276, 4294901760
          %v721 = vsub.f32 %v276, %v720
          %722 = vmatpush1.xpose.msra.mxu0 %v721
          %723 = vmatprep.subr.mxu0 0.0
          %v724 = vand.u32 %v279, 4294901760
          %v725 = vsub.f32 %v279, %v724
          %726 = vmatpush1.xpose.msra.mxu0 %v725
          %727 = vmatprep.subr.mxu0 0.0
          %v728 = vand.u32 %v282, 4294901760
          %v729 = vsub.f32 %v282, %v728
          %730 = vmatpush1.xpose.msra.mxu0 %v729
          %731 = vmatprep.subr.mxu0 0.0
          %v732 = vand.u32 %v285, 4294901760
          %v733 = vsub.f32 %v285, %v732
          %734 = vmatpush1.xpose.msra.mxu0 %v733
          %735 = vmatprep.subr.mxu0 0.0
          %v736 = vand.u32 %v288, 4294901760
          %v737 = vsub.f32 %v288, %v736
          %738 = vmatpush1.xpose.msra.mxu0 %v737
          %739 = vmatprep.subr.mxu0 0.0
          %v740 = vand.u32 %v291, 4294901760
          %v741 = vsub.f32 %v291, %v740
          %742 = vmatpush1.xpose.msra.mxu0 %v741
          %743 = vmatprep.subr.mxu0 0.0
          %v744 = vand.u32 %v294, 4294901760
          %v745 = vsub.f32 %v294, %v744
          %746 = vmatpush1.xpose.msra.mxu0 %v745
          %747 = vmatprep.subr.mxu0 0.0
          %v748 = vand.u32 %v297, 4294901760
          %v749 = vsub.f32 %v297, %v748
          %750 = vmatpush1.xpose.msra.mxu0 %v749
          %751 = vmatprep.subr.mxu0 0.0
          %v752 = vand.u32 %v300, 4294901760
          %v753 = vsub.f32 %v300, %v752
          %754 = vmatpush1.xpose.msra.mxu0 %v753
          %755 = vmatprep.subr.mxu0 0.0
          %v756 = vand.u32 %v303, 4294901760
          %v757 = vsub.f32 %v303, %v756
          %758 = vmatpush1.xpose.msra.mxu0 %v757
          %759 = vmatprep.subr.mxu0 0.0
          %v760 = vand.u32 %v306, 4294901760
          %v761 = vsub.f32 %v306, %v760
          %762 = vmatpush1.xpose.msra.mxu0 %v761
          %763 = vmatprep.subr.mxu0 0.0
          %v764 = vand.u32 %v309, 4294901760
          %v765 = vsub.f32 %v309, %v764
          %766 = vmatpush1.xpose.msra.mxu0 %v765
          %767 = vmatprep.subr.mxu0 0.0
          %v768 = vand.u32 %v312, 4294901760
          %v769 = vsub.f32 %v312, %v768
          %770 = vmatpush1.xpose.msra.mxu0 %v769
          %771 = vmatprep.subr.mxu0 0.0
          %v772 = vand.u32 %v315, 4294901760
          %v773 = vsub.f32 %v315, %v772
          %774 = vmatpush1.xpose.msra.mxu0 %v773
          %775 = vmatprep.subr.mxu0 0.0
          %v776 = vand.u32 %v318, 4294901760
          %v777 = vsub.f32 %v318, %v776
          %778 = vmatpush1.xpose.msra.mxu0 %v777
          %779 = vmatprep.subr.mxu0 0.0
          %v780 = vand.u32 %v321, 4294901760
          %v781 = vsub.f32 %v321, %v780
          %782 = vmatpush1.xpose.msra.mxu0 %v781
          %783 = vmatprep.subr.mxu0 0.0
          %v784 = vand.u32 %v324, 4294901760
          %v785 = vsub.f32 %v324, %v784
          %786 = vmatpush1.xpose.msra.mxu0 %v785
          %787 = vmatprep.subr.mxu0 0.0
          %v788 = vand.u32 %v327, 4294901760
          %v789 = vsub.f32 %v327, %v788
          %790 = vmatpush1.xpose.msra.mxu0 %v789
          %791 = vmatprep.subr.mxu0 0.0
          %v792 = vand.u32 %v330, 4294901760
          %v793 = vsub.f32 %v330, %v792
          %794 = vmatpush1.xpose.msra.mxu0 %v793
          %795 = vmatprep.subr.mxu0 0.0
          %v796 = vand.u32 %v333, 4294901760
          %v797 = vsub.f32 %v333, %v796
          %798 = vmatpush1.xpose.msra.mxu0 %v797
          %799 = vmatprep.subr.mxu0 0.0
          %v800 = vand.u32 %v336, 4294901760
          %v801 = vsub.f32 %v336, %v800
          %802 = vmatpush1.xpose.msra.mxu0 %v801
          %803 = vmatprep.subr.mxu0 0.0
          %v804 = vand.u32 %v339, 4294901760
          %v805 = vsub.f32 %v339, %v804
          %806 = vmatpush1.xpose.msra.mxu0 %v805
          %807 = vmatprep.subr.mxu0 0.0
          %v808 = vand.u32 %v342, 4294901760
          %v809 = vsub.f32 %v342, %v808
          %810 = vmatpush1.xpose.msra.mxu0 %v809
          %811 = vmatprep.subr.mxu0 0.0
          %v812 = vand.u32 %v345, 4294901760
          %v813 = vsub.f32 %v345, %v812
          %814 = vmatpush1.xpose.msra.mxu0 %v813
          %815 = vmatprep.mubr.f32.mxu0 0.0
          %v816 = vand.u32 %v249, 4294901760
          %v817 = vsub.f32 %v249, %v816
          %818 = vmatmul.mubr.f32.gmra.mrb[0].mxu0 %v817
          %v819 = vpop.f32.mrb[0].mxu0
          %v820 = vadd.f32 %v683, %v819
          %v821 = vpop.f32.mrb[0].mxu0
          %v822 = vadd.f32 %v685, %v821
          %823 = vdwg.mxu0
          %824 = vmatprep.subr.mxu0 0.0
          %v825 = vand.u32 %v252, 4294901760
          %826 = vmatpush1.xpose.msra.mxu0 %v825
          %827 = vmatprep.subr.mxu0 0.0
          %v828 = vand.u32 %v255, 4294901760
          %829 = vmatpush1.xpose.msra.mxu0 %v828
          %830 = vmatprep.subr.mxu0 0.0
          %v831 = vand.u32 %v258, 4294901760
          %832 = vmatpush1.xpose.msra.mxu0 %v831
          %833 = vmatprep.subr.mxu0 0.0
          %v834 = vand.u32 %v261, 4294901760
          %835 = vmatpush1.xpose.msra.mxu0 %v834
          %836 = vmatprep.subr.mxu0 0.0
          %v837 = vand.u32 %v264, 4294901760
          %838 = vmatpush1.xpose.msra.mxu0 %v837
          %839 = vmatprep.subr.mxu0 0.0
          %v840 = vand.u32 %v267, 4294901760
          %841 = vmatpush1.xpose.msra.mxu0 %v840
          %842 = vmatprep.subr.mxu0 0.0
          %v843 = vand.u32 %v270, 4294901760
          %844 = vmatpush1.xpose.msra.mxu0 %v843
          %845 = vmatprep.subr.mxu0 0.0
          %v846 = vand.u32 %v273, 4294901760
          %847 = vmatpush1.xpose.msra.mxu0 %v846
          %848 = vmatprep.subr.mxu0 0.0
          %v849 = vand.u32 %v276, 4294901760
          %850 = vmatpush1.xpose.msra.mxu0 %v849
          %851 = vmatprep.subr.mxu0 0.0
          %v852 = vand.u32 %v279, 4294901760
          %853 = vmatpush1.xpose.msra.mxu0 %v852
          %854 = vmatprep.subr.mxu0 0.0
          %v855 = vand.u32 %v282, 4294901760
          %856 = vmatpush1.xpose.msra.mxu0 %v855
          %857 = vmatprep.subr.mxu0 0.0
          %v858 = vand.u32 %v285, 4294901760
          %859 = vmatpush1.xpose.msra.mxu0 %v858
          %860 = vmatprep.subr.mxu0 0.0
          %v861 = vand.u32 %v288, 4294901760
          %862 = vmatpush1.xpose.msra.mxu0 %v861
          %863 = vmatprep.subr.mxu0 0.0
          %v864 = vand.u32 %v291, 4294901760
          %865 = vmatpush1.xpose.msra.mxu0 %v864
          %866 = vmatprep.subr.mxu0 0.0
          %v867 = vand.u32 %v294, 4294901760
          %868 = vmatpush1.xpose.msra.mxu0 %v867
          %869 = vmatprep.subr.mxu0 0.0
          %v870 = vand.u32 %v297, 4294901760
          %871 = vmatpush1.xpose.msra.mxu0 %v870
          %872 = vmatprep.subr.mxu0 0.0
          %v873 = vand.u32 %v300, 4294901760
          %874 = vmatpush1.xpose.msra.mxu0 %v873
          %875 = vmatprep.subr.mxu0 0.0
          %v876 = vand.u32 %v303, 4294901760
          %877 = vmatpush1.xpose.msra.mxu0 %v876
          %878 = vmatprep.subr.mxu0 0.0
          %v879 = vand.u32 %v306, 4294901760
          %880 = vmatpush1.xpose.msra.mxu0 %v879
          %881 = vmatprep.subr.mxu0 0.0
          %v882 = vand.u32 %v309, 4294901760
          %883 = vmatpush1.xpose.msra.mxu0 %v882
          %884 = vmatprep.subr.mxu0 0.0
          %v885 = vand.u32 %v312, 4294901760
          %886 = vmatpush1.xpose.msra.mxu0 %v885
          %887 = vmatprep.subr.mxu0 0.0
          %v888 = vand.u32 %v315, 4294901760
          %889 = vmatpush1.xpose.msra.mxu0 %v888
          %890 = vmatprep.subr.mxu0 0.0
          %v891 = vand.u32 %v318, 4294901760
          %892 = vmatpush1.xpose.msra.mxu0 %v891
          %893 = vmatprep.subr.mxu0 0.0
          %v894 = vand.u32 %v321, 4294901760
          %895 = vmatpush1.xpose.msra.mxu0 %v894
          %896 = vmatprep.subr.mxu0 0.0
          %v897 = vand.u32 %v324, 4294901760
          %898 = vmatpush1.xpose.msra.mxu0 %v897
          %899 = vmatprep.subr.mxu0 0.0
          %v900 = vand.u32 %v327, 4294901760
          %901 = vmatpush1.xpose.msra.mxu0 %v900
          %902 = vmatprep.subr.mxu0 0.0
          %v903 = vand.u32 %v330, 4294901760
          %904 = vmatpush1.xpose.msra.mxu0 %v903
          %905 = vmatprep.subr.mxu0 0.0
          %v906 = vand.u32 %v333, 4294901760
          %907 = vmatpush1.xpose.msra.mxu0 %v906
          %908 = vmatprep.subr.mxu0 0.0
          %v909 = vand.u32 %v336, 4294901760
          %910 = vmatpush1.xpose.msra.mxu0 %v909
          %911 = vmatprep.subr.mxu0 0.0
          %v912 = vand.u32 %v339, 4294901760
          %913 = vmatpush1.xpose.msra.mxu0 %v912
          %914 = vmatprep.subr.mxu0 0.0
          %v915 = vand.u32 %v342, 4294901760
          %916 = vmatpush1.xpose.msra.mxu0 %v915
          %917 = vmatprep.subr.mxu0 0.0
          %v918 = vand.u32 %v345, 4294901760
          %919 = vmatpush1.xpose.msra.mxu0 %v918
          %920 = vmatprep.mubr.f32.mxu0 0.0
          %v921 = vand.u32 %v249, 4294901760
          %v922 = vsub.f32 %v249, %v921
          %v923 = vand.u32 %v922, 4294901760
          %924 = vmatmul.mubr.f32.gmra.mrb[0].mxu0 %v923
          %v925 = vpop.f32.mrb[0].mxu0
          %v926 = vadd.f32 %v820, %v925
          %v927 = vpop.f32.mrb[0].mxu0
          %v928 = vadd.f32 %v822, %v927
          %929 = vdwg.mxu0
          %930 = vmatprep.subr.mxu0 0.0
          %v931 = vand.u32 %v252, 4294901760
          %v932 = vsub.f32 %v252, %v931
          %v933 = vand.u32 %v932, 4294901760
          %934 = vmatpush1.xpose.msra.mxu0 %v933
          %935 = vmatprep.subr.mxu0 0.0
          %v936 = vand.u32 %v255, 4294901760
          %v937 = vsub.f32 %v255, %v936
          %v938 = vand.u32 %v937, 4294901760
          %939 = vmatpush1.xpose.msra.mxu0 %v938
          %940 = vmatprep.subr.mxu0 0.0
          %v941 = vand.u32 %v258, 4294901760
          %v942 = vsub.f32 %v258, %v941
          %v943 = vand.u32 %v942, 4294901760
          %944 = vmatpush1.xpose.msra.mxu0 %v943
          %945 = vmatprep.subr.mxu0 0.0
          %v946 = vand.u32 %v261, 4294901760
          %v947 = vsub.f32 %v261, %v946
          %v948 = vand.u32 %v947, 4294901760
          %949 = vmatpush1.xpose.msra.mxu0 %v948
          %950 = vmatprep.subr.mxu0 0.0
          %v951 = vand.u32 %v264, 4294901760
          %v952 = vsub.f32 %v264, %v951
          %v953 = vand.u32 %v952, 4294901760
          %954 = vmatpush1.xpose.msra.mxu0 %v953
          %955 = vmatprep.subr.mxu0 0.0
          %v956 = vand.u32 %v267, 4294901760
          %v957 = vsub.f32 %v267, %v956
          %v958 = vand.u32 %v957, 4294901760
          %959 = vmatpush1.xpose.msra.mxu0 %v958
          %960 = vmatprep.subr.mxu0 0.0
          %v961 = vand.u32 %v270, 4294901760
          %v962 = vsub.f32 %v270, %v961
          %v963 = vand.u32 %v962, 4294901760
          %964 = vmatpush1.xpose.msra.mxu0 %v963
          %965 = vmatprep.subr.mxu0 0.0
          %v966 = vand.u32 %v273, 4294901760
          %v967 = vsub.f32 %v273, %v966
          %v968 = vand.u32 %v967, 4294901760
          %969 = vmatpush1.xpose.msra.mxu0 %v968
          %970 = vmatprep.subr.mxu0 0.0
          %v971 = vand.u32 %v276, 4294901760
          %v972 = vsub.f32 %v276, %v971
          %v973 = vand.u32 %v972, 4294901760
          %974 = vmatpush1.xpose.msra.mxu0 %v973
          %975 = vmatprep.subr.mxu0 0.0
          %v976 = vand.u32 %v279, 4294901760
          %v977 = vsub.f32 %v279, %v976
          %v978 = vand.u32 %v977, 4294901760
          %979 = vmatpush1.xpose.msra.mxu0 %v978
          %980 = vmatprep.subr.mxu0 0.0
          %v981 = vand.u32 %v282, 4294901760
          %v982 = vsub.f32 %v282, %v981
          %v983 = vand.u32 %v982, 4294901760
          %984 = vmatpush1.xpose.msra.mxu0 %v983
          %985 = vmatprep.subr.mxu0 0.0
          %v986 = vand.u32 %v285, 4294901760
          %v987 = vsub.f32 %v285, %v986
          %v988 = vand.u32 %v987, 4294901760
          %989 = vmatpush1.xpose.msra.mxu0 %v988
          %990 = vmatprep.subr.mxu0 0.0
          %v991 = vand.u32 %v288, 4294901760
          %v992 = vsub.f32 %v288, %v991
          %v993 = vand.u32 %v992, 4294901760
          %994 = vmatpush1.xpose.msra.mxu0 %v993
          %995 = vmatprep.subr.mxu0 0.0
          %v996 = vand.u32 %v291, 4294901760
          %v997 = vsub.f32 %v291, %v996
          %v998 = vand.u32 %v997, 4294901760
          %999 = vmatpush1.xpose.msra.mxu0 %v998
          %1000 = vmatprep.subr.mxu0 0.0
          %v1001 = vand.u32 %v294, 4294901760
          %v1002 = vsub.f32 %v294, %v1001
          %v1003 = vand.u32 %v1002, 4294901760
          %1004 = vmatpush1.xpose.msra.mxu0 %v1003
          %1005 = vmatprep.subr.mxu0 0.0
          %v1006 = vand.u32 %v297, 4294901760
          %v1007 = vsub.f32 %v297, %v1006
          %v1008 = vand.u32 %v1007, 4294901760
          %1009 = vmatpush1.xpose.msra.mxu0 %v1008
          %1010 = vmatprep.subr.mxu0 0.0
          %v1011 = vand.u32 %v300, 4294901760
          %v1012 = vsub.f32 %v300, %v1011
          %v1013 = vand.u32 %v1012, 4294901760
          %1014 = vmatpush1.xpose.msra.mxu0 %v1013
          %1015 = vmatprep.subr.mxu0 0.0
          %v1016 = vand.u32 %v303, 4294901760
          %v1017 = vsub.f32 %v303, %v1016
          %v1018 = vand.u32 %v1017, 4294901760
          %1019 = vmatpush1.xpose.msra.mxu0 %v1018
          %1020 = vmatprep.subr.mxu0 0.0
          %v1021 = vand.u32 %v306, 4294901760
          %v1022 = vsub.f32 %v306, %v1021
          %v1023 = vand.u32 %v1022, 4294901760
          %1024 = vmatpush1.xpose.msra.mxu0 %v1023
          %1025 = vmatprep.subr.mxu0 0.0
          %v1026 = vand.u32 %v309, 4294901760
          %v1027 = vsub.f32 %v309, %v1026
          %v1028 = vand.u32 %v1027, 4294901760
          %1029 = vmatpush1.xpose.msra.mxu0 %v1028
          %1030 = vmatprep.subr.mxu0 0.0
          %v1031 = vand.u32 %v312, 4294901760
          %v1032 = vsub.f32 %v312, %v1031
          %v1033 = vand.u32 %v1032, 4294901760
          %1034 = vmatpush1.xpose.msra.mxu0 %v1033
          %1035 = vmatprep.subr.mxu0 0.0
          %v1036 = vand.u32 %v315, 4294901760
          %v1037 = vsub.f32 %v315, %v1036
          %v1038 = vand.u32 %v1037, 4294901760
          %1039 = vmatpush1.xpose.msra.mxu0 %v1038
          %1040 = vmatprep.subr.mxu0 0.0
          %v1041 = vand.u32 %v318, 4294901760
          %v1042 = vsub.f32 %v318, %v1041
          %v1043 = vand.u32 %v1042, 4294901760
          %1044 = vmatpush1.xpose.msra.mxu0 %v1043
          %1045 = vmatprep.subr.mxu0 0.0
          %v1046 = vand.u32 %v321, 4294901760
          %v1047 = vsub.f32 %v321, %v1046
          %v1048 = vand.u32 %v1047, 4294901760
          %1049 = vmatpush1.xpose.msra.mxu0 %v1048
          %1050 = vmatprep.subr.mxu0 0.0
          %v1051 = vand.u32 %v324, 4294901760
          %v1052 = vsub.f32 %v324, %v1051
          %v1053 = vand.u32 %v1052, 4294901760
          %1054 = vmatpush1.xpose.msra.mxu0 %v1053
          %1055 = vmatprep.subr.mxu0 0.0
          %v1056 = vand.u32 %v327, 4294901760
          %v1057 = vsub.f32 %v327, %v1056
          %v1058 = vand.u32 %v1057, 4294901760
          %1059 = vmatpush1.xpose.msra.mxu0 %v1058
          %1060 = vmatprep.subr.mxu0 0.0
          %v1061 = vand.u32 %v330, 4294901760
          %v1062 = vsub.f32 %v330, %v1061
          %v1063 = vand.u32 %v1062, 4294901760
          %1064 = vmatpush1.xpose.msra.mxu0 %v1063
          %1065 = vmatprep.subr.mxu0 0.0
          %v1066 = vand.u32 %v333, 4294901760
          %v1067 = vsub.f32 %v333, %v1066
          %v1068 = vand.u32 %v1067, 4294901760
          %1069 = vmatpush1.xpose.msra.mxu0 %v1068
          %1070 = vmatprep.subr.mxu0 0.0
          %v1071 = vand.u32 %v336, 4294901760
          %v1072 = vsub.f32 %v336, %v1071
          %v1073 = vand.u32 %v1072, 4294901760
          %1074 = vmatpush1.xpose.msra.mxu0 %v1073
          %1075 = vmatprep.subr.mxu0 0.0
          %v1076 = vand.u32 %v339, 4294901760
          %v1077 = vsub.f32 %v339, %v1076
          %v1078 = vand.u32 %v1077, 4294901760
          %1079 = vmatpush1.xpose.msra.mxu0 %v1078
          %1080 = vmatprep.subr.mxu0 0.0
          %v1081 = vand.u32 %v342, 4294901760
          %v1082 = vsub.f32 %v342, %v1081
          %v1083 = vand.u32 %v1082, 4294901760
          %1084 = vmatpush1.xpose.msra.mxu0 %v1083
          %1085 = vmatprep.subr.mxu0 0.0
          %v1086 = vand.u32 %v345, 4294901760
          %v1087 = vsub.f32 %v345, %v1086
          %v1088 = vand.u32 %v1087, 4294901760
          %1089 = vmatpush1.xpose.msra.mxu0 %v1088
          %1090 = vmatprep.mubr.f32.mxu0 0.0
          %v1091 = vand.u32 %v249, 4294901760
          %1092 = vmatmul.mubr.f32.gmra.mrb[0].mxu0 %v1091
          %v1093 = vpop.f32.mrb[0].mxu0
          %v1094 = vadd.f32 %v926, %v1093
          %v1095 = vpop.f32.mrb[0].mxu0
          %v1096 = vadd.f32 %v928, %v1095
          %1097 = vdwg.mxu0
          %1098 = vmatprep.subr.mxu0 0.0
          %v1099 = vand.u32 %v252, 4294901760
          %1100 = vmatpush1.xpose.msra.mxu0 %v1099
          %1101 = vmatprep.subr.mxu0 0.0
          %v1102 = vand.u32 %v255, 4294901760
          %1103 = vmatpush1.xpose.msra.mxu0 %v1102
          %1104 = vmatprep.subr.mxu0 0.0
          %v1105 = vand.u32 %v258, 4294901760
          %1106 = vmatpush1.xpose.msra.mxu0 %v1105
          %1107 = vmatprep.subr.mxu0 0.0
          %v1108 = vand.u32 %v261, 4294901760
          %1109 = vmatpush1.xpose.msra.mxu0 %v1108
          %1110 = vmatprep.subr.mxu0 0.0
          %v1111 = vand.u32 %v264, 4294901760
          %1112 = vmatpush1.xpose.msra.mxu0 %v1111
          %1113 = vmatprep.subr.mxu0 0.0
          %v1114 = vand.u32 %v267, 4294901760
          %1115 = vmatpush1.xpose.msra.mxu0 %v1114
          %1116 = vmatprep.subr.mxu0 0.0
          %v1117 = vand.u32 %v270, 4294901760
          %1118 = vmatpush1.xpose.msra.mxu0 %v1117
          %1119 = vmatprep.subr.mxu0 0.0
          %v1120 = vand.u32 %v273, 4294901760
          %1121 = vmatpush1.xpose.msra.mxu0 %v1120
          %1122 = vmatprep.subr.mxu0 0.0
          %v1123 = vand.u32 %v276, 4294901760
          %1124 = vmatpush1.xpose.msra.mxu0 %v1123
          %1125 = vmatprep.subr.mxu0 0.0
          %v1126 = vand.u32 %v279, 4294901760
          %1127 = vmatpush1.xpose.msra.mxu0 %v1126
          %1128 = vmatprep.subr.mxu0 0.0
          %v1129 = vand.u32 %v282, 4294901760
          %1130 = vmatpush1.xpose.msra.mxu0 %v1129
          %1131 = vmatprep.subr.mxu0 0.0
          %v1132 = vand.u32 %v285, 4294901760
          %1133 = vmatpush1.xpose.msra.mxu0 %v1132
          %1134 = vmatprep.subr.mxu0 0.0
          %v1135 = vand.u32 %v288, 4294901760
          %1136 = vmatpush1.xpose.msra.mxu0 %v1135
          %1137 = vmatprep.subr.mxu0 0.0
          %v1138 = vand.u32 %v291, 4294901760
          %1139 = vmatpush1.xpose.msra.mxu0 %v1138
          %1140 = vmatprep.subr.mxu0 0.0
          %v1141 = vand.u32 %v294, 4294901760
          %1142 = vmatpush1.xpose.msra.mxu0 %v1141
          %1143 = vmatprep.subr.mxu0 0.0
          %v1144 = vand.u32 %v297, 4294901760
          %1145 = vmatpush1.xpose.msra.mxu0 %v1144
          %1146 = vmatprep.subr.mxu0 0.0
          %v1147 = vand.u32 %v300, 4294901760
          %1148 = vmatpush1.xpose.msra.mxu0 %v1147
          %1149 = vmatprep.subr.mxu0 0.0
          %v1150 = vand.u32 %v303, 4294901760
          %1151 = vmatpush1.xpose.msra.mxu0 %v1150
          %1152 = vmatprep.subr.mxu0 0.0
          %v1153 = vand.u32 %v306, 4294901760
          %1154 = vmatpush1.xpose.msra.mxu0 %v1153
          %1155 = vmatprep.subr.mxu0 0.0
          %v1156 = vand.u32 %v309, 4294901760
          %1157 = vmatpush1.xpose.msra.mxu0 %v1156
          %1158 = vmatprep.subr.mxu0 0.0
          %v1159 = vand.u32 %v312, 4294901760
          %1160 = vmatpush1.xpose.msra.mxu0 %v1159
          %1161 = vmatprep.subr.mxu0 0.0
          %v1162 = vand.u32 %v315, 4294901760
          %1163 = vmatpush1.xpose.msra.mxu0 %v1162
          %1164 = vmatprep.subr.mxu0 0.0
          %v1165 = vand.u32 %v318, 4294901760
          %1166 = vmatpush1.xpose.msra.mxu0 %v1165
          %1167 = vmatprep.subr.mxu0 0.0
          %v1168 = vand.u32 %v321, 4294901760
          %1169 = vmatpush1.xpose.msra.mxu0 %v1168
          %1170 = vmatprep.subr.mxu0 0.0
          %v1171 = vand.u32 %v324, 4294901760
          %1172 = vmatpush1.xpose.msra.mxu0 %v1171
          %1173 = vmatprep.subr.mxu0 0.0
          %v1174 = vand.u32 %v327, 4294901760
          %1175 = vmatpush1.xpose.msra.mxu0 %v1174
          %1176 = vmatprep.subr.mxu0 0.0
          %v1177 = vand.u32 %v330, 4294901760
          %1178 = vmatpush1.xpose.msra.mxu0 %v1177
          %1179 = vmatprep.subr.mxu0 0.0
          %v1180 = vand.u32 %v333, 4294901760
          %1181 = vmatpush1.xpose.msra.mxu0 %v1180
          %1182 = vmatprep.subr.mxu0 0.0
          %v1183 = vand.u32 %v336, 4294901760
          %1184 = vmatpush1.xpose.msra.mxu0 %v1183
          %1185 = vmatprep.subr.mxu0 0.0
          %v1186 = vand.u32 %v339, 4294901760
          %1187 = vmatpush1.xpose.msra.mxu0 %v1186
          %1188 = vmatprep.subr.mxu0 0.0
          %v1189 = vand.u32 %v342, 4294901760
          %1190 = vmatpush1.xpose.msra.mxu0 %v1189
          %1191 = vmatprep.subr.mxu0 0.0
          %v1192 = vand.u32 %v345, 4294901760
          %1193 = vmatpush1.xpose.msra.mxu0 %v1192
          %1194 = vmatprep.mubr.f32.mxu0 0.0
          %v1195 = vand.u32 %v249, 4294901760
          %1196 = vmatmul.mubr.f32.gmra.mrb[0].mxu0 %v1195
          %v1197 = vpop.f32.mrb[0].mxu0
          %v1198 = vadd.f32 %v1094, %v1197
          %v1199 = vpop.f32.mrb[0].mxu0
          %v1200 = vadd.f32 %v1096, %v1199
          %1201 = vdwg.mxu0
          %v1204 = vcombine.low %v1198, %v1200
          %v1206 = vunpack.c.l.s4 1966171168
          %v1207 = vunpack.c.0.s8 %v1206
          %v1208 = vlaneseq
          %v1209 = vshrl.u32 %v1208, 7
          %v1210 = vsub.s32 %v1207, %v1209
          %v1211 = vrot.slane %v1204, %v1210
          %v1213 = vunpack.c.l.s4 1966171168
          %v1214 = vunpack.c.0.s8 %v1213
          %v1215 = vlaneseq
          %v1216 = vshrl.u32 %v1215, 7
          %v1217 = vsub.s32 %v1214, %v1216
          %v1218 = vrot.slane %v1211, %v1217
          %v1220 = vlaneseq
          %vm1221 = vcmp.ge.s32.totalorder %v1220, 0
          %vm1222 = vcmp.lt.s32.totalorder %v1220, 256
          %vm1223 = vmand %vm1221, %vm1222
          %1224 = vst.msk [vmem:[#allocation4] sm:$0x3] %vm1223, %v1218
          %1225 = vst.msk [vmem:[#allocation2] sm:$0x3] %vm1223, -inf
          %1226 = vst.msk [vmem:[#allocation3] sm:$0x3] %vm1223, 0.0
        $region32: #{tpu_custom_call.1} parent=27 // pred_fallthru
          _
        %v1227 = vld [vmem:[#allocation4] sm:$0x3]
        %v1228 = vld [vmem:[#allocation2] sm:$0x3]
        %v1229 = vld [vmem:[#allocation3] sm:$0x3]
        %v1230 = vld [vmem:[%s176] sm:$0xff]
        %v1231 = vld [vmem:[%s176 + $0x8] sm:$0xff]
        %v1232 = vld [vmem:[%s176 + $0x10] sm:$0xff]
        %v1233 = vld [vmem:[%s176 + $0x18] sm:$0xff]
        %v1234 = vld [vmem:[%s176 + $0x20] sm:$0xff]
        %v1235 = vld [vmem:[%s176 + $0x28] sm:$0xff]
        %v1236 = vld [vmem:[%s176 + $0x30] sm:$0xff]
        %v1237 = vld [vmem:[%s176 + $0x38] sm:$0xff]
        %v1238 = vld [vmem:[%s176 + $0x40] sm:$0xff]
        %v1239 = vld [vmem:[%s176 + $0x48] sm:$0xff]
        %v1240 = vld [vmem:[%s176 + $0x50] sm:$0xff]
        %v1241 = vld [vmem:[%s176 + $0x58] sm:$0xff]
        %v1242 = vld [vmem:[%s176 + $0x60] sm:$0xff]
        %v1243 = vld [vmem:[%s176 + $0x68] sm:$0xff]
        %v1244 = vld [vmem:[%s176 + $0x70] sm:$0xff]
        %v1245 = vld [vmem:[%s176 + $0x78] sm:$0xff]
        %vm1246 = vcmask 130048
        %v1248 = vsel %vm1246, %v1230, 0
        %v1251 = vsel %vm1246, %v1231, 0
        %v1254 = vsel %vm1246, %v1232, 0
        %v1257 = vsel %vm1246, %v1233, 0
        %v1260 = vsel %vm1246, %v1234, 0
        %v1263 = vsel %vm1246, %v1235, 0
        %v1266 = vsel %vm1246, %v1236, 0
        %v1269 = vsel %vm1246, %v1237, 0
        %v1272 = vsel %vm1246, %v1238, 0
        %v1275 = vsel %vm1246, %v1239, 0
        %v1278 = vsel %vm1246, %v1240, 0
        %v1281 = vsel %vm1246, %v1241, 0
        %v1284 = vsel %vm1246, %v1242, 0
        %v1287 = vsel %vm1246, %v1243, 0
        %v1290 = vsel %vm1246, %v1244, 0
        %v1293 = vsel %vm1246, %v1245, 0
        %v1296 = vsel %vm1246, %v179, 0
        %v1299 = vsel %vm1246, %v180, 0
        %v1302 = vsel %vm1246, %v181, 0
        %v1305 = vsel %vm1246, %v182, 0
        %v1308 = vsel %vm1246, %v183, 0
        %v1311 = vsel %vm1246, %v184, 0
        %v1314 = vsel %vm1246, %v185, 0
        %v1317 = vsel %vm1246, %v186, 0
        %v1320 = vsel %vm1246, %v187, 0
        %v1323 = vsel %vm1246, %v188, 0
        %v1326 = vsel %vm1246, %v189, 0
        %v1329 = vsel %vm1246, %v190, 0
        %v1332 = vsel %vm1246, %v191, 0
        %v1335 = vsel %vm1246, %v192, 0
        %v1338 = vsel %vm1246, %v193, 0
        %v1341 = vsel %vm1246, %v194, 0
        %v1344 = vsel %vm1246, %v195, 0
        %v1347 = vsel %vm1246, %v196, 0
        %v1350 = vsel %vm1246, %v197, 0
        %v1353 = vsel %vm1246, %v198, 0
        %v1356 = vsel %vm1246, %v199, 0
        %v1359 = vsel %vm1246, %v200, 0
        %v1362 = vsel %vm1246, %v201, 0
        %v1365 = vsel %vm1246, %v202, 0
        %v1368 = vsel %vm1246, %v203, 0
        %v1371 = vsel %vm1246, %v204, 0
        %v1374 = vsel %vm1246, %v205, 0
        %v1377 = vsel %vm1246, %v206, 0
        %v1380 = vsel %vm1246, %v207, 0
        %v1383 = vsel %vm1246, %v208, 0
        %v1386 = vsel %vm1246, %v209, 0
        %v1389 = vsel %vm1246, %v210, 0
        %1391 = vmatprep.subr.mxu0 0.0
        %v1392 = vand.u32 %v1296, 4294901760
        %1393 = vmatpush1.xpose.msra.mxu0 %v1392
        %1394 = vmatprep.subr.mxu0 0.0
        %v1395 = vand.u32 %v1299, 4294901760
        %1396 = vmatpush1.xpose.msra.mxu0 %v1395
        %1397 = vmatprep.subr.mxu0 0.0
        %v1398 = vand.u32 %v1302, 4294901760
        %1399 = vmatpush1.xpose.msra.mxu0 %v1398
        %1400 = vmatprep.subr.mxu0 0.0
        %v1401 = vand.u32 %v1305, 4294901760
        %1402 = vmatpush1.xpose.msra.mxu0 %v1401
        %1403 = vmatprep.subr.mxu0 0.0
        %v1404 = vand.u32 %v1308, 4294901760
        %1405 = vmatpush1.xpose.msra.mxu0 %v1404
        %1406 = vmatprep.subr.mxu0 0.0
        %v1407 = vand.u32 %v1311, 4294901760
        %1408 = vmatpush1.xpose.msra.mxu0 %v1407
        %1409 = vmatprep.subr.mxu0 0.0
        %v1410 = vand.u32 %v1314, 4294901760
        %1411 = vmatpush1.xpose.msra.mxu0 %v1410
        %1412 = vmatprep.subr.mxu0 0.0
        %v1413 = vand.u32 %v1317, 4294901760
        %1414 = vmatpush1.xpose.msra.mxu0 %v1413
        %1415 = vmatprep.subr.mxu0 0.0
        %v1416 = vand.u32 %v1320, 4294901760
        %1417 = vmatpush1.xpose.msra.mxu0 %v1416
        %1418 = vmatprep.subr.mxu0 0.0
        %v1419 = vand.u32 %v1323, 4294901760
        %1420 = vmatpush1.xpose.msra.mxu0 %v1419
        %1421 = vmatprep.subr.mxu0 0.0
        %v1422 = vand.u32 %v1326, 4294901760
        %1423 = vmatpush1.xpose.msra.mxu0 %v1422
        %1424 = vmatprep.subr.mxu0 0.0
        %v1425 = vand.u32 %v1329, 4294901760
        %1426 = vmatpush1.xpose.msra.mxu0 %v1425
        %1427 = vmatprep.subr.mxu0 0.0
        %v1428 = vand.u32 %v1332, 4294901760
        %1429 = vmatpush1.xpose.msra.mxu0 %v1428
        %1430 = vmatprep.subr.mxu0 0.0
        %v1431 = vand.u32 %v1335, 4294901760
        %1432 = vmatpush1.xpose.msra.mxu0 %v1431
        %1433 = vmatprep.subr.mxu0 0.0
        %v1434 = vand.u32 %v1338, 4294901760
        %1435 = vmatpush1.xpose.msra.mxu0 %v1434
        %1436 = vmatprep.subr.mxu0 0.0
        %v1437 = vand.u32 %v1341, 4294901760
        %1438 = vmatpush1.xpose.msra.mxu0 %v1437
        %1439 = vmatprep.subr.mxu0 0.0
        %v1440 = vand.u32 %v1344, 4294901760
        %1441 = vmatpush1.xpose.msra.mxu0 %v1440
        %1442 = vmatprep.subr.mxu0 0.0
        %v1443 = vand.u32 %v1347, 4294901760
        %1444 = vmatpush1.xpose.msra.mxu0 %v1443
        %1445 = vmatprep.subr.mxu0 0.0
        %v1446 = vand.u32 %v1350, 4294901760
        %1447 = vmatpush1.xpose.msra.mxu0 %v1446
        %1448 = vmatprep.subr.mxu0 0.0
        %v1449 = vand.u32 %v1353, 4294901760
        %1450 = vmatpush1.xpose.msra.mxu0 %v1449
        %1451 = vmatprep.subr.mxu0 0.0
        %v1452 = vand.u32 %v1356, 4294901760
        %1453 = vmatpush1.xpose.msra.mxu0 %v1452
        %1454 = vmatprep.subr.mxu0 0.0
        %v1455 = vand.u32 %v1359, 4294901760
        %1456 = vmatpush1.xpose.msra.mxu0 %v1455
        %1457 = vmatprep.subr.mxu0 0.0
        %v1458 = vand.u32 %v1362, 4294901760
        %1459 = vmatpush1.xpose.msra.mxu0 %v1458
        %1460 = vmatprep.subr.mxu0 0.0
        %v1461 = vand.u32 %v1365, 4294901760
        %1462 = vmatpush1.xpose.msra.mxu0 %v1461
        %1463 = vmatprep.subr.mxu0 0.0
        %v1464 = vand.u32 %v1368, 4294901760
        %1465 = vmatpush1.xpose.msra.mxu0 %v1464
        %1466 = vmatprep.subr.mxu0 0.0
        %v1467 = vand.u32 %v1371, 4294901760
        %1468 = vmatpush1.xpose.msra.mxu0 %v1467
        %1469 = vmatprep.subr.mxu0 0.0
        %v1470 = vand.u32 %v1374, 4294901760
        %1471 = vmatpush1.xpose.msra.mxu0 %v1470
        %1472 = vmatprep.subr.mxu0 0.0
        %v1473 = vand.u32 %v1377, 4294901760
        %1474 = vmatpush1.xpose.msra.mxu0 %v1473
        %1475 = vmatprep.subr.mxu0 0.0
        %v1476 = vand.u32 %v1380, 4294901760
        %1477 = vmatpush1.xpose.msra.mxu0 %v1476
        %1478 = vmatprep.subr.mxu0 0.0
        %v1479 = vand.u32 %v1383, 4294901760
        %1480 = vmatpush1.xpose.msra.mxu0 %v1479
        %1481 = vmatprep.subr.mxu0 0.0
        %v1482 = vand.u32 %v1386, 4294901760
        %1483 = vmatpush1.xpose.msra.mxu0 %v1482
        %1484 = vmatprep.subr.mxu0 0.0
        %v1485 = vand.u32 %v1389, 4294901760
        %1486 = vmatpush1.xpose.msra.mxu0 %v1485
        %1487 = vmatprep.mubr.f32.mxu0 0.0
        %v1488 = vand.u32 %v1248, 4294901760
        %v1489 = vsub.f32 %v1248, %v1488
        %v1490 = vand.u32 %v1489, 4294901760
        %v1491 = vsub.f32 %v1489, %v1490
        %v1492 = vand.u32 %v1491, 4294901760
        %1493 = vmatmul.mubr.f32.gmra.mrb[0].mxu0 %v1492
        %v1494 = vpop.f32.mrb[0].mxu0
        %v1495 = vadd.f32 0.0, %v1494
        %v1496 = vpop.f32.mrb[0].mxu0
        %v1497 = vadd.f32 0.0, %v1496
        %1498 = vmatprep.mubr.f32.mxu0 0.0
        %v1499 = vand.u32 %v1251, 4294901760
        %v1500 = vsub.f32 %v1251, %v1499
        %v1501 = vand.u32 %v1500, 4294901760
        %v1502 = vsub.f32 %v1500, %v1501
        %v1503 = vand.u32 %v1502, 4294901760
        %1504 = vmatmul.mubr.f32.gmra.mrb[0].mxu0 %v1503
        %v1505 = vpop.f32.mrb[0].mxu0
        %v1506 = vadd.f32 0.0, %v1505
        %v1507 = vpop.f32.mrb[0].mxu0
        %v1508 = vadd.f32 0.0, %v1507
        %1509 = vmatprep.mubr.f32.mxu0 0.0
        %v1510 = vand.u32 %v1254, 4294901760
        %v1511 = vsub.f32 %v1254, %v1510
        %v1512 = vand.u32 %v1511, 4294901760
        %v1513 = vsub.f32 %v1511, %v1512
        %v1514 = vand.u32 %v1513, 4294901760
        %1515 = vmatmul.mubr.f32.gmra.mrb[0].mxu0 %v1514
        %v1516 = vpop.f32.mrb[0].mxu0
        %v1517 = vadd.f32 0.0, %v1516
        %v1518 = vpop.f32.mrb[0].mxu0
        %v1519 = vadd.f32 0.0, %v1518
        %1520 = vmatprep.mubr.f32.mxu0 0.0
        %v1521 = vand.u32 %v1257, 4294901760
        %v1522 = vsub.f32 %v1257, %v1521
        %v1523 = vand.u32 %v1522, 4294901760
        %v1524 = vsub.f32 %v1522, %v1523
        %v1525 = vand.u32 %v1524, 4294901760
        %1526 = vmatmul.mubr.f32.gmra.mrb[0].mxu0 %v1525
        %v1527 = vpop.f32.mrb[0].mxu0
        %v1528 = vadd.f32 0.0, %v1527
        %v1529 = vpop.f32.mrb[0].mxu0
        %v1530 = vadd.f32 0.0, %v1529
        %1531 = vmatprep.mubr.f32.mxu0 0.0
        %v1532 = vand.u32 %v1260, 4294901760
        %v1533 = vsub.f32 %v1260, %v1532
        %v1534 = vand.u32 %v1533, 4294901760
        %v1535 = vsub.f32 %v1533, %v1534
        %v1536 = vand.u32 %v1535, 4294901760
        %1537 = vmatmul.mubr.f32.gmra.mrb[0].mxu0 %v1536
        %v1538 = vpop.f32.mrb[0].mxu0
        %v1539 = vadd.f32 0.0, %v1538
        %v1540 = vpop.f32.mrb[0].mxu0
        %v1541 = vadd.f32 0.0, %v1540
        %1542 = vmatprep.mubr.f32.mxu0 0.0
        %v1543 = vand.u32 %v1263, 4294901760
        %v1544 = vsub.f32 %v1263, %v1543
        %v1545 = vand.u32 %v1544, 4294901760
        %v1546 = vsub.f32 %v1544, %v1545
        %v1547 = vand.u32 %v1546, 4294901760
        %1548 = vmatmul.mubr.f32.gmra.mrb[0].mxu0 %v1547
        %v1549 = vpop.f32.mrb[0].mxu0
        %v1550 = vadd.f32 0.0, %v1549
        %v1551 = vpop.f32.mrb[0].mxu0
        %v1552 = vadd.f32 0.0, %v1551
        %1553 = vmatprep.mubr.f32.mxu0 0.0
        %v1554 = vand.u32 %v1266, 4294901760
        %v1555 = vsub.f32 %v1266, %v1554
        %v1556 = vand.u32 %v1555, 4294901760
        %v1557 = vsub.f32 %v1555, %v1556
        %v1558 = vand.u32 %v1557, 4294901760
        %1559 = vmatmul.mubr.f32.gmra.mrb[0].mxu0 %v1558
        %v1560 = vpop.f32.mrb[0].mxu0
        %v1561 = vadd.f32 0.0, %v1560
        %v1562 = vpop.f32.mrb[0].mxu0
        %v1563 = vadd.f32 0.0, %v1562
        %1564 = vmatprep.mubr.f32.mxu0 0.0
        %v1565 = vand.u32 %v1269, 4294901760
        %v1566 = vsub.f32 %v1269, %v1565
        %v1567 = vand.u32 %v1566, 4294901760
        %v1568 = vsub.f32 %v1566, %v1567
        %v1569 = vand.u32 %v1568, 4294901760
        %1570 = vmatmul.mubr.f32.gmra.mrb[0].mxu0 %v1569
        %v1571 = vpop.f32.mrb[0].mxu0
        %v1572 = vadd.f32 0.0, %v1571
        %v1573 = vpop.f32.mrb[0].mxu0
        %v1574 = vadd.f32 0.0, %v1573
        %1575 = vmatprep.mubr.f32.mxu0 0.0
        %v1576 = vand.u32 %v1272, 4294901760
        %v1577 = vsub.f32 %v1272, %v1576
        %v1578 = vand.u32 %v1577, 4294901760
        %v1579 = vsub.f32 %v1577, %v1578
        %v1580 = vand.u32 %v1579, 4294901760
        %1581 = vmatmul.mubr.f32.gmra.mrb[0].mxu0 %v1580
        %v1582 = vpop.f32.mrb[0].mxu0
        %v1583 = vadd.f32 0.0, %v1582
        %v1584 = vpop.f32.mrb[0].mxu0
        %v1585 = vadd.f32 0.0, %v1584
        %1586 = vmatprep.mubr.f32.mxu0 0.0
        %v1587 = vand.u32 %v1275, 4294901760
        %v1588 = vsub.f32 %v1275, %v1587
        %v1589 = vand.u32 %v1588, 4294901760
        %v1590 = vsub.f32 %v1588, %v1589
        %v1591 = vand.u32 %v1590, 4294901760
        %1592 = vmatmul.mubr.f32.gmra.mrb[0].mxu0 %v1591
        %v1593 = vpop.f32.mrb[0].mxu0
        %v1594 = vadd.f32 0.0, %v1593
        %v1595 = vpop.f32.mrb[0].mxu0
        %v1596 = vadd.f32 0.0, %v1595
        %1597 = vmatprep.mubr.f32.mxu0 0.0
        %v1598 = vand.u32 %v1278, 4294901760
        %v1599 = vsub.f32 %v1278, %v1598
        %v1600 = vand.u32 %v1599, 4294901760
        %v1601 = vsub.f32 %v1599, %v1600
        %v1602 = vand.u32 %v1601, 4294901760
        %1603 = vmatmul.mubr.f32.gmra.mrb[0].mxu0 %v1602
        %v1604 = vpop.f32.mrb[0].mxu0
        %v1605 = vadd.f32 0.0, %v1604
        %v1606 = vpop.f32.mrb[0].mxu0
        %v1607 = vadd.f32 0.0, %v1606
        %1608 = vmatprep.mubr.f32.mxu0 0.0
        %v1609 = vand.u32 %v1281, 4294901760
        %v1610 = vsub.f32 %v1281, %v1609
        %v1611 = vand.u32 %v1610, 4294901760
        %v1612 = vsub.f32 %v1610, %v1611
        %v1613 = vand.u32 %v1612, 4294901760
        %1614 = vmatmul.mubr.f32.gmra.mrb[0].mxu0 %v1613
        %v1615 = vpop.f32.mrb[0].mxu0
        %v1616 = vadd.f32 0.0, %v1615
        %v1617 = vpop.f32.mrb[0].mxu0
        %v1618 = vadd.f32 0.0, %v1617
        %1619 = vmatprep.mubr.f32.mxu0 0.0
        %v1620 = vand.u32 %v1284, 4294901760
        %v1621 = vsub.f32 %v1284, %v1620
        %v1622 = vand.u32 %v1621, 4294901760
        %v1623 = vsub.f32 %v1621, %v1622
        %v1624 = vand.u32 %v1623, 4294901760
        %1625 = vmatmul.mubr.f32.gmra.mrb[0].mxu0 %v1624
        %v1626 = vpop.f32.mrb[0].mxu0
        %v1627 = vadd.f32 0.0, %v1626
        %v1628 = vpop.f32.mrb[0].mxu0
        %v1629 = vadd.f32 0.0, %v1628
        %1630 = vmatprep.mubr.f32.mxu0 0.0
        %v1631 = vand.u32 %v1287, 4294901760
        %v1632 = vsub.f32 %v1287, %v1631
        %v1633 = vand.u32 %v1632, 4294901760
        %v1634 = vsub.f32 %v1632, %v1633
        %v1635 = vand.u32 %v1634, 4294901760
        %1636 = vmatmul.mubr.f32.gmra.mrb[0].mxu0 %v1635
        %v1637 = vpop.f32.mrb[0].mxu0
        %v1638 = vadd.f32 0.0, %v1637
        %v1639 = vpop.f32.mrb[0].mxu0
        %v1640 = vadd.f32 0.0, %v1639
        %1641 = vmatprep.mubr.f32.mxu0 0.0
        %v1642 = vand.u32 %v1290, 4294901760
        %v1643 = vsub.f32 %v1290, %v1642
        %v1644 = vand.u32 %v1643, 4294901760
        %v1645 = vsub.f32 %v1643, %v1644
        %v1646 = vand.u32 %v1645, 4294901760
        %1647 = vmatmul.mubr.f32.gmra.mrb[0].mxu0 %v1646
        %v1648 = vpop.f32.mrb[0].mxu0
        %v1649 = vadd.f32 0.0, %v1648
        %v1650 = vpop.f32.mrb[0].mxu0
        %v1651 = vadd.f32 0.0, %v1650
        %1652 = vmatprep.mubr.f32.mxu0 0.0
        %v1653 = vand.u32 %v1293, 4294901760
        %v1654 = vsub.f32 %v1293, %v1653
        %v1655 = vand.u32 %v1654, 4294901760
        %v1656 = vsub.f32 %v1654, %v1655
        %v1657 = vand.u32 %v1656, 4294901760
        %1658 = vmatmul.mubr.f32.gmra.mrb[0].mxu0 %v1657
        %v1659 = vpop.f32.mrb[0].mxu0
        %v1660 = vadd.f32 0.0, %v1659
        %v1661 = vpop.f32.mrb[0].mxu0
        %v1662 = vadd.f32 0.0, %v1661
        %1663 = vdwg.mxu0
        %1664 = vmatprep.subr.mxu0 0.0
        %v1665 = vand.u32 %v1296, 4294901760
        %v1666 = vsub.f32 %v1296, %v1665
        %v1667 = vand.u32 %v1666, 4294901760
        %v1668 = vsub.f32 %v1666, %v1667
        %v1669 = vand.u32 %v1668, 4294901760
        %1670 = vmatpush1.xpose.msra.mxu0 %v1669
        %1671 = vmatprep.subr.mxu0 0.0
        %v1672 = vand.u32 %v1299, 4294901760
        %v1673 = vsub.f32 %v1299, %v1672
        %v1674 = vand.u32 %v1673, 4294901760
        %v1675 = vsub.f32 %v1673, %v1674
        %v1676 = vand.u32 %v1675, 4294901760
        %1677 = vmatpush1.xpose.msra.mxu0 %v1676
        %1678 = vmatprep.subr.mxu0 0.0
        %v1679 = vand.u32 %v1302, 4294901760
        %v1680 = vsub.f32 %v1302, %v1679
        %v1681 = vand.u32 %v1680, 4294901760
        %v1682 = vsub.f32 %v1680, %v1681
        %v1683 = vand.u32 %v1682, 4294901760
        %1684 = vmatpush1.xpose.msra.mxu0 %v1683
        %1685 = vmatprep.subr.mxu0 0.0
        %v1686 = vand.u32 %v1305, 4294901760
        %v1687 = vsub.f32 %v1305, %v1686
        %v1688 = vand.u32 %v1687, 4294901760
        %v1689 = vsub.f32 %v1687, %v1688
        %v1690 = vand.u32 %v1689, 4294901760
        %1691 = vmatpush1.xpose.msra.mxu0 %v1690
        %1692 = vmatprep.subr.mxu0 0.0
        %v1693 = vand.u32 %v1308, 4294901760
        %v1694 = vsub.f32 %v1308, %v1693
        %v1695 = vand.u32 %v1694, 4294901760
        %v1696 = vsub.f32 %v1694, %v1695
        %v1697 = vand.u32 %v1696, 4294901760
        %1698 = vmatpush1.xpose.msra.mxu0 %v1697
        %1699 = vmatprep.subr.mxu0 0.0
        %v1700 = vand.u32 %v1311, 4294901760
        %v1701 = vsub.f32 %v1311, %v1700
        %v1702 = vand.u32 %v1701, 4294901760
        %v1703 = vsub.f32 %v1701, %v1702
        %v1704 = vand.u32 %v1703, 4294901760
        %1705 = vmatpush1.xpose.msra.mxu0 %v1704
        %1706 = vmatprep.subr.mxu0 0.0
        %v1707 = vand.u32 %v1314, 4294901760
        %v1708 = vsub.f32 %v1314, %v1707
        %v1709 = vand.u32 %v1708, 4294901760
        %v1710 = vsub.f32 %v1708, %v1709
        %v1711 = vand.u32 %v1710, 4294901760
        %1712 = vmatpush1.xpose.msra.mxu0 %v1711
        %1713 = vmatprep.subr.mxu0 0.0
        %v1714 = vand.u32 %v1317, 4294901760
        %v1715 = vsub.f32 %v1317, %v1714
        %v1716 = vand.u32 %v1715, 4294901760
        %v1717 = vsub.f32 %v1715, %v1716
        %v1718 = vand.u32 %v1717, 4294901760
        %1719 = vmatpush1.xpose.msra.mxu0 %v1718
        %1720 = vmatprep.subr.mxu0 0.0
        %v1721 = vand.u32 %v1320, 4294901760
        %v1722 = vsub.f32 %v1320, %v1721
        %v1723 = vand.u32 %v1722, 4294901760
        %v1724 = vsub.f32 %v1722, %v1723
        %v1725 = vand.u32 %v1724, 4294901760
        %1726 = vmatpush1.xpose.msra.mxu0 %v1725
        %1727 = vmatprep.subr.mxu0 0.0
        %v1728 = vand.u32 %v1323, 4294901760
        %v1729 = vsub.f32 %v1323, %v1728
        %v1730 = vand.u32 %v1729, 4294901760
        %v1731 = vsub.f32 %v1729, %v1730
        %v1732 = vand.u32 %v1731, 4294901760
        %1733 = vmatpush1.xpose.msra.mxu0 %v1732
        %1734 = vmatprep.subr.mxu0 0.0
        %v1735 = vand.u32 %v1326, 4294901760
        %v1736 = vsub.f32 %v1326, %v1735
        %v1737 = vand.u32 %v1736, 4294901760
        %v1738 = vsub.f32 %v1736, %v1737
        %v1739 = vand.u32 %v1738, 4294901760
        %1740 = vmatpush1.xpose.msra.mxu0 %v1739
        %1741 = vmatprep.subr.mxu0 0.0
        %v1742 = vand.u32 %v1329, 4294901760
        %v1743 = vsub.f32 %v1329, %v1742
        %v1744 = vand.u32 %v1743, 4294901760
        %v1745 = vsub.f32 %v1743, %v1744
        %v1746 = vand.u32 %v1745, 4294901760
        %1747 = vmatpush1.xpose.msra.mxu0 %v1746
        %1748 = vmatprep.subr.mxu0 0.0
        %v1749 = vand.u32 %v1332, 4294901760
        %v1750 = vsub.f32 %v1332, %v1749
        %v1751 = vand.u32 %v1750, 4294901760
        %v1752 = vsub.f32 %v1750, %v1751
        %v1753 = vand.u32 %v1752, 4294901760
        %1754 = vmatpush1.xpose.msra.mxu0 %v1753
        %1755 = vmatprep.subr.mxu0 0.0
        %v1756 = vand.u32 %v1335, 4294901760
        %v1757 = vsub.f32 %v1335, %v1756
        %v1758 = vand.u32 %v1757, 4294901760
        %v1759 = vsub.f32 %v1757, %v1758
        %v1760 = vand.u32 %v1759, 4294901760
        %1761 = vmatpush1.xpose.msra.mxu0 %v1760
        %1762 = vmatprep.subr.mxu0 0.0
        %v1763 = vand.u32 %v1338, 4294901760
        %v1764 = vsub.f32 %v1338, %v1763
        %v1765 = vand.u32 %v1764, 4294901760
        %v1766 = vsub.f32 %v1764, %v1765
        %v1767 = vand.u32 %v1766, 4294901760
        %1768 = vmatpush1.xpose.msra.mxu0 %v1767
        %1769 = vmatprep.subr.mxu0 0.0
        %v1770 = vand.u32 %v1341, 4294901760
        %v1771 = vsub.f32 %v1341, %v1770
        %v1772 = vand.u32 %v1771, 4294901760
        %v1773 = vsub.f32 %v1771, %v1772
        %v1774 = vand.u32 %v1773, 4294901760
        %1775 = vmatpush1.xpose.msra.mxu0 %v1774
        %1776 = vmatprep.subr.mxu0 0.0
        %v1777 = vand.u32 %v1344, 4294901760
        %v1778 = vsub.f32 %v1344, %v1777
        %v1779 = vand.u32 %v1778, 4294901760
        %v1780 = vsub.f32 %v1778, %v1779
        %v1781 = vand.u32 %v1780, 4294901760
        %1782 = vmatpush1.xpose.msra.mxu0 %v1781
        %1783 = vmatprep.subr.mxu0 0.0
        %v1784 = vand.u32 %v1347, 4294901760
        %v1785 = vsub.f32 %v1347, %v1784
        %v1786 = vand.u32 %v1785, 4294901760
        %v1787 = vsub.f32 %v1785, %v1786
        %v1788 = vand.u32 %v1787, 4294901760
        %1789 = vmatpush1.xpose.msra.mxu0 %v1788
        %1790 = vmatprep.subr.mxu0 0.0
        %v1791 = vand.u32 %v1350, 4294901760
        %v1792 = vsub.f32 %v1350, %v1791
        %v1793 = vand.u32 %v1792, 4294901760
        %v1794 = vsub.f32 %v1792, %v1793
        %v1795 = vand.u32 %v1794, 4294901760
        %1796 = vmatpush1.xpose.msra.mxu0 %v1795
        %1797 = vmatprep.subr.mxu0 0.0
        %v1798 = vand.u32 %v1353, 4294901760
        %v1799 = vsub.f32 %v1353, %v1798
        %v1800 = vand.u32 %v1799, 4294901760
        %v1801 = vsub.f32 %v1799, %v1800
        %v1802 = vand.u32 %v1801, 4294901760
        %1803 = vmatpush1.xpose.msra.mxu0 %v1802
        %1804 = vmatprep.subr.mxu0 0.0
        %v1805 = vand.u32 %v1356, 4294901760
        %v1806 = vsub.f32 %v1356, %v1805
        %v1807 = vand.u32 %v1806, 4294901760
        %v1808 = vsub.f32 %v1806, %v1807
        %v1809 = vand.u32 %v1808, 4294901760
        %1810 = vmatpush1.xpose.msra.mxu0 %v1809
        %1811 = vmatprep.subr.mxu0 0.0
        %v1812 = vand.u32 %v1359, 4294901760
        %v1813 = vsub.f32 %v1359, %v1812
        %v1814 = vand.u32 %v1813, 4294901760
        %v1815 = vsub.f32 %v1813, %v1814
        %v1816 = vand.u32 %v1815, 4294901760
        %1817 = vmatpush1.xpose.msra.mxu0 %v1816
        %1818 = vmatprep.subr.mxu0 0.0
        %v1819 = vand.u32 %v1362, 4294901760
        %v1820 = vsub.f32 %v1362, %v1819
        %v1821 = vand.u32 %v1820, 4294901760
        %v1822 = vsub.f32 %v1820, %v1821
        %v1823 = vand.u32 %v1822, 4294901760
        %1824 = vmatpush1.xpose.msra.mxu0 %v1823
        %1825 = vmatprep.subr.mxu0 0.0
        %v1826 = vand.u32 %v1365, 4294901760
        %v1827 = vsub.f32 %v1365, %v1826
        %v1828 = vand.u32 %v1827, 4294901760
        %v1829 = vsub.f32 %v1827, %v1828
        %v1830 = vand.u32 %v1829, 4294901760
        %1831 = vmatpush1.xpose.msra.mxu0 %v1830
        %1832 = vmatprep.subr.mxu0 0.0
        %v1833 = vand.u32 %v1368, 4294901760
        %v1834 = vsub.f32 %v1368, %v1833
        %v1835 = vand.u32 %v1834, 4294901760
        %v1836 = vsub.f32 %v1834, %v1835
        %v1837 = vand.u32 %v1836, 4294901760
        %1838 = vmatpush1.xpose.msra.mxu0 %v1837
        %1839 = vmatprep.subr.mxu0 0.0
        %v1840 = vand.u32 %v1371, 4294901760
        %v1841 = vsub.f32 %v1371, %v1840
        %v1842 = vand.u32 %v1841, 4294901760
        %v1843 = vsub.f32 %v1841, %v1842
        %v1844 = vand.u32 %v1843, 4294901760
        %1845 = vmatpush1.xpose.msra.mxu0 %v1844
        %1846 = vmatprep.subr.mxu0 0.0
        %v1847 = vand.u32 %v1374, 4294901760
        %v1848 = vsub.f32 %v1374, %v1847
        %v1849 = vand.u32 %v1848, 4294901760
        %v1850 = vsub.f32 %v1848, %v1849
        %v1851 = vand.u32 %v1850, 4294901760
        %1852 = vmatpush1.xpose.msra.mxu0 %v1851
        %1853 = vmatprep.subr.mxu0 0.0
        %v1854 = vand.u32 %v1377, 4294901760
        %v1855 = vsub.f32 %v1377, %v1854
        %v1856 = vand.u32 %v1855, 4294901760
        %v1857 = vsub.f32 %v1855, %v1856
        %v1858 = vand.u32 %v1857, 4294901760
        %1859 = vmatpush1.xpose.msra.mxu0 %v1858
        %1860 = vmatprep.subr.mxu0 0.0
        %v1861 = vand.u32 %v1380, 4294901760
        %v1862 = vsub.f32 %v1380, %v1861
        %v1863 = vand.u32 %v1862, 4294901760
        %v1864 = vsub.f32 %v1862, %v1863
        %v1865 = vand.u32 %v1864, 4294901760
        %1866 = vmatpush1.xpose.msra.mxu0 %v1865
        %1867 = vmatprep.subr.mxu0 0.0
        %v1868 = vand.u32 %v1383, 4294901760
        %v1869 = vsub.f32 %v1383, %v1868
        %v1870 = vand.u32 %v1869, 4294901760
        %v1871 = vsub.f32 %v1869, %v1870
        %v1872 = vand.u32 %v1871, 4294901760
        %1873 = vmatpush1.xpose.msra.mxu0 %v1872
        %1874 = vmatprep.subr.mxu0 0.0
        %v1875 = vand.u32 %v1386, 4294901760
        %v1876 = vsub.f32 %v1386, %v1875
        %v1877 = vand.u32 %v1876, 4294901760
        %v1878 = vsub.f32 %v1876, %v1877
        %v1879 = vand.u32 %v1878, 4294901760
        %1880 = vmatpush1.xpose.msra.mxu0 %v1879
        %1881 = vmatprep.subr.mxu0 0.0
        %v1882 = vand.u32 %v1389, 4294901760
        %v1883 = vsub.f32 %v1389, %v1882
        %v1884 = vand.u32 %v1883, 4294901760
        %v1885 = vsub.f32 %v1883, %v1884
        %v1886 = vand.u32 %v1885, 4294901760
        %1887 = vmatpush1.xpose.msra.mxu0 %v1886
        %1888 = vmatprep.mubr.f32.mxu0 0.0
        %v1889 = vand.u32 %v1248, 4294901760
        %1890 = vmatmul.mubr.f32.gmra.mrb[0].mxu0 %v1889
        %v1891 = vpop.f32.mrb[0].mxu0
        %v1892 = vadd.f32 %v1495, %v1891
        %v1893 = vpop.f32.mrb[0].mxu0
        %v1894 = vadd.f32 %v1497, %v1893
        %1895 = vmatprep.mubr.f32.mxu0 0.0
        %v1896 = vand.u32 %v1251, 4294901760
        %1897 = vmatmul.mubr.f32.gmra.mrb[0].mxu0 %v1896
        %v1898 = vpop.f32.mrb[0].mxu0
        %v1899 = vadd.f32 %v1506, %v1898
        %v1900 = vpop.f32.mrb[0].mxu0
        %v1901 = vadd.f32 %v1508, %v1900
        %1902 = vmatprep.mubr.f32.mxu0 0.0
        %v1903 = vand.u32 %v1254, 4294901760
        %1904 = vmatmul.mubr.f32.gmra.mrb[0].mxu0 %v1903
        %v1905 = vpop.f32.mrb[0].mxu0
        %v1906 = vadd.f32 %v1517, %v1905
        %v1907 = vpop.f32.mrb[0].mxu0
        %v1908 = vadd.f32 %v1519, %v1907
        %1909 = vmatprep.mubr.f32.mxu0 0.0
        %v1910 = vand.u32 %v1257, 4294901760
        %1911 = vmatmul.mubr.f32.gmra.mrb[0].mxu0 %v1910
        %v1912 = vpop.f32.mrb[0].mxu0
        %v1913 = vadd.f32 %v1528, %v1912
        %v1914 = vpop.f32.mrb[0].mxu0
        %v1915 = vadd.f32 %v1530, %v1914
        %1916 = vmatprep.mubr.f32.mxu0 0.0
        %v1917 = vand.u32 %v1260, 4294901760
        %1918 = vmatmul.mubr.f32.gmra.mrb[0].mxu0 %v1917
        %v1919 = vpop.f32.mrb[0].mxu0
        %v1920 = vadd.f32 %v1539, %v1919
        %v1921 = vpop.f32.mrb[0].mxu0
        %v1922 = vadd.f32 %v1541, %v1921
        %1923 = vmatprep.mubr.f32.mxu0 0.0
        %v1924 = vand.u32 %v1263, 4294901760
        %1925 = vmatmul.mubr.f32.gmra.mrb[0].mxu0 %v1924
        %v1926 = vpop.f32.mrb[0].mxu0
        %v1927 = vadd.f32 %v1550, %v1926
        %v1928 = vpop.f32.mrb[0].mxu0
        %v1929 = vadd.f32 %v1552, %v1928
        %1930 = vmatprep.mubr.f32.mxu0 0.0
        %v1931 = vand.u32 %v1266, 4294901760
        %1932 = vmatmul.mubr.f32.gmra.mrb[0].mxu0 %v1931
        %v1933 = vpop.f32.mrb[0].mxu0
        %v1934 = vadd.f32 %v1561, %v1933
        %v1935 = vpop.f32.mrb[0].mxu0
        %v1936 = vadd.f32 %v1563, %v1935
        %1937 = vmatprep.mubr.f32.mxu0 0.0
        %v1938 = vand.u32 %v1269, 4294901760
        %1939 = vmatmul.mubr.f32.gmra.mrb[0].mxu0 %v1938
        %v1940 = vpop.f32.mrb[0].mxu0
        %v1941 = vadd.f32 %v1572, %v1940
        %v1942 = vpop.f32.mrb[0].mxu0
        %v1943 = vadd.f32 %v1574, %v1942
        %1944 = vmatprep.mubr.f32.mxu0 0.0
        %v1945 = vand.u32 %v1272, 4294901760
        %1946 = vmatmul.mubr.f32.gmra.mrb[0].mxu0 %v1945
        %v1947 = vpop.f32.mrb[0].mxu0
        %v1948 = vadd.f32 %v1583, %v1947
        %v1949 = vpop.f32.mrb[0].mxu0
        %v1950 = vadd.f32 %v1585, %v1949
        %1951 = vmatprep.mubr.f32.mxu0 0.0
        %v1952 = vand.u32 %v1275, 4294901760
        %1953 = vmatmul.mubr.f32.gmra.mrb[0].mxu0 %v1952
        %v1954 = vpop.f32.mrb[0].mxu0
        %v1955 = vadd.f32 %v1594, %v1954
        %v1956 = vpop.f32.mrb[0].mxu0
        %v1957 = vadd.f32 %v1596, %v1956
        %1958 = vmatprep.mubr.f32.mxu0 0.0
        %v1959 = vand.u32 %v1278, 4294901760
        %1960 = vmatmul.mubr.f32.gmra.mrb[0].mxu0 %v1959
        %v1961 = vpop.f32.mrb[0].mxu0
        %v1962 = vadd.f32 %v1605, %v1961
        %v1963 = vpop.f32.mrb[0].mxu0
        %v1964 = vadd.f32 %v1607, %v1963
        %1965 = vmatprep.mubr.f32.mxu0 0.0
        %v1966 = vand.u32 %v1281, 4294901760
        %1967 = vmatmul.mubr.f32.gmra.mrb[0].mxu0 %v1966
        %v1968 = vpop.f32.mrb[0].mxu0
        %v1969 = vadd.f32 %v1616, %v1968
        %v1970 = vpop.f32.mrb[0].mxu0
        %v1971 = vadd.f32 %v1618, %v1970
        %1972 = vmatprep.mubr.f32.mxu0 0.0
        %v1973 = vand.u32 %v1284, 4294901760
        %1974 = vmatmul.mubr.f32.gmra.mrb[0].mxu0 %v1973
        %v1975 = vpop.f32.mrb[0].mxu0
        %v1976 = vadd.f32 %v1627, %v1975
        %v1977 = vpop.f32.mrb[0].mxu0
        %v1978 = vadd.f32 %v1629, %v1977
        %1979 = vmatprep.mubr.f32.mxu0 0.0
        %v1980 = vand.u32 %v1287, 4294901760
        %1981 = vmatmul.mubr.f32.gmra.mrb[0].mxu0 %v1980
        %v1982 = vpop.f32.mrb[0].mxu0
        %v1983 = vadd.f32 %v1638, %v1982
        %v1984 = vpop.f32.mrb[0].mxu0
        %v1985 = vadd.f32 %v1640, %v1984
        %1986 = vmatprep.mubr.f32.mxu0 0.0
        %v1987 = vand.u32 %v1290, 4294901760
        %1988 = vmatmul.mubr.f32.gmra.mrb[0].mxu0 %v1987
        %v1989 = vpop.f32.mrb[0].mxu0
        %v1990 = vadd.f32 %v1649, %v1989
        %v1991 = vpop.f32.mrb[0].mxu0
        %v1992 = vadd.f32 %v1651, %v1991
        %1993 = vmatprep.mubr.f32.mxu0 0.0
        %v1994 = vand.u32 %v1293, 4294901760
        %1995 = vmatmul.mubr.f32.gmra.mrb[0].mxu0 %v1994
        %v1996 = vpop.f32.mrb[0].mxu0
        %v1997 = vadd.f32 %v1660, %v1996
        %v1998 = vpop.f32.mrb[0].mxu0
        %v1999 = vadd.f32 %v1662, %v1998
        %2000 = vdwg.mxu0
        %2001 = vmatprep.subr.mxu0 0.0
        %v2002 = vand.u32 %v1296, 4294901760
        %v2003 = vsub.f32 %v1296, %v2002
        %2004 = vmatpush1.xpose.msra.mxu0 %v2003
        %2005 = vmatprep.subr.mxu0 0.0
        %v2006 = vand.u32 %v1299, 4294901760
        %v2007 = vsub.f32 %v1299, %v2006
        %2008 = vmatpush1.xpose.msra.mxu0 %v2007
        %2009 = vmatprep.subr.mxu0 0.0
        %v2010 = vand.u32 %v1302, 4294901760
        %v2011 = vsub.f32 %v1302, %v2010
        %2012 = vmatpush1.xpose.msra.mxu0 %v2011
        %2013 = vmatprep.subr.mxu0 0.0
        %v2014 = vand.u32 %v1305, 4294901760
        %v2015 = vsub.f32 %v1305, %v2014
        %2016 = vmatpush1.xpose.msra.mxu0 %v2015
        %2017 = vmatprep.subr.mxu0 0.0
        %v2018 = vand.u32 %v1308, 4294901760
        %v2019 = vsub.f32 %v1308, %v2018
        %2020 = vmatpush1.xpose.msra.mxu0 %v2019
        %2021 = vmatprep.subr.mxu0 0.0
        %v2022 = vand.u32 %v1311, 4294901760
        %v2023 = vsub.f32 %v1311, %v2022
        %2024 = vmatpush1.xpose.msra.mxu0 %v2023
        %2025 = vmatprep.subr.mxu0 0.0
        %v2026 = vand.u32 %v1314, 4294901760
        %v2027 = vsub.f32 %v1314, %v2026
        %2028 = vmatpush1.xpose.msra.mxu0 %v2027
        %2029 = vmatprep.subr.mxu0 0.0
        %v2030 = vand.u32 %v1317, 4294901760
        %v2031 = vsub.f32 %v1317, %v2030
        %2032 = vmatpush1.xpose.msra.mxu0 %v2031
        %2033 = vmatprep.subr.mxu0 0.0
        %v2034 = vand.u32 %v1320, 4294901760
        %v2035 = vsub.f32 %v1320, %v2034
        %2036 = vmatpush1.xpose.msra.mxu0 %v2035
        %2037 = vmatprep.subr.mxu0 0.0
        %v2038 = vand.u32 %v1323, 4294901760
        %v2039 = vsub.f32 %v1323, %v2038
        %2040 = vmatpush1.xpose.msra.mxu0 %v2039
        %2041 = vmatprep.subr.mxu0 0.0
        %v2042 = vand.u32 %v1326, 4294901760
        %v2043 = vsub.f32 %v1326, %v2042
        %2044 = vmatpush1.xpose.msra.mxu0 %v2043
        %2045 = vmatprep.subr.mxu0 0.0
        %v2046 = vand.u32 %v1329, 4294901760
        %v2047 = vsub.f32 %v1329, %v2046
        %2048 = vmatpush1.xpose.msra.mxu0 %v2047
        %2049 = vmatprep.subr.mxu0 0.0
        %v2050 = vand.u32 %v1332, 4294901760
        %v2051 = vsub.f32 %v1332, %v2050
        %2052 = vmatpush1.xpose.msra.mxu0 %v2051
        %2053 = vmatprep.subr.mxu0 0.0
        %v2054 = vand.u32 %v1335, 4294901760
        %v2055 = vsub.f32 %v1335, %v2054
        %2056 = vmatpush1.xpose.msra.mxu0 %v2055
        %2057 = vmatprep.subr.mxu0 0.0
        %v2058 = vand.u32 %v1338, 4294901760
        %v2059 = vsub.f32 %v1338, %v2058
        %2060 = vmatpush1.xpose.msra.mxu0 %v2059
        %2061 = vmatprep.subr.mxu0 0.0
        %v2062 = vand.u32 %v1341, 4294901760
        %v2063 = vsub.f32 %v1341, %v2062
        %2064 = vmatpush1.xpose.msra.mxu0 %v2063
        %2065 = vmatprep.subr.mxu0 0.0
        %v2066 = vand.u32 %v1344, 4294901760
        %v2067 = vsub.f32 %v1344, %v2066
        %2068 = vmatpush1.xpose.msra.mxu0 %v2067
        %2069 = vmatprep.subr.mxu0 0.0
        %v2070 = vand.u32 %v1347, 4294901760
        %v2071 = vsub.f32 %v1347, %v2070
        %2072 = vmatpush1.xpose.msra.mxu0 %v2071
        %2073 = vmatprep.subr.mxu0 0.0
        %v2074 = vand.u32 %v1350, 4294901760
        %v2075 = vsub.f32 %v1350, %v2074
        %2076 = vmatpush1.xpose.msra.mxu0 %v2075
        %2077 = vmatprep.subr.mxu0 0.0
        %v2078 = vand.u32 %v1353, 4294901760
        %v2079 = vsub.f32 %v1353, %v2078
        %2080 = vmatpush1.xpose.msra.mxu0 %v2079
        %2081 = vmatprep.subr.mxu0 0.0
        %v2082 = vand.u32 %v1356, 4294901760
        %v2083 = vsub.f32 %v1356, %v2082
        %2084 = vmatpush1.xpose.msra.mxu0 %v2083
        %2085 = vmatprep.subr.mxu0 0.0
        %v2086 = vand.u32 %v1359, 4294901760
        %v2087 = vsub.f32 %v1359, %v2086
        %2088 = vmatpush1.xpose.msra.mxu0 %v2087
        %2089 = vmatprep.subr.mxu0 0.0
        %v2090 = vand.u32 %v1362, 4294901760
        %v2091 = vsub.f32 %v1362, %v2090
        %2092 = vmatpush1.xpose.msra.mxu0 %v2091
        %2093 = vmatprep.subr.mxu0 0.0
        %v2094 = vand.u32 %v1365, 4294901760
        %v2095 = vsub.f32 %v1365, %v2094
        %2096 = vmatpush1.xpose.msra.mxu0 %v2095
        %2097 = vmatprep.subr.mxu0 0.0
        %v2098 = vand.u32 %v1368, 4294901760
        %v2099 = vsub.f32 %v1368, %v2098
        %2100 = vmatpush1.xpose.msra.mxu0 %v2099
        %2101 = vmatprep.subr.mxu0 0.0
        %v2102 = vand.u32 %v1371, 4294901760
        %v2103 = vsub.f32 %v1371, %v2102
        %2104 = vmatpush1.xpose.msra.mxu0 %v2103
        %2105 = vmatprep.subr.mxu0 0.0
        %v2106 = vand.u32 %v1374, 4294901760
        %v2107 = vsub.f32 %v1374, %v2106
        %2108 = vmatpush1.xpose.msra.mxu0 %v2107
        %2109 = vmatprep.subr.mxu0 0.0
        %v2110 = vand.u32 %v1377, 4294901760
        %v2111 = vsub.f32 %v1377, %v2110
        %2112 = vmatpush1.xpose.msra.mxu0 %v2111
        %2113 = vmatprep.subr.mxu0 0.0
        %v2114 = vand.u32 %v1380, 4294901760
        %v2115 = vsub.f32 %v1380, %v2114
        %2116 = vmatpush1.xpose.msra.mxu0 %v2115
        %2117 = vmatprep.subr.mxu0 0.0
        %v2118 = vand.u32 %v1383, 4294901760
        %v2119 = vsub.f32 %v1383, %v2118
        %2120 = vmatpush1.xpose.msra.mxu0 %v2119
        %2121 = vmatprep.subr.mxu0 0.0
        %v2122 = vand.u32 %v1386, 4294901760
        %v2123 = vsub.f32 %v1386, %v2122
        %2124 = vmatpush1.xpose.msra.mxu0 %v2123
        %2125 = vmatprep.subr.mxu0 0.0
        %v2126 = vand.u32 %v1389, 4294901760
        %v2127 = vsub.f32 %v1389, %v2126
        %2128 = vmatpush1.xpose.msra.mxu0 %v2127
        %2129 = vmatprep.mubr.f32.mxu0 0.0
        %v2130 = vand.u32 %v1248, 4294901760
        %v2131 = vsub.f32 %v1248, %v2130
        %2132 = vmatmul.mubr.f32.gmra.mrb[0].mxu0 %v2131
        %v2133 = vpop.f32.mrb[0].mxu0
        %v2134 = vadd.f32 %v1892, %v2133
        %v2135 = vpop.f32.mrb[0].mxu0
        %v2136 = vadd.f32 %v1894, %v2135
        %2137 = vmatprep.mubr.f32.mxu0 0.0
        %v2138 = vand.u32 %v1251, 4294901760
        %v2139 = vsub.f32 %v1251, %v2138
        %2140 = vmatmul.mubr.f32.gmra.mrb[0].mxu0 %v2139
        %v2141 = vpop.f32.mrb[0].mxu0
        %v2142 = vadd.f32 %v1899, %v2141
        %v2143 = vpop.f32.mrb[0].mxu0
        %v2144 = vadd.f32 %v1901, %v2143
        %2145 = vmatprep.mubr.f32.mxu0 0.0
        %v2146 = vand.u32 %v1254, 4294901760
        %v2147 = vsub.f32 %v1254, %v2146
        %2148 = vmatmul.mubr.f32.gmra.mrb[0].mxu0 %v2147
        %v2149 = vpop.f32.mrb[0].mxu0
        %v2150 = vadd.f32 %v1906, %v2149
        %v2151 = vpop.f32.mrb[0].mxu0
        %v2152 = vadd.f32 %v1908, %v2151
        %2153 = vmatprep.mubr.f32.mxu0 0.0
        %v2154 = vand.u32 %v1257, 4294901760
        %v2155 = vsub.f32 %v1257, %v2154
        %2156 = vmatmul.mubr.f32.gmra.mrb[0].mxu0 %v2155
        %v2157 = vpop.f32.mrb[0].mxu0
        %v2158 = vadd.f32 %v1913, %v2157
        %v2159 = vpop.f32.mrb[0].mxu0
        %v2160 = vadd.f32 %v1915, %v2159
        %2161 = vmatprep.mubr.f32.mxu0 0.0
        %v2162 = vand.u32 %v1260, 4294901760
        %v2163 = vsub.f32 %v1260, %v2162
        %2164 = vmatmul.mubr.f32.gmra.mrb[0].mxu0 %v2163
        %v2165 = vpop.f32.mrb[0].mxu0
        %v2166 = vadd.f32 %v1920, %v2165
        %v2167 = vpop.f32.mrb[0].mxu0
        %v2168 = vadd.f32 %v1922, %v2167
        %2169 = vmatprep.mubr.f32.mxu0 0.0
        %v2170 = vand.u32 %v1263, 4294901760
        %v2171 = vsub.f32 %v1263, %v2170
        %2172 = vmatmul.mubr.f32.gmra.mrb[0].mxu0 %v2171
        %v2173 = vpop.f32.mrb[0].mxu0
        %v2174 = vadd.f32 %v1927, %v2173
        %v2175 = vpop.f32.mrb[0].mxu0
        %v2176 = vadd.f32 %v1929, %v2175
        %2177 = vmatprep.mubr.f32.mxu0 0.0
        %v2178 = vand.u32 %v1266, 4294901760
        %v2179 = vsub.f32 %v1266, %v2178
        %2180 = vmatmul.mubr.f32.gmra.mrb[0].mxu0 %v2179
        %v2181 = vpop.f32.mrb[0].mxu0
        %v2182 = vadd.f32 %v1934, %v2181
        %v2183 = vpop.f32.mrb[0].mxu0
        %v2184 = vadd.f32 %v1936, %v2183
        %2185 = vmatprep.mubr.f32.mxu0 0.0
        %v2186 = vand.u32 %v1269, 4294901760
        %v2187 = vsub.f32 %v1269, %v2186
        %2188 = vmatmul.mubr.f32.gmra.mrb[0].mxu0 %v2187
        %v2189 = vpop.f32.mrb[0].mxu0
        %v2190 = vadd.f32 %v1941, %v2189
        %v2191 = vpop.f32.mrb[0].mxu0
        %v2192 = vadd.f32 %v1943, %v2191
        %2193 = vmatprep.mubr.f32.mxu0 0.0
        %v2194 = vand.u32 %v1272, 4294901760
        %v2195 = vsub.f32 %v1272, %v2194
        %2196 = vmatmul.mubr.f32.gmra.mrb[0].mxu0 %v2195
        %v2197 = vpop.f32.mrb[0].mxu0
        %v2198 = vadd.f32 %v1948, %v2197
        %v2199 = vpop.f32.mrb[0].mxu0
        %v2200 = vadd.f32 %v1950, %v2199
        %2201 = vmatprep.mubr.f32.mxu0 0.0
        %v2202 = vand.u32 %v1275, 4294901760
        %v2203 = vsub.f32 %v1275, %v2202
        %2204 = vmatmul.mubr.f32.gmra.mrb[0].mxu0 %v2203
        %v2205 = vpop.f32.mrb[0].mxu0
        %v2206 = vadd.f32 %v1955, %v2205
        %v2207 = vpop.f32.mrb[0].mxu0
        %v2208 = vadd.f32 %v1957, %v2207
        %2209 = vmatprep.mubr.f32.mxu0 0.0
        %v2210 = vand.u32 %v1278, 4294901760
        %v2211 = vsub.f32 %v1278, %v2210
        %2212 = vmatmul.mubr.f32.gmra.mrb[0].mxu0 %v2211
        %v2213 = vpop.f32.mrb[0].mxu0
        %v2214 = vadd.f32 %v1962, %v2213
        %v2215 = vpop.f32.mrb[0].mxu0
        %v2216 = vadd.f32 %v1964, %v2215
        %2217 = vmatprep.mubr.f32.mxu0 0.0
        %v2218 = vand.u32 %v1281, 4294901760
        %v2219 = vsub.f32 %v1281, %v2218
        %2220 = vmatmul.mubr.f32.gmra.mrb[0].mxu0 %v2219
        %v2221 = vpop.f32.mrb[0].mxu0
        %v2222 = vadd.f32 %v1969, %v2221
        %v2223 = vpop.f32.mrb[0].mxu0
        %v2224 = vadd.f32 %v1971, %v2223
        %2225 = vmatprep.mubr.f32.mxu0 0.0
        %v2226 = vand.u32 %v1284, 4294901760
        %v2227 = vsub.f32 %v1284, %v2226
        %2228 = vmatmul.mubr.f32.gmra.mrb[0].mxu0 %v2227
        %v2229 = vpop.f32.mrb[0].mxu0
        %v2230 = vadd.f32 %v1976, %v2229
        %v2231 = vpop.f32.mrb[0].mxu0
        %v2232 = vadd.f32 %v1978, %v2231
        %2233 = vmatprep.mubr.f32.mxu0 0.0
        %v2234 = vand.u32 %v1287, 4294901760
        %v2235 = vsub.f32 %v1287, %v2234
        %2236 = vmatmul.mubr.f32.gmra.mrb[0].mxu0 %v2235
        %v2237 = vpop.f32.mrb[0].mxu0
        %v2238 = vadd.f32 %v1983, %v2237
        %v2239 = vpop.f32.mrb[0].mxu0
        %v2240 = vadd.f32 %v1985, %v2239
        %2241 = vmatprep.mubr.f32.mxu0 0.0
        %v2242 = vand.u32 %v1290, 4294901760
        %v2243 = vsub.f32 %v1290, %v2242
        %2244 = vmatmul.mubr.f32.gmra.mrb[0].mxu0 %v2243
        %v2245 = vpop.f32.mrb[0].mxu0
        %v2246 = vadd.f32 %v1990, %v2245
        %v2247 = vpop.f32.mrb[0].mxu0
        %v2248 = vadd.f32 %v1992, %v2247
        %2249 = vmatprep.mubr.f32.mxu0 0.0
        %v2250 = vand.u32 %v1293, 4294901760
        %v2251 = vsub.f32 %v1293, %v2250
        %2252 = vmatmul.mubr.f32.gmra.mrb[0].mxu0 %v2251
        %v2253 = vpop.f32.mrb[0].mxu0
        %v2254 = vadd.f32 %v1997, %v2253
        %v2255 = vpop.f32.mrb[0].mxu0
        %v2256 = vadd.f32 %v1999, %v2255
        %2257 = vdwg.mxu0
        %2258 = vmatprep.subr.mxu0 0.0
        %v2259 = vand.u32 %v1296, 4294901760
        %2260 = vmatpush1.xpose.msra.mxu0 %v2259
        %2261 = vmatprep.subr.mxu0 0.0
        %v2262 = vand.u32 %v1299, 4294901760
        %2263 = vmatpush1.xpose.msra.mxu0 %v2262
        %2264 = vmatprep.subr.mxu0 0.0
        %v2265 = vand.u32 %v1302, 4294901760
        %2266 = vmatpush1.xpose.msra.mxu0 %v2265
        %2267 = vmatprep.subr.mxu0 0.0
        %v2268 = vand.u32 %v1305, 4294901760
        %2269 = vmatpush1.xpose.msra.mxu0 %v2268
        %2270 = vmatprep.subr.mxu0 0.0
        %v2271 = vand.u32 %v1308, 4294901760
        %2272 = vmatpush1.xpose.msra.mxu0 %v2271
        %2273 = vmatprep.subr.mxu0 0.0
        %v2274 = vand.u32 %v1311, 4294901760
        %2275 = vmatpush1.xpose.msra.mxu0 %v2274
        %2276 = vmatprep.subr.mxu0 0.0
        %v2277 = vand.u32 %v1314, 4294901760
        %2278 = vmatpush1.xpose.msra.mxu0 %v2277
        %2279 = vmatprep.subr.mxu0 0.0
        %v2280 = vand.u32 %v1317, 4294901760
        %2281 = vmatpush1.xpose.msra.mxu0 %v2280
        %2282 = vmatprep.subr.mxu0 0.0
        %v2283 = vand.u32 %v1320, 4294901760
        %2284 = vmatpush1.xpose.msra.mxu0 %v2283
        %2285 = vmatprep.subr.mxu0 0.0
        %v2286 = vand.u32 %v1323, 4294901760
        %2287 = vmatpush1.xpose.msra.mxu0 %v2286
        %2288 = vmatprep.subr.mxu0 0.0
        %v2289 = vand.u32 %v1326, 4294901760
        %2290 = vmatpush1.xpose.msra.mxu0 %v2289
        %2291 = vmatprep.subr.mxu0 0.0
        %v2292 = vand.u32 %v1329, 4294901760
        %2293 = vmatpush1.xpose.msra.mxu0 %v2292
        %2294 = vmatprep.subr.mxu0 0.0
        %v2295 = vand.u32 %v1332, 4294901760
        %2296 = vmatpush1.xpose.msra.mxu0 %v2295
        %2297 = vmatprep.subr.mxu0 0.0
        %v2298 = vand.u32 %v1335, 4294901760
        %2299 = vmatpush1.xpose.msra.mxu0 %v2298
        %2300 = vmatprep.subr.mxu0 0.0
        %v2301 = vand.u32 %v1338, 4294901760
        %2302 = vmatpush1.xpose.msra.mxu0 %v2301
        %2303 = vmatprep.subr.mxu0 0.0
        %v2304 = vand.u32 %v1341, 4294901760
        %2305 = vmatpush1.xpose.msra.mxu0 %v2304
        %2306 = vmatprep.subr.mxu0 0.0
        %v2307 = vand.u32 %v1344, 4294901760
        %2308 = vmatpush1.xpose.msra.mxu0 %v2307
        %2309 = vmatprep.subr.mxu0 0.0
        %v2310 = vand.u32 %v1347, 4294901760
        %2311 = vmatpush1.xpose.msra.mxu0 %v2310
        %2312 = vmatprep.subr.mxu0 0.0
        %v2313 = vand.u32 %v1350, 4294901760
        %2314 = vmatpush1.xpose.msra.mxu0 %v2313
        %2315 = vmatprep.subr.mxu0 0.0
        %v2316 = vand.u32 %v1353, 4294901760
        %2317 = vmatpush1.xpose.msra.mxu0 %v2316
        %2318 = vmatprep.subr.mxu0 0.0
        %v2319 = vand.u32 %v1356, 4294901760
        %2320 = vmatpush1.xpose.msra.mxu0 %v2319
        %2321 = vmatprep.subr.mxu0 0.0
        %v2322 = vand.u32 %v1359, 4294901760
        %2323 = vmatpush1.xpose.msra.mxu0 %v2322
        %2324 = vmatprep.subr.mxu0 0.0
        %v2325 = vand.u32 %v1362, 4294901760
        %2326 = vmatpush1.xpose.msra.mxu0 %v2325
        %2327 = vmatprep.subr.mxu0 0.0
        %v2328 = vand.u32 %v1365, 4294901760
        %2329 = vmatpush1.xpose.msra.mxu0 %v2328
        %2330 = vmatprep.subr.mxu0 0.0
        %v2331 = vand.u32 %v1368, 4294901760
        %2332 = vmatpush1.xpose.msra.mxu0 %v2331
        %2333 = vmatprep.subr.mxu0 0.0
        %v2334 = vand.u32 %v1371, 4294901760
        %2335 = vmatpush1.xpose.msra.mxu0 %v2334
        %2336 = vmatprep.subr.mxu0 0.0
        %v2337 = vand.u32 %v1374, 4294901760
        %2338 = vmatpush1.xpose.msra.mxu0 %v2337
        %2339 = vmatprep.subr.mxu0 0.0
        %v2340 = vand.u32 %v1377, 4294901760
        %2341 = vmatpush1.xpose.msra.mxu0 %v2340
        %2342 = vmatprep.subr.mxu0 0.0
        %v2343 = vand.u32 %v1380, 4294901760
        %2344 = vmatpush1.xpose.msra.mxu0 %v2343
        %2345 = vmatprep.subr.mxu0 0.0
        %v2346 = vand.u32 %v1383, 4294901760
        %2347 = vmatpush1.xpose.msra.mxu0 %v2346
        %2348 = vmatprep.subr.mxu0 0.0
        %v2349 = vand.u32 %v1386, 4294901760
        %2350 = vmatpush1.xpose.msra.mxu0 %v2349
        %2351 = vmatprep.subr.mxu0 0.0
        %v2352 = vand.u32 %v1389, 4294901760
        %2353 = vmatpush1.xpose.msra.mxu0 %v2352
        %2354 = vmatprep.mubr.f32.mxu0 0.0
        %v2355 = vand.u32 %v1248, 4294901760
        %v2356 = vsub.f32 %v1248, %v2355
        %v2357 = vand.u32 %v2356, 4294901760
        %2358 = vmatmul.mubr.f32.gmra.mrb[0].mxu0 %v2357
        %v2359 = vpop.f32.mrb[0].mxu0
        %v2360 = vadd.f32 %v2134, %v2359
        %v2361 = vpop.f32.mrb[0].mxu0
        %v2362 = vadd.f32 %v2136, %v2361
        %2363 = vmatprep.mubr.f32.mxu0 0.0
        %v2364 = vand.u32 %v1251, 4294901760
        %v2365 = vsub.f32 %v1251, %v2364
        %v2366 = vand.u32 %v2365, 4294901760
        %2367 = vmatmul.mubr.f32.gmra.mrb[0].mxu0 %v2366
        %v2368 = vpop.f32.mrb[0].mxu0
        %v2369 = vadd.f32 %v2142, %v2368
        %v2370 = vpop.f32.mrb[0].mxu0
        %v2371 = vadd.f32 %v2144, %v2370
        %2372 = vmatprep.mubr.f32.mxu0 0.0
        %v2373 = vand.u32 %v1254, 4294901760
        %v2374 = vsub.f32 %v1254, %v2373
        %v2375 = vand.u32 %v2374, 4294901760
        %2376 = vmatmul.mubr.f32.gmra.mrb[0].mxu0 %v2375
        %v2377 = vpop.f32.mrb[0].mxu0
        %v2378 = vadd.f32 %v2150, %v2377
        %v2379 = vpop.f32.mrb[0].mxu0
        %v2380 = vadd.f32 %v2152, %v2379
        %2381 = vmatprep.mubr.f32.mxu0 0.0
        %v2382 = vand.u32 %v1257, 4294901760
        %v2383 = vsub.f32 %v1257, %v2382
        %v2384 = vand.u32 %v2383, 4294901760
        %2385 = vmatmul.mubr.f32.gmra.mrb[0].mxu0 %v2384
        %v2386 = vpop.f32.mrb[0].mxu0
        %v2387 = vadd.f32 %v2158, %v2386
        %v2388 = vpop.f32.mrb[0].mxu0
        %v2389 = vadd.f32 %v2160, %v2388
        %2390 = vmatprep.mubr.f32.mxu0 0.0
        %v2391 = vand.u32 %v1260, 4294901760
        %v2392 = vsub.f32 %v1260, %v2391
        %v2393 = vand.u32 %v2392, 4294901760
        %2394 = vmatmul.mubr.f32.gmra.mrb[0].mxu0 %v2393
        %v2395 = vpop.f32.mrb[0].mxu0
        %v2396 = vadd.f32 %v2166, %v2395
        %v2397 = vpop.f32.mrb[0].mxu0
        %v2398 = vadd.f32 %v2168, %v2397
        %2399 = vmatprep.mubr.f32.mxu0 0.0
        %v2400 = vand.u32 %v1263, 4294901760
        %v2401 = vsub.f32 %v1263, %v2400
        %v2402 = vand.u32 %v2401, 4294901760
        %2403 = vmatmul.mubr.f32.gmra.mrb[0].mxu0 %v2402
        %v2404 = vpop.f32.mrb[0].mxu0
        %v2405 = vadd.f32 %v2174, %v2404
        %v2406 = vpop.f32.mrb[0].mxu0
        %v2407 = vadd.f32 %v2176, %v2406
        %2408 = vmatprep.mubr.f32.mxu0 0.0
        %v2409 = vand.u32 %v1266, 4294901760
        %v2410 = vsub.f32 %v1266, %v2409
        %v2411 = vand.u32 %v2410, 4294901760
        %2412 = vmatmul.mubr.f32.gmra.mrb[0].mxu0 %v2411
        %v2413 = vpop.f32.mrb[0].mxu0
        %v2414 = vadd.f32 %v2182, %v2413
        %v2415 = vpop.f32.mrb[0].mxu0
        %v2416 = vadd.f32 %v2184, %v2415
        %2417 = vmatprep.mubr.f32.mxu0 0.0
        %v2418 = vand.u32 %v1269, 4294901760
        %v2419 = vsub.f32 %v1269, %v2418
        %v2420 = vand.u32 %v2419, 4294901760
        %2421 = vmatmul.mubr.f32.gmra.mrb[0].mxu0 %v2420
        %v2422 = vpop.f32.mrb[0].mxu0
        %v2423 = vadd.f32 %v2190, %v2422
        %v2424 = vpop.f32.mrb[0].mxu0
        %v2425 = vadd.f32 %v2192, %v2424
        %2426 = vmatprep.mubr.f32.mxu0 0.0
        %v2427 = vand.u32 %v1272, 4294901760
        %v2428 = vsub.f32 %v1272, %v2427
        %v2429 = vand.u32 %v2428, 4294901760
        %2430 = vmatmul.mubr.f32.gmra.mrb[0].mxu0 %v2429
        %v2431 = vpop.f32.mrb[0].mxu0
        %v2432 = vadd.f32 %v2198, %v2431
        %v2433 = vpop.f32.mrb[0].mxu0
        %v2434 = vadd.f32 %v2200, %v2433
        %2435 = vmatprep.mubr.f32.mxu0 0.0
        %v2436 = vand.u32 %v1275, 4294901760
        %v2437 = vsub.f32 %v1275, %v2436
        %v2438 = vand.u32 %v2437, 4294901760
        %2439 = vmatmul.mubr.f32.gmra.mrb[0].mxu0 %v2438
        %v2440 = vpop.f32.mrb[0].mxu0
        %v2441 = vadd.f32 %v2206, %v2440
        %v2442 = vpop.f32.mrb[0].mxu0
        %v2443 = vadd.f32 %v2208, %v2442
        %2444 = vmatprep.mubr.f32.mxu0 0.0
        %v2445 = vand.u32 %v1278, 4294901760
        %v2446 = vsub.f32 %v1278, %v2445
        %v2447 = vand.u32 %v2446, 4294901760
        %2448 = vmatmul.mubr.f32.gmra.mrb[0].mxu0 %v2447
        %v2449 = vpop.f32.mrb[0].mxu0
        %v2450 = vadd.f32 %v2214, %v2449
        %v2451 = vpop.f32.mrb[0].mxu0
        %v2452 = vadd.f32 %v2216, %v2451
        %2453 = vmatprep.mubr.f32.mxu0 0.0
        %v2454 = vand.u32 %v1281, 4294901760
        %v2455 = vsub.f32 %v1281, %v2454
        %v2456 = vand.u32 %v2455, 4294901760
        %2457 = vmatmul.mubr.f32.gmra.mrb[0].mxu0 %v2456
        %v2458 = vpop.f32.mrb[0].mxu0
        %v2459 = vadd.f32 %v2222, %v2458
        %v2460 = vpop.f32.mrb[0].mxu0
        %v2461 = vadd.f32 %v2224, %v2460
        %2462 = vmatprep.mubr.f32.mxu0 0.0
        %v2463 = vand.u32 %v1284, 4294901760
        %v2464 = vsub.f32 %v1284, %v2463
        %v2465 = vand.u32 %v2464, 4294901760
        %2466 = vmatmul.mubr.f32.gmra.mrb[0].mxu0 %v2465
        %v2467 = vpop.f32.mrb[0].mxu0
        %v2468 = vadd.f32 %v2230, %v2467
        %v2469 = vpop.f32.mrb[0].mxu0
        %v2470 = vadd.f32 %v2232, %v2469
        %2471 = vmatprep.mubr.f32.mxu0 0.0
        %v2472 = vand.u32 %v1287, 4294901760
        %v2473 = vsub.f32 %v1287, %v2472
        %v2474 = vand.u32 %v2473, 4294901760
        %2475 = vmatmul.mubr.f32.gmra.mrb[0].mxu0 %v2474
        %v2476 = vpop.f32.mrb[0].mxu0
        %v2477 = vadd.f32 %v2238, %v2476
        %v2478 = vpop.f32.mrb[0].mxu0
        %v2479 = vadd.f32 %v2240, %v2478
        %2480 = vmatprep.mubr.f32.mxu0 0.0
        %v2481 = vand.u32 %v1290, 4294901760
        %v2482 = vsub.f32 %v1290, %v2481
        %v2483 = vand.u32 %v2482, 4294901760
        %2484 = vmatmul.mubr.f32.gmra.mrb[0].mxu0 %v2483
        %v2485 = vpop.f32.mrb[0].mxu0
        %v2486 = vadd.f32 %v2246, %v2485
        %v2487 = vpop.f32.mrb[0].mxu0
        %v2488 = vadd.f32 %v2248, %v2487
        %2489 = vmatprep.mubr.f32.mxu0 0.0
        %v2490 = vand.u32 %v1293, 4294901760
        %v2491 = vsub.f32 %v1293, %v2490
        %v2492 = vand.u32 %v2491, 4294901760
        %2493 = vmatmul.mubr.f32.gmra.mrb[0].mxu0 %v2492
        %v2494 = vpop.f32.mrb[0].mxu0
        %v2495 = vadd.f32 %v2254, %v2494
        %v2496 = vpop.f32.mrb[0].mxu0
        %v2497 = vadd.f32 %v2256, %v2496
        %2498 = vdwg.mxu0
        %2499 = vmatprep.subr.mxu0 0.0
        %v2500 = vand.u32 %v1296, 4294901760
        %v2501 = vsub.f32 %v1296, %v2500
        %v2502 = vand.u32 %v2501, 4294901760
        %2503 = vmatpush1.xpose.msra.mxu0 %v2502
        %2504 = vmatprep.subr.mxu0 0.0
        %v2505 = vand.u32 %v1299, 4294901760
        %v2506 = vsub.f32 %v1299, %v2505
        %v2507 = vand.u32 %v2506, 4294901760
        %2508 = vmatpush1.xpose.msra.mxu0 %v2507
        %2509 = vmatprep.subr.mxu0 0.0
        %v2510 = vand.u32 %v1302, 4294901760
        %v2511 = vsub.f32 %v1302, %v2510
        %v2512 = vand.u32 %v2511, 4294901760
        %2513 = vmatpush1.xpose.msra.mxu0 %v2512
        %2514 = vmatprep.subr.mxu0 0.0
        %v2515 = vand.u32 %v1305, 4294901760
        %v2516 = vsub.f32 %v1305, %v2515
        %v2517 = vand.u32 %v2516, 4294901760
        %2518 = vmatpush1.xpose.msra.mxu0 %v2517
        %2519 = vmatprep.subr.mxu0 0.0
        %v2520 = vand.u32 %v1308, 4294901760
        %v2521 = vsub.f32 %v1308, %v2520
        %v2522 = vand.u32 %v2521, 4294901760
        %2523 = vmatpush1.xpose.msra.mxu0 %v2522
        %2524 = vmatprep.subr.mxu0 0.0
        %v2525 = vand.u32 %v1311, 4294901760
        %v2526 = vsub.f32 %v1311, %v2525
        %v2527 = vand.u32 %v2526, 4294901760
        %2528 = vmatpush1.xpose.msra.mxu0 %v2527
        %2529 = vmatprep.subr.mxu0 0.0
        %v2530 = vand.u32 %v1314, 4294901760
        %v2531 = vsub.f32 %v1314, %v2530
        %v2532 = vand.u32 %v2531, 4294901760
        %2533 = vmatpush1.xpose.msra.mxu0 %v2532
        %2534 = vmatprep.subr.mxu0 0.0
        %v2535 = vand.u32 %v1317, 4294901760
        %v2536 = vsub.f32 %v1317, %v2535
        %v2537 = vand.u32 %v2536, 4294901760
        %2538 = vmatpush1.xpose.msra.mxu0 %v2537
        %2539 = vmatprep.subr.mxu0 0.0
        %v2540 = vand.u32 %v1320, 4294901760
        %v2541 = vsub.f32 %v1320, %v2540
        %v2542 = vand.u32 %v2541, 4294901760
        %2543 = vmatpush1.xpose.msra.mxu0 %v2542
        %2544 = vmatprep.subr.mxu0 0.0
        %v2545 = vand.u32 %v1323, 4294901760
        %v2546 = vsub.f32 %v1323, %v2545
        %v2547 = vand.u32 %v2546, 4294901760
        %2548 = vmatpush1.xpose.msra.mxu0 %v2547
        %2549 = vmatprep.subr.mxu0 0.0
        %v2550 = vand.u32 %v1326, 4294901760
        %v2551 = vsub.f32 %v1326, %v2550
        %v2552 = vand.u32 %v2551, 4294901760
        %2553 = vmatpush1.xpose.msra.mxu0 %v2552
        %2554 = vmatprep.subr.mxu0 0.0
        %v2555 = vand.u32 %v1329, 4294901760
        %v2556 = vsub.f32 %v1329, %v2555
        %v2557 = vand.u32 %v2556, 4294901760
        %2558 = vmatpush1.xpose.msra.mxu0 %v2557
        %2559 = vmatprep.subr.mxu0 0.0
        %v2560 = vand.u32 %v1332, 4294901760
        %v2561 = vsub.f32 %v1332, %v2560
        %v2562 = vand.u32 %v2561, 4294901760
        %2563 = vmatpush1.xpose.msra.mxu0 %v2562
        %2564 = vmatprep.subr.mxu0 0.0
        %v2565 = vand.u32 %v1335, 4294901760
        %v2566 = vsub.f32 %v1335, %v2565
        %v2567 = vand.u32 %v2566, 4294901760
        %2568 = vmatpush1.xpose.msra.mxu0 %v2567
        %2569 = vmatprep.subr.mxu0 0.0
        %v2570 = vand.u32 %v1338, 4294901760
        %v2571 = vsub.f32 %v1338, %v2570
        %v2572 = vand.u32 %v2571, 4294901760
        %2573 = vmatpush1.xpose.msra.mxu0 %v2572
        %2574 = vmatprep.subr.mxu0 0.0
        %v2575 = vand.u32 %v1341, 4294901760
        %v2576 = vsub.f32 %v1341, %v2575
        %v2577 = vand.u32 %v2576, 4294901760
        %2578 = vmatpush1.xpose.msra.mxu0 %v2577
        %2579 = vmatprep.subr.mxu0 0.0
        %v2580 = vand.u32 %v1344, 4294901760
        %v2581 = vsub.f32 %v1344, %v2580
        %v2582 = vand.u32 %v2581, 4294901760
        %2583 = vmatpush1.xpose.msra.mxu0 %v2582
        %2584 = vmatprep.subr.mxu0 0.0
        %v2585 = vand.u32 %v1347, 4294901760
        %v2586 = vsub.f32 %v1347, %v2585
        %v2587 = vand.u32 %v2586, 4294901760
        %2588 = vmatpush1.xpose.msra.mxu0 %v2587
        %2589 = vmatprep.subr.mxu0 0.0
        %v2590 = vand.u32 %v1350, 4294901760
        %v2591 = vsub.f32 %v1350, %v2590
        %v2592 = vand.u32 %v2591, 4294901760
        %2593 = vmatpush1.xpose.msra.mxu0 %v2592
        %2594 = vmatprep.subr.mxu0 0.0
        %v2595 = vand.u32 %v1353, 4294901760
        %v2596 = vsub.f32 %v1353, %v2595
        %v2597 = vand.u32 %v2596, 4294901760
        %2598 = vmatpush1.xpose.msra.mxu0 %v2597
        %2599 = vmatprep.subr.mxu0 0.0
        %v2600 = vand.u32 %v1356, 4294901760
        %v2601 = vsub.f32 %v1356, %v2600
        %v2602 = vand.u32 %v2601, 4294901760
        %2603 = vmatpush1.xpose.msra.mxu0 %v2602
        %2604 = vmatprep.subr.mxu0 0.0
        %v2605 = vand.u32 %v1359, 4294901760
        %v2606 = vsub.f32 %v1359, %v2605
        %v2607 = vand.u32 %v2606, 4294901760
        %2608 = vmatpush1.xpose.msra.mxu0 %v2607
        %2609 = vmatprep.subr.mxu0 0.0
        %v2610 = vand.u32 %v1362, 4294901760
        %v2611 = vsub.f32 %v1362, %v2610
        %v2612 = vand.u32 %v2611, 4294901760
        %2613 = vmatpush1.xpose.msra.mxu0 %v2612
        %2614 = vmatprep.subr.mxu0 0.0
        %v2615 = vand.u32 %v1365, 4294901760
        %v2616 = vsub.f32 %v1365, %v2615
        %v2617 = vand.u32 %v2616, 4294901760
        %2618 = vmatpush1.xpose.msra.mxu0 %v2617
        %2619 = vmatprep.subr.mxu0 0.0
        %v2620 = vand.u32 %v1368, 4294901760
        %v2621 = vsub.f32 %v1368, %v2620
        %v2622 = vand.u32 %v2621, 4294901760
        %2623 = vmatpush1.xpose.msra.mxu0 %v2622
        %2624 = vmatprep.subr.mxu0 0.0
        %v2625 = vand.u32 %v1371, 4294901760
        %v2626 = vsub.f32 %v1371, %v2625
        %v2627 = vand.u32 %v2626, 4294901760
        %2628 = vmatpush1.xpose.msra.mxu0 %v2627
        %2629 = vmatprep.subr.mxu0 0.0
        %v2630 = vand.u32 %v1374, 4294901760
        %v2631 = vsub.f32 %v1374, %v2630
        %v2632 = vand.u32 %v2631, 4294901760
        %2633 = vmatpush1.xpose.msra.mxu0 %v2632
        %2634 = vmatprep.subr.mxu0 0.0
        %v2635 = vand.u32 %v1377, 4294901760
        %v2636 = vsub.f32 %v1377, %v2635
        %v2637 = vand.u32 %v2636, 4294901760
        %2638 = vmatpush1.xpose.msra.mxu0 %v2637
        %2639 = vmatprep.subr.mxu0 0.0
        %v2640 = vand.u32 %v1380, 4294901760
        %v2641 = vsub.f32 %v1380, %v2640
        %v2642 = vand.u32 %v2641, 4294901760
        %2643 = vmatpush1.xpose.msra.mxu0 %v2642
        %2644 = vmatprep.subr.mxu0 0.0
        %v2645 = vand.u32 %v1383, 4294901760
        %v2646 = vsub.f32 %v1383, %v2645
        %v2647 = vand.u32 %v2646, 4294901760
        %2648 = vmatpush1.xpose.msra.mxu0 %v2647
        %2649 = vmatprep.subr.mxu0 0.0
        %v2650 = vand.u32 %v1386, 4294901760
        %v2651 = vsub.f32 %v1386, %v2650
        %v2652 = vand.u32 %v2651, 4294901760
        %2653 = vmatpush1.xpose.msra.mxu0 %v2652
        %2654 = vmatprep.subr.mxu0 0.0
        %v2655 = vand.u32 %v1389, 4294901760
        %v2656 = vsub.f32 %v1389, %v2655
        %v2657 = vand.u32 %v2656, 4294901760
        %2658 = vmatpush1.xpose.msra.mxu0 %v2657
        %2659 = vmatprep.mubr.f32.mxu0 0.0
        %v2660 = vand.u32 %v1248, 4294901760
        %2661 = vmatmul.mubr.f32.gmra.mrb[0].mxu0 %v2660
        %v2662 = vpop.f32.mrb[0].mxu0
        %v2663 = vadd.f32 %v2360, %v2662
        %v2664 = vpop.f32.mrb[0].mxu0
        %v2665 = vadd.f32 %v2362, %v2664
        %2666 = vmatprep.mubr.f32.mxu0 0.0
        %v2667 = vand.u32 %v1251, 4294901760
        %2668 = vmatmul.mubr.f32.gmra.mrb[0].mxu0 %v2667
        %v2669 = vpop.f32.mrb[0].mxu0
        %v2670 = vadd.f32 %v2369, %v2669
        %v2671 = vpop.f32.mrb[0].mxu0
        %v2672 = vadd.f32 %v2371, %v2671
        %2673 = vmatprep.mubr.f32.mxu0 0.0
        %v2674 = vand.u32 %v1254, 4294901760
        %2675 = vmatmul.mubr.f32.gmra.mrb[0].mxu0 %v2674
        %v2676 = vpop.f32.mrb[0].mxu0
        %v2677 = vadd.f32 %v2378, %v2676
        %v2678 = vpop.f32.mrb[0].mxu0
        %v2679 = vadd.f32 %v2380, %v2678
        %2680 = vmatprep.mubr.f32.mxu0 0.0
        %v2681 = vand.u32 %v1257, 4294901760
        %2682 = vmatmul.mubr.f32.gmra.mrb[0].mxu0 %v2681
        %v2683 = vpop.f32.mrb[0].mxu0
        %v2684 = vadd.f32 %v2387, %v2683
        %v2685 = vpop.f32.mrb[0].mxu0
        %v2686 = vadd.f32 %v2389, %v2685
        %2687 = vmatprep.mubr.f32.mxu0 0.0
        %v2688 = vand.u32 %v1260, 4294901760
        %2689 = vmatmul.mubr.f32.gmra.mrb[0].mxu0 %v2688
        %v2690 = vpop.f32.mrb[0].mxu0
        %v2691 = vadd.f32 %v2396, %v2690
        %v2692 = vpop.f32.mrb[0].mxu0
        %v2693 = vadd.f32 %v2398, %v2692
        %2694 = vmatprep.mubr.f32.mxu0 0.0
        %v2695 = vand.u32 %v1263, 4294901760
        %2696 = vmatmul.mubr.f32.gmra.mrb[0].mxu0 %v2695
        %v2697 = vpop.f32.mrb[0].mxu0
        %v2698 = vadd.f32 %v2405, %v2697
        %v2699 = vpop.f32.mrb[0].mxu0
        %v2700 = vadd.f32 %v2407, %v2699
        %2701 = vmatprep.mubr.f32.mxu0 0.0
        %v2702 = vand.u32 %v1266, 4294901760
        %2703 = vmatmul.mubr.f32.gmra.mrb[0].mxu0 %v2702
        %v2704 = vpop.f32.mrb[0].mxu0
        %v2705 = vadd.f32 %v2414, %v2704
        %v2706 = vpop.f32.mrb[0].mxu0
        %v2707 = vadd.f32 %v2416, %v2706
        %2708 = vmatprep.mubr.f32.mxu0 0.0
        %v2709 = vand.u32 %v1269, 4294901760
        %2710 = vmatmul.mubr.f32.gmra.mrb[0].mxu0 %v2709
        %v2711 = vpop.f32.mrb[0].mxu0
        %v2712 = vadd.f32 %v2423, %v2711
        %v2713 = vpop.f32.mrb[0].mxu0
        %v2714 = vadd.f32 %v2425, %v2713
        %2715 = vmatprep.mubr.f32.mxu0 0.0
        %v2716 = vand.u32 %v1272, 4294901760
        %2717 = vmatmul.mubr.f32.gmra.mrb[0].mxu0 %v2716
        %v2718 = vpop.f32.mrb[0].mxu0
        %v2719 = vadd.f32 %v2432, %v2718
        %v2720 = vpop.f32.mrb[0].mxu0
        %v2721 = vadd.f32 %v2434, %v2720
        %2722 = vmatprep.mubr.f32.mxu0 0.0
        %v2723 = vand.u32 %v1275, 4294901760
        %2724 = vmatmul.mubr.f32.gmra.mrb[0].mxu0 %v2723
        %v2725 = vpop.f32.mrb[0].mxu0
        %v2726 = vadd.f32 %v2441, %v2725
        %v2727 = vpop.f32.mrb[0].mxu0
        %v2728 = vadd.f32 %v2443, %v2727
        %2729 = vmatprep.mubr.f32.mxu0 0.0
        %v2730 = vand.u32 %v1278, 4294901760
        %2731 = vmatmul.mubr.f32.gmra.mrb[0].mxu0 %v2730
        %v2732 = vpop.f32.mrb[0].mxu0
        %v2733 = vadd.f32 %v2450, %v2732
        %v2734 = vpop.f32.mrb[0].mxu0
        %v2735 = vadd.f32 %v2452, %v2734
        %2736 = vmatprep.mubr.f32.mxu0 0.0
        %v2737 = vand.u32 %v1281, 4294901760
        %2738 = vmatmul.mubr.f32.gmra.mrb[0].mxu0 %v2737
        %v2739 = vpop.f32.mrb[0].mxu0
        %v2740 = vadd.f32 %v2459, %v2739
        %v2741 = vpop.f32.mrb[0].mxu0
        %v2742 = vadd.f32 %v2461, %v2741
        %2743 = vmatprep.mubr.f32.mxu0 0.0
        %v2744 = vand.u32 %v1284, 4294901760
        %2745 = vmatmul.mubr.f32.gmra.mrb[0].mxu0 %v2744
        %v2746 = vpop.f32.mrb[0].mxu0
        %v2747 = vadd.f32 %v2468, %v2746
        %v2748 = vpop.f32.mrb[0].mxu0
        %v2749 = vadd.f32 %v2470, %v2748
        %2750 = vmatprep.mubr.f32.mxu0 0.0
        %v2751 = vand.u32 %v1287, 4294901760
        %2752 = vmatmul.mubr.f32.gmra.mrb[0].mxu0 %v2751
        %v2753 = vpop.f32.mrb[0].mxu0
        %v2754 = vadd.f32 %v2477, %v2753
        %v2755 = vpop.f32.mrb[0].mxu0
        %v2756 = vadd.f32 %v2479, %v2755
        %2757 = vmatprep.mubr.f32.mxu0 0.0
        %v2758 = vand.u32 %v1290, 4294901760
        %2759 = vmatmul.mubr.f32.gmra.mrb[0].mxu0 %v2758
        %v2760 = vpop.f32.mrb[0].mxu0
        %v2761 = vadd.f32 %v2486, %v2760
        %v2762 = vpop.f32.mrb[0].mxu0
        %v2763 = vadd.f32 %v2488, %v2762
        %2764 = vmatprep.mubr.f32.mxu0 0.0
        %v2765 = vand.u32 %v1293, 4294901760
        %2766 = vmatmul.mubr.f32.gmra.mrb[0].mxu0 %v2765
        %v2767 = vpop.f32.mrb[0].mxu0
        %v2768 = vadd.f32 %v2495, %v2767
        %v2769 = vpop.f32.mrb[0].mxu0
        %v2770 = vadd.f32 %v2497, %v2769
        %2771 = vdwg.mxu0
        %2772 = vmatprep.subr.mxu0 0.0
        %v2773 = vand.u32 %v1296, 4294901760
        %2774 = vmatpush1.xpose.msra.mxu0 %v2773
        %2775 = vmatprep.subr.mxu0 0.0
        %v2776 = vand.u32 %v1299, 4294901760
        %2777 = vmatpush1.xpose.msra.mxu0 %v2776
        %2778 = vmatprep.subr.mxu0 0.0
        %v2779 = vand.u32 %v1302, 4294901760
        %2780 = vmatpush1.xpose.msra.mxu0 %v2779
        %2781 = vmatprep.subr.mxu0 0.0
        %v2782 = vand.u32 %v1305, 4294901760
        %2783 = vmatpush1.xpose.msra.mxu0 %v2782
        %2784 = vmatprep.subr.mxu0 0.0
        %v2785 = vand.u32 %v1308, 4294901760
        %2786 = vmatpush1.xpose.msra.mxu0 %v2785
        %2787 = vmatprep.subr.mxu0 0.0
        %v2788 = vand.u32 %v1311, 4294901760
        %2789 = vmatpush1.xpose.msra.mxu0 %v2788
        %2790 = vmatprep.subr.mxu0 0.0
        %v2791 = vand.u32 %v1314, 4294901760
        %2792 = vmatpush1.xpose.msra.mxu0 %v2791
        %2793 = vmatprep.subr.mxu0 0.0
        %v2794 = vand.u32 %v1317, 4294901760
        %2795 = vmatpush1.xpose.msra.mxu0 %v2794
        %2796 = vmatprep.subr.mxu0 0.0
        %v2797 = vand.u32 %v1320, 4294901760
        %2798 = vmatpush1.xpose.msra.mxu0 %v2797
        %2799 = vmatprep.subr.mxu0 0.0
        %v2800 = vand.u32 %v1323, 4294901760
        %2801 = vmatpush1.xpose.msra.mxu0 %v2800
        %2802 = vmatprep.subr.mxu0 0.0
        %v2803 = vand.u32 %v1326, 4294901760
        %2804 = vmatpush1.xpose.msra.mxu0 %v2803
        %2805 = vmatprep.subr.mxu0 0.0
        %v2806 = vand.u32 %v1329, 4294901760
        %2807 = vmatpush1.xpose.msra.mxu0 %v2806
        %2808 = vmatprep.subr.mxu0 0.0
        %v2809 = vand.u32 %v1332, 4294901760
        %2810 = vmatpush1.xpose.msra.mxu0 %v2809
        %2811 = vmatprep.subr.mxu0 0.0
        %v2812 = vand.u32 %v1335, 4294901760
        %2813 = vmatpush1.xpose.msra.mxu0 %v2812
        %2814 = vmatprep.subr.mxu0 0.0
        %v2815 = vand.u32 %v1338, 4294901760
        %2816 = vmatpush1.xpose.msra.mxu0 %v2815
        %2817 = vmatprep.subr.mxu0 0.0
        %v2818 = vand.u32 %v1341, 4294901760
        %2819 = vmatpush1.xpose.msra.mxu0 %v2818
        %2820 = vmatprep.subr.mxu0 0.0
        %v2821 = vand.u32 %v1344, 4294901760
        %2822 = vmatpush1.xpose.msra.mxu0 %v2821
        %2823 = vmatprep.subr.mxu0 0.0
        %v2824 = vand.u32 %v1347, 4294901760
        %2825 = vmatpush1.xpose.msra.mxu0 %v2824
        %2826 = vmatprep.subr.mxu0 0.0
        %v2827 = vand.u32 %v1350, 4294901760
        %2828 = vmatpush1.xpose.msra.mxu0 %v2827
        %2829 = vmatprep.subr.mxu0 0.0
        %v2830 = vand.u32 %v1353, 4294901760
        %2831 = vmatpush1.xpose.msra.mxu0 %v2830
        %2832 = vmatprep.subr.mxu0 0.0
        %v2833 = vand.u32 %v1356, 4294901760
        %2834 = vmatpush1.xpose.msra.mxu0 %v2833
        %2835 = vmatprep.subr.mxu0 0.0
        %v2836 = vand.u32 %v1359, 4294901760
        %2837 = vmatpush1.xpose.msra.mxu0 %v2836
        %2838 = vmatprep.subr.mxu0 0.0
        %v2839 = vand.u32 %v1362, 4294901760
        %2840 = vmatpush1.xpose.msra.mxu0 %v2839
        %2841 = vmatprep.subr.mxu0 0.0
        %v2842 = vand.u32 %v1365, 4294901760
        %2843 = vmatpush1.xpose.msra.mxu0 %v2842
        %2844 = vmatprep.subr.mxu0 0.0
        %v2845 = vand.u32 %v1368, 4294901760
        %2846 = vmatpush1.xpose.msra.mxu0 %v2845
        %2847 = vmatprep.subr.mxu0 0.0
        %v2848 = vand.u32 %v1371, 4294901760
        %2849 = vmatpush1.xpose.msra.mxu0 %v2848
        %2850 = vmatprep.subr.mxu0 0.0
        %v2851 = vand.u32 %v1374, 4294901760
        %2852 = vmatpush1.xpose.msra.mxu0 %v2851
        %2853 = vmatprep.subr.mxu0 0.0
        %v2854 = vand.u32 %v1377, 4294901760
        %2855 = vmatpush1.xpose.msra.mxu0 %v2854
        %2856 = vmatprep.subr.mxu0 0.0
        %v2857 = vand.u32 %v1380, 4294901760
        %2858 = vmatpush1.xpose.msra.mxu0 %v2857
        %2859 = vmatprep.subr.mxu0 0.0
        %v2860 = vand.u32 %v1383, 4294901760
        %2861 = vmatpush1.xpose.msra.mxu0 %v2860
        %2862 = vmatprep.subr.mxu0 0.0
        %v2863 = vand.u32 %v1386, 4294901760
        %2864 = vmatpush1.xpose.msra.mxu0 %v2863
        %2865 = vmatprep.subr.mxu0 0.0
        %v2866 = vand.u32 %v1389, 4294901760
        %2867 = vmatpush1.xpose.msra.mxu0 %v2866
        %2868 = vmatprep.mubr.f32.mxu0 0.0
        %v2869 = vand.u32 %v1248, 4294901760
        %2870 = vmatmul.mubr.f32.gmra.mrb[0].mxu0 %v2869
        %v2871 = vpop.f32.mrb[0].mxu0
        %v2872 = vadd.f32 %v2663, %v2871
        %v2873 = vpop.f32.mrb[0].mxu0
        %v2874 = vadd.f32 %v2665, %v2873
        %2875 = vmatprep.mubr.f32.mxu0 0.0
        %v2876 = vand.u32 %v1251, 4294901760
        %2877 = vmatmul.mubr.f32.gmra.mrb[0].mxu0 %v2876
        %v2878 = vpop.f32.mrb[0].mxu0
        %v2879 = vadd.f32 %v2670, %v2878
        %v2880 = vpop.f32.mrb[0].mxu0
        %v2881 = vadd.f32 %v2672, %v2880
        %2882 = vmatprep.mubr.f32.mxu0 0.0
        %v2883 = vand.u32 %v1254, 4294901760
        %2884 = vmatmul.mubr.f32.gmra.mrb[0].mxu0 %v2883
        %v2885 = vpop.f32.mrb[0].mxu0
        %v2886 = vadd.f32 %v2677, %v2885
        %v2887 = vpop.f32.mrb[0].mxu0
        %v2888 = vadd.f32 %v2679, %v2887
        %2889 = vmatprep.mubr.f32.mxu0 0.0
        %v2890 = vand.u32 %v1257, 4294901760
        %2891 = vmatmul.mubr.f32.gmra.mrb[0].mxu0 %v2890
        %v2892 = vpop.f32.mrb[0].mxu0
        %v2893 = vadd.f32 %v2684, %v2892
        %v2894 = vpop.f32.mrb[0].mxu0
        %v2895 = vadd.f32 %v2686, %v2894
        %2896 = vmatprep.mubr.f32.mxu0 0.0
        %v2897 = vand.u32 %v1260, 4294901760
        %2898 = vmatmul.mubr.f32.gmra.mrb[0].mxu0 %v2897
        %v2899 = vpop.f32.mrb[0].mxu0
        %v2900 = vadd.f32 %v2691, %v2899
        %v2901 = vpop.f32.mrb[0].mxu0
        %v2902 = vadd.f32 %v2693, %v2901
        %2903 = vmatprep.mubr.f32.mxu0 0.0
        %v2904 = vand.u32 %v1263, 4294901760
        %2905 = vmatmul.mubr.f32.gmra.mrb[0].mxu0 %v2904
        %v2906 = vpop.f32.mrb[0].mxu0
        %v2907 = vadd.f32 %v2698, %v2906
        %v2908 = vpop.f32.mrb[0].mxu0
        %v2909 = vadd.f32 %v2700, %v2908
        %2910 = vmatprep.mubr.f32.mxu0 0.0
        %v2911 = vand.u32 %v1266, 4294901760
        %2912 = vmatmul.mubr.f32.gmra.mrb[0].mxu0 %v2911
        %v2913 = vpop.f32.mrb[0].mxu0
        %v2914 = vadd.f32 %v2705, %v2913
        %v2915 = vpop.f32.mrb[0].mxu0
        %v2916 = vadd.f32 %v2707, %v2915
        %2917 = vmatprep.mubr.f32.mxu0 0.0
        %v2918 = vand.u32 %v1269, 4294901760
        %2919 = vmatmul.mubr.f32.gmra.mrb[0].mxu0 %v2918
        %v2920 = vpop.f32.mrb[0].mxu0
        %v2921 = vadd.f32 %v2712, %v2920
        %v2922 = vpop.f32.mrb[0].mxu0
        %v2923 = vadd.f32 %v2714, %v2922
        %2924 = vmatprep.mubr.f32.mxu0 0.0
        %v2925 = vand.u32 %v1272, 4294901760
        %2926 = vmatmul.mubr.f32.gmra.mrb[0].mxu0 %v2925
        %v2927 = vpop.f32.mrb[0].mxu0
        %v2928 = vadd.f32 %v2719, %v2927
        %v2929 = vpop.f32.mrb[0].mxu0
        %v2930 = vadd.f32 %v2721, %v2929
        %2931 = vmatprep.mubr.f32.mxu0 0.0
        %v2932 = vand.u32 %v1275, 4294901760
        %2933 = vmatmul.mubr.f32.gmra.mrb[0].mxu0 %v2932
        %v2934 = vpop.f32.mrb[0].mxu0
        %v2935 = vadd.f32 %v2726, %v2934
        %v2936 = vpop.f32.mrb[0].mxu0
        %v2937 = vadd.f32 %v2728, %v2936
        %2938 = vmatprep.mubr.f32.mxu0 0.0
        %v2939 = vand.u32 %v1278, 4294901760
        %2940 = vmatmul.mubr.f32.gmra.mrb[0].mxu0 %v2939
        %v2941 = vpop.f32.mrb[0].mxu0
        %v2942 = vadd.f32 %v2733, %v2941
        %v2943 = vpop.f32.mrb[0].mxu0
        %v2944 = vadd.f32 %v2735, %v2943
        %2945 = vmatprep.mubr.f32.mxu0 0.0
        %v2946 = vand.u32 %v1281, 4294901760
        %2947 = vmatmul.mubr.f32.gmra.mrb[0].mxu0 %v2946
        %v2948 = vpop.f32.mrb[0].mxu0
        %v2949 = vadd.f32 %v2740, %v2948
        %v2950 = vpop.f32.mrb[0].mxu0
        %v2951 = vadd.f32 %v2742, %v2950
        %2952 = vmatprep.mubr.f32.mxu0 0.0
        %v2953 = vand.u32 %v1284, 4294901760
        %2954 = vmatmul.mubr.f32.gmra.mrb[0].mxu0 %v2953
        %v2955 = vpop.f32.mrb[0].mxu0
        %v2956 = vadd.f32 %v2747, %v2955
        %v2957 = vpop.f32.mrb[0].mxu0
        %v2958 = vadd.f32 %v2749, %v2957
        %2959 = vmatprep.mubr.f32.mxu0 0.0
        %v2960 = vand.u32 %v1287, 4294901760
        %2961 = vmatmul.mubr.f32.gmra.mrb[0].mxu0 %v2960
        %v2962 = vpop.f32.mrb[0].mxu0
        %v2963 = vadd.f32 %v2754, %v2962
        %v2964 = vpop.f32.mrb[0].mxu0
        %v2965 = vadd.f32 %v2756, %v2964
        %2966 = vmatprep.mubr.f32.mxu0 0.0
        %v2967 = vand.u32 %v1290, 4294901760
        %2968 = vmatmul.mubr.f32.gmra.mrb[0].mxu0 %v2967
        %v2969 = vpop.f32.mrb[0].mxu0
        %v2970 = vadd.f32 %v2761, %v2969
        %v2971 = vpop.f32.mrb[0].mxu0
        %v2972 = vadd.f32 %v2763, %v2971
        %2973 = vmatprep.mubr.f32.mxu0 0.0
        %v2974 = vand.u32 %v1293, 4294901760
        %2975 = vmatmul.mubr.f32.gmra.mrb[0].mxu0 %v2974
        %v2976 = vpop.f32.mrb[0].mxu0
        %v2977 = vadd.f32 %v2768, %v2976
        %v2978 = vpop.f32.mrb[0].mxu0
        %v2979 = vadd.f32 %v2770, %v2978
        %2980 = vdwg.mxu0
        %v2981 = vmul.f32 %v1230, %v1230
        %v2982 = vmul.f32 %v1231, %v1231
        %v2983 = vmul.f32 %v1232, %v1232
        %v2984 = vmul.f32 %v1233, %v1233
        %v2985 = vmul.f32 %v1234, %v1234
        %v2986 = vmul.f32 %v1235, %v1235
        %v2987 = vmul.f32 %v1236, %v1236
        %v2988 = vmul.f32 %v1237, %v1237
        %v2989 = vmul.f32 %v1238, %v1238
        %v2990 = vmul.f32 %v1239, %v1239
        %v2991 = vmul.f32 %v1240, %v1240
        %v2992 = vmul.f32 %v1241, %v1241
        %v2993 = vmul.f32 %v1242, %v1242
        %v2994 = vmul.f32 %v1243, %v1243
        %v2995 = vmul.f32 %v1244, %v1244
        %v2996 = vmul.f32 %v1245, %v1245
        %v2997 = vsel %vm1246, %v2981, 0.0
        %2998 = vadd.xlane.f32.xlu0 %v2997
        %v2999 = vpop.xlane.xlu0 %2998
        %v3000 = vsel %vm1246, %v2982, 0.0
        %3001 = vadd.xlane.f32.xlu0 %v3000
        %v3002 = vpop.xlane.xlu0 %3001
        %v3003 = vsel %vm1246, %v2983, 0.0
        %3004 = vadd.xlane.f32.xlu0 %v3003
        %v3005 = vpop.xlane.xlu0 %3004
        %v3006 = vsel %vm1246, %v2984, 0.0
        %3007 = vadd.xlane.f32.xlu0 %v3006
        %v3008 = vpop.xlane.xlu0 %3007
        %v3009 = vsel %vm1246, %v2985, 0.0
        %3010 = vadd.xlane.f32.xlu0 %v3009
        %v3011 = vpop.xlane.xlu0 %3010
        %v3012 = vsel %vm1246, %v2986, 0.0
        %3013 = vadd.xlane.f32.xlu0 %v3012
        %v3014 = vpop.xlane.xlu0 %3013
        %v3015 = vsel %vm1246, %v2987, 0.0
        %3016 = vadd.xlane.f32.xlu0 %v3015
        %v3017 = vpop.xlane.xlu0 %3016
        %v3018 = vsel %vm1246, %v2988, 0.0
        %3019 = vadd.xlane.f32.xlu0 %v3018
        %v3020 = vpop.xlane.xlu0 %3019
        %v3021 = vsel %vm1246, %v2989, 0.0
        %3022 = vadd.xlane.f32.xlu0 %v3021
        %v3023 = vpop.xlane.xlu0 %3022
        %v3024 = vsel %vm1246, %v2990, 0.0
        %3025 = vadd.xlane.f32.xlu0 %v3024
        %v3026 = vpop.xlane.xlu0 %3025
        %v3027 = vsel %vm1246, %v2991, 0.0
        %3028 = vadd.xlane.f32.xlu0 %v3027
        %v3029 = vpop.xlane.xlu0 %3028
        %v3030 = vsel %vm1246, %v2992, 0.0
        %3031 = vadd.xlane.f32.xlu0 %v3030
        %v3032 = vpop.xlane.xlu0 %3031
        %v3033 = vsel %vm1246, %v2993, 0.0
        %3034 = vadd.xlane.f32.xlu0 %v3033
        %v3035 = vpop.xlane.xlu0 %3034
        %v3036 = vsel %vm1246, %v2994, 0.0
        %3037 = vadd.xlane.f32.xlu0 %v3036
        %v3038 = vpop.xlane.xlu0 %3037
        %v3039 = vsel %vm1246, %v2995, 0.0
        %3040 = vadd.xlane.f32.xlu0 %v3039
        %v3041 = vpop.xlane.xlu0 %3040
        %v3042 = vsel %vm1246, %v2996, 0.0
        %3043 = vadd.xlane.f32.xlu0 %v3042
        %v3044 = vpop.xlane.xlu0 %3043
        %v3046 = vlaneseq
        %v3047 = vshrl.u32 %v3046, 7
        %v3048 = vsub.s32 0, %v3047
        %v3049 = vrot.slane %v1227, %v3048
        %v3050 = vlaneseq
        %v3051 = vshrl.u32 %v3050, 7
        %v3052 = vsub.s32 1, %v3051
        %v3053 = vrot.slane %v1227, %v3052
        %v3056 = vadd.f32 %v2999, %v3049
        %v3057 = vadd.f32 %v2999, %v3053
        %v3058 = vadd.f32 %v3002, %v3049
        %v3059 = vadd.f32 %v3002, %v3053
        %v3060 = vadd.f32 %v3005, %v3049
        %v3061 = vadd.f32 %v3005, %v3053
        %v3062 = vadd.f32 %v3008, %v3049
        %v3063 = vadd.f32 %v3008, %v3053
        %v3064 = vadd.f32 %v3011, %v3049
        %v3065 = vadd.f32 %v3011, %v3053
        %v3066 = vadd.f32 %v3014, %v3049
        %v3067 = vadd.f32 %v3014, %v3053
        %v3068 = vadd.f32 %v3017, %v3049
        %v3069 = vadd.f32 %v3017, %v3053
        %v3070 = vadd.f32 %v3020, %v3049
        %v3071 = vadd.f32 %v3020, %v3053
        %v3072 = vadd.f32 %v3023, %v3049
        %v3073 = vadd.f32 %v3023, %v3053
        %v3074 = vadd.f32 %v3026, %v3049
        %v3075 = vadd.f32 %v3026, %v3053
        %v3076 = vadd.f32 %v3029, %v3049
        %v3077 = vadd.f32 %v3029, %v3053
        %v3078 = vadd.f32 %v3032, %v3049
        %v3079 = vadd.f32 %v3032, %v3053
        %v3080 = vadd.f32 %v3035, %v3049
        %v3081 = vadd.f32 %v3035, %v3053
        %v3082 = vadd.f32 %v3038, %v3049
        %v3083 = vadd.f32 %v3038, %v3053
        %v3084 = vadd.f32 %v3041, %v3049
        %v3085 = vadd.f32 %v3041, %v3053
        %v3086 = vadd.f32 %v3044, %v3049
        %v3087 = vadd.f32 %v3044, %v3053
        %v3088 = vmul.f32 %v2872, 2.0
        %v3089 = vmul.f32 %v2874, 2.0
        %v3090 = vmul.f32 %v2879, 2.0
        %v3091 = vmul.f32 %v2881, 2.0
        %v3092 = vmul.f32 %v2886, 2.0
        %v3093 = vmul.f32 %v2888, 2.0
        %v3094 = vmul.f32 %v2893, 2.0
        %v3095 = vmul.f32 %v2895, 2.0
        %v3096 = vmul.f32 %v2900, 2.0
        %v3097 = vmul.f32 %v2902, 2.0
        %v3098 = vmul.f32 %v2907, 2.0
        %v3099 = vmul.f32 %v2909, 2.0
        %v3100 = vmul.f32 %v2914, 2.0
        %v3101 = vmul.f32 %v2916, 2.0
        %v3102 = vmul.f32 %v2921, 2.0
        %v3103 = vmul.f32 %v2923, 2.0
        %v3104 = vmul.f32 %v2928, 2.0
        %v3105 = vmul.f32 %v2930, 2.0
        %v3106 = vmul.f32 %v2935, 2.0
        %v3107 = vmul.f32 %v2937, 2.0
        %v3108 = vmul.f32 %v2942, 2.0
        %v3109 = vmul.f32 %v2944, 2.0
        %v3110 = vmul.f32 %v2949, 2.0
        %v3111 = vmul.f32 %v2951, 2.0
        %v3112 = vmul.f32 %v2956, 2.0
        %v3113 = vmul.f32 %v2958, 2.0
        %v3114 = vmul.f32 %v2963, 2.0
        %v3115 = vmul.f32 %v2965, 2.0
        %v3116 = vmul.f32 %v2970, 2.0
        %v3117 = vmul.f32 %v2972, 2.0
        %v3118 = vmul.f32 %v2977, 2.0
        %v3119 = vmul.f32 %v2979, 2.0
        %v3120 = vsub.f32 %v3056, %v3088
        %v3121 = vsub.f32 %v3057, %v3089
        %v3122 = vsub.f32 %v3058, %v3090
        %v3123 = vsub.f32 %v3059, %v3091
        %v3124 = vsub.f32 %v3060, %v3092
        %v3125 = vsub.f32 %v3061, %v3093
        %v3126 = vsub.f32 %v3062, %v3094
        %v3127 = vsub.f32 %v3063, %v3095
        %v3128 = vsub.f32 %v3064, %v3096
        %v3129 = vsub.f32 %v3065, %v3097
        %v3130 = vsub.f32 %v3066, %v3098
        %v3131 = vsub.f32 %v3067, %v3099
        %v3132 = vsub.f32 %v3068, %v3100
        %v3133 = vsub.f32 %v3069, %v3101
        %v3134 = vsub.f32 %v3070, %v3102
        %v3135 = vsub.f32 %v3071, %v3103
        %v3136 = vsub.f32 %v3072, %v3104
        %v3137 = vsub.f32 %v3073, %v3105
        %v3138 = vsub.f32 %v3074, %v3106
        %v3139 = vsub.f32 %v3075, %v3107
        %v3140 = vsub.f32 %v3076, %v3108
        %v3141 = vsub.f32 %v3077, %v3109
        %v3142 = vsub.f32 %v3078, %v3110
        %v3143 = vsub.f32 %v3079, %v3111
        %v3144 = vsub.f32 %v3080, %v3112
        %v3145 = vsub.f32 %v3081, %v3113
        %v3146 = vsub.f32 %v3082, %v3114
        %v3147 = vsub.f32 %v3083, %v3115
        %v3148 = vsub.f32 %v3084, %v3116
        %v3149 = vsub.f32 %v3085, %v3117
        %v3150 = vsub.f32 %v3086, %v3118
        %v3151 = vsub.f32 %v3087, %v3119
        %v3152 = vmax.f32 %v3120, 0.0
        %v3153 = vmax.f32 %v3121, 0.0
        %v3154 = vmax.f32 %v3122, 0.0
        %v3155 = vmax.f32 %v3123, 0.0
        %v3156 = vmax.f32 %v3124, 0.0
        %v3157 = vmax.f32 %v3125, 0.0
        %v3158 = vmax.f32 %v3126, 0.0
        %v3159 = vmax.f32 %v3127, 0.0
        %v3160 = vmax.f32 %v3128, 0.0
        %v3161 = vmax.f32 %v3129, 0.0
        %v3162 = vmax.f32 %v3130, 0.0
        %v3163 = vmax.f32 %v3131, 0.0
        %v3164 = vmax.f32 %v3132, 0.0
        %v3165 = vmax.f32 %v3133, 0.0
        %v3166 = vmax.f32 %v3134, 0.0
        %v3167 = vmax.f32 %v3135, 0.0
        %v3168 = vmax.f32 %v3136, 0.0
        %v3169 = vmax.f32 %v3137, 0.0
        %v3170 = vmax.f32 %v3138, 0.0
        %v3171 = vmax.f32 %v3139, 0.0
        %v3172 = vmax.f32 %v3140, 0.0
        %v3173 = vmax.f32 %v3141, 0.0
        %v3174 = vmax.f32 %v3142, 0.0
        %v3175 = vmax.f32 %v3143, 0.0
        %v3176 = vmax.f32 %v3144, 0.0
        %v3177 = vmax.f32 %v3145, 0.0
        %v3178 = vmax.f32 %v3146, 0.0
        %v3179 = vmax.f32 %v3147, 0.0
        %v3180 = vmax.f32 %v3148, 0.0
        %v3181 = vmax.f32 %v3149, 0.0
        %v3182 = vmax.f32 %v3150, 0.0
        %v3183 = vmax.f32 %v3151, 0.0
        %v3184 = vmul.f32 %v3152, -0.5
        %v3185 = vmul.f32 %v3153, -0.5
        %v3186 = vmul.f32 %v3154, -0.5
        %v3187 = vmul.f32 %v3155, -0.5
        %v3188 = vmul.f32 %v3156, -0.5
        %v3189 = vmul.f32 %v3157, -0.5
        %v3190 = vmul.f32 %v3158, -0.5
        %v3191 = vmul.f32 %v3159, -0.5
        %v3192 = vmul.f32 %v3160, -0.5
        %v3193 = vmul.f32 %v3161, -0.5
        %v3194 = vmul.f32 %v3162, -0.5
        %v3195 = vmul.f32 %v3163, -0.5
        %v3196 = vmul.f32 %v3164, -0.5
        %v3197 = vmul.f32 %v3165, -0.5
        %v3198 = vmul.f32 %v3166, -0.5
        %v3199 = vmul.f32 %v3167, -0.5
        %v3200 = vmul.f32 %v3168, -0.5
        %v3201 = vmul.f32 %v3169, -0.5
        %v3202 = vmul.f32 %v3170, -0.5
        %v3203 = vmul.f32 %v3171, -0.5
        %v3204 = vmul.f32 %v3172, -0.5
        %v3205 = vmul.f32 %v3173, -0.5
        %v3206 = vmul.f32 %v3174, -0.5
        %v3207 = vmul.f32 %v3175, -0.5
        %v3208 = vmul.f32 %v3176, -0.5
        %v3209 = vmul.f32 %v3177, -0.5
        %v3210 = vmul.f32 %v3178, -0.5
        %v3211 = vmul.f32 %v3179, -0.5
        %v3212 = vmul.f32 %v3180, -0.5
        %v3213 = vmul.f32 %v3181, -0.5
        %v3214 = vmul.f32 %v3182, -0.5
        %v3215 = vmul.f32 %v3183, -0.5
        %v3216 = vsub.f32 %v3184, 21.254097
        %v3217 = vsub.f32 %v3185, 21.254097
        %v3218 = vsub.f32 %v3186, 21.254097
        %v3219 = vsub.f32 %v3187, 21.254097
        %v3220 = vsub.f32 %v3188, 21.254097
        %v3221 = vsub.f32 %v3189, 21.254097
        %v3222 = vsub.f32 %v3190, 21.254097
        %v3223 = vsub.f32 %v3191, 21.254097
        %v3224 = vsub.f32 %v3192, 21.254097
        %v3225 = vsub.f32 %v3193, 21.254097
        %v3226 = vsub.f32 %v3194, 21.254097
        %v3227 = vsub.f32 %v3195, 21.254097
        %v3228 = vsub.f32 %v3196, 21.254097
        %v3229 = vsub.f32 %v3197, 21.254097
        %v3230 = vsub.f32 %v3198, 21.254097
        %v3231 = vsub.f32 %v3199, 21.254097
        %v3232 = vsub.f32 %v3200, 21.254097
        %v3233 = vsub.f32 %v3201, 21.254097
        %v3234 = vsub.f32 %v3202, 21.254097
        %v3235 = vsub.f32 %v3203, 21.254097
        %v3236 = vsub.f32 %v3204, 21.254097
        %v3237 = vsub.f32 %v3205, 21.254097
        %v3238 = vsub.f32 %v3206, 21.254097
        %v3239 = vsub.f32 %v3207, 21.254097
        %v3240 = vsub.f32 %v3208, 21.254097
        %v3241 = vsub.f32 %v3209, 21.254097
        %v3242 = vsub.f32 %v3210, 21.254097
        %v3243 = vsub.f32 %v3211, 21.254097
        %v3244 = vsub.f32 %v3212, 21.254097
        %v3245 = vsub.f32 %v3213, 21.254097
        %v3246 = vsub.f32 %v3214, 21.254097
        %v3247 = vsub.f32 %v3215, 21.254097
        %v3248 = vmax.f32 %v3216, %v3220
        %v3249 = vmax.f32 %v3218, %v3222
        %v3250 = vmax.f32 %v3248, %v3224
        %v3251 = vmax.f32 %v3249, %v3226
        %v3252 = vmax.f32 %v3250, %v3228
        %v3253 = vmax.f32 %v3251, %v3230
        %v3254 = vmax.f32 %v3252, %v3232
        %v3255 = vmax.f32 %v3253, %v3234
        %v3256 = vmax.f32 %v3254, %v3236
        %v3257 = vmax.f32 %v3255, %v3238
        %v3258 = vmax.f32 %v3256, %v3240
        %v3259 = vmax.f32 %v3257, %v3242
        %v3260 = vmax.f32 %v3258, %v3244
        %v3261 = vmax.f32 %v3259, %v3246
        %v3262 = vmax.f32 %v3260, %v3261
        %v3263 = vrot.slane %v3262, 4
        %v3264 = vmax.f32 %v3262, %v3263
        %v3265 = vrot.slane %v3264, 2
        %v3266 = vmax.f32 %v3264, %v3265
        %v3267 = vrot.slane %v3266, 1
        %v3268 = vmax.f32 %v3266, %v3267
        %v3269 = vmax.f32 %v3217, %v3221
        %v3270 = vmax.f32 %v3219, %v3223
        %v3271 = vmax.f32 %v3269, %v3225
        %v3272 = vmax.f32 %v3270, %v3227
        %v3273 = vmax.f32 %v3271, %v3229
        %v3274 = vmax.f32 %v3272, %v3231
        %v3275 = vmax.f32 %v3273, %v3233
        %v3276 = vmax.f32 %v3274, %v3235
        %v3277 = vmax.f32 %v3275, %v3237
        %v3278 = vmax.f32 %v3276, %v3239
        %v3279 = vmax.f32 %v3277, %v3241
        %v3280 = vmax.f32 %v3278, %v3243
        %v3281 = vmax.f32 %v3279, %v3245
        %v3282 = vmax.f32 %v3280, %v3247
        %v3283 = vmax.f32 %v3281, %v3282
        %v3284 = vrot.slane %v3283, 4
        %v3285 = vmax.f32 %v3283, %v3284
        %v3286 = vrot.slane %v3285, 2
        %v3287 = vmax.f32 %v3285, %v3286
        %v3288 = vrot.slane %v3287, 1
        %v3289 = vmax.f32 %v3287, %v3288
        %v3292 = vcombine.low %v3268, %v3289
        %v3294 = vunpack.c.l.s4 1966171168
        %v3295 = vunpack.c.0.s8 %v3294
        %v3296 = vlaneseq
        %v3297 = vshrl.u32 %v3296, 7
        %v3298 = vsub.s32 %v3295, %v3297
        %v3299 = vrot.slane %v3292, %v3298
        %v3301 = vunpack.c.l.s4 1966171168
        %v3302 = vunpack.c.0.s8 %v3301
        %v3303 = vlaneseq
        %v3304 = vshrl.u32 %v3303, 7
        %v3305 = vsub.s32 %v3302, %v3304
        %v3306 = vrot.slane %v3299, %v3305
        %v3308 = vmax.f32 %v1228, %v3306
        %v3309 = vsub.f32 %v1228, %v3308
        %v3310 = vmul.f32 %v3309, 1.442695
        %v3311 = vpow.pop %v3310
        %v3312 = vmul.f32 %v3311, %v1229
        %v3314 = vlaneseq
        %v3315 = vshrl.u32 %v3314, 7
        %v3316 = vsub.s32 0, %v3315
        %v3317 = vrot.slane %v3308, %v3316
        %v3318 = vlaneseq
        %v3319 = vshrl.u32 %v3318, 7
        %v3320 = vsub.s32 1, %v3319
        %v3321 = vrot.slane %v3308, %v3320
        %v3324 = vsub.f32 %v3216, %v3317
        %v3325 = vsub.f32 %v3217, %v3321
        %v3326 = vsub.f32 %v3218, %v3317
        %v3327 = vsub.f32 %v3219, %v3321
        %v3328 = vsub.f32 %v3220, %v3317
        %v3329 = vsub.f32 %v3221, %v3321
        %v3330 = vsub.f32 %v3222, %v3317
        %v3331 = vsub.f32 %v3223, %v3321
        %v3332 = vsub.f32 %v3224, %v3317
        %v3333 = vsub.f32 %v3225, %v3321
        %v3334 = vsub.f32 %v3226, %v3317
        %v3335 = vsub.f32 %v3227, %v3321
        %v3336 = vsub.f32 %v3228, %v3317
        %v3337 = vsub.f32 %v3229, %v3321
        %v3338 = vsub.f32 %v3230, %v3317
        %v3339 = vsub.f32 %v3231, %v3321
        %v3340 = vsub.f32 %v3232, %v3317
        %v3341 = vsub.f32 %v3233, %v3321
        %v3342 = vsub.f32 %v3234, %v3317
        %v3343 = vsub.f32 %v3235, %v3321
        %v3344 = vsub.f32 %v3236, %v3317
        %v3345 = vsub.f32 %v3237, %v3321
        %v3346 = vsub.f32 %v3238, %v3317
        %v3347 = vsub.f32 %v3239, %v3321
        %v3348 = vsub.f32 %v3240, %v3317
        %v3349 = vsub.f32 %v3241, %v3321
        %v3350 = vsub.f32 %v3242, %v3317
        %v3351 = vsub.f32 %v3243, %v3321
        %v3352 = vsub.f32 %v3244, %v3317
        %v3353 = vsub.f32 %v3245, %v3321
        %v3354 = vsub.f32 %v3246, %v3317
        %v3355 = vsub.f32 %v3247, %v3321
        %v3356 = vmul.f32 %v3324, 1.442695
        %v3357 = vpow.pop %v3356
        %v3358 = vmul.f32 %v3325, 1.442695
        %v3359 = vpow.pop %v3358
        %v3360 = vmul.f32 %v3326, 1.442695
        %v3361 = vpow.pop %v3360
        %v3362 = vmul.f32 %v3327, 1.442695
        %v3363 = vpow.pop %v3362
        %v3364 = vmul.f32 %v3328, 1.442695
        %v3365 = vpow.pop %v3364
        %v3366 = vmul.f32 %v3329, 1.442695
        %v3367 = vpow.pop %v3366
        %v3368 = vmul.f32 %v3330, 1.442695
        %v3369 = vpow.pop %v3368
        %v3370 = vmul.f32 %v3331, 1.442695
        %v3371 = vpow.pop %v3370
        %v3372 = vmul.f32 %v3332, 1.442695
        %v3373 = vpow.pop %v3372
        %v3374 = vmul.f32 %v3333, 1.442695
        %v3375 = vpow.pop %v3374
        %v3376 = vmul.f32 %v3334, 1.442695
        %v3377 = vpow.pop %v3376
        %v3378 = vmul.f32 %v3335, 1.442695
        %v3379 = vpow.pop %v3378
        %v3380 = vmul.f32 %v3336, 1.442695
        %v3381 = vpow.pop %v3380
        %v3382 = vmul.f32 %v3337, 1.442695
        %v3383 = vpow.pop %v3382
        %v3384 = vmul.f32 %v3338, 1.442695
        %v3385 = vpow.pop %v3384
        %v3386 = vmul.f32 %v3339, 1.442695
        %v3387 = vpow.pop %v3386
        %v3388 = vmul.f32 %v3340, 1.442695
        %v3389 = vpow.pop %v3388
        %v3390 = vmul.f32 %v3341, 1.442695
        %v3391 = vpow.pop %v3390
        %v3392 = vmul.f32 %v3342, 1.442695
        %v3393 = vpow.pop %v3392
        %v3394 = vmul.f32 %v3343, 1.442695
        %v3395 = vpow.pop %v3394
        %v3396 = vmul.f32 %v3344, 1.442695
        %v3397 = vpow.pop %v3396
        %v3398 = vmul.f32 %v3345, 1.442695
        %v3399 = vpow.pop %v3398
        %v3400 = vmul.f32 %v3346, 1.442695
        %v3401 = vpow.pop %v3400
        %v3402 = vmul.f32 %v3347, 1.442695
        %v3403 = vpow.pop %v3402
        %v3404 = vmul.f32 %v3348, 1.442695
        %v3405 = vpow.pop %v3404
        %v3406 = vmul.f32 %v3349, 1.442695
        %v3407 = vpow.pop %v3406
        %v3408 = vmul.f32 %v3350, 1.442695
        %v3409 = vpow.pop %v3408
        %v3410 = vmul.f32 %v3351, 1.442695
        %v3411 = vpow.pop %v3410
        %v3412 = vmul.f32 %v3352, 1.442695
        %v3413 = vpow.pop %v3412
        %v3414 = vmul.f32 %v3353, 1.442695
        %v3415 = vpow.pop %v3414
        %v3416 = vmul.f32 %v3354, 1.442695
        %v3417 = vpow.pop %v3416
        %v3418 = vmul.f32 %v3355, 1.442695
        %v3419 = vpow.pop %v3418
        %v3420 = vadd.f32 %v3357, %v3361
        %v3421 = vadd.f32 %v3420, %v3365
        %v3422 = vadd.f32 %v3421, %v3369
        %v3423 = vadd.f32 %v3422, %v3373
        %v3424 = vadd.f32 %v3423, %v3377
        %v3425 = vadd.f32 %v3424, %v3381
        %v3426 = vadd.f32 %v3425, %v3385
        %v3427 = vadd.f32 %v3426, %v3389
        %v3428 = vadd.f32 %v3427, %v3393
        %v3429 = vadd.f32 %v3428, %v3397
        %v3430 = vadd.f32 %v3429, %v3401
        %v3431 = vadd.f32 %v3430, %v3405
        %v3432 = vadd.f32 %v3431, %v3409
        %v3433 = vadd.f32 %v3432, %v3413
        %v3434 = vadd.f32 %v3433, %v3417
        %v3435 = vrot.slane %v3434, 4
        %v3436 = vadd.f32 %v3434, %v3435
        %v3437 = vrot.slane %v3436, 2
        %v3438 = vadd.f32 %v3436, %v3437
        %v3439 = vrot.slane %v3438, 1
        %v3440 = vadd.f32 %v3438, %v3439
        %v3441 = vadd.f32 %v3359, %v3363
        %v3442 = vadd.f32 %v3441, %v3367
        %v3443 = vadd.f32 %v3442, %v3371
        %v3444 = vadd.f32 %v3443, %v3375
        %v3445 = vadd.f32 %v3444, %v3379
        %v3446 = vadd.f32 %v3445, %v3383
        %v3447 = vadd.f32 %v3446, %v3387
        %v3448 = vadd.f32 %v3447, %v3391
        %v3449 = vadd.f32 %v3448, %v3395
        %v3450 = vadd.f32 %v3449, %v3399
        %v3451 = vadd.f32 %v3450, %v3403
        %v3452 = vadd.f32 %v3451, %v3407
        %v3453 = vadd.f32 %v3452, %v3411
        %v3454 = vadd.f32 %v3453, %v3415
        %v3455 = vadd.f32 %v3454, %v3419
        %v3456 = vrot.slane %v3455, 4
        %v3457 = vadd.f32 %v3455, %v3456
        %v3458 = vrot.slane %v3457, 2
        %v3459 = vadd.f32 %v3457, %v3458
        %v3460 = vrot.slane %v3459, 1
        %v3461 = vadd.f32 %v3459, %v3460
        %v3464 = vcombine.low %v3440, %v3461
        %v3466 = vunpack.c.l.s4 1966171168
        %v3467 = vunpack.c.0.s8 %v3466
        %v3468 = vlaneseq
        %v3469 = vshrl.u32 %v3468, 7
        %v3470 = vsub.s32 %v3467, %v3469
        %v3471 = vrot.slane %v3464, %v3470
        %v3473 = vunpack.c.l.s4 1966171168
        %v3474 = vunpack.c.0.s8 %v3473
        %v3475 = vlaneseq
        %v3476 = vshrl.u32 %v3475, 7
        %v3477 = vsub.s32 %v3474, %v3476
        %v3478 = vrot.slane %v3471, %v3477
        %v3480 = vadd.f32 %v3312, %v3478
        %v3481 = vld [vmem:[%s176 + $0x80] sm:$0xff]
        %v3482 = vld [vmem:[%s176 + $0x88] sm:$0xff]
        %v3483 = vld [vmem:[%s176 + $0x90] sm:$0xff]
        %v3484 = vld [vmem:[%s176 + $0x98] sm:$0xff]
        %v3485 = vld [vmem:[%s176 + $0xa0] sm:$0xff]
        %v3486 = vld [vmem:[%s176 + $0xa8] sm:$0xff]
        %v3487 = vld [vmem:[%s176 + $0xb0] sm:$0xff]
        %v3488 = vld [vmem:[%s176 + $0xb8] sm:$0xff]
        %v3489 = vld [vmem:[%s176 + $0xc0] sm:$0xff]
        %v3490 = vld [vmem:[%s176 + $0xc8] sm:$0xff]
        %v3491 = vld [vmem:[%s176 + $0xd0] sm:$0xff]
        %v3492 = vld [vmem:[%s176 + $0xd8] sm:$0xff]
        %v3493 = vld [vmem:[%s176 + $0xe0] sm:$0xff]
        %v3494 = vld [vmem:[%s176 + $0xe8] sm:$0xff]
        %v3495 = vld [vmem:[%s176 + $0xf0] sm:$0xff]
        %v3496 = vld [vmem:[%s176 + $0xf8] sm:$0xff]
        %v3498 = vsel %vm1246, %v3481, 0
        %v3501 = vsel %vm1246, %v3482, 0
        %v3504 = vsel %vm1246, %v3483, 0
        %v3507 = vsel %vm1246, %v3484, 0
        %v3510 = vsel %vm1246, %v3485, 0
        %v3513 = vsel %vm1246, %v3486, 0
        %v3516 = vsel %vm1246, %v3487, 0
        %v3519 = vsel %vm1246, %v3488, 0
        %v3522 = vsel %vm1246, %v3489, 0
        %v3525 = vsel %vm1246, %v3490, 0
        %v3528 = vsel %vm1246, %v3491, 0
        %v3531 = vsel %vm1246, %v3492, 0
        %v3534 = vsel %vm1246, %v3493, 0
        %v3537 = vsel %vm1246, %v3494, 0
        %v3540 = vsel %vm1246, %v3495, 0
        %v3543 = vsel %vm1246, %v3496, 0
        %3545 = vmatprep.subr.mxu0 0.0
        %v3546 = vand.u32 %v1296, 4294901760
        %3547 = vmatpush1.xpose.msra.mxu0 %v3546
        %3548 = vmatprep.subr.mxu0 0.0
        %v3549 = vand.u32 %v1299, 4294901760
        %3550 = vmatpush1.xpose.msra.mxu0 %v3549
        %3551 = vmatprep.subr.mxu0 0.0
        %v3552 = vand.u32 %v1302, 4294901760
        %3553 = vmatpush1.xpose.msra.mxu0 %v3552
        %3554 = vmatprep.subr.mxu0 0.0
        %v3555 = vand.u32 %v1305, 4294901760
        %3556 = vmatpush1.xpose.msra.mxu0 %v3555
        %3557 = vmatprep.subr.mxu0 0.0
        %v3558 = vand.u32 %v1308, 4294901760
        %3559 = vmatpush1.xpose.msra.mxu0 %v3558
        %3560 = vmatprep.subr.mxu0 0.0
        %v3561 = vand.u32 %v1311, 4294901760
        %3562 = vmatpush1.xpose.msra.mxu0 %v3561
        %3563 = vmatprep.subr.mxu0 0.0
        %v3564 = vand.u32 %v1314, 4294901760
        %3565 = vmatpush1.xpose.msra.mxu0 %v3564
        %3566 = vmatprep.subr.mxu0 0.0
        %v3567 = vand.u32 %v1317, 4294901760
        %3568 = vmatpush1.xpose.msra.mxu0 %v3567
        %3569 = vmatprep.subr.mxu0 0.0
        %v3570 = vand.u32 %v1320, 4294901760
        %3571 = vmatpush1.xpose.msra.mxu0 %v3570
        %3572 = vmatprep.subr.mxu0 0.0
        %v3573 = vand.u32 %v1323, 4294901760
        %3574 = vmatpush1.xpose.msra.mxu0 %v3573
        %3575 = vmatprep.subr.mxu0 0.0
        %v3576 = vand.u32 %v1326, 4294901760
        %3577 = vmatpush1.xpose.msra.mxu0 %v3576
        %3578 = vmatprep.subr.mxu0 0.0
        %v3579 = vand.u32 %v1329, 4294901760
        %3580 = vmatpush1.xpose.msra.mxu0 %v3579
        %3581 = vmatprep.subr.mxu0 0.0
        %v3582 = vand.u32 %v1332, 4294901760
        %3583 = vmatpush1.xpose.msra.mxu0 %v3582
        %3584 = vmatprep.subr.mxu0 0.0
        %v3585 = vand.u32 %v1335, 4294901760
        %3586 = vmatpush1.xpose.msra.mxu0 %v3585
        %3587 = vmatprep.subr.mxu0 0.0
        %v3588 = vand.u32 %v1338, 4294901760
        %3589 = vmatpush1.xpose.msra.mxu0 %v3588
        %3590 = vmatprep.subr.mxu0 0.0
        %v3591 = vand.u32 %v1341, 4294901760
        %3592 = vmatpush1.xpose.msra.mxu0 %v3591
        %3593 = vmatprep.subr.mxu0 0.0
        %v3594 = vand.u32 %v1344, 4294901760
        %3595 = vmatpush1.xpose.msra.mxu0 %v3594
        %3596 = vmatprep.subr.mxu0 0.0
        %v3597 = vand.u32 %v1347, 4294901760
        %3598 = vmatpush1.xpose.msra.mxu0 %v3597
        %3599 = vmatprep.subr.mxu0 0.0
        %v3600 = vand.u32 %v1350, 4294901760
        %3601 = vmatpush1.xpose.msra.mxu0 %v3600
        %3602 = vmatprep.subr.mxu0 0.0
        %v3603 = vand.u32 %v1353, 4294901760
        %3604 = vmatpush1.xpose.msra.mxu0 %v3603
        %3605 = vmatprep.subr.mxu0 0.0
        %v3606 = vand.u32 %v1356, 4294901760
        %3607 = vmatpush1.xpose.msra.mxu0 %v3606
        %3608 = vmatprep.subr.mxu0 0.0
        %v3609 = vand.u32 %v1359, 4294901760
        %3610 = vmatpush1.xpose.msra.mxu0 %v3609
        %3611 = vmatprep.subr.mxu0 0.0
        %v3612 = vand.u32 %v1362, 4294901760
        %3613 = vmatpush1.xpose.msra.mxu0 %v3612
        %3614 = vmatprep.subr.mxu0 0.0
        %v3615 = vand.u32 %v1365, 4294901760
        %3616 = vmatpush1.xpose.msra.mxu0 %v3615
        %3617 = vmatprep.subr.mxu0 0.0
        %v3618 = vand.u32 %v1368, 4294901760
        %3619 = vmatpush1.xpose.msra.mxu0 %v3618
        %3620 = vmatprep.subr.mxu0 0.0
        %v3621 = vand.u32 %v1371, 4294901760
        %3622 = vmatpush1.xpose.msra.mxu0 %v3621
        %3623 = vmatprep.subr.mxu0 0.0
        %v3624 = vand.u32 %v1374, 4294901760
        %3625 = vmatpush1.xpose.msra.mxu0 %v3624
        %3626 = vmatprep.subr.mxu0 0.0
        %v3627 = vand.u32 %v1377, 4294901760
        %3628 = vmatpush1.xpose.msra.mxu0 %v3627
        %3629 = vmatprep.subr.mxu0 0.0
        %v3630 = vand.u32 %v1380, 4294901760
        %3631 = vmatpush1.xpose.msra.mxu0 %v3630
        %3632 = vmatprep.subr.mxu0 0.0
        %v3633 = vand.u32 %v1383, 4294901760
        %3634 = vmatpush1.xpose.msra.mxu0 %v3633
        %3635 = vmatprep.subr.mxu0 0.0
        %v3636 = vand.u32 %v1386, 4294901760
        %3637 = vmatpush1.xpose.msra.mxu0 %v3636
        %3638 = vmatprep.subr.mxu0 0.0
        %v3639 = vand.u32 %v1389, 4294901760
        %3640 = vmatpush1.xpose.msra.mxu0 %v3639
        %3641 = vmatprep.mubr.f32.mxu0 0.0
        %v3642 = vand.u32 %v3498, 4294901760
        %v3643 = vsub.f32 %v3498, %v3642
        %v3644 = vand.u32 %v3643, 4294901760
        %v3645 = vsub.f32 %v3643, %v3644
        %v3646 = vand.u32 %v3645, 4294901760
        %3647 = vmatmul.mubr.f32.gmra.mrb[0].mxu0 %v3646
        %v3648 = vpop.f32.mrb[0].mxu0
        %v3649 = vadd.f32 0.0, %v3648
        %v3650 = vpop.f32.mrb[0].mxu0
        %v3651 = vadd.f32 0.0, %v3650
        %3652 = vmatprep.mubr.f32.mxu0 0.0
        %v3653 = vand.u32 %v3501, 4294901760
        %v3654 = vsub.f32 %v3501, %v3653
        %v3655 = vand.u32 %v3654, 4294901760
        %v3656 = vsub.f32 %v3654, %v3655
        %v3657 = vand.u32 %v3656, 4294901760
        %3658 = vmatmul.mubr.f32.gmra.mrb[0].mxu0 %v3657
        %v3659 = vpop.f32.mrb[0].mxu0
        %v3660 = vadd.f32 0.0, %v3659
        %v3661 = vpop.f32.mrb[0].mxu0
        %v3662 = vadd.f32 0.0, %v3661
        %3663 = vmatprep.mubr.f32.mxu0 0.0
        %v3664 = vand.u32 %v3504, 4294901760
        %v3665 = vsub.f32 %v3504, %v3664
        %v3666 = vand.u32 %v3665, 4294901760
        %v3667 = vsub.f32 %v3665, %v3666
        %v3668 = vand.u32 %v3667, 4294901760
        %3669 = vmatmul.mubr.f32.gmra.mrb[0].mxu0 %v3668
        %v3670 = vpop.f32.mrb[0].mxu0
        %v3671 = vadd.f32 0.0, %v3670
        %v3672 = vpop.f32.mrb[0].mxu0
        %v3673 = vadd.f32 0.0, %v3672
        %3674 = vmatprep.mubr.f32.mxu0 0.0
        %v3675 = vand.u32 %v3507, 4294901760
        %v3676 = vsub.f32 %v3507, %v3675
        %v3677 = vand.u32 %v3676, 4294901760
        %v3678 = vsub.f32 %v3676, %v3677
        %v3679 = vand.u32 %v3678, 4294901760
        %3680 = vmatmul.mubr.f32.gmra.mrb[0].mxu0 %v3679
        %v3681 = vpop.f32.mrb[0].mxu0
        %v3682 = vadd.f32 0.0, %v3681
        %v3683 = vpop.f32.mrb[0].mxu0
        %v3684 = vadd.f32 0.0, %v3683
        %3685 = vmatprep.mubr.f32.mxu0 0.0
        %v3686 = vand.u32 %v3510, 4294901760
        %v3687 = vsub.f32 %v3510, %v3686
        %v3688 = vand.u32 %v3687, 4294901760
        %v3689 = vsub.f32 %v3687, %v3688
        %v3690 = vand.u32 %v3689, 4294901760
        %3691 = vmatmul.mubr.f32.gmra.mrb[0].mxu0 %v3690
        %v3692 = vpop.f32.mrb[0].mxu0
        %v3693 = vadd.f32 0.0, %v3692
        %v3694 = vpop.f32.mrb[0].mxu0
        %v3695 = vadd.f32 0.0, %v3694
        %3696 = vmatprep.mubr.f32.mxu0 0.0
        %v3697 = vand.u32 %v3513, 4294901760
        %v3698 = vsub.f32 %v3513, %v3697
        %v3699 = vand.u32 %v3698, 4294901760
        %v3700 = vsub.f32 %v3698, %v3699
        %v3701 = vand.u32 %v3700, 4294901760
        %3702 = vmatmul.mubr.f32.gmra.mrb[0].mxu0 %v3701
        %v3703 = vpop.f32.mrb[0].mxu0
        %v3704 = vadd.f32 0.0, %v3703
        %v3705 = vpop.f32.mrb[0].mxu0
        %v3706 = vadd.f32 0.0, %v3705
        %3707 = vmatprep.mubr.f32.mxu0 0.0
        %v3708 = vand.u32 %v3516, 4294901760
        %v3709 = vsub.f32 %v3516, %v3708
        %v3710 = vand.u32 %v3709, 4294901760
        %v3711 = vsub.f32 %v3709, %v3710
        %v3712 = vand.u32 %v3711, 4294901760
        %3713 = vmatmul.mubr.f32.gmra.mrb[0].mxu0 %v3712
        %v3714 = vpop.f32.mrb[0].mxu0
        %v3715 = vadd.f32 0.0, %v3714
        %v3716 = vpop.f32.mrb[0].mxu0
        %v3717 = vadd.f32 0.0, %v3716
        %3718 = vmatprep.mubr.f32.mxu0 0.0
        %v3719 = vand.u32 %v3519, 4294901760
        %v3720 = vsub.f32 %v3519, %v3719
        %v3721 = vand.u32 %v3720, 4294901760
        %v3722 = vsub.f32 %v3720, %v3721
        %v3723 = vand.u32 %v3722, 4294901760
        %3724 = vmatmul.mubr.f32.gmra.mrb[0].mxu0 %v3723
        %v3725 = vpop.f32.mrb[0].mxu0
        %v3726 = vadd.f32 0.0, %v3725
        %v3727 = vpop.f32.mrb[0].mxu0
        %v3728 = vadd.f32 0.0, %v3727
        %3729 = vmatprep.mubr.f32.mxu0 0.0
        %v3730 = vand.u32 %v3522, 4294901760
        %v3731 = vsub.f32 %v3522, %v3730
        %v3732 = vand.u32 %v3731, 4294901760
        %v3733 = vsub.f32 %v3731, %v3732
        %v3734 = vand.u32 %v3733, 4294901760
        %3735 = vmatmul.mubr.f32.gmra.mrb[0].mxu0 %v3734
        %v3736 = vpop.f32.mrb[0].mxu0
        %v3737 = vadd.f32 0.0, %v3736
        %v3738 = vpop.f32.mrb[0].mxu0
        %v3739 = vadd.f32 0.0, %v3738
        %3740 = vmatprep.mubr.f32.mxu0 0.0
        %v3741 = vand.u32 %v3525, 4294901760
        %v3742 = vsub.f32 %v3525, %v3741
        %v3743 = vand.u32 %v3742, 4294901760
        %v3744 = vsub.f32 %v3742, %v3743
        %v3745 = vand.u32 %v3744, 4294901760
        %3746 = vmatmul.mubr.f32.gmra.mrb[0].mxu0 %v3745
        %v3747 = vpop.f32.mrb[0].mxu0
        %v3748 = vadd.f32 0.0, %v3747
        %v3749 = vpop.f32.mrb[0].mxu0
        %v3750 = vadd.f32 0.0, %v3749
        %3751 = vmatprep.mubr.f32.mxu0 0.0
        %v3752 = vand.u32 %v3528, 4294901760
        %v3753 = vsub.f32 %v3528, %v3752
        %v3754 = vand.u32 %v3753, 4294901760
        %v3755 = vsub.f32 %v3753, %v3754
        %v3756 = vand.u32 %v3755, 4294901760
        %3757 = vmatmul.mubr.f32.gmra.mrb[0].mxu0 %v3756
        %v3758 = vpop.f32.mrb[0].mxu0
        %v3759 = vadd.f32 0.0, %v3758
        %v3760 = vpop.f32.mrb[0].mxu0
        %v3761 = vadd.f32 0.0, %v3760
        %3762 = vmatprep.mubr.f32.mxu0 0.0
        %v3763 = vand.u32 %v3531, 4294901760
        %v3764 = vsub.f32 %v3531, %v3763
        %v3765 = vand.u32 %v3764, 4294901760
        %v3766 = vsub.f32 %v3764, %v3765
        %v3767 = vand.u32 %v3766, 4294901760
        %3768 = vmatmul.mubr.f32.gmra.mrb[0].mxu0 %v3767
        %v3769 = vpop.f32.mrb[0].mxu0
        %v3770 = vadd.f32 0.0, %v3769
        %v3771 = vpop.f32.mrb[0].mxu0
        %v3772 = vadd.f32 0.0, %v3771
        %3773 = vmatprep.mubr.f32.mxu0 0.0
        %v3774 = vand.u32 %v3534, 4294901760
        %v3775 = vsub.f32 %v3534, %v3774
        %v3776 = vand.u32 %v3775, 4294901760
        %v3777 = vsub.f32 %v3775, %v3776
        %v3778 = vand.u32 %v3777, 4294901760
        %3779 = vmatmul.mubr.f32.gmra.mrb[0].mxu0 %v3778
        %v3780 = vpop.f32.mrb[0].mxu0
        %v3781 = vadd.f32 0.0, %v3780
        %v3782 = vpop.f32.mrb[0].mxu0
        %v3783 = vadd.f32 0.0, %v3782
        %3784 = vmatprep.mubr.f32.mxu0 0.0
        %v3785 = vand.u32 %v3537, 4294901760
        %v3786 = vsub.f32 %v3537, %v3785
        %v3787 = vand.u32 %v3786, 4294901760
        %v3788 = vsub.f32 %v3786, %v3787
        %v3789 = vand.u32 %v3788, 4294901760
        %3790 = vmatmul.mubr.f32.gmra.mrb[0].mxu0 %v3789
        %v3791 = vpop.f32.mrb[0].mxu0
        %v3792 = vadd.f32 0.0, %v3791
        %v3793 = vpop.f32.mrb[0].mxu0
        %v3794 = vadd.f32 0.0, %v3793
        %3795 = vmatprep.mubr.f32.mxu0 0.0
        %v3796 = vand.u32 %v3540, 4294901760
        %v3797 = vsub.f32 %v3540, %v3796
        %v3798 = vand.u32 %v3797, 4294901760
        %v3799 = vsub.f32 %v3797, %v3798
        %v3800 = vand.u32 %v3799, 4294901760
        %3801 = vmatmul.mubr.f32.gmra.mrb[0].mxu0 %v3800
        %v3802 = vpop.f32.mrb[0].mxu0
        %v3803 = vadd.f32 0.0, %v3802
        %v3804 = vpop.f32.mrb[0].mxu0
        %v3805 = vadd.f32 0.0, %v3804
        %3806 = vmatprep.mubr.f32.mxu0 0.0
        %v3807 = vand.u32 %v3543, 4294901760
        %v3808 = vsub.f32 %v3543, %v3807
        %v3809 = vand.u32 %v3808, 4294901760
        %v3810 = vsub.f32 %v3808, %v3809
        %v3811 = vand.u32 %v3810, 4294901760
        %3812 = vmatmul.mubr.f32.gmra.mrb[0].mxu0 %v3811
        %v3813 = vpop.f32.mrb[0].mxu0
        %v3814 = vadd.f32 0.0, %v3813
        %v3815 = vpop.f32.mrb[0].mxu0
        %v3816 = vadd.f32 0.0, %v3815
        %3817 = vdwg.mxu0
        %3818 = vmatprep.subr.mxu0 0.0
        %v3819 = vand.u32 %v1296, 4294901760
        %v3820 = vsub.f32 %v1296, %v3819
        %v3821 = vand.u32 %v3820, 4294901760
        %v3822 = vsub.f32 %v3820, %v3821
        %v3823 = vand.u32 %v3822, 4294901760
        %3824 = vmatpush1.xpose.msra.mxu0 %v3823
        %3825 = vmatprep.subr.mxu0 0.0
        %v3826 = vand.u32 %v1299, 4294901760
        %v3827 = vsub.f32 %v1299, %v3826
        %v3828 = vand.u32 %v3827, 4294901760
        %v3829 = vsub.f32 %v3827, %v3828
        %v3830 = vand.u32 %v3829, 4294901760
        %3831 = vmatpush1.xpose.msra.mxu0 %v3830
        %3832 = vmatprep.subr.mxu0 0.0
        %v3833 = vand.u32 %v1302, 4294901760
        %v3834 = vsub.f32 %v1302, %v3833
        %v3835 = vand.u32 %v3834, 4294901760
        %v3836 = vsub.f32 %v3834, %v3835
        %v3837 = vand.u32 %v3836, 4294901760
        %3838 = vmatpush1.xpose.msra.mxu0 %v3837
        %3839 = vmatprep.subr.mxu0 0.0
        %v3840 = vand.u32 %v1305, 4294901760
        %v3841 = vsub.f32 %v1305, %v3840
        %v3842 = vand.u32 %v3841, 4294901760
        %v3843 = vsub.f32 %v3841, %v3842
        %v3844 = vand.u32 %v3843, 4294901760
        %3845 = vmatpush1.xpose.msra.mxu0 %v3844
        %3846 = vmatprep.subr.mxu0 0.0
        %v3847 = vand.u32 %v1308, 4294901760
        %v3848 = vsub.f32 %v1308, %v3847
        %v3849 = vand.u32 %v3848, 4294901760
        %v3850 = vsub.f32 %v3848, %v3849
        %v3851 = vand.u32 %v3850, 4294901760
        %3852 = vmatpush1.xpose.msra.mxu0 %v3851
        %3853 = vmatprep.subr.mxu0 0.0
        %v3854 = vand.u32 %v1311, 4294901760
        %v3855 = vsub.f32 %v1311, %v3854
        %v3856 = vand.u32 %v3855, 4294901760
        %v3857 = vsub.f32 %v3855, %v3856
        %v3858 = vand.u32 %v3857, 4294901760
        %3859 = vmatpush1.xpose.msra.mxu0 %v3858
        %3860 = vmatprep.subr.mxu0 0.0
        %v3861 = vand.u32 %v1314, 4294901760
        %v3862 = vsub.f32 %v1314, %v3861
        %v3863 = vand.u32 %v3862, 4294901760
        %v3864 = vsub.f32 %v3862, %v3863
        %v3865 = vand.u32 %v3864, 4294901760
        %3866 = vmatpush1.xpose.msra.mxu0 %v3865
        %3867 = vmatprep.subr.mxu0 0.0
        %v3868 = vand.u32 %v1317, 4294901760
        %v3869 = vsub.f32 %v1317, %v3868
        %v3870 = vand.u32 %v3869, 4294901760
        %v3871 = vsub.f32 %v3869, %v3870
        %v3872 = vand.u32 %v3871, 4294901760
        %3873 = vmatpush1.xpose.msra.mxu0 %v3872
        %3874 = vmatprep.subr.mxu0 0.0
        %v3875 = vand.u32 %v1320, 4294901760
        %v3876 = vsub.f32 %v1320, %v3875
        %v3877 = vand.u32 %v3876, 4294901760
        %v3878 = vsub.f32 %v3876, %v3877
        %v3879 = vand.u32 %v3878, 4294901760
        %3880 = vmatpush1.xpose.msra.mxu0 %v3879
        %3881 = vmatprep.subr.mxu0 0.0
        %v3882 = vand.u32 %v1323, 4294901760
        %v3883 = vsub.f32 %v1323, %v3882
        %v3884 = vand.u32 %v3883, 4294901760
        %v3885 = vsub.f32 %v3883, %v3884
        %v3886 = vand.u32 %v3885, 4294901760
        %3887 = vmatpush1.xpose.msra.mxu0 %v3886
        %3888 = vmatprep.subr.mxu0 0.0
        %v3889 = vand.u32 %v1326, 4294901760
        %v3890 = vsub.f32 %v1326, %v3889
        %v3891 = vand.u32 %v3890, 4294901760
        %v3892 = vsub.f32 %v3890, %v3891
        %v3893 = vand.u32 %v3892, 4294901760
        %3894 = vmatpush1.xpose.msra.mxu0 %v3893
        %3895 = vmatprep.subr.mxu0 0.0
        %v3896 = vand.u32 %v1329, 4294901760
        %v3897 = vsub.f32 %v1329, %v3896
        %v3898 = vand.u32 %v3897, 4294901760
        %v3899 = vsub.f32 %v3897, %v3898
        %v3900 = vand.u32 %v3899, 4294901760
        %3901 = vmatpush1.xpose.msra.mxu0 %v3900
        %3902 = vmatprep.subr.mxu0 0.0
        %v3903 = vand.u32 %v1332, 4294901760
        %v3904 = vsub.f32 %v1332, %v3903
        %v3905 = vand.u32 %v3904, 4294901760
        %v3906 = vsub.f32 %v3904, %v3905
        %v3907 = vand.u32 %v3906, 4294901760
        %3908 = vmatpush1.xpose.msra.mxu0 %v3907
        %3909 = vmatprep.subr.mxu0 0.0
        %v3910 = vand.u32 %v1335, 4294901760
        %v3911 = vsub.f32 %v1335, %v3910
        %v3912 = vand.u32 %v3911, 4294901760
        %v3913 = vsub.f32 %v3911, %v3912
        %v3914 = vand.u32 %v3913, 4294901760
        %3915 = vmatpush1.xpose.msra.mxu0 %v3914
        %3916 = vmatprep.subr.mxu0 0.0
        %v3917 = vand.u32 %v1338, 4294901760
        %v3918 = vsub.f32 %v1338, %v3917
        %v3919 = vand.u32 %v3918, 4294901760
        %v3920 = vsub.f32 %v3918, %v3919
        %v3921 = vand.u32 %v3920, 4294901760
        %3922 = vmatpush1.xpose.msra.mxu0 %v3921
        %3923 = vmatprep.subr.mxu0 0.0
        %v3924 = vand.u32 %v1341, 4294901760
        %v3925 = vsub.f32 %v1341, %v3924
        %v3926 = vand.u32 %v3925, 4294901760
        %v3927 = vsub.f32 %v3925, %v3926
        %v3928 = vand.u32 %v3927, 4294901760
        %3929 = vmatpush1.xpose.msra.mxu0 %v3928
        %3930 = vmatprep.subr.mxu0 0.0
        %v3931 = vand.u32 %v1344, 4294901760
        %v3932 = vsub.f32 %v1344, %v3931
        %v3933 = vand.u32 %v3932, 4294901760
        %v3934 = vsub.f32 %v3932, %v3933
        %v3935 = vand.u32 %v3934, 4294901760
        %3936 = vmatpush1.xpose.msra.mxu0 %v3935
        %3937 = vmatprep.subr.mxu0 0.0
        %v3938 = vand.u32 %v1347, 4294901760
        %v3939 = vsub.f32 %v1347, %v3938
        %v3940 = vand.u32 %v3939, 4294901760
        %v3941 = vsub.f32 %v3939, %v3940
        %v3942 = vand.u32 %v3941, 4294901760
        %3943 = vmatpush1.xpose.msra.mxu0 %v3942
        %3944 = vmatprep.subr.mxu0 0.0
        %v3945 = vand.u32 %v1350, 4294901760
        %v3946 = vsub.f32 %v1350, %v3945
        %v3947 = vand.u32 %v3946, 4294901760
        %v3948 = vsub.f32 %v3946, %v3947
        %v3949 = vand.u32 %v3948, 4294901760
        %3950 = vmatpush1.xpose.msra.mxu0 %v3949
        %3951 = vmatprep.subr.mxu0 0.0
        %v3952 = vand.u32 %v1353, 4294901760
        %v3953 = vsub.f32 %v1353, %v3952
        %v3954 = vand.u32 %v3953, 4294901760
        %v3955 = vsub.f32 %v3953, %v3954
        %v3956 = vand.u32 %v3955, 4294901760
        %3957 = vmatpush1.xpose.msra.mxu0 %v3956
        %3958 = vmatprep.subr.mxu0 0.0
        %v3959 = vand.u32 %v1356, 4294901760
        %v3960 = vsub.f32 %v1356, %v3959
        %v3961 = vand.u32 %v3960, 4294901760
        %v3962 = vsub.f32 %v3960, %v3961
        %v3963 = vand.u32 %v3962, 4294901760
        %3964 = vmatpush1.xpose.msra.mxu0 %v3963
        %3965 = vmatprep.subr.mxu0 0.0
        %v3966 = vand.u32 %v1359, 4294901760
        %v3967 = vsub.f32 %v1359, %v3966
        %v3968 = vand.u32 %v3967, 4294901760
        %v3969 = vsub.f32 %v3967, %v3968
        %v3970 = vand.u32 %v3969, 4294901760
        %3971 = vmatpush1.xpose.msra.mxu0 %v3970
        %3972 = vmatprep.subr.mxu0 0.0
        %v3973 = vand.u32 %v1362, 4294901760
        %v3974 = vsub.f32 %v1362, %v3973
        %v3975 = vand.u32 %v3974, 4294901760
        %v3976 = vsub.f32 %v3974, %v3975
        %v3977 = vand.u32 %v3976, 4294901760
        %3978 = vmatpush1.xpose.msra.mxu0 %v3977
        %3979 = vmatprep.subr.mxu0 0.0
        %v3980 = vand.u32 %v1365, 4294901760
        %v3981 = vsub.f32 %v1365, %v3980
        %v3982 = vand.u32 %v3981, 4294901760
        %v3983 = vsub.f32 %v3981, %v3982
        %v3984 = vand.u32 %v3983, 4294901760
        %3985 = vmatpush1.xpose.msra.mxu0 %v3984
        %3986 = vmatprep.subr.mxu0 0.0
        %v3987 = vand.u32 %v1368, 4294901760
        %v3988 = vsub.f32 %v1368, %v3987
        %v3989 = vand.u32 %v3988, 4294901760
        %v3990 = vsub.f32 %v3988, %v3989
        %v3991 = vand.u32 %v3990, 4294901760
        %3992 = vmatpush1.xpose.msra.mxu0 %v3991
        %3993 = vmatprep.subr.mxu0 0.0
        %v3994 = vand.u32 %v1371, 4294901760
        %v3995 = vsub.f32 %v1371, %v3994
        %v3996 = vand.u32 %v3995, 4294901760
        %v3997 = vsub.f32 %v3995, %v3996
        %v3998 = vand.u32 %v3997, 4294901760
        %3999 = vmatpush1.xpose.msra.mxu0 %v3998
        %4000 = vmatprep.subr.mxu0 0.0
        %v4001 = vand.u32 %v1374, 4294901760
        %v4002 = vsub.f32 %v1374, %v4001
        %v4003 = vand.u32 %v4002, 4294901760
        %v4004 = vsub.f32 %v4002, %v4003
        %v4005 = vand.u32 %v4004, 4294901760
        %4006 = vmatpush1.xpose.msra.mxu0 %v4005
        %4007 = vmatprep.subr.mxu0 0.0
        %v4008 = vand.u32 %v1377, 4294901760
        %v4009 = vsub.f32 %v1377, %v4008
        %v4010 = vand.u32 %v4009, 4294901760
        %v4011 = vsub.f32 %v4009, %v4010
        %v4012 = vand.u32 %v4011, 4294901760
        %4013 = vmatpush1.xpose.msra.mxu0 %v4012
        %4014 = vmatprep.subr.mxu0 0.0
        %v4015 = vand.u32 %v1380, 4294901760
        %v4016 = vsub.f32 %v1380, %v4015
        %v4017 = vand.u32 %v4016, 4294901760
        %v4018 = vsub.f32 %v4016, %v4017
        %v4019 = vand.u32 %v4018, 4294901760
        %4020 = vmatpush1.xpose.msra.mxu0 %v4019
        %4021 = vmatprep.subr.mxu0 0.0
        %v4022 = vand.u32 %v1383, 4294901760
        %v4023 = vsub.f32 %v1383, %v4022
        %v4024 = vand.u32 %v4023, 4294901760
        %v4025 = vsub.f32 %v4023, %v4024
        %v4026 = vand.u32 %v4025, 4294901760
        %4027 = vmatpush1.xpose.msra.mxu0 %v4026
        %4028 = vmatprep.subr.mxu0 0.0
        %v4029 = vand.u32 %v1386, 4294901760
        %v4030 = vsub.f32 %v1386, %v4029
        %v4031 = vand.u32 %v4030, 4294901760
        %v4032 = vsub.f32 %v4030, %v4031
        %v4033 = vand.u32 %v4032, 4294901760
        %4034 = vmatpush1.xpose.msra.mxu0 %v4033
        %4035 = vmatprep.subr.mxu0 0.0
        %v4036 = vand.u32 %v1389, 4294901760
        %v4037 = vsub.f32 %v1389, %v4036
        %v4038 = vand.u32 %v4037, 4294901760
        %v4039 = vsub.f32 %v4037, %v4038
        %v4040 = vand.u32 %v4039, 4294901760
        %4041 = vmatpush1.xpose.msra.mxu0 %v4040
        %4042 = vmatprep.mubr.f32.mxu0 0.0
        %v4043 = vand.u32 %v3498, 4294901760
        %4044 = vmatmul.mubr.f32.gmra.mrb[0].mxu0 %v4043
        %v4045 = vpop.f32.mrb[0].mxu0
        %v4046 = vadd.f32 %v3649, %v4045
        %v4047 = vpop.f32.mrb[0].mxu0
        %v4048 = vadd.f32 %v3651, %v4047
        %4049 = vmatprep.mubr.f32.mxu0 0.0
        %v4050 = vand.u32 %v3501, 4294901760
        %4051 = vmatmul.mubr.f32.gmra.mrb[0].mxu0 %v4050
        %v4052 = vpop.f32.mrb[0].mxu0
        %v4053 = vadd.f32 %v3660, %v4052
        %v4054 = vpop.f32.mrb[0].mxu0
        %v4055 = vadd.f32 %v3662, %v4054
        %4056 = vmatprep.mubr.f32.mxu0 0.0
        %v4057 = vand.u32 %v3504, 4294901760
        %4058 = vmatmul.mubr.f32.gmra.mrb[0].mxu0 %v4057
        %v4059 = vpop.f32.mrb[0].mxu0
        %v4060 = vadd.f32 %v3671, %v4059
        %v4061 = vpop.f32.mrb[0].mxu0
        %v4062 = vadd.f32 %v3673, %v4061
        %4063 = vmatprep.mubr.f32.mxu0 0.0
        %v4064 = vand.u32 %v3507, 4294901760
        %4065 = vmatmul.mubr.f32.gmra.mrb[0].mxu0 %v4064
        %v4066 = vpop.f32.mrb[0].mxu0
        %v4067 = vadd.f32 %v3682, %v4066
        %v4068 = vpop.f32.mrb[0].mxu0
        %v4069 = vadd.f32 %v3684, %v4068
        %4070 = vmatprep.mubr.f32.mxu0 0.0
        %v4071 = vand.u32 %v3510, 4294901760
        %4072 = vmatmul.mubr.f32.gmra.mrb[0].mxu0 %v4071
        %v4073 = vpop.f32.mrb[0].mxu0
        %v4074 = vadd.f32 %v3693, %v4073
        %v4075 = vpop.f32.mrb[0].mxu0
        %v4076 = vadd.f32 %v3695, %v4075
        %4077 = vmatprep.mubr.f32.mxu0 0.0
        %v4078 = vand.u32 %v3513, 4294901760
        %4079 = vmatmul.mubr.f32.gmra.mrb[0].mxu0 %v4078
        %v4080 = vpop.f32.mrb[0].mxu0
        %v4081 = vadd.f32 %v3704, %v4080
        %v4082 = vpop.f32.mrb[0].mxu0
        %v4083 = vadd.f32 %v3706, %v4082
        %4084 = vmatprep.mubr.f32.mxu0 0.0
        %v4085 = vand.u32 %v3516, 4294901760
        %4086 = vmatmul.mubr.f32.gmra.mrb[0].mxu0 %v4085
        %v4087 = vpop.f32.mrb[0].mxu0
        %v4088 = vadd.f32 %v3715, %v4087
        %v4089 = vpop.f32.mrb[0].mxu0
        %v4090 = vadd.f32 %v3717, %v4089
        %4091 = vmatprep.mubr.f32.mxu0 0.0
        %v4092 = vand.u32 %v3519, 4294901760
        %4093 = vmatmul.mubr.f32.gmra.mrb[0].mxu0 %v4092
        %v4094 = vpop.f32.mrb[0].mxu0
        %v4095 = vadd.f32 %v3726, %v4094
        %v4096 = vpop.f32.mrb[0].mxu0
        %v4097 = vadd.f32 %v3728, %v4096
        %4098 = vmatprep.mubr.f32.mxu0 0.0
        %v4099 = vand.u32 %v3522, 4294901760
        %4100 = vmatmul.mubr.f32.gmra.mrb[0].mxu0 %v4099
        %v4101 = vpop.f32.mrb[0].mxu0
        %v4102 = vadd.f32 %v3737, %v4101
        %v4103 = vpop.f32.mrb[0].mxu0
        %v4104 = vadd.f32 %v3739, %v4103
        %4105 = vmatprep.mubr.f32.mxu0 0.0
        %v4106 = vand.u32 %v3525, 4294901760
        %4107 = vmatmul.mubr.f32.gmra.mrb[0].mxu0 %v4106
        %v4108 = vpop.f32.mrb[0].mxu0
        %v4109 = vadd.f32 %v3748, %v4108
        %v4110 = vpop.f32.mrb[0].mxu0
        %v4111 = vadd.f32 %v3750, %v4110
        %4112 = vmatprep.mubr.f32.mxu0 0.0
        %v4113 = vand.u32 %v3528, 4294901760
        %4114 = vmatmul.mubr.f32.gmra.mrb[0].mxu0 %v4113
        %v4115 = vpop.f32.mrb[0].mxu0
        %v4116 = vadd.f32 %v3759, %v4115
        %v4117 = vpop.f32.mrb[0].mxu0
        %v4118 = vadd.f32 %v3761, %v4117
        %4119 = vmatprep.mubr.f32.mxu0 0.0
        %v4120 = vand.u32 %v3531, 4294901760
        %4121 = vmatmul.mubr.f32.gmra.mrb[0].mxu0 %v4120
        %v4122 = vpop.f32.mrb[0].mxu0
        %v4123 = vadd.f32 %v3770, %v4122
        %v4124 = vpop.f32.mrb[0].mxu0
        %v4125 = vadd.f32 %v3772, %v4124
        %4126 = vmatprep.mubr.f32.mxu0 0.0
        %v4127 = vand.u32 %v3534, 4294901760
        %4128 = vmatmul.mubr.f32.gmra.mrb[0].mxu0 %v4127
        %v4129 = vpop.f32.mrb[0].mxu0
        %v4130 = vadd.f32 %v3781, %v4129
        %v4131 = vpop.f32.mrb[0].mxu0
        %v4132 = vadd.f32 %v3783, %v4131
        %4133 = vmatprep.mubr.f32.mxu0 0.0
        %v4134 = vand.u32 %v3537, 4294901760
        %4135 = vmatmul.mubr.f32.gmra.mrb[0].mxu0 %v4134
        %v4136 = vpop.f32.mrb[0].mxu0
        %v4137 = vadd.f32 %v3792, %v4136
        %v4138 = vpop.f32.mrb[0].mxu0
        %v4139 = vadd.f32 %v3794, %v4138
        %4140 = vmatprep.mubr.f32.mxu0 0.0
        %v4141 = vand.u32 %v3540, 4294901760
        %4142 = vmatmul.mubr.f32.gmra.mrb[0].mxu0 %v4141
        %v4143 = vpop.f32.mrb[0].mxu0
        %v4144 = vadd.f32 %v3803, %v4143
        %v4145 = vpop.f32.mrb[0].mxu0
        %v4146 = vadd.f32 %v3805, %v4145
        %4147 = vmatprep.mubr.f32.mxu0 0.0
        %v4148 = vand.u32 %v3543, 4294901760
        %4149 = vmatmul.mubr.f32.gmra.mrb[0].mxu0 %v4148
        %v4150 = vpop.f32.mrb[0].mxu0
        %v4151 = vadd.f32 %v3814, %v4150
        %v4152 = vpop.f32.mrb[0].mxu0
        %v4153 = vadd.f32 %v3816, %v4152
        %4154 = vdwg.mxu0
        %4155 = vmatprep.subr.mxu0 0.0
        %v4156 = vand.u32 %v1296, 4294901760
        %v4157 = vsub.f32 %v1296, %v4156
        %4158 = vmatpush1.xpose.msra.mxu0 %v4157
        %4159 = vmatprep.subr.mxu0 0.0
        %v4160 = vand.u32 %v1299, 4294901760
        %v4161 = vsub.f32 %v1299, %v4160
        %4162 = vmatpush1.xpose.msra.mxu0 %v4161
        %4163 = vmatprep.subr.mxu0 0.0
        %v4164 = vand.u32 %v1302, 4294901760
        %v4165 = vsub.f32 %v1302, %v4164
        %4166 = vmatpush1.xpose.msra.mxu0 %v4165
        %4167 = vmatprep.subr.mxu0 0.0
        %v4168 = vand.u32 %v1305, 4294901760
        %v4169 = vsub.f32 %v1305, %v4168
        %4170 = vmatpush1.xpose.msra.mxu0 %v4169
        %4171 = vmatprep.subr.mxu0 0.0
        %v4172 = vand.u32 %v1308, 4294901760
        %v4173 = vsub.f32 %v1308, %v4172
        %4174 = vmatpush1.xpose.msra.mxu0 %v4173
        %4175 = vmatprep.subr.mxu0 0.0
        %v4176 = vand.u32 %v1311, 4294901760
        %v4177 = vsub.f32 %v1311, %v4176
        %4178 = vmatpush1.xpose.msra.mxu0 %v4177
        %4179 = vmatprep.subr.mxu0 0.0
        %v4180 = vand.u32 %v1314, 4294901760
        %v4181 = vsub.f32 %v1314, %v4180
        %4182 = vmatpush1.xpose.msra.mxu0 %v4181
        %4183 = vmatprep.subr.mxu0 0.0
        %v4184 = vand.u32 %v1317, 4294901760
        %v4185 = vsub.f32 %v1317, %v4184
        %4186 = vmatpush1.xpose.msra.mxu0 %v4185
        %4187 = vmatprep.subr.mxu0 0.0
        %v4188 = vand.u32 %v1320, 4294901760
        %v4189 = vsub.f32 %v1320, %v4188
        %4190 = vmatpush1.xpose.msra.mxu0 %v4189
        %4191 = vmatprep.subr.mxu0 0.0
        %v4192 = vand.u32 %v1323, 4294901760
        %v4193 = vsub.f32 %v1323, %v4192
        %4194 = vmatpush1.xpose.msra.mxu0 %v4193
        %4195 = vmatprep.subr.mxu0 0.0
        %v4196 = vand.u32 %v1326, 4294901760
        %v4197 = vsub.f32 %v1326, %v4196
        %4198 = vmatpush1.xpose.msra.mxu0 %v4197
        %4199 = vmatprep.subr.mxu0 0.0
        %v4200 = vand.u32 %v1329, 4294901760
        %v4201 = vsub.f32 %v1329, %v4200
        %4202 = vmatpush1.xpose.msra.mxu0 %v4201
        %4203 = vmatprep.subr.mxu0 0.0
        %v4204 = vand.u32 %v1332, 4294901760
        %v4205 = vsub.f32 %v1332, %v4204
        %4206 = vmatpush1.xpose.msra.mxu0 %v4205
        %4207 = vmatprep.subr.mxu0 0.0
        %v4208 = vand.u32 %v1335, 4294901760
        %v4209 = vsub.f32 %v1335, %v4208
        %4210 = vmatpush1.xpose.msra.mxu0 %v4209
        %4211 = vmatprep.subr.mxu0 0.0
        %v4212 = vand.u32 %v1338, 4294901760
        %v4213 = vsub.f32 %v1338, %v4212
        %4214 = vmatpush1.xpose.msra.mxu0 %v4213
        %4215 = vmatprep.subr.mxu0 0.0
        %v4216 = vand.u32 %v1341, 4294901760
        %v4217 = vsub.f32 %v1341, %v4216
        %4218 = vmatpush1.xpose.msra.mxu0 %v4217
        %4219 = vmatprep.subr.mxu0 0.0
        %v4220 = vand.u32 %v1344, 4294901760
        %v4221 = vsub.f32 %v1344, %v4220
        %4222 = vmatpush1.xpose.msra.mxu0 %v4221
        %4223 = vmatprep.subr.mxu0 0.0
        %v4224 = vand.u32 %v1347, 4294901760
        %v4225 = vsub.f32 %v1347, %v4224
        %4226 = vmatpush1.xpose.msra.mxu0 %v4225
        %4227 = vmatprep.subr.mxu0 0.0
        %v4228 = vand.u32 %v1350, 4294901760
        %v4229 = vsub.f32 %v1350, %v4228
        %4230 = vmatpush1.xpose.msra.mxu0 %v4229
        %4231 = vmatprep.subr.mxu0 0.0
        %v4232 = vand.u32 %v1353, 4294901760
        %v4233 = vsub.f32 %v1353, %v4232
        %4234 = vmatpush1.xpose.msra.mxu0 %v4233
        %4235 = vmatprep.subr.mxu0 0.0
        %v4236 = vand.u32 %v1356, 4294901760
        %v4237 = vsub.f32 %v1356, %v4236
        %4238 = vmatpush1.xpose.msra.mxu0 %v4237
        %4239 = vmatprep.subr.mxu0 0.0
        %v4240 = vand.u32 %v1359, 4294901760
        %v4241 = vsub.f32 %v1359, %v4240
        %4242 = vmatpush1.xpose.msra.mxu0 %v4241
        %4243 = vmatprep.subr.mxu0 0.0
        %v4244 = vand.u32 %v1362, 4294901760
        %v4245 = vsub.f32 %v1362, %v4244
        %4246 = vmatpush1.xpose.msra.mxu0 %v4245
        %4247 = vmatprep.subr.mxu0 0.0
        %v4248 = vand.u32 %v1365, 4294901760
        %v4249 = vsub.f32 %v1365, %v4248
        %4250 = vmatpush1.xpose.msra.mxu0 %v4249
        %4251 = vmatprep.subr.mxu0 0.0
        %v4252 = vand.u32 %v1368, 4294901760
        %v4253 = vsub.f32 %v1368, %v4252
        %4254 = vmatpush1.xpose.msra.mxu0 %v4253
        %4255 = vmatprep.subr.mxu0 0.0
        %v4256 = vand.u32 %v1371, 4294901760
        %v4257 = vsub.f32 %v1371, %v4256
        %4258 = vmatpush1.xpose.msra.mxu0 %v4257
        %4259 = vmatprep.subr.mxu0 0.0
        %v4260 = vand.u32 %v1374, 4294901760
        %v4261 = vsub.f32 %v1374, %v4260
        %4262 = vmatpush1.xpose.msra.mxu0 %v4261
        %4263 = vmatprep.subr.mxu0 0.0
        %v4264 = vand.u32 %v1377, 4294901760
        %v4265 = vsub.f32 %v1377, %v4264
        %4266 = vmatpush1.xpose.msra.mxu0 %v4265
        %4267 = vmatprep.subr.mxu0 0.0
        %v4268 = vand.u32 %v1380, 4294901760
        %v4269 = vsub.f32 %v1380, %v4268
        %4270 = vmatpush1.xpose.msra.mxu0 %v4269
        %4271 = vmatprep.subr.mxu0 0.0
        %v4272 = vand.u32 %v1383, 4294901760
        %v4273 = vsub.f32 %v1383, %v4272
        %4274 = vmatpush1.xpose.msra.mxu0 %v4273
        %4275 = vmatprep.subr.mxu0 0.0
        %v4276 = vand.u32 %v1386, 4294901760
        %v4277 = vsub.f32 %v1386, %v4276
        %4278 = vmatpush1.xpose.msra.mxu0 %v4277
        %4279 = vmatprep.subr.mxu0 0.0
        %v4280 = vand.u32 %v1389, 4294901760
        %v4281 = vsub.f32 %v1389, %v4280
        %4282 = vmatpush1.xpose.msra.mxu0 %v4281
        %4283 = vmatprep.mubr.f32.mxu0 0.0
        %v4284 = vand.u32 %v3498, 4294901760
        %v4285 = vsub.f32 %v3498, %v4284
        %4286 = vmatmul.mubr.f32.gmra.mrb[0].mxu0 %v4285
        %v4287 = vpop.f32.mrb[0].mxu0
        %v4288 = vadd.f32 %v4046, %v4287
        %v4289 = vpop.f32.mrb[0].mxu0
        %v4290 = vadd.f32 %v4048, %v4289
        %4291 = vmatprep.mubr.f32.mxu0 0.0
        %v4292 = vand.u32 %v3501, 4294901760
        %v4293 = vsub.f32 %v3501, %v4292
        %4294 = vmatmul.mubr.f32.gmra.mrb[0].mxu0 %v4293
        %v4295 = vpop.f32.mrb[0].mxu0
        %v4296 = vadd.f32 %v4053, %v4295
        %v4297 = vpop.f32.mrb[0].mxu0
        %v4298 = vadd.f32 %v4055, %v4297
        %4299 = vmatprep.mubr.f32.mxu0 0.0
        %v4300 = vand.u32 %v3504, 4294901760
        %v4301 = vsub.f32 %v3504, %v4300
        %4302 = vmatmul.mubr.f32.gmra.mrb[0].mxu0 %v4301
        %v4303 = vpop.f32.mrb[0].mxu0
        %v4304 = vadd.f32 %v4060, %v4303
        %v4305 = vpop.f32.mrb[0].mxu0
        %v4306 = vadd.f32 %v4062, %v4305
        %4307 = vmatprep.mubr.f32.mxu0 0.0
        %v4308 = vand.u32 %v3507, 4294901760
        %v4309 = vsub.f32 %v3507, %v4308
        %4310 = vmatmul.mubr.f32.gmra.mrb[0].mxu0 %v4309
        %v4311 = vpop.f32.mrb[0].mxu0
        %v4312 = vadd.f32 %v4067, %v4311
        %v4313 = vpop.f32.mrb[0].mxu0
        %v4314 = vadd.f32 %v4069, %v4313
        %4315 = vmatprep.mubr.f32.mxu0 0.0
        %v4316 = vand.u32 %v3510, 4294901760
        %v4317 = vsub.f32 %v3510, %v4316
        %4318 = vmatmul.mubr.f32.gmra.mrb[0].mxu0 %v4317
        %v4319 = vpop.f32.mrb[0].mxu0
        %v4320 = vadd.f32 %v4074, %v4319
        %v4321 = vpop.f32.mrb[0].mxu0
        %v4322 = vadd.f32 %v4076, %v4321
        %4323 = vmatprep.mubr.f32.mxu0 0.0
        %v4324 = vand.u32 %v3513, 4294901760
        %v4325 = vsub.f32 %v3513, %v4324
        %4326 = vmatmul.mubr.f32.gmra.mrb[0].mxu0 %v4325
        %v4327 = vpop.f32.mrb[0].mxu0
        %v4328 = vadd.f32 %v4081, %v4327
        %v4329 = vpop.f32.mrb[0].mxu0
        %v4330 = vadd.f32 %v4083, %v4329
        %4331 = vmatprep.mubr.f32.mxu0 0.0
        %v4332 = vand.u32 %v3516, 4294901760
        %v4333 = vsub.f32 %v3516, %v4332
        %4334 = vmatmul.mubr.f32.gmra.mrb[0].mxu0 %v4333
        %v4335 = vpop.f32.mrb[0].mxu0
        %v4336 = vadd.f32 %v4088, %v4335
        %v4337 = vpop.f32.mrb[0].mxu0
        %v4338 = vadd.f32 %v4090, %v4337
        %4339 = vmatprep.mubr.f32.mxu0 0.0
        %v4340 = vand.u32 %v3519, 4294901760
        %v4341 = vsub.f32 %v3519, %v4340
        %4342 = vmatmul.mubr.f32.gmra.mrb[0].mxu0 %v4341
        %v4343 = vpop.f32.mrb[0].mxu0
        %v4344 = vadd.f32 %v4095, %v4343
        %v4345 = vpop.f32.mrb[0].mxu0
        %v4346 = vadd.f32 %v4097, %v4345
        %4347 = vmatprep.mubr.f32.mxu0 0.0
        %v4348 = vand.u32 %v3522, 4294901760
        %v4349 = vsub.f32 %v3522, %v4348
        %4350 = vmatmul.mubr.f32.gmra.mrb[0].mxu0 %v4349
        %v4351 = vpop.f32.mrb[0].mxu0
        %v4352 = vadd.f32 %v4102, %v4351
        %v4353 = vpop.f32.mrb[0].mxu0
        %v4354 = vadd.f32 %v4104, %v4353
        %4355 = vmatprep.mubr.f32.mxu0 0.0
        %v4356 = vand.u32 %v3525, 4294901760
        %v4357 = vsub.f32 %v3525, %v4356
        %4358 = vmatmul.mubr.f32.gmra.mrb[0].mxu0 %v4357
        %v4359 = vpop.f32.mrb[0].mxu0
        %v4360 = vadd.f32 %v4109, %v4359
        %v4361 = vpop.f32.mrb[0].mxu0
        %v4362 = vadd.f32 %v4111, %v4361
        %4363 = vmatprep.mubr.f32.mxu0 0.0
        %v4364 = vand.u32 %v3528, 4294901760
        %v4365 = vsub.f32 %v3528, %v4364
        %4366 = vmatmul.mubr.f32.gmra.mrb[0].mxu0 %v4365
        %v4367 = vpop.f32.mrb[0].mxu0
        %v4368 = vadd.f32 %v4116, %v4367
        %v4369 = vpop.f32.mrb[0].mxu0
        %v4370 = vadd.f32 %v4118, %v4369
        %4371 = vmatprep.mubr.f32.mxu0 0.0
        %v4372 = vand.u32 %v3531, 4294901760
        %v4373 = vsub.f32 %v3531, %v4372
        %4374 = vmatmul.mubr.f32.gmra.mrb[0].mxu0 %v4373
        %v4375 = vpop.f32.mrb[0].mxu0
        %v4376 = vadd.f32 %v4123, %v4375
        %v4377 = vpop.f32.mrb[0].mxu0
        %v4378 = vadd.f32 %v4125, %v4377
        %4379 = vmatprep.mubr.f32.mxu0 0.0
        %v4380 = vand.u32 %v3534, 4294901760
        %v4381 = vsub.f32 %v3534, %v4380
        %4382 = vmatmul.mubr.f32.gmra.mrb[0].mxu0 %v4381
        %v4383 = vpop.f32.mrb[0].mxu0
        %v4384 = vadd.f32 %v4130, %v4383
        %v4385 = vpop.f32.mrb[0].mxu0
        %v4386 = vadd.f32 %v4132, %v4385
        %4387 = vmatprep.mubr.f32.mxu0 0.0
        %v4388 = vand.u32 %v3537, 4294901760
        %v4389 = vsub.f32 %v3537, %v4388
        %4390 = vmatmul.mubr.f32.gmra.mrb[0].mxu0 %v4389
        %v4391 = vpop.f32.mrb[0].mxu0
        %v4392 = vadd.f32 %v4137, %v4391
        %v4393 = vpop.f32.mrb[0].mxu0
        %v4394 = vadd.f32 %v4139, %v4393
        %4395 = vmatprep.mubr.f32.mxu0 0.0
        %v4396 = vand.u32 %v3540, 4294901760
        %v4397 = vsub.f32 %v3540, %v4396
        %4398 = vmatmul.mubr.f32.gmra.mrb[0].mxu0 %v4397
        %v4399 = vpop.f32.mrb[0].mxu0
        %v4400 = vadd.f32 %v4144, %v4399
        %v4401 = vpop.f32.mrb[0].mxu0
        %v4402 = vadd.f32 %v4146, %v4401
        %4403 = vmatprep.mubr.f32.mxu0 0.0
        %v4404 = vand.u32 %v3543, 4294901760
        %v4405 = vsub.f32 %v3543, %v4404
        %4406 = vmatmul.mubr.f32.gmra.mrb[0].mxu0 %v4405
        %v4407 = vpop.f32.mrb[0].mxu0
        %v4408 = vadd.f32 %v4151, %v4407
        %v4409 = vpop.f32.mrb[0].mxu0
        %v4410 = vadd.f32 %v4153, %v4409
        %4411 = vdwg.mxu0
        %4412 = vmatprep.subr.mxu0 0.0
        %v4413 = vand.u32 %v1296, 4294901760
        %4414 = vmatpush1.xpose.msra.mxu0 %v4413
        %4415 = vmatprep.subr.mxu0 0.0
        %v4416 = vand.u32 %v1299, 4294901760
        %4417 = vmatpush1.xpose.msra.mxu0 %v4416
        %4418 = vmatprep.subr.mxu0 0.0
        %v4419 = vand.u32 %v1302, 4294901760
        %4420 = vmatpush1.xpose.msra.mxu0 %v4419
        %4421 = vmatprep.subr.mxu0 0.0
        %v4422 = vand.u32 %v1305, 4294901760
        %4423 = vmatpush1.xpose.msra.mxu0 %v4422
        %4424 = vmatprep.subr.mxu0 0.0
        %v4425 = vand.u32 %v1308, 4294901760
        %4426 = vmatpush1.xpose.msra.mxu0 %v4425
        %4427 = vmatprep.subr.mxu0 0.0
        %v4428 = vand.u32 %v1311, 4294901760
        %4429 = vmatpush1.xpose.msra.mxu0 %v4428
        %4430 = vmatprep.subr.mxu0 0.0
        %v4431 = vand.u32 %v1314, 4294901760
        %4432 = vmatpush1.xpose.msra.mxu0 %v4431
        %4433 = vmatprep.subr.mxu0 0.0
        %v4434 = vand.u32 %v1317, 4294901760
        %4435 = vmatpush1.xpose.msra.mxu0 %v4434
        %4436 = vmatprep.subr.mxu0 0.0
        %v4437 = vand.u32 %v1320, 4294901760
        %4438 = vmatpush1.xpose.msra.mxu0 %v4437
        %4439 = vmatprep.subr.mxu0 0.0
        %v4440 = vand.u32 %v1323, 4294901760
        %4441 = vmatpush1.xpose.msra.mxu0 %v4440
        %4442 = vmatprep.subr.mxu0 0.0
        %v4443 = vand.u32 %v1326, 4294901760
        %4444 = vmatpush1.xpose.msra.mxu0 %v4443
        %4445 = vmatprep.subr.mxu0 0.0
        %v4446 = vand.u32 %v1329, 4294901760
        %4447 = vmatpush1.xpose.msra.mxu0 %v4446
        %4448 = vmatprep.subr.mxu0 0.0
        %v4449 = vand.u32 %v1332, 4294901760
        %4450 = vmatpush1.xpose.msra.mxu0 %v4449
        %4451 = vmatprep.subr.mxu0 0.0
        %v4452 = vand.u32 %v1335, 4294901760
        %4453 = vmatpush1.xpose.msra.mxu0 %v4452
        %4454 = vmatprep.subr.mxu0 0.0
        %v4455 = vand.u32 %v1338, 4294901760
        %4456 = vmatpush1.xpose.msra.mxu0 %v4455
        %4457 = vmatprep.subr.mxu0 0.0
        %v4458 = vand.u32 %v1341, 4294901760
        %4459 = vmatpush1.xpose.msra.mxu0 %v4458
        %4460 = vmatprep.subr.mxu0 0.0
        %v4461 = vand.u32 %v1344, 4294901760
        %4462 = vmatpush1.xpose.msra.mxu0 %v4461
        %4463 = vmatprep.subr.mxu0 0.0
        %v4464 = vand.u32 %v1347, 4294901760
        %4465 = vmatpush1.xpose.msra.mxu0 %v4464
        %4466 = vmatprep.subr.mxu0 0.0
        %v4467 = vand.u32 %v1350, 4294901760
        %4468 = vmatpush1.xpose.msra.mxu0 %v4467
        %4469 = vmatprep.subr.mxu0 0.0
        %v4470 = vand.u32 %v1353, 4294901760
        %4471 = vmatpush1.xpose.msra.mxu0 %v4470
        %4472 = vmatprep.subr.mxu0 0.0
        %v4473 = vand.u32 %v1356, 4294901760
        %4474 = vmatpush1.xpose.msra.mxu0 %v4473
        %4475 = vmatprep.subr.mxu0 0.0
        %v4476 = vand.u32 %v1359, 4294901760
        %4477 = vmatpush1.xpose.msra.mxu0 %v4476
        %4478 = vmatprep.subr.mxu0 0.0
        %v4479 = vand.u32 %v1362, 4294901760
        %4480 = vmatpush1.xpose.msra.mxu0 %v4479
        %4481 = vmatprep.subr.mxu0 0.0
        %v4482 = vand.u32 %v1365, 4294901760
        %4483 = vmatpush1.xpose.msra.mxu0 %v4482
        %4484 = vmatprep.subr.mxu0 0.0
        %v4485 = vand.u32 %v1368, 4294901760
        %4486 = vmatpush1.xpose.msra.mxu0 %v4485
        %4487 = vmatprep.subr.mxu0 0.0
        %v4488 = vand.u32 %v1371, 4294901760
        %4489 = vmatpush1.xpose.msra.mxu0 %v4488
        %4490 = vmatprep.subr.mxu0 0.0
        %v4491 = vand.u32 %v1374, 4294901760
        %4492 = vmatpush1.xpose.msra.mxu0 %v4491
        %4493 = vmatprep.subr.mxu0 0.0
        %v4494 = vand.u32 %v1377, 4294901760
        %4495 = vmatpush1.xpose.msra.mxu0 %v4494
        %4496 = vmatprep.subr.mxu0 0.0
        %v4497 = vand.u32 %v1380, 4294901760
        %4498 = vmatpush1.xpose.msra.mxu0 %v4497
        %4499 = vmatprep.subr.mxu0 0.0
        %v4500 = vand.u32 %v1383, 4294901760
        %4501 = vmatpush1.xpose.msra.mxu0 %v4500
        %4502 = vmatprep.subr.mxu0 0.0
        %v4503 = vand.u32 %v1386, 4294901760
        %4504 = vmatpush1.xpose.msra.mxu0 %v4503
        %4505 = vmatprep.subr.mxu0 0.0
        %v4506 = vand.u32 %v1389, 4294901760
        %4507 = vmatpush1.xpose.msra.mxu0 %v4506
        %4508 = vmatprep.mubr.f32.mxu0 0.0
        %v4509 = vand.u32 %v3498, 4294901760
        %v4510 = vsub.f32 %v3498, %v4509
        %v4511 = vand.u32 %v4510, 4294901760
        %4512 = vmatmul.mubr.f32.gmra.mrb[0].mxu0 %v4511
        %v4513 = vpop.f32.mrb[0].mxu0
        %v4514 = vadd.f32 %v4288, %v4513
        %v4515 = vpop.f32.mrb[0].mxu0
        %v4516 = vadd.f32 %v4290, %v4515
        %4517 = vmatprep.mubr.f32.mxu0 0.0
        %v4518 = vand.u32 %v3501, 4294901760
        %v4519 = vsub.f32 %v3501, %v4518
        %v4520 = vand.u32 %v4519, 4294901760
        %4521 = vmatmul.mubr.f32.gmra.mrb[0].mxu0 %v4520
        %v4522 = vpop.f32.mrb[0].mxu0
        %v4523 = vadd.f32 %v4296, %v4522
        %v4524 = vpop.f32.mrb[0].mxu0
        %v4525 = vadd.f32 %v4298, %v4524
        %4526 = vmatprep.mubr.f32.mxu0 0.0
        %v4527 = vand.u32 %v3504, 4294901760
        %v4528 = vsub.f32 %v3504, %v4527
        %v4529 = vand.u32 %v4528, 4294901760
        %4530 = vmatmul.mubr.f32.gmra.mrb[0].mxu0 %v4529
        %v4531 = vpop.f32.mrb[0].mxu0
        %v4532 = vadd.f32 %v4304, %v4531
        %v4533 = vpop.f32.mrb[0].mxu0
        %v4534 = vadd.f32 %v4306, %v4533
        %4535 = vmatprep.mubr.f32.mxu0 0.0
        %v4536 = vand.u32 %v3507, 4294901760
        %v4537 = vsub.f32 %v3507, %v4536
        %v4538 = vand.u32 %v4537, 4294901760
        %4539 = vmatmul.mubr.f32.gmra.mrb[0].mxu0 %v4538
        %v4540 = vpop.f32.mrb[0].mxu0
        %v4541 = vadd.f32 %v4312, %v4540
        %v4542 = vpop.f32.mrb[0].mxu0
        %v4543 = vadd.f32 %v4314, %v4542
        %4544 = vmatprep.mubr.f32.mxu0 0.0
        %v4545 = vand.u32 %v3510, 4294901760
        %v4546 = vsub.f32 %v3510, %v4545
        %v4547 = vand.u32 %v4546, 4294901760
        %4548 = vmatmul.mubr.f32.gmra.mrb[0].mxu0 %v4547
        %v4549 = vpop.f32.mrb[0].mxu0
        %v4550 = vadd.f32 %v4320, %v4549
        %v4551 = vpop.f32.mrb[0].mxu0
        %v4552 = vadd.f32 %v4322, %v4551
        %4553 = vmatprep.mubr.f32.mxu0 0.0
        %v4554 = vand.u32 %v3513, 4294901760
        %v4555 = vsub.f32 %v3513, %v4554
        %v4556 = vand.u32 %v4555, 4294901760
        %4557 = vmatmul.mubr.f32.gmra.mrb[0].mxu0 %v4556
        %v4558 = vpop.f32.mrb[0].mxu0
        %v4559 = vadd.f32 %v4328, %v4558
        %v4560 = vpop.f32.mrb[0].mxu0
        %v4561 = vadd.f32 %v4330, %v4560
        %4562 = vmatprep.mubr.f32.mxu0 0.0
        %v4563 = vand.u32 %v3516, 4294901760
        %v4564 = vsub.f32 %v3516, %v4563
        %v4565 = vand.u32 %v4564, 4294901760
        %4566 = vmatmul.mubr.f32.gmra.mrb[0].mxu0 %v4565
        %v4567 = vpop.f32.mrb[0].mxu0
        %v4568 = vadd.f32 %v4336, %v4567
        %v4569 = vpop.f32.mrb[0].mxu0
        %v4570 = vadd.f32 %v4338, %v4569
        %4571 = vmatprep.mubr.f32.mxu0 0.0
        %v4572 = vand.u32 %v3519, 4294901760
        %v4573 = vsub.f32 %v3519, %v4572
        %v4574 = vand.u32 %v4573, 4294901760
        %4575 = vmatmul.mubr.f32.gmra.mrb[0].mxu0 %v4574
        %v4576 = vpop.f32.mrb[0].mxu0
        %v4577 = vadd.f32 %v4344, %v4576
        %v4578 = vpop.f32.mrb[0].mxu0
        %v4579 = vadd.f32 %v4346, %v4578
        %4580 = vmatprep.mubr.f32.mxu0 0.0
        %v4581 = vand.u32 %v3522, 4294901760
        %v4582 = vsub.f32 %v3522, %v4581
        %v4583 = vand.u32 %v4582, 4294901760
        %4584 = vmatmul.mubr.f32.gmra.mrb[0].mxu0 %v4583
        %v4585 = vpop.f32.mrb[0].mxu0
        %v4586 = vadd.f32 %v4352, %v4585
        %v4587 = vpop.f32.mrb[0].mxu0
        %v4588 = vadd.f32 %v4354, %v4587
        %4589 = vmatprep.mubr.f32.mxu0 0.0
        %v4590 = vand.u32 %v3525, 4294901760
        %v4591 = vsub.f32 %v3525, %v4590
        %v4592 = vand.u32 %v4591, 4294901760
        %4593 = vmatmul.mubr.f32.gmra.mrb[0].mxu0 %v4592
        %v4594 = vpop.f32.mrb[0].mxu0
        %v4595 = vadd.f32 %v4360, %v4594
        %v4596 = vpop.f32.mrb[0].mxu0
        %v4597 = vadd.f32 %v4362, %v4596
        %4598 = vmatprep.mubr.f32.mxu0 0.0
        %v4599 = vand.u32 %v3528, 4294901760
        %v4600 = vsub.f32 %v3528, %v4599
        %v4601 = vand.u32 %v4600, 4294901760
        %4602 = vmatmul.mubr.f32.gmra.mrb[0].mxu0 %v4601
        %v4603 = vpop.f32.mrb[0].mxu0
        %v4604 = vadd.f32 %v4368, %v4603
        %v4605 = vpop.f32.mrb[0].mxu0
        %v4606 = vadd.f32 %v4370, %v4605
        %4607 = vmatprep.mubr.f32.mxu0 0.0
        %v4608 = vand.u32 %v3531, 4294901760
        %v4609 = vsub.f32 %v3531, %v4608
        %v4610 = vand.u32 %v4609, 4294901760
        %4611 = vmatmul.mubr.f32.gmra.mrb[0].mxu0 %v4610
        %v4612 = vpop.f32.mrb[0].mxu0
        %v4613 = vadd.f32 %v4376, %v4612
        %v4614 = vpop.f32.mrb[0].mxu0
        %v4615 = vadd.f32 %v4378, %v4614
        %4616 = vmatprep.mubr.f32.mxu0 0.0
        %v4617 = vand.u32 %v3534, 4294901760
        %v4618 = vsub.f32 %v3534, %v4617
        %v4619 = vand.u32 %v4618, 4294901760
        %4620 = vmatmul.mubr.f32.gmra.mrb[0].mxu0 %v4619
        %v4621 = vpop.f32.mrb[0].mxu0
        %v4622 = vadd.f32 %v4384, %v4621
        %v4623 = vpop.f32.mrb[0].mxu0
        %v4624 = vadd.f32 %v4386, %v4623
        %4625 = vmatprep.mubr.f32.mxu0 0.0
        %v4626 = vand.u32 %v3537, 4294901760
        %v4627 = vsub.f32 %v3537, %v4626
        %v4628 = vand.u32 %v4627, 4294901760
        %4629 = vmatmul.mubr.f32.gmra.mrb[0].mxu0 %v4628
        %v4630 = vpop.f32.mrb[0].mxu0
        %v4631 = vadd.f32 %v4392, %v4630
        %v4632 = vpop.f32.mrb[0].mxu0
        %v4633 = vadd.f32 %v4394, %v4632
        %4634 = vmatprep.mubr.f32.mxu0 0.0
        %v4635 = vand.u32 %v3540, 4294901760
        %v4636 = vsub.f32 %v3540, %v4635
        %v4637 = vand.u32 %v4636, 4294901760
        %4638 = vmatmul.mubr.f32.gmra.mrb[0].mxu0 %v4637
        %v4639 = vpop.f32.mrb[0].mxu0
        %v4640 = vadd.f32 %v4400, %v4639
        %v4641 = vpop.f32.mrb[0].mxu0
        %v4642 = vadd.f32 %v4402, %v4641
        %4643 = vmatprep.mubr.f32.mxu0 0.0
        %v4644 = vand.u32 %v3543, 4294901760
        %v4645 = vsub.f32 %v3543, %v4644
        %v4646 = vand.u32 %v4645, 4294901760
        %4647 = vmatmul.mubr.f32.gmra.mrb[0].mxu0 %v4646
        %v4648 = vpop.f32.mrb[0].mxu0
        %v4649 = vadd.f32 %v4408, %v4648
        %v4650 = vpop.f32.mrb[0].mxu0
        %v4651 = vadd.f32 %v4410, %v4650
        %4652 = vdwg.mxu0
        %4653 = vmatprep.subr.mxu0 0.0
        %v4654 = vand.u32 %v1296, 4294901760
        %v4655 = vsub.f32 %v1296, %v4654
        %v4656 = vand.u32 %v4655, 4294901760
        %4657 = vmatpush1.xpose.msra.mxu0 %v4656
        %4658 = vmatprep.subr.mxu0 0.0
        %v4659 = vand.u32 %v1299, 4294901760
        %v4660 = vsub.f32 %v1299, %v4659
        %v4661 = vand.u32 %v4660, 4294901760
        %4662 = vmatpush1.xpose.msra.mxu0 %v4661
        %4663 = vmatprep.subr.mxu0 0.0
        %v4664 = vand.u32 %v1302, 4294901760
        %v4665 = vsub.f32 %v1302, %v4664
        %v4666 = vand.u32 %v4665, 4294901760
        %4667 = vmatpush1.xpose.msra.mxu0 %v4666
        %4668 = vmatprep.subr.mxu0 0.0
        %v4669 = vand.u32 %v1305, 4294901760
        %v4670 = vsub.f32 %v1305, %v4669
        %v4671 = vand.u32 %v4670, 4294901760
        %4672 = vmatpush1.xpose.msra.mxu0 %v4671
        %4673 = vmatprep.subr.mxu0 0.0
        %v4674 = vand.u32 %v1308, 4294901760
        %v4675 = vsub.f32 %v1308, %v4674
        %v4676 = vand.u32 %v4675, 4294901760
        %4677 = vmatpush1.xpose.msra.mxu0 %v4676
        %4678 = vmatprep.subr.mxu0 0.0
        %v4679 = vand.u32 %v1311, 4294901760
        %v4680 = vsub.f32 %v1311, %v4679
        %v4681 = vand.u32 %v4680, 4294901760
        %4682 = vmatpush1.xpose.msra.mxu0 %v4681
        %4683 = vmatprep.subr.mxu0 0.0
        %v4684 = vand.u32 %v1314, 4294901760
        %v4685 = vsub.f32 %v1314, %v4684
        %v4686 = vand.u32 %v4685, 4294901760
        %4687 = vmatpush1.xpose.msra.mxu0 %v4686
        %4688 = vmatprep.subr.mxu0 0.0
        %v4689 = vand.u32 %v1317, 4294901760
        %v4690 = vsub.f32 %v1317, %v4689
        %v4691 = vand.u32 %v4690, 4294901760
        %4692 = vmatpush1.xpose.msra.mxu0 %v4691
        %4693 = vmatprep.subr.mxu0 0.0
        %v4694 = vand.u32 %v1320, 4294901760
        %v4695 = vsub.f32 %v1320, %v4694
        %v4696 = vand.u32 %v4695, 4294901760
        %4697 = vmatpush1.xpose.msra.mxu0 %v4696
        %4698 = vmatprep.subr.mxu0 0.0
        %v4699 = vand.u32 %v1323, 4294901760
        %v4700 = vsub.f32 %v1323, %v4699
        %v4701 = vand.u32 %v4700, 4294901760
        %4702 = vmatpush1.xpose.msra.mxu0 %v4701
        %4703 = vmatprep.subr.mxu0 0.0
        %v4704 = vand.u32 %v1326, 4294901760
        %v4705 = vsub.f32 %v1326, %v4704
        %v4706 = vand.u32 %v4705, 4294901760
        %4707 = vmatpush1.xpose.msra.mxu0 %v4706
        %4708 = vmatprep.subr.mxu0 0.0
        %v4709 = vand.u32 %v1329, 4294901760
        %v4710 = vsub.f32 %v1329, %v4709
        %v4711 = vand.u32 %v4710, 4294901760
        %4712 = vmatpush1.xpose.msra.mxu0 %v4711
        %4713 = vmatprep.subr.mxu0 0.0
        %v4714 = vand.u32 %v1332, 4294901760
        %v4715 = vsub.f32 %v1332, %v4714
        %v4716 = vand.u32 %v4715, 4294901760
        %4717 = vmatpush1.xpose.msra.mxu0 %v4716
        %4718 = vmatprep.subr.mxu0 0.0
        %v4719 = vand.u32 %v1335, 4294901760
        %v4720 = vsub.f32 %v1335, %v4719
        %v4721 = vand.u32 %v4720, 4294901760
        %4722 = vmatpush1.xpose.msra.mxu0 %v4721
        %4723 = vmatprep.subr.mxu0 0.0
        %v4724 = vand.u32 %v1338, 4294901760
        %v4725 = vsub.f32 %v1338, %v4724
        %v4726 = vand.u32 %v4725, 4294901760
        %4727 = vmatpush1.xpose.msra.mxu0 %v4726
        %4728 = vmatprep.subr.mxu0 0.0
        %v4729 = vand.u32 %v1341, 4294901760
        %v4730 = vsub.f32 %v1341, %v4729
        %v4731 = vand.u32 %v4730, 4294901760
        %4732 = vmatpush1.xpose.msra.mxu0 %v4731
        %4733 = vmatprep.subr.mxu0 0.0
        %v4734 = vand.u32 %v1344, 4294901760
        %v4735 = vsub.f32 %v1344, %v4734
        %v4736 = vand.u32 %v4735, 4294901760
        %4737 = vmatpush1.xpose.msra.mxu0 %v4736
        %4738 = vmatprep.subr.mxu0 0.0
        %v4739 = vand.u32 %v1347, 4294901760
        %v4740 = vsub.f32 %v1347, %v4739
        %v4741 = vand.u32 %v4740, 4294901760
        %4742 = vmatpush1.xpose.msra.mxu0 %v4741
        %4743 = vmatprep.subr.mxu0 0.0
        %v4744 = vand.u32 %v1350, 4294901760
        %v4745 = vsub.f32 %v1350, %v4744
        %v4746 = vand.u32 %v4745, 4294901760
        %4747 = vmatpush1.xpose.msra.mxu0 %v4746
        %4748 = vmatprep.subr.mxu0 0.0
        %v4749 = vand.u32 %v1353, 4294901760
        %v4750 = vsub.f32 %v1353, %v4749
        %v4751 = vand.u32 %v4750, 4294901760
        %4752 = vmatpush1.xpose.msra.mxu0 %v4751
        %4753 = vmatprep.subr.mxu0 0.0
        %v4754 = vand.u32 %v1356, 4294901760
        %v4755 = vsub.f32 %v1356, %v4754
        %v4756 = vand.u32 %v4755, 4294901760
        %4757 = vmatpush1.xpose.msra.mxu0 %v4756
        %4758 = vmatprep.subr.mxu0 0.0
        %v4759 = vand.u32 %v1359, 4294901760
        %v4760 = vsub.f32 %v1359, %v4759
        %v4761 = vand.u32 %v4760, 4294901760
        %4762 = vmatpush1.xpose.msra.mxu0 %v4761
        %4763 = vmatprep.subr.mxu0 0.0
        %v4764 = vand.u32 %v1362, 4294901760
        %v4765 = vsub.f32 %v1362, %v4764
        %v4766 = vand.u32 %v4765, 4294901760
        %4767 = vmatpush1.xpose.msra.mxu0 %v4766
        %4768 = vmatprep.subr.mxu0 0.0
        %v4769 = vand.u32 %v1365, 4294901760
        %v4770 = vsub.f32 %v1365, %v4769
        %v4771 = vand.u32 %v4770, 4294901760
        %4772 = vmatpush1.xpose.msra.mxu0 %v4771
        %4773 = vmatprep.subr.mxu0 0.0
        %v4774 = vand.u32 %v1368, 4294901760
        %v4775 = vsub.f32 %v1368, %v4774
        %v4776 = vand.u32 %v4775, 4294901760
        %4777 = vmatpush1.xpose.msra.mxu0 %v4776
        %4778 = vmatprep.subr.mxu0 0.0
        %v4779 = vand.u32 %v1371, 4294901760
        %v4780 = vsub.f32 %v1371, %v4779
        %v4781 = vand.u32 %v4780, 4294901760
        %4782 = vmatpush1.xpose.msra.mxu0 %v4781
        %4783 = vmatprep.subr.mxu0 0.0
        %v4784 = vand.u32 %v1374, 4294901760
        %v4785 = vsub.f32 %v1374, %v4784
        %v4786 = vand.u32 %v4785, 4294901760
        %4787 = vmatpush1.xpose.msra.mxu0 %v4786
        %4788 = vmatprep.subr.mxu0 0.0
        %v4789 = vand.u32 %v1377, 4294901760
        %v4790 = vsub.f32 %v1377, %v4789
        %v4791 = vand.u32 %v4790, 4294901760
        %4792 = vmatpush1.xpose.msra.mxu0 %v4791
        %4793 = vmatprep.subr.mxu0 0.0
        %v4794 = vand.u32 %v1380, 4294901760
        %v4795 = vsub.f32 %v1380, %v4794
        %v4796 = vand.u32 %v4795, 4294901760
        %4797 = vmatpush1.xpose.msra.mxu0 %v4796
        %4798 = vmatprep.subr.mxu0 0.0
        %v4799 = vand.u32 %v1383, 4294901760
        %v4800 = vsub.f32 %v1383, %v4799
        %v4801 = vand.u32 %v4800, 4294901760
        %4802 = vmatpush1.xpose.msra.mxu0 %v4801
        %4803 = vmatprep.subr.mxu0 0.0
        %v4804 = vand.u32 %v1386, 4294901760
        %v4805 = vsub.f32 %v1386, %v4804
        %v4806 = vand.u32 %v4805, 4294901760
        %4807 = vmatpush1.xpose.msra.mxu0 %v4806
        %4808 = vmatprep.subr.mxu0 0.0
        %v4809 = vand.u32 %v1389, 4294901760
        %v4810 = vsub.f32 %v1389, %v4809
        %v4811 = vand.u32 %v4810, 4294901760
        %4812 = vmatpush1.xpose.msra.mxu0 %v4811
        %4813 = vmatprep.mubr.f32.mxu0 0.0
        %v4814 = vand.u32 %v3498, 4294901760
        %4815 = vmatmul.mubr.f32.gmra.mrb[0].mxu0 %v4814
        %v4816 = vpop.f32.mrb[0].mxu0
        %v4817 = vadd.f32 %v4514, %v4816
        %v4818 = vpop.f32.mrb[0].mxu0
        %v4819 = vadd.f32 %v4516, %v4818
        %4820 = vmatprep.mubr.f32.mxu0 0.0
        %v4821 = vand.u32 %v3501, 4294901760
        %4822 = vmatmul.mubr.f32.gmra.mrb[0].mxu0 %v4821
        %v4823 = vpop.f32.mrb[0].mxu0
        %v4824 = vadd.f32 %v4523, %v4823
        %v4825 = vpop.f32.mrb[0].mxu0
        %v4826 = vadd.f32 %v4525, %v4825
        %4827 = vmatprep.mubr.f32.mxu0 0.0
        %v4828 = vand.u32 %v3504, 4294901760
        %4829 = vmatmul.mubr.f32.gmra.mrb[0].mxu0 %v4828
        %v4830 = vpop.f32.mrb[0].mxu0
        %v4831 = vadd.f32 %v4532, %v4830
        %v4832 = vpop.f32.mrb[0].mxu0
        %v4833 = vadd.f32 %v4534, %v4832
        %4834 = vmatprep.mubr.f32.mxu0 0.0
        %v4835 = vand.u32 %v3507, 4294901760
        %4836 = vmatmul.mubr.f32.gmra.mrb[0].mxu0 %v4835
        %v4837 = vpop.f32.mrb[0].mxu0
        %v4838 = vadd.f32 %v4541, %v4837
        %v4839 = vpop.f32.mrb[0].mxu0
        %v4840 = vadd.f32 %v4543, %v4839
        %4841 = vmatprep.mubr.f32.mxu0 0.0
        %v4842 = vand.u32 %v3510, 4294901760
        %4843 = vmatmul.mubr.f32.gmra.mrb[0].mxu0 %v4842
        %v4844 = vpop.f32.mrb[0].mxu0
        %v4845 = vadd.f32 %v4550, %v4844
        %v4846 = vpop.f32.mrb[0].mxu0
        %v4847 = vadd.f32 %v4552, %v4846
        %4848 = vmatprep.mubr.f32.mxu0 0.0
        %v4849 = vand.u32 %v3513, 4294901760
        %4850 = vmatmul.mubr.f32.gmra.mrb[0].mxu0 %v4849
        %v4851 = vpop.f32.mrb[0].mxu0
        %v4852 = vadd.f32 %v4559, %v4851
        %v4853 = vpop.f32.mrb[0].mxu0
        %v4854 = vadd.f32 %v4561, %v4853
        %4855 = vmatprep.mubr.f32.mxu0 0.0
        %v4856 = vand.u32 %v3516, 4294901760
        %4857 = vmatmul.mubr.f32.gmra.mrb[0].mxu0 %v4856
        %v4858 = vpop.f32.mrb[0].mxu0
        %v4859 = vadd.f32 %v4568, %v4858
        %v4860 = vpop.f32.mrb[0].mxu0
        %v4861 = vadd.f32 %v4570, %v4860
        %4862 = vmatprep.mubr.f32.mxu0 0.0
        %v4863 = vand.u32 %v3519, 4294901760
        %4864 = vmatmul.mubr.f32.gmra.mrb[0].mxu0 %v4863
        %v4865 = vpop.f32.mrb[0].mxu0
        %v4866 = vadd.f32 %v4577, %v4865
        %v4867 = vpop.f32.mrb[0].mxu0
        %v4868 = vadd.f32 %v4579, %v4867
        %4869 = vmatprep.mubr.f32.mxu0 0.0
        %v4870 = vand.u32 %v3522, 4294901760
        %4871 = vmatmul.mubr.f32.gmra.mrb[0].mxu0 %v4870
        %v4872 = vpop.f32.mrb[0].mxu0
        %v4873 = vadd.f32 %v4586, %v4872
        %v4874 = vpop.f32.mrb[0].mxu0
        %v4875 = vadd.f32 %v4588, %v4874
        %4876 = vmatprep.mubr.f32.mxu0 0.0
        %v4877 = vand.u32 %v3525, 4294901760
        %4878 = vmatmul.mubr.f32.gmra.mrb[0].mxu0 %v4877
        %v4879 = vpop.f32.mrb[0].mxu0
        %v4880 = vadd.f32 %v4595, %v4879
        %v4881 = vpop.f32.mrb[0].mxu0
        %v4882 = vadd.f32 %v4597, %v4881
        %4883 = vmatprep.mubr.f32.mxu0 0.0
        %v4884 = vand.u32 %v3528, 4294901760
        %4885 = vmatmul.mubr.f32.gmra.mrb[0].mxu0 %v4884
        %v4886 = vpop.f32.mrb[0].mxu0
        %v4887 = vadd.f32 %v4604, %v4886
        %v4888 = vpop.f32.mrb[0].mxu0
        %v4889 = vadd.f32 %v4606, %v4888
        %4890 = vmatprep.mubr.f32.mxu0 0.0
        %v4891 = vand.u32 %v3531, 4294901760
        %4892 = vmatmul.mubr.f32.gmra.mrb[0].mxu0 %v4891
        %v4893 = vpop.f32.mrb[0].mxu0
        %v4894 = vadd.f32 %v4613, %v4893
        %v4895 = vpop.f32.mrb[0].mxu0
        %v4896 = vadd.f32 %v4615, %v4895
        %4897 = vmatprep.mubr.f32.mxu0 0.0
        %v4898 = vand.u32 %v3534, 4294901760
        %4899 = vmatmul.mubr.f32.gmra.mrb[0].mxu0 %v4898
        %v4900 = vpop.f32.mrb[0].mxu0
        %v4901 = vadd.f32 %v4622, %v4900
        %v4902 = vpop.f32.mrb[0].mxu0
        %v4903 = vadd.f32 %v4624, %v4902
        %4904 = vmatprep.mubr.f32.mxu0 0.0
        %v4905 = vand.u32 %v3537, 4294901760
        %4906 = vmatmul.mubr.f32.gmra.mrb[0].mxu0 %v4905
        %v4907 = vpop.f32.mrb[0].mxu0
        %v4908 = vadd.f32 %v4631, %v4907
        %v4909 = vpop.f32.mrb[0].mxu0
        %v4910 = vadd.f32 %v4633, %v4909
        %4911 = vmatprep.mubr.f32.mxu0 0.0
        %v4912 = vand.u32 %v3540, 4294901760
        %4913 = vmatmul.mubr.f32.gmra.mrb[0].mxu0 %v4912
        %v4914 = vpop.f32.mrb[0].mxu0
        %v4915 = vadd.f32 %v4640, %v4914
        %v4916 = vpop.f32.mrb[0].mxu0
        %v4917 = vadd.f32 %v4642, %v4916
        %4918 = vmatprep.mubr.f32.mxu0 0.0
        %v4919 = vand.u32 %v3543, 4294901760
        %4920 = vmatmul.mubr.f32.gmra.mrb[0].mxu0 %v4919
        %v4921 = vpop.f32.mrb[0].mxu0
        %v4922 = vadd.f32 %v4649, %v4921
        %v4923 = vpop.f32.mrb[0].mxu0
        %v4924 = vadd.f32 %v4651, %v4923
        %4925 = vdwg.mxu0
        %4926 = vmatprep.subr.mxu0 0.0
        %v4927 = vand.u32 %v1296, 4294901760
        %4928 = vmatpush1.xpose.msra.mxu0 %v4927
        %4929 = vmatprep.subr.mxu0 0.0
        %v4930 = vand.u32 %v1299, 4294901760
        %4931 = vmatpush1.xpose.msra.mxu0 %v4930
        %4932 = vmatprep.subr.mxu0 0.0
        %v4933 = vand.u32 %v1302, 4294901760
        %4934 = vmatpush1.xpose.msra.mxu0 %v4933
        %4935 = vmatprep.subr.mxu0 0.0
        %v4936 = vand.u32 %v1305, 4294901760
        %4937 = vmatpush1.xpose.msra.mxu0 %v4936
        %4938 = vmatprep.subr.mxu0 0.0
        %v4939 = vand.u32 %v1308, 4294901760
        %4940 = vmatpush1.xpose.msra.mxu0 %v4939
        %4941 = vmatprep.subr.mxu0 0.0
        %v4942 = vand.u32 %v1311, 4294901760
        %4943 = vmatpush1.xpose.msra.mxu0 %v4942
        %4944 = vmatprep.subr.mxu0 0.0
        %v4945 = vand.u32 %v1314, 4294901760
        %4946 = vmatpush1.xpose.msra.mxu0 %v4945
        %4947 = vmatprep.subr.mxu0 0.0
        %v4948 = vand.u32 %v1317, 4294901760
        %4949 = vmatpush1.xpose.msra.mxu0 %v4948
        %4950 = vmatprep.subr.mxu0 0.0
        %v4951 = vand.u32 %v1320, 4294901760
        %4952 = vmatpush1.xpose.msra.mxu0 %v4951
        %4953 = vmatprep.subr.mxu0 0.0
        %v4954 = vand.u32 %v1323, 4294901760
        %4955 = vmatpush1.xpose.msra.mxu0 %v4954
        %4956 = vmatprep.subr.mxu0 0.0
        %v4957 = vand.u32 %v1326, 4294901760
        %4958 = vmatpush1.xpose.msra.mxu0 %v4957
        %4959 = vmatprep.subr.mxu0 0.0
        %v4960 = vand.u32 %v1329, 4294901760
        %4961 = vmatpush1.xpose.msra.mxu0 %v4960
        %4962 = vmatprep.subr.mxu0 0.0
        %v4963 = vand.u32 %v1332, 4294901760
        %4964 = vmatpush1.xpose.msra.mxu0 %v4963
        %4965 = vmatprep.subr.mxu0 0.0
        %v4966 = vand.u32 %v1335, 4294901760
        %4967 = vmatpush1.xpose.msra.mxu0 %v4966
        %4968 = vmatprep.subr.mxu0 0.0
        %v4969 = vand.u32 %v1338, 4294901760
        %4970 = vmatpush1.xpose.msra.mxu0 %v4969
        %4971 = vmatprep.subr.mxu0 0.0
        %v4972 = vand.u32 %v1341, 4294901760
        %4973 = vmatpush1.xpose.msra.mxu0 %v4972
        %4974 = vmatprep.subr.mxu0 0.0
        %v4975 = vand.u32 %v1344, 4294901760
        %4976 = vmatpush1.xpose.msra.mxu0 %v4975
        %4977 = vmatprep.subr.mxu0 0.0
        %v4978 = vand.u32 %v1347, 4294901760
        %4979 = vmatpush1.xpose.msra.mxu0 %v4978
        %4980 = vmatprep.subr.mxu0 0.0
        %v4981 = vand.u32 %v1350, 4294901760
        %4982 = vmatpush1.xpose.msra.mxu0 %v4981
        %4983 = vmatprep.subr.mxu0 0.0
        %v4984 = vand.u32 %v1353, 4294901760
        %4985 = vmatpush1.xpose.msra.mxu0 %v4984
        %4986 = vmatprep.subr.mxu0 0.0
        %v4987 = vand.u32 %v1356, 4294901760
        %4988 = vmatpush1.xpose.msra.mxu0 %v4987
        %4989 = vmatprep.subr.mxu0 0.0
        %v4990 = vand.u32 %v1359, 4294901760
        %4991 = vmatpush1.xpose.msra.mxu0 %v4990
        %4992 = vmatprep.subr.mxu0 0.0
        %v4993 = vand.u32 %v1362, 4294901760
        %4994 = vmatpush1.xpose.msra.mxu0 %v4993
        %4995 = vmatprep.subr.mxu0 0.0
        %v4996 = vand.u32 %v1365, 4294901760
        %4997 = vmatpush1.xpose.msra.mxu0 %v4996
        %4998 = vmatprep.subr.mxu0 0.0
        %v4999 = vand.u32 %v1368, 4294901760
        %5000 = vmatpush1.xpose.msra.mxu0 %v4999
        %5001 = vmatprep.subr.mxu0 0.0
        %v5002 = vand.u32 %v1371, 4294901760
        %5003 = vmatpush1.xpose.msra.mxu0 %v5002
        %5004 = vmatprep.subr.mxu0 0.0
        %v5005 = vand.u32 %v1374, 4294901760
        %5006 = vmatpush1.xpose.msra.mxu0 %v5005
        %5007 = vmatprep.subr.mxu0 0.0
        %v5008 = vand.u32 %v1377, 4294901760
        %5009 = vmatpush1.xpose.msra.mxu0 %v5008
        %5010 = vmatprep.subr.mxu0 0.0
        %v5011 = vand.u32 %v1380, 4294901760
        %5012 = vmatpush1.xpose.msra.mxu0 %v5011
        %5013 = vmatprep.subr.mxu0 0.0
        %v5014 = vand.u32 %v1383, 4294901760
        %5015 = vmatpush1.xpose.msra.mxu0 %v5014
        %5016 = vmatprep.subr.mxu0 0.0
        %v5017 = vand.u32 %v1386, 4294901760
        %5018 = vmatpush1.xpose.msra.mxu0 %v5017
        %5019 = vmatprep.subr.mxu0 0.0
        %v5020 = vand.u32 %v1389, 4294901760
        %5021 = vmatpush1.xpose.msra.mxu0 %v5020
        %5022 = vmatprep.mubr.f32.mxu0 0.0
        %v5023 = vand.u32 %v3498, 4294901760
        %5024 = vmatmul.mubr.f32.gmra.mrb[0].mxu0 %v5023
        %v5025 = vpop.f32.mrb[0].mxu0
        %v5026 = vadd.f32 %v4817, %v5025
        %v5027 = vpop.f32.mrb[0].mxu0
        %v5028 = vadd.f32 %v4819, %v5027
        %5029 = vmatprep.mubr.f32.mxu0 0.0
        %v5030 = vand.u32 %v3501, 4294901760
        %5031 = vmatmul.mubr.f32.gmra.mrb[0].mxu0 %v5030
        %v5032 = vpop.f32.mrb[0].mxu0
        %v5033 = vadd.f32 %v4824, %v5032
        %v5034 = vpop.f32.mrb[0].mxu0
        %v5035 = vadd.f32 %v4826, %v5034
        %5036 = vmatprep.mubr.f32.mxu0 0.0
        %v5037 = vand.u32 %v3504, 4294901760
        %5038 = vmatmul.mubr.f32.gmra.mrb[0].mxu0 %v5037
        %v5039 = vpop.f32.mrb[0].mxu0
        %v5040 = vadd.f32 %v4831, %v5039
        %v5041 = vpop.f32.mrb[0].mxu0
        %v5042 = vadd.f32 %v4833, %v5041
        %5043 = vmatprep.mubr.f32.mxu0 0.0
        %v5044 = vand.u32 %v3507, 4294901760
        %5045 = vmatmul.mubr.f32.gmra.mrb[0].mxu0 %v5044
        %v5046 = vpop.f32.mrb[0].mxu0
        %v5047 = vadd.f32 %v4838, %v5046
        %v5048 = vpop.f32.mrb[0].mxu0
        %v5049 = vadd.f32 %v4840, %v5048
        %5050 = vmatprep.mubr.f32.mxu0 0.0
        %v5051 = vand.u32 %v3510, 4294901760
        %5052 = vmatmul.mubr.f32.gmra.mrb[0].mxu0 %v5051
        %v5053 = vpop.f32.mrb[0].mxu0
        %v5054 = vadd.f32 %v4845, %v5053
        %v5055 = vpop.f32.mrb[0].mxu0
        %v5056 = vadd.f32 %v4847, %v5055
        %5057 = vmatprep.mubr.f32.mxu0 0.0
        %v5058 = vand.u32 %v3513, 4294901760
        %5059 = vmatmul.mubr.f32.gmra.mrb[0].mxu0 %v5058
        %v5060 = vpop.f32.mrb[0].mxu0
        %v5061 = vadd.f32 %v4852, %v5060
        %v5062 = vpop.f32.mrb[0].mxu0
        %v5063 = vadd.f32 %v4854, %v5062
        %5064 = vmatprep.mubr.f32.mxu0 0.0
        %v5065 = vand.u32 %v3516, 4294901760
        %5066 = vmatmul.mubr.f32.gmra.mrb[0].mxu0 %v5065
        %v5067 = vpop.f32.mrb[0].mxu0
        %v5068 = vadd.f32 %v4859, %v5067
        %v5069 = vpop.f32.mrb[0].mxu0
        %v5070 = vadd.f32 %v4861, %v5069
        %5071 = vmatprep.mubr.f32.mxu0 0.0
        %v5072 = vand.u32 %v3519, 4294901760
        %5073 = vmatmul.mubr.f32.gmra.mrb[0].mxu0 %v5072
        %v5074 = vpop.f32.mrb[0].mxu0
        %v5075 = vadd.f32 %v4866, %v5074
        %v5076 = vpop.f32.mrb[0].mxu0
        %v5077 = vadd.f32 %v4868, %v5076
        %5078 = vmatprep.mubr.f32.mxu0 0.0
        %v5079 = vand.u32 %v3522, 4294901760
        %5080 = vmatmul.mubr.f32.gmra.mrb[0].mxu0 %v5079
        %v5081 = vpop.f32.mrb[0].mxu0
        %v5082 = vadd.f32 %v4873, %v5081
        %v5083 = vpop.f32.mrb[0].mxu0
        %v5084 = vadd.f32 %v4875, %v5083
        %5085 = vmatprep.mubr.f32.mxu0 0.0
        %v5086 = vand.u32 %v3525, 4294901760
        %5087 = vmatmul.mubr.f32.gmra.mrb[0].mxu0 %v5086
        %v5088 = vpop.f32.mrb[0].mxu0
        %v5089 = vadd.f32 %v4880, %v5088
        %v5090 = vpop.f32.mrb[0].mxu0
        %v5091 = vadd.f32 %v4882, %v5090
        %5092 = vmatprep.mubr.f32.mxu0 0.0
        %v5093 = vand.u32 %v3528, 4294901760
        %5094 = vmatmul.mubr.f32.gmra.mrb[0].mxu0 %v5093
        %v5095 = vpop.f32.mrb[0].mxu0
        %v5096 = vadd.f32 %v4887, %v5095
        %v5097 = vpop.f32.mrb[0].mxu0
        %v5098 = vadd.f32 %v4889, %v5097
        %5099 = vmatprep.mubr.f32.mxu0 0.0
        %v5100 = vand.u32 %v3531, 4294901760
        %5101 = vmatmul.mubr.f32.gmra.mrb[0].mxu0 %v5100
        %v5102 = vpop.f32.mrb[0].mxu0
        %v5103 = vadd.f32 %v4894, %v5102
        %v5104 = vpop.f32.mrb[0].mxu0
        %v5105 = vadd.f32 %v4896, %v5104
        %5106 = vmatprep.mubr.f32.mxu0 0.0
        %v5107 = vand.u32 %v3534, 4294901760
        %5108 = vmatmul.mubr.f32.gmra.mrb[0].mxu0 %v5107
        %v5109 = vpop.f32.mrb[0].mxu0
        %v5110 = vadd.f32 %v4901, %v5109
        %v5111 = vpop.f32.mrb[0].mxu0
        %v5112 = vadd.f32 %v4903, %v5111
        %5113 = vmatprep.mubr.f32.mxu0 0.0
        %v5114 = vand.u32 %v3537, 4294901760
        %5115 = vmatmul.mubr.f32.gmra.mrb[0].mxu0 %v5114
        %v5116 = vpop.f32.mrb[0].mxu0
        %v5117 = vadd.f32 %v4908, %v5116
        %v5118 = vpop.f32.mrb[0].mxu0
        %v5119 = vadd.f32 %v4910, %v5118
        %5120 = vmatprep.mubr.f32.mxu0 0.0
        %v5121 = vand.u32 %v3540, 4294901760
        %5122 = vmatmul.mubr.f32.gmra.mrb[0].mxu0 %v5121
        %v5123 = vpop.f32.mrb[0].mxu0
        %v5124 = vadd.f32 %v4915, %v5123
        %v5125 = vpop.f32.mrb[0].mxu0
        %v5126 = vadd.f32 %v4917, %v5125
        %5127 = vmatprep.mubr.f32.mxu0 0.0
        %v5128 = vand.u32 %v3543, 4294901760
        %5129 = vmatmul.mubr.f32.gmra.mrb[0].mxu0 %v5128
        %v5130 = vpop.f32.mrb[0].mxu0
        %v5131 = vadd.f32 %v4922, %v5130
        %v5132 = vpop.f32.mrb[0].mxu0
        %v5133 = vadd.f32 %v4924, %v5132
        %5134 = vdwg.mxu0
        %v5135 = vmul.f32 %v3481, %v3481
        %v5136 = vmul.f32 %v3482, %v3482
        %v5137 = vmul.f32 %v3483, %v3483
        %v5138 = vmul.f32 %v3484, %v3484
        %v5139 = vmul.f32 %v3485, %v3485
        %v5140 = vmul.f32 %v3486, %v3486
        %v5141 = vmul.f32 %v3487, %v3487
        %v5142 = vmul.f32 %v3488, %v3488
        %v5143 = vmul.f32 %v3489, %v3489
        %v5144 = vmul.f32 %v3490, %v3490
        %v5145 = vmul.f32 %v3491, %v3491
        %v5146 = vmul.f32 %v3492, %v3492
        %v5147 = vmul.f32 %v3493, %v3493
        %v5148 = vmul.f32 %v3494, %v3494
        %v5149 = vmul.f32 %v3495, %v3495
        %v5150 = vmul.f32 %v3496, %v3496
        %v5151 = vsel %vm1246, %v5135, 0.0
        %5152 = vadd.xlane.f32.xlu0 %v5151
        %v5153 = vpop.xlane.xlu0 %5152
        %v5154 = vsel %vm1246, %v5136, 0.0
        %5155 = vadd.xlane.f32.xlu0 %v5154
        %v5156 = vpop.xlane.xlu0 %5155
        %v5157 = vsel %vm1246, %v5137, 0.0
        %5158 = vadd.xlane.f32.xlu0 %v5157
        %v5159 = vpop.xlane.xlu0 %5158
        %v5160 = vsel %vm1246, %v5138, 0.0
        %5161 = vadd.xlane.f32.xlu0 %v5160
        %v5162 = vpop.xlane.xlu0 %5161
        %v5163 = vsel %vm1246, %v5139, 0.0
        %5164 = vadd.xlane.f32.xlu0 %v5163
        %v5165 = vpop.xlane.xlu0 %5164
        %v5166 = vsel %vm1246, %v5140, 0.0
        %5167 = vadd.xlane.f32.xlu0 %v5166
        %v5168 = vpop.xlane.xlu0 %5167
        %v5169 = vsel %vm1246, %v5141, 0.0
        %5170 = vadd.xlane.f32.xlu0 %v5169
        %v5171 = vpop.xlane.xlu0 %5170
        %v5172 = vsel %vm1246, %v5142, 0.0
        %5173 = vadd.xlane.f32.xlu0 %v5172
        %v5174 = vpop.xlane.xlu0 %5173
        %v5175 = vsel %vm1246, %v5143, 0.0
        %5176 = vadd.xlane.f32.xlu0 %v5175
        %v5177 = vpop.xlane.xlu0 %5176
        %v5178 = vsel %vm1246, %v5144, 0.0
        %5179 = vadd.xlane.f32.xlu0 %v5178
        %v5180 = vpop.xlane.xlu0 %5179
        %v5181 = vsel %vm1246, %v5145, 0.0
        %5182 = vadd.xlane.f32.xlu0 %v5181
        %v5183 = vpop.xlane.xlu0 %5182
        %v5184 = vsel %vm1246, %v5146, 0.0
        %5185 = vadd.xlane.f32.xlu0 %v5184
        %v5186 = vpop.xlane.xlu0 %5185
        %v5187 = vsel %vm1246, %v5147, 0.0
        %5188 = vadd.xlane.f32.xlu0 %v5187
        %v5189 = vpop.xlane.xlu0 %5188
        %v5190 = vsel %vm1246, %v5148, 0.0
        %5191 = vadd.xlane.f32.xlu0 %v5190
        %v5192 = vpop.xlane.xlu0 %5191
        %v5193 = vsel %vm1246, %v5149, 0.0
        %5194 = vadd.xlane.f32.xlu0 %v5193
        %v5195 = vpop.xlane.xlu0 %5194
        %v5196 = vsel %vm1246, %v5150, 0.0
        %5197 = vadd.xlane.f32.xlu0 %v5196
        %v5198 = vpop.xlane.xlu0 %5197
        %v5199 = vadd.f32 %v5153, %v3049
        %v5200 = vadd.f32 %v5153, %v3053
        %v5201 = vadd.f32 %v5156, %v3049
        %v5202 = vadd.f32 %v5156, %v3053
        %v5203 = vadd.f32 %v5159, %v3049
        %v5204 = vadd.f32 %v5159, %v3053
        %v5205 = vadd.f32 %v5162, %v3049
        %v5206 = vadd.f32 %v5162, %v3053
        %v5207 = vadd.f32 %v5165, %v3049
        %v5208 = vadd.f32 %v5165, %v3053
        %v5209 = vadd.f32 %v5168, %v3049
        %v5210 = vadd.f32 %v5168, %v3053
        %v5211 = vadd.f32 %v5171, %v3049
        %v5212 = vadd.f32 %v5171, %v3053
        %v5213 = vadd.f32 %v5174, %v3049
        %v5214 = vadd.f32 %v5174, %v3053
        %v5215 = vadd.f32 %v5177, %v3049
        %v5216 = vadd.f32 %v5177, %v3053
        %v5217 = vadd.f32 %v5180, %v3049
        %v5218 = vadd.f32 %v5180, %v3053
        %v5219 = vadd.f32 %v5183, %v3049
        %v5220 = vadd.f32 %v5183, %v3053
        %v5221 = vadd.f32 %v5186, %v3049
        %v5222 = vadd.f32 %v5186, %v3053
        %v5223 = vadd.f32 %v5189, %v3049
        %v5224 = vadd.f32 %v5189, %v3053
        %v5225 = vadd.f32 %v5192, %v3049
        %v5226 = vadd.f32 %v5192, %v3053
        %v5227 = vadd.f32 %v5195, %v3049
        %v5228 = vadd.f32 %v5195, %v3053
        %v5229 = vadd.f32 %v5198, %v3049
        %v5230 = vadd.f32 %v5198, %v3053
        %v5231 = vmul.f32 %v5026, 2.0
        %v5232 = vmul.f32 %v5028, 2.0
        %v5233 = vmul.f32 %v5033, 2.0
        %v5234 = vmul.f32 %v5035, 2.0
        %v5235 = vmul.f32 %v5040, 2.0
        %v5236 = vmul.f32 %v5042, 2.0
        %v5237 = vmul.f32 %v5047, 2.0
        %v5238 = vmul.f32 %v5049, 2.0
        %v5239 = vmul.f32 %v5054, 2.0
        %v5240 = vmul.f32 %v5056, 2.0
        %v5241 = vmul.f32 %v5061, 2.0
        %v5242 = vmul.f32 %v5063, 2.0
        %v5243 = vmul.f32 %v5068, 2.0
        %v5244 = vmul.f32 %v5070, 2.0
        %v5245 = vmul.f32 %v5075, 2.0
        %v5246 = vmul.f32 %v5077, 2.0
        %v5247 = vmul.f32 %v5082, 2.0
        %v5248 = vmul.f32 %v5084, 2.0
        %v5249 = vmul.f32 %v5089, 2.0
        %v5250 = vmul.f32 %v5091, 2.0
        %v5251 = vmul.f32 %v5096, 2.0
        %v5252 = vmul.f32 %v5098, 2.0
        %v5253 = vmul.f32 %v5103, 2.0
        %v5254 = vmul.f32 %v5105, 2.0
        %v5255 = vmul.f32 %v5110, 2.0
        %v5256 = vmul.f32 %v5112, 2.0
        %v5257 = vmul.f32 %v5117, 2.0
        %v5258 = vmul.f32 %v5119, 2.0
        %v5259 = vmul.f32 %v5124, 2.0
        %v5260 = vmul.f32 %v5126, 2.0
        %v5261 = vmul.f32 %v5131, 2.0
        %v5262 = vmul.f32 %v5133, 2.0
        %v5263 = vsub.f32 %v5199, %v5231
        %v5264 = vsub.f32 %v5200, %v5232
        %v5265 = vsub.f32 %v5201, %v5233
        %v5266 = vsub.f32 %v5202, %v5234
        %v5267 = vsub.f32 %v5203, %v5235
        %v5268 = vsub.f32 %v5204, %v5236
        %v5269 = vsub.f32 %v5205, %v5237
        %v5270 = vsub.f32 %v5206, %v5238
        %v5271 = vsub.f32 %v5207, %v5239
        %v5272 = vsub.f32 %v5208, %v5240
        %v5273 = vsub.f32 %v5209, %v5241
        %v5274 = vsub.f32 %v5210, %v5242
        %v5275 = vsub.f32 %v5211, %v5243
        %v5276 = vsub.f32 %v5212, %v5244
        %v5277 = vsub.f32 %v5213, %v5245
        %v5278 = vsub.f32 %v5214, %v5246
        %v5279 = vsub.f32 %v5215, %v5247
        %v5280 = vsub.f32 %v5216, %v5248
        %v5281 = vsub.f32 %v5217, %v5249
        %v5282 = vsub.f32 %v5218, %v5250
        %v5283 = vsub.f32 %v5219, %v5251
        %v5284 = vsub.f32 %v5220, %v5252
        %v5285 = vsub.f32 %v5221, %v5253
        %v5286 = vsub.f32 %v5222, %v5254
        %v5287 = vsub.f32 %v5223, %v5255
        %v5288 = vsub.f32 %v5224, %v5256
        %v5289 = vsub.f32 %v5225, %v5257
        %v5290 = vsub.f32 %v5226, %v5258
        %v5291 = vsub.f32 %v5227, %v5259
        %v5292 = vsub.f32 %v5228, %v5260
        %v5293 = vsub.f32 %v5229, %v5261
        %v5294 = vsub.f32 %v5230, %v5262
        %v5295 = vmax.f32 %v5263, 0.0
        %v5296 = vmax.f32 %v5264, 0.0
        %v5297 = vmax.f32 %v5265, 0.0
        %v5298 = vmax.f32 %v5266, 0.0
        %v5299 = vmax.f32 %v5267, 0.0
        %v5300 = vmax.f32 %v5268, 0.0
        %v5301 = vmax.f32 %v5269, 0.0
        %v5302 = vmax.f32 %v5270, 0.0
        %v5303 = vmax.f32 %v5271, 0.0
        %v5304 = vmax.f32 %v5272, 0.0
        %v5305 = vmax.f32 %v5273, 0.0
        %v5306 = vmax.f32 %v5274, 0.0
        %v5307 = vmax.f32 %v5275, 0.0
        %v5308 = vmax.f32 %v5276, 0.0
        %v5309 = vmax.f32 %v5277, 0.0
        %v5310 = vmax.f32 %v5278, 0.0
        %v5311 = vmax.f32 %v5279, 0.0
        %v5312 = vmax.f32 %v5280, 0.0
        %v5313 = vmax.f32 %v5281, 0.0
        %v5314 = vmax.f32 %v5282, 0.0
        %v5315 = vmax.f32 %v5283, 0.0
        %v5316 = vmax.f32 %v5284, 0.0
        %v5317 = vmax.f32 %v5285, 0.0
        %v5318 = vmax.f32 %v5286, 0.0
        %v5319 = vmax.f32 %v5287, 0.0
        %v5320 = vmax.f32 %v5288, 0.0
        %v5321 = vmax.f32 %v5289, 0.0
        %v5322 = vmax.f32 %v5290, 0.0
        %v5323 = vmax.f32 %v5291, 0.0
        %v5324 = vmax.f32 %v5292, 0.0
        %v5325 = vmax.f32 %v5293, 0.0
        %v5326 = vmax.f32 %v5294, 0.0
        %v5327 = vmul.f32 %v5295, -0.5
        %v5328 = vmul.f32 %v5296, -0.5
        %v5329 = vmul.f32 %v5297, -0.5
        %v5330 = vmul.f32 %v5298, -0.5
        %v5331 = vmul.f32 %v5299, -0.5
        %v5332 = vmul.f32 %v5300, -0.5
        %v5333 = vmul.f32 %v5301, -0.5
        %v5334 = vmul.f32 %v5302, -0.5
        %v5335 = vmul.f32 %v5303, -0.5
        %v5336 = vmul.f32 %v5304, -0.5
        %v5337 = vmul.f32 %v5305, -0.5
        %v5338 = vmul.f32 %v5306, -0.5
        %v5339 = vmul.f32 %v5307, -0.5
        %v5340 = vmul.f32 %v5308, -0.5
        %v5341 = vmul.f32 %v5309, -0.5
        %v5342 = vmul.f32 %v5310, -0.5
        %v5343 = vmul.f32 %v5311, -0.5
        %v5344 = vmul.f32 %v5312, -0.5
        %v5345 = vmul.f32 %v5313, -0.5
        %v5346 = vmul.f32 %v5314, -0.5
        %v5347 = vmul.f32 %v5315, -0.5
        %v5348 = vmul.f32 %v5316, -0.5
        %v5349 = vmul.f32 %v5317, -0.5
        %v5350 = vmul.f32 %v5318, -0.5
        %v5351 = vmul.f32 %v5319, -0.5
        %v5352 = vmul.f32 %v5320, -0.5
        %v5353 = vmul.f32 %v5321, -0.5
        %v5354 = vmul.f32 %v5322, -0.5
        %v5355 = vmul.f32 %v5323, -0.5
        %v5356 = vmul.f32 %v5324, -0.5
        %v5357 = vmul.f32 %v5325, -0.5
        %v5358 = vmul.f32 %v5326, -0.5
        %v5359 = vsub.f32 %v5327, 21.254097
        %v5360 = vsub.f32 %v5328, 21.254097
        %v5361 = vsub.f32 %v5329, 21.254097
        %v5362 = vsub.f32 %v5330, 21.254097
        %v5363 = vsub.f32 %v5331, 21.254097
        %v5364 = vsub.f32 %v5332, 21.254097
        %v5365 = vsub.f32 %v5333, 21.254097
        %v5366 = vsub.f32 %v5334, 21.254097
        %v5367 = vsub.f32 %v5335, 21.254097
        %v5368 = vsub.f32 %v5336, 21.254097
        %v5369 = vsub.f32 %v5337, 21.254097
        %v5370 = vsub.f32 %v5338, 21.254097
        %v5371 = vsub.f32 %v5339, 21.254097
        %v5372 = vsub.f32 %v5340, 21.254097
        %v5373 = vsub.f32 %v5341, 21.254097
        %v5374 = vsub.f32 %v5342, 21.254097
        %v5375 = vsub.f32 %v5343, 21.254097
        %v5376 = vsub.f32 %v5344, 21.254097
        %v5377 = vsub.f32 %v5345, 21.254097
        %v5378 = vsub.f32 %v5346, 21.254097
        %v5379 = vsub.f32 %v5347, 21.254097
        %v5380 = vsub.f32 %v5348, 21.254097
        %v5381 = vsub.f32 %v5349, 21.254097
        %v5382 = vsub.f32 %v5350, 21.254097
        %v5383 = vsub.f32 %v5351, 21.254097
        %v5384 = vsub.f32 %v5352, 21.254097
        %v5385 = vsub.f32 %v5353, 21.254097
        %v5386 = vsub.f32 %v5354, 21.254097
        %v5387 = vsub.f32 %v5355, 21.254097
        %v5388 = vsub.f32 %v5356, 21.254097
        %v5389 = vsub.f32 %v5357, 21.254097
        %v5390 = vsub.f32 %v5358, 21.254097
        %v5391 = vmax.f32 %v5359, %v5363
        %v5392 = vmax.f32 %v5361, %v5365
        %v5393 = vmax.f32 %v5391, %v5367
        %v5394 = vmax.f32 %v5392, %v5369
        %v5395 = vmax.f32 %v5393, %v5371
        %v5396 = vmax.f32 %v5394, %v5373
        %v5397 = vmax.f32 %v5395, %v5375
        %v5398 = vmax.f32 %v5396, %v5377
        %v5399 = vmax.f32 %v5397, %v5379
        %v5400 = vmax.f32 %v5398, %v5381
        %v5401 = vmax.f32 %v5399, %v5383
        %v5402 = vmax.f32 %v5400, %v5385
        %v5403 = vmax.f32 %v5401, %v5387
        %v5404 = vmax.f32 %v5402, %v5389
        %v5405 = vmax.f32 %v5403, %v5404
        %v5406 = vrot.slane %v5405, 4
        %v5407 = vmax.f32 %v5405, %v5406
        %v5408 = vrot.slane %v5407, 2
        %v5409 = vmax.f32 %v5407, %v5408
        %v5410 = vrot.slane %v5409, 1
        %v5411 = vmax.f32 %v5409, %v5410
        %v5412 = vmax.f32 %v5360, %v5364
        %v5413 = vmax.f32 %v5362, %v5366
        %v5414 = vmax.f32 %v5412, %v5368
        %v5415 = vmax.f32 %v5413, %v5370
        %v5416 = vmax.f32 %v5414, %v5372
        %v5417 = vmax.f32 %v5415, %v5374
        %v5418 = vmax.f32 %v5416, %v5376
        %v5419 = vmax.f32 %v5417, %v5378
        %v5420 = vmax.f32 %v5418, %v5380
        %v5421 = vmax.f32 %v5419, %v5382
        %v5422 = vmax.f32 %v5420, %v5384
        %v5423 = vmax.f32 %v5421, %v5386
        %v5424 = vmax.f32 %v5422, %v5388
        %v5425 = vmax.f32 %v5423, %v5390
        %v5426 = vmax.f32 %v5424, %v5425
        %v5427 = vrot.slane %v5426, 4
        %v5428 = vmax.f32 %v5426, %v5427
        %v5429 = vrot.slane %v5428, 2
        %v5430 = vmax.f32 %v5428, %v5429
        %v5431 = vrot.slane %v5430, 1
        %v5432 = vmax.f32 %v5430, %v5431
        %v5435 = vcombine.low %v5411, %v5432
        %v5437 = vunpack.c.l.s4 1966171168
        %v5438 = vunpack.c.0.s8 %v5437
        %v5439 = vlaneseq
        %v5440 = vshrl.u32 %v5439, 7
        %v5441 = vsub.s32 %v5438, %v5440
        %v5442 = vrot.slane %v5435, %v5441
        %v5444 = vunpack.c.l.s4 1966171168
        %v5445 = vunpack.c.0.s8 %v5444
        %v5446 = vlaneseq
        %v5447 = vshrl.u32 %v5446, 7
        %v5448 = vsub.s32 %v5445, %v5447
        %v5449 = vrot.slane %v5442, %v5448
        %v5451 = vmax.f32 %v3308, %v5449
        %v5452 = vsub.f32 %v3308, %v5451
        %v5453 = vmul.f32 %v5452, 1.442695
        %v5454 = vpow.pop %v5453
        %v5455 = vmul.f32 %v5454, %v3480
        %v5457 = vlaneseq
        %v5458 = vshrl.u32 %v5457, 7
        %v5459 = vsub.s32 0, %v5458
        %v5460 = vrot.slane %v5451, %v5459
        %v5461 = vlaneseq
        %v5462 = vshrl.u32 %v5461, 7
        %v5463 = vsub.s32 1, %v5462
        %v5464 = vrot.slane %v5451, %v5463
        %v5467 = vsub.f32 %v5359, %v5460
        %v5468 = vsub.f32 %v5360, %v5464
        %v5469 = vsub.f32 %v5361, %v5460
        %v5470 = vsub.f32 %v5362, %v5464
        %v5471 = vsub.f32 %v5363, %v5460
        %v5472 = vsub.f32 %v5364, %v5464
        %v5473 = vsub.f32 %v5365, %v5460
        %v5474 = vsub.f32 %v5366, %v5464
        %v5475 = vsub.f32 %v5367, %v5460
        %v5476 = vsub.f32 %v5368, %v5464
        %v5477 = vsub.f32 %v5369, %v5460
        %v5478 = vsub.f32 %v5370, %v5464
        %v5479 = vsub.f32 %v5371, %v5460
        %v5480 = vsub.f32 %v5372, %v5464
        %v5481 = vsub.f32 %v5373, %v5460
        %v5482 = vsub.f32 %v5374, %v5464
        %v5483 = vsub.f32 %v5375, %v5460
        %v5484 = vsub.f32 %v5376, %v5464
        %v5485 = vsub.f32 %v5377, %v5460
        %v5486 = vsub.f32 %v5378, %v5464
        %v5487 = vsub.f32 %v5379, %v5460
        %v5488 = vsub.f32 %v5380, %v5464
        %v5489 = vsub.f32 %v5381, %v5460
        %v5490 = vsub.f32 %v5382, %v5464
        %v5491 = vsub.f32 %v5383, %v5460
        %v5492 = vsub.f32 %v5384, %v5464
        %v5493 = vsub.f32 %v5385, %v5460
        %v5494 = vsub.f32 %v5386, %v5464
        %v5495 = vsub.f32 %v5387, %v5460
        %v5496 = vsub.f32 %v5388, %v5464
        %v5497 = vsub.f32 %v5389, %v5460
        %v5498 = vsub.f32 %v5390, %v5464
        %v5499 = vmul.f32 %v5467, 1.442695
        %v5500 = vpow.pop %v5499
        %v5501 = vmul.f32 %v5468, 1.442695
        %v5502 = vpow.pop %v5501
        %v5503 = vmul.f32 %v5469, 1.442695
        %v5504 = vpow.pop %v5503
        %v5505 = vmul.f32 %v5470, 1.442695
        %v5506 = vpow.pop %v5505
        %v5507 = vmul.f32 %v5471, 1.442695
        %v5508 = vpow.pop %v5507
        %v5509 = vmul.f32 %v5472, 1.442695
        %v5510 = vpow.pop %v5509
        %v5511 = vmul.f32 %v5473, 1.442695
        %v5512 = vpow.pop %v5511
        %v5513 = vmul.f32 %v5474, 1.442695
        %v5514 = vpow.pop %v5513
        %v5515 = vmul.f32 %v5475, 1.442695
        %v5516 = vpow.pop %v5515
        %v5517 = vmul.f32 %v5476, 1.442695
        %v5518 = vpow.pop %v5517
        %v5519 = vmul.f32 %v5477, 1.442695
        %v5520 = vpow.pop %v5519
        %v5521 = vmul.f32 %v5478, 1.442695
        %v5522 = vpow.pop %v5521
        %v5523 = vmul.f32 %v5479, 1.442695
        %v5524 = vpow.pop %v5523
        %v5525 = vmul.f32 %v5480, 1.442695
        %v5526 = vpow.pop %v5525
        %v5527 = vmul.f32 %v5481, 1.442695
        %v5528 = vpow.pop %v5527
        %v5529 = vmul.f32 %v5482, 1.442695
        %v5530 = vpow.pop %v5529
        %v5531 = vmul.f32 %v5483, 1.442695
        %v5532 = vpow.pop %v5531
        %v5533 = vmul.f32 %v5484, 1.442695
        %v5534 = vpow.pop %v5533
        %v5535 = vmul.f32 %v5485, 1.442695
        %v5536 = vpow.pop %v5535
        %v5537 = vmul.f32 %v5486, 1.442695
        %v5538 = vpow.pop %v5537
        %v5539 = vmul.f32 %v5487, 1.442695
        %v5540 = vpow.pop %v5539
        %v5541 = vmul.f32 %v5488, 1.442695
        %v5542 = vpow.pop %v5541
        %v5543 = vmul.f32 %v5489, 1.442695
        %v5544 = vpow.pop %v5543
        %v5545 = vmul.f32 %v5490, 1.442695
        %v5546 = vpow.pop %v5545
        %v5547 = vmul.f32 %v5491, 1.442695
        %v5548 = vpow.pop %v5547
        %v5549 = vmul.f32 %v5492, 1.442695
        %v5550 = vpow.pop %v5549
        %v5551 = vmul.f32 %v5493, 1.442695
        %v5552 = vpow.pop %v5551
        %v5553 = vmul.f32 %v5494, 1.442695
        %v5554 = vpow.pop %v5553
        %v5555 = vmul.f32 %v5495, 1.442695
        %v5556 = vpow.pop %v5555
        %v5557 = vmul.f32 %v5496, 1.442695
        %v5558 = vpow.pop %v5557
        %v5559 = vmul.f32 %v5497, 1.442695
        %v5560 = vpow.pop %v5559
        %v5561 = vmul.f32 %v5498, 1.442695
        %v5562 = vpow.pop %v5561
        %v5563 = vadd.f32 %v5500, %v5504
        %v5564 = vadd.f32 %v5563, %v5508
        %v5565 = vadd.f32 %v5564, %v5512
        %v5566 = vadd.f32 %v5565, %v5516
        %v5567 = vadd.f32 %v5566, %v5520
        %v5568 = vadd.f32 %v5567, %v5524
        %v5569 = vadd.f32 %v5568, %v5528
        %v5570 = vadd.f32 %v5569, %v5532
        %v5571 = vadd.f32 %v5570, %v5536
        %v5572 = vadd.f32 %v5571, %v5540
        %v5573 = vadd.f32 %v5572, %v5544
        %v5574 = vadd.f32 %v5573, %v5548
        %v5575 = vadd.f32 %v5574, %v5552
        %v5576 = vadd.f32 %v5575, %v5556
        %v5577 = vadd.f32 %v5576, %v5560
        %v5578 = vrot.slane %v5577, 4
        %v5579 = vadd.f32 %v5577, %v5578
        %v5580 = vrot.slane %v5579, 2
        %v5581 = vadd.f32 %v5579, %v5580
        %v5582 = vrot.slane %v5581, 1
        %v5583 = vadd.f32 %v5581, %v5582
        %v5584 = vadd.f32 %v5502, %v5506
        %v5585 = vadd.f32 %v5584, %v5510
        %v5586 = vadd.f32 %v5585, %v5514
        %v5587 = vadd.f32 %v5586, %v5518
        %v5588 = vadd.f32 %v5587, %v5522
        %v5589 = vadd.f32 %v5588, %v5526
        %v5590 = vadd.f32 %v5589, %v5530
        %v5591 = vadd.f32 %v5590, %v5534
        %v5592 = vadd.f32 %v5591, %v5538
        %v5593 = vadd.f32 %v5592, %v5542
        %v5594 = vadd.f32 %v5593, %v5546
        %v5595 = vadd.f32 %v5594, %v5550
        %v5596 = vadd.f32 %v5595, %v5554
        %v5597 = vadd.f32 %v5596, %v5558
        %v5598 = vadd.f32 %v5597, %v5562
        %v5599 = vrot.slane %v5598, 4
        %v5600 = vadd.f32 %v5598, %v5599
        %v5601 = vrot.slane %v5600, 2
        %v5602 = vadd.f32 %v5600, %v5601
        %v5603 = vrot.slane %v5602, 1
        %v5604 = vadd.f32 %v5602, %v5603
        %v5607 = vcombine.low %v5583, %v5604
        %v5609 = vunpack.c.l.s4 1966171168
        %v5610 = vunpack.c.0.s8 %v5609
        %v5611 = vlaneseq
        %v5612 = vshrl.u32 %v5611, 7
        %v5613 = vsub.s32 %v5610, %v5612
        %v5614 = vrot.slane %v5607, %v5613
        %v5616 = vunpack.c.l.s4 1966171168
        %v5617 = vunpack.c.0.s8 %v5616
        %v5618 = vlaneseq
        %v5619 = vshrl.u32 %v5618, 7
        %v5620 = vsub.s32 %v5617, %v5619
        %v5621 = vrot.slane %v5614, %v5620
        %v5623 = vadd.f32 %v5455, %v5621
        %v5624 = vld [vmem:[%s176 + $0x100] sm:$0xff]
        %v5625 = vld [vmem:[%s176 + $0x108] sm:$0xff]
        %v5626 = vld [vmem:[%s176 + $0x110] sm:$0xff]
        %v5627 = vld [vmem:[%s176 + $0x118] sm:$0xff]
        %v5628 = vld [vmem:[%s176 + $0x120] sm:$0xff]
        %v5629 = vld [vmem:[%s176 + $0x128] sm:$0xff]
        %v5630 = vld [vmem:[%s176 + $0x130] sm:$0xff]
        %v5631 = vld [vmem:[%s176 + $0x138] sm:$0xff]
        %v5632 = vld [vmem:[%s176 + $0x140] sm:$0xff]
        %v5633 = vld [vmem:[%s176 + $0x148] sm:$0xff]
        %v5634 = vld [vmem:[%s176 + $0x150] sm:$0xff]
        %v5635 = vld [vmem:[%s176 + $0x158] sm:$0xff]
        %v5636 = vld [vmem:[%s176 + $0x160] sm:$0xff]
        %v5637 = vld [vmem:[%s176 + $0x168] sm:$0xff]
        %v5638 = vld [vmem:[%s176 + $0x170] sm:$0xff]
        %v5639 = vld [vmem:[%s176 + $0x178] sm:$0xff]
        %v5641 = vsel %vm1246, %v5624, 0
        %v5644 = vsel %vm1246, %v5625, 0
        %v5647 = vsel %vm1246, %v5626, 0
        %v5650 = vsel %vm1246, %v5627, 0
        %v5653 = vsel %vm1246, %v5628, 0
        %v5656 = vsel %vm1246, %v5629, 0
        %v5659 = vsel %vm1246, %v5630, 0
        %v5662 = vsel %vm1246, %v5631, 0
        %v5665 = vsel %vm1246, %v5632, 0
        %v5668 = vsel %vm1246, %v5633, 0
        %v5671 = vsel %vm1246, %v5634, 0
        %v5674 = vsel %vm1246, %v5635, 0
        %v5677 = vsel %vm1246, %v5636, 0
        %v5680 = vsel %vm1246, %v5637, 0
        %v5683 = vsel %vm1246, %v5638, 0
        %v5686 = vsel %vm1246, %v5639, 0
        %5688 = vmatprep.subr.mxu0 0.0
        %v5689 = vand.u32 %v1296, 4294901760
        %5690 = vmatpush1.xpose.msra.mxu0 %v5689
        %5691 = vmatprep.subr.mxu0 0.0
        %v5692 = vand.u32 %v1299, 4294901760
        %5693 = vmatpush1.xpose.msra.mxu0 %v5692
        %5694 = vmatprep.subr.mxu0 0.0
        %v5695 = vand.u32 %v1302, 4294901760
        %5696 = vmatpush1.xpose.msra.mxu0 %v5695
        %5697 = vmatprep.subr.mxu0 0.0
        %v5698 = vand.u32 %v1305, 4294901760
        %5699 = vmatpush1.xpose.msra.mxu0 %v5698
        %5700 = vmatprep.subr.mxu0 0.0
        %v5701 = vand.u32 %v1308, 4294901760
        %5702 = vmatpush1.xpose.msra.mxu0 %v5701
        %5703 = vmatprep.subr.mxu0 0.0
        %v5704 = vand.u32 %v1311, 4294901760
        %5705 = vmatpush1.xpose.msra.mxu0 %v5704
        %5706 = vmatprep.subr.mxu0 0.0
        %v5707 = vand.u32 %v1314, 4294901760
        %5708 = vmatpush1.xpose.msra.mxu0 %v5707
        %5709 = vmatprep.subr.mxu0 0.0
        %v5710 = vand.u32 %v1317, 4294901760
        %5711 = vmatpush1.xpose.msra.mxu0 %v5710
        %5712 = vmatprep.subr.mxu0 0.0
        %v5713 = vand.u32 %v1320, 4294901760
        %5714 = vmatpush1.xpose.msra.mxu0 %v5713
        %5715 = vmatprep.subr.mxu0 0.0
        %v5716 = vand.u32 %v1323, 4294901760
        %5717 = vmatpush1.xpose.msra.mxu0 %v5716
        %5718 = vmatprep.subr.mxu0 0.0
        %v5719 = vand.u32 %v1326, 4294901760
        %5720 = vmatpush1.xpose.msra.mxu0 %v5719
        %5721 = vmatprep.subr.mxu0 0.0
        %v5722 = vand.u32 %v1329, 4294901760
        %5723 = vmatpush1.xpose.msra.mxu0 %v5722
        %5724 = vmatprep.subr.mxu0 0.0
        %v5725 = vand.u32 %v1332, 4294901760
        %5726 = vmatpush1.xpose.msra.mxu0 %v5725
        %5727 = vmatprep.subr.mxu0 0.0
        %v5728 = vand.u32 %v1335, 4294901760
        %5729 = vmatpush1.xpose.msra.mxu0 %v5728
        %5730 = vmatprep.subr.mxu0 0.0
        %v5731 = vand.u32 %v1338, 4294901760
        %5732 = vmatpush1.xpose.msra.mxu0 %v5731
        %5733 = vmatprep.subr.mxu0 0.0
        %v5734 = vand.u32 %v1341, 4294901760
        %5735 = vmatpush1.xpose.msra.mxu0 %v5734
        %5736 = vmatprep.subr.mxu0 0.0
        %v5737 = vand.u32 %v1344, 4294901760
        %5738 = vmatpush1.xpose.msra.mxu0 %v5737
        %5739 = vmatprep.subr.mxu0 0.0
        %v5740 = vand.u32 %v1347, 4294901760
        %5741 = vmatpush1.xpose.msra.mxu0 %v5740
        %5742 = vmatprep.subr.mxu0 0.0
        %v5743 = vand.u32 %v1350, 4294901760
        %5744 = vmatpush1.xpose.msra.mxu0 %v5743
        %5745 = vmatprep.subr.mxu0 0.0
        %v5746 = vand.u32 %v1353, 4294901760
        %5747 = vmatpush1.xpose.msra.mxu0 %v5746
        %5748 = vmatprep.subr.mxu0 0.0
        %v5749 = vand.u32 %v1356, 4294901760
        %5750 = vmatpush1.xpose.msra.mxu0 %v5749
        %5751 = vmatprep.subr.mxu0 0.0
        %v5752 = vand.u32 %v1359, 4294901760
        %5753 = vmatpush1.xpose.msra.mxu0 %v5752
        %5754 = vmatprep.subr.mxu0 0.0
        %v5755 = vand.u32 %v1362, 4294901760
        %5756 = vmatpush1.xpose.msra.mxu0 %v5755
        %5757 = vmatprep.subr.mxu0 0.0
        %v5758 = vand.u32 %v1365, 4294901760
        %5759 = vmatpush1.xpose.msra.mxu0 %v5758
        %5760 = vmatprep.subr.mxu0 0.0
        %v5761 = vand.u32 %v1368, 4294901760
        %5762 = vmatpush1.xpose.msra.mxu0 %v5761
        %5763 = vmatprep.subr.mxu0 0.0
        %v5764 = vand.u32 %v1371, 4294901760
        %5765 = vmatpush1.xpose.msra.mxu0 %v5764
        %5766 = vmatprep.subr.mxu0 0.0
        %v5767 = vand.u32 %v1374, 4294901760
        %5768 = vmatpush1.xpose.msra.mxu0 %v5767
        %5769 = vmatprep.subr.mxu0 0.0
        %v5770 = vand.u32 %v1377, 4294901760
        %5771 = vmatpush1.xpose.msra.mxu0 %v5770
        %5772 = vmatprep.subr.mxu0 0.0
        %v5773 = vand.u32 %v1380, 4294901760
        %5774 = vmatpush1.xpose.msra.mxu0 %v5773
        %5775 = vmatprep.subr.mxu0 0.0
        %v5776 = vand.u32 %v1383, 4294901760
        %5777 = vmatpush1.xpose.msra.mxu0 %v5776
        %5778 = vmatprep.subr.mxu0 0.0
        %v5779 = vand.u32 %v1386, 4294901760
        %5780 = vmatpush1.xpose.msra.mxu0 %v5779
        %5781 = vmatprep.subr.mxu0 0.0
        %v5782 = vand.u32 %v1389, 4294901760
        %5783 = vmatpush1.xpose.msra.mxu0 %v5782
        %5784 = vmatprep.mubr.f32.mxu0 0.0
        %v5785 = vand.u32 %v5641, 4294901760
        %v5786 = vsub.f32 %v5641, %v5785
        %v5787 = vand.u32 %v5786, 4294901760
        %v5788 = vsub.f32 %v5786, %v5787
        %v5789 = vand.u32 %v5788, 4294901760
        %5790 = vmatmul.mubr.f32.gmra.mrb[0].mxu0 %v5789
        %v5791 = vpop.f32.mrb[0].mxu0
        %v5792 = vadd.f32 0.0, %v5791
        %v5793 = vpop.f32.mrb[0].mxu0
        %v5794 = vadd.f32 0.0, %v5793
        %5795 = vmatprep.mubr.f32.mxu0 0.0
        %v5796 = vand.u32 %v5644, 4294901760
        %v5797 = vsub.f32 %v5644, %v5796
        %v5798 = vand.u32 %v5797, 4294901760
        %v5799 = vsub.f32 %v5797, %v5798
        %v5800 = vand.u32 %v5799, 4294901760
        %5801 = vmatmul.mubr.f32.gmra.mrb[0].mxu0 %v5800
        %v5802 = vpop.f32.mrb[0].mxu0
        %v5803 = vadd.f32 0.0, %v5802
        %v5804 = vpop.f32.mrb[0].mxu0
        %v5805 = vadd.f32 0.0, %v5804
        %5806 = vmatprep.mubr.f32.mxu0 0.0
        %v5807 = vand.u32 %v5647, 4294901760
        %v5808 = vsub.f32 %v5647, %v5807
        %v5809 = vand.u32 %v5808, 4294901760
        %v5810 = vsub.f32 %v5808, %v5809
        %v5811 = vand.u32 %v5810, 4294901760
        %5812 = vmatmul.mubr.f32.gmra.mrb[0].mxu0 %v5811
        %v5813 = vpop.f32.mrb[0].mxu0
        %v5814 = vadd.f32 0.0, %v5813
        %v5815 = vpop.f32.mrb[0].mxu0
        %v5816 = vadd.f32 0.0, %v5815
        %5817 = vmatprep.mubr.f32.mxu0 0.0
        %v5818 = vand.u32 %v5650, 4294901760
        %v5819 = vsub.f32 %v5650, %v5818
        %v5820 = vand.u32 %v5819, 4294901760
        %v5821 = vsub.f32 %v5819, %v5820
        %v5822 = vand.u32 %v5821, 4294901760
        %5823 = vmatmul.mubr.f32.gmra.mrb[0].mxu0 %v5822
        %v5824 = vpop.f32.mrb[0].mxu0
        %v5825 = vadd.f32 0.0, %v5824
        %v5826 = vpop.f32.mrb[0].mxu0
        %v5827 = vadd.f32 0.0, %v5826
        %5828 = vmatprep.mubr.f32.mxu0 0.0
        %v5829 = vand.u32 %v5653, 4294901760
        %v5830 = vsub.f32 %v5653, %v5829
        %v5831 = vand.u32 %v5830, 4294901760
        %v5832 = vsub.f32 %v5830, %v5831
        %v5833 = vand.u32 %v5832, 4294901760
        %5834 = vmatmul.mubr.f32.gmra.mrb[0].mxu0 %v5833
        %v5835 = vpop.f32.mrb[0].mxu0
        %v5836 = vadd.f32 0.0, %v5835
        %v5837 = vpop.f32.mrb[0].mxu0
        %v5838 = vadd.f32 0.0, %v5837
        %5839 = vmatprep.mubr.f32.mxu0 0.0
        %v5840 = vand.u32 %v5656, 4294901760
        %v5841 = vsub.f32 %v5656, %v5840
        %v5842 = vand.u32 %v5841, 4294901760
        %v5843 = vsub.f32 %v5841, %v5842
        %v5844 = vand.u32 %v5843, 4294901760
        %5845 = vmatmul.mubr.f32.gmra.mrb[0].mxu0 %v5844
        %v5846 = vpop.f32.mrb[0].mxu0
        %v5847 = vadd.f32 0.0, %v5846
        %v5848 = vpop.f32.mrb[0].mxu0
        %v5849 = vadd.f32 0.0, %v5848
        %5850 = vmatprep.mubr.f32.mxu0 0.0
        %v5851 = vand.u32 %v5659, 4294901760
        %v5852 = vsub.f32 %v5659, %v5851
        %v5853 = vand.u32 %v5852, 4294901760
        %v5854 = vsub.f32 %v5852, %v5853
        %v5855 = vand.u32 %v5854, 4294901760
        %5856 = vmatmul.mubr.f32.gmra.mrb[0].mxu0 %v5855
        %v5857 = vpop.f32.mrb[0].mxu0
        %v5858 = vadd.f32 0.0, %v5857
        %v5859 = vpop.f32.mrb[0].mxu0
        %v5860 = vadd.f32 0.0, %v5859
        %5861 = vmatprep.mubr.f32.mxu0 0.0
        %v5862 = vand.u32 %v5662, 4294901760
        %v5863 = vsub.f32 %v5662, %v5862
        %v5864 = vand.u32 %v5863, 4294901760
        %v5865 = vsub.f32 %v5863, %v5864
        %v5866 = vand.u32 %v5865, 4294901760
        %5867 = vmatmul.mubr.f32.gmra.mrb[0].mxu0 %v5866
        %v5868 = vpop.f32.mrb[0].mxu0
        %v5869 = vadd.f32 0.0, %v5868
        %v5870 = vpop.f32.mrb[0].mxu0
        %v5871 = vadd.f32 0.0, %v5870
        %5872 = vmatprep.mubr.f32.mxu0 0.0
        %v5873 = vand.u32 %v5665, 4294901760
        %v5874 = vsub.f32 %v5665, %v5873
        %v5875 = vand.u32 %v5874, 4294901760
        %v5876 = vsub.f32 %v5874, %v5875
        %v5877 = vand.u32 %v5876, 4294901760
        %5878 = vmatmul.mubr.f32.gmra.mrb[0].mxu0 %v5877
        %v5879 = vpop.f32.mrb[0].mxu0
        %v5880 = vadd.f32 0.0, %v5879
        %v5881 = vpop.f32.mrb[0].mxu0
        %v5882 = vadd.f32 0.0, %v5881
        %5883 = vmatprep.mubr.f32.mxu0 0.0
        %v5884 = vand.u32 %v5668, 4294901760
        %v5885 = vsub.f32 %v5668, %v5884
        %v5886 = vand.u32 %v5885, 4294901760
        %v5887 = vsub.f32 %v5885, %v5886
        %v5888 = vand.u32 %v5887, 4294901760
        %5889 = vmatmul.mubr.f32.gmra.mrb[0].mxu0 %v5888
        %v5890 = vpop.f32.mrb[0].mxu0
        %v5891 = vadd.f32 0.0, %v5890
        %v5892 = vpop.f32.mrb[0].mxu0
        %v5893 = vadd.f32 0.0, %v5892
        %5894 = vmatprep.mubr.f32.mxu0 0.0
        %v5895 = vand.u32 %v5671, 4294901760
        %v5896 = vsub.f32 %v5671, %v5895
        %v5897 = vand.u32 %v5896, 4294901760
        %v5898 = vsub.f32 %v5896, %v5897
        %v5899 = vand.u32 %v5898, 4294901760
        %5900 = vmatmul.mubr.f32.gmra.mrb[0].mxu0 %v5899
        %v5901 = vpop.f32.mrb[0].mxu0
        %v5902 = vadd.f32 0.0, %v5901
        %v5903 = vpop.f32.mrb[0].mxu0
        %v5904 = vadd.f32 0.0, %v5903
        %5905 = vmatprep.mubr.f32.mxu0 0.0
        %v5906 = vand.u32 %v5674, 4294901760
        %v5907 = vsub.f32 %v5674, %v5906
        %v5908 = vand.u32 %v5907, 4294901760
        %v5909 = vsub.f32 %v5907, %v5908
        %v5910 = vand.u32 %v5909, 4294901760
        %5911 = vmatmul.mubr.f32.gmra.mrb[0].mxu0 %v5910
        %v5912 = vpop.f32.mrb[0].mxu0
        %v5913 = vadd.f32 0.0, %v5912
        %v5914 = vpop.f32.mrb[0].mxu0
        %v5915 = vadd.f32 0.0, %v5914
        %5916 = vmatprep.mubr.f32.mxu0 0.0
        %v5917 = vand.u32 %v5677, 4294901760
        %v5918 = vsub.f32 %v5677, %v5917
        %v5919 = vand.u32 %v5918, 4294901760
        %v5920 = vsub.f32 %v5918, %v5919
        %v5921 = vand.u32 %v5920, 4294901760
        %5922 = vmatmul.mubr.f32.gmra.mrb[0].mxu0 %v5921
        %v5923 = vpop.f32.mrb[0].mxu0
        %v5924 = vadd.f32 0.0, %v5923
        %v5925 = vpop.f32.mrb[0].mxu0
        %v5926 = vadd.f32 0.0, %v5925
        %5927 = vmatprep.mubr.f32.mxu0 0.0
        %v5928 = vand.u32 %v5680, 4294901760
        %v5929 = vsub.f32 %v5680, %v5928
        %v5930 = vand.u32 %v5929, 4294901760
        %v5931 = vsub.f32 %v5929, %v5930
        %v5932 = vand.u32 %v5931, 4294901760
        %5933 = vmatmul.mubr.f32.gmra.mrb[0].mxu0 %v5932
        %v5934 = vpop.f32.mrb[0].mxu0
        %v5935 = vadd.f32 0.0, %v5934
        %v5936 = vpop.f32.mrb[0].mxu0
        %v5937 = vadd.f32 0.0, %v5936
        %5938 = vmatprep.mubr.f32.mxu0 0.0
        %v5939 = vand.u32 %v5683, 4294901760
        %v5940 = vsub.f32 %v5683, %v5939
        %v5941 = vand.u32 %v5940, 4294901760
        %v5942 = vsub.f32 %v5940, %v5941
        %v5943 = vand.u32 %v5942, 4294901760
        %5944 = vmatmul.mubr.f32.gmra.mrb[0].mxu0 %v5943
        %v5945 = vpop.f32.mrb[0].mxu0
        %v5946 = vadd.f32 0.0, %v5945
        %v5947 = vpop.f32.mrb[0].mxu0
        %v5948 = vadd.f32 0.0, %v5947
        %5949 = vmatprep.mubr.f32.mxu0 0.0
        %v5950 = vand.u32 %v5686, 4294901760
        %v5951 = vsub.f32 %v5686, %v5950
        %v5952 = vand.u32 %v5951, 4294901760
        %v5953 = vsub.f32 %v5951, %v5952
        %v5954 = vand.u32 %v5953, 4294901760
        %5955 = vmatmul.mubr.f32.gmra.mrb[0].mxu0 %v5954
        %v5956 = vpop.f32.mrb[0].mxu0
        %v5957 = vadd.f32 0.0, %v5956
        %v5958 = vpop.f32.mrb[0].mxu0
        %v5959 = vadd.f32 0.0, %v5958
        %5960 = vdwg.mxu0
        %5961 = vmatprep.subr.mxu0 0.0
        %v5962 = vand.u32 %v1296, 4294901760
        %v5963 = vsub.f32 %v1296, %v5962
        %v5964 = vand.u32 %v5963, 4294901760
        %v5965 = vsub.f32 %v5963, %v5964
        %v5966 = vand.u32 %v5965, 4294901760
        %5967 = vmatpush1.xpose.msra.mxu0 %v5966
        %5968 = vmatprep.subr.mxu0 0.0
        %v5969 = vand.u32 %v1299, 4294901760
        %v5970 = vsub.f32 %v1299, %v5969
        %v5971 = vand.u32 %v5970, 4294901760
        %v5972 = vsub.f32 %v5970, %v5971
        %v5973 = vand.u32 %v5972, 4294901760
        %5974 = vmatpush1.xpose.msra.mxu0 %v5973
        %5975 = vmatprep.subr.mxu0 0.0
        %v5976 = vand.u32 %v1302, 4294901760
        %v5977 = vsub.f32 %v1302, %v5976
        %v5978 = vand.u32 %v5977, 4294901760
        %v5979 = vsub.f32 %v5977, %v5978
        %v5980 = vand.u32 %v5979, 4294901760
        %5981 = vmatpush1.xpose.msra.mxu0 %v5980
        %5982 = vmatprep.subr.mxu0 0.0
        %v5983 = vand.u32 %v1305, 4294901760
        %v5984 = vsub.f32 %v1305, %v5983
        %v5985 = vand.u32 %v5984, 4294901760
        %v5986 = vsub.f32 %v5984, %v5985
        %v5987 = vand.u32 %v5986, 4294901760
        %5988 = vmatpush1.xpose.msra.mxu0 %v5987
        %5989 = vmatprep.subr.mxu0 0.0
        %v5990 = vand.u32 %v1308, 4294901760
        %v5991 = vsub.f32 %v1308, %v5990
        %v5992 = vand.u32 %v5991, 4294901760
        %v5993 = vsub.f32 %v5991, %v5992
        %v5994 = vand.u32 %v5993, 4294901760
        %5995 = vmatpush1.xpose.msra.mxu0 %v5994
        %5996 = vmatprep.subr.mxu0 0.0
        %v5997 = vand.u32 %v1311, 4294901760
        %v5998 = vsub.f32 %v1311, %v5997
        %v5999 = vand.u32 %v5998, 4294901760
        %v6000 = vsub.f32 %v5998, %v5999
        %v6001 = vand.u32 %v6000, 4294901760
        %6002 = vmatpush1.xpose.msra.mxu0 %v6001
        %6003 = vmatprep.subr.mxu0 0.0
        %v6004 = vand.u32 %v1314, 4294901760
        %v6005 = vsub.f32 %v1314, %v6004
        %v6006 = vand.u32 %v6005, 4294901760
        %v6007 = vsub.f32 %v6005, %v6006
        %v6008 = vand.u32 %v6007, 4294901760
        %6009 = vmatpush1.xpose.msra.mxu0 %v6008
        %6010 = vmatprep.subr.mxu0 0.0
        %v6011 = vand.u32 %v1317, 4294901760
        %v6012 = vsub.f32 %v1317, %v6011
        %v6013 = vand.u32 %v6012, 4294901760
        %v6014 = vsub.f32 %v6012, %v6013
        %v6015 = vand.u32 %v6014, 4294901760
        %6016 = vmatpush1.xpose.msra.mxu0 %v6015
        %6017 = vmatprep.subr.mxu0 0.0
        %v6018 = vand.u32 %v1320, 4294901760
        %v6019 = vsub.f32 %v1320, %v6018
        %v6020 = vand.u32 %v6019, 4294901760
        %v6021 = vsub.f32 %v6019, %v6020
        %v6022 = vand.u32 %v6021, 4294901760
        %6023 = vmatpush1.xpose.msra.mxu0 %v6022
        %6024 = vmatprep.subr.mxu0 0.0
        %v6025 = vand.u32 %v1323, 4294901760
        %v6026 = vsub.f32 %v1323, %v6025
        %v6027 = vand.u32 %v6026, 4294901760
        %v6028 = vsub.f32 %v6026, %v6027
        %v6029 = vand.u32 %v6028, 4294901760
        %6030 = vmatpush1.xpose.msra.mxu0 %v6029
        %6031 = vmatprep.subr.mxu0 0.0
        %v6032 = vand.u32 %v1326, 4294901760
        %v6033 = vsub.f32 %v1326, %v6032
        %v6034 = vand.u32 %v6033, 4294901760
        %v6035 = vsub.f32 %v6033, %v6034
        %v6036 = vand.u32 %v6035, 4294901760
        %6037 = vmatpush1.xpose.msra.mxu0 %v6036
        %6038 = vmatprep.subr.mxu0 0.0
        %v6039 = vand.u32 %v1329, 4294901760
        %v6040 = vsub.f32 %v1329, %v6039
        %v6041 = vand.u32 %v6040, 4294901760
        %v6042 = vsub.f32 %v6040, %v6041
        %v6043 = vand.u32 %v6042, 4294901760
        %6044 = vmatpush1.xpose.msra.mxu0 %v6043
        %6045 = vmatprep.subr.mxu0 0.0
        %v6046 = vand.u32 %v1332, 4294901760
        %v6047 = vsub.f32 %v1332, %v6046
        %v6048 = vand.u32 %v6047, 4294901760
        %v6049 = vsub.f32 %v6047, %v6048
        %v6050 = vand.u32 %v6049, 4294901760
        %6051 = vmatpush1.xpose.msra.mxu0 %v6050
        %6052 = vmatprep.subr.mxu0 0.0
        %v6053 = vand.u32 %v1335, 4294901760
        %v6054 = vsub.f32 %v1335, %v6053
        %v6055 = vand.u32 %v6054, 4294901760
        %v6056 = vsub.f32 %v6054, %v6055
        %v6057 = vand.u32 %v6056, 4294901760
        %6058 = vmatpush1.xpose.msra.mxu0 %v6057
        %6059 = vmatprep.subr.mxu0 0.0
        %v6060 = vand.u32 %v1338, 4294901760
        %v6061 = vsub.f32 %v1338, %v6060
        %v6062 = vand.u32 %v6061, 4294901760
        %v6063 = vsub.f32 %v6061, %v6062
        %v6064 = vand.u32 %v6063, 4294901760
        %6065 = vmatpush1.xpose.msra.mxu0 %v6064
        %6066 = vmatprep.subr.mxu0 0.0
        %v6067 = vand.u32 %v1341, 4294901760
        %v6068 = vsub.f32 %v1341, %v6067
        %v6069 = vand.u32 %v6068, 4294901760
        %v6070 = vsub.f32 %v6068, %v6069
        %v6071 = vand.u32 %v6070, 4294901760
        %6072 = vmatpush1.xpose.msra.mxu0 %v6071
        %6073 = vmatprep.subr.mxu0 0.0
        %v6074 = vand.u32 %v1344, 4294901760
        %v6075 = vsub.f32 %v1344, %v6074
        %v6076 = vand.u32 %v6075, 4294901760
        %v6077 = vsub.f32 %v6075, %v6076
        %v6078 = vand.u32 %v6077, 4294901760
        %6079 = vmatpush1.xpose.msra.mxu0 %v6078
        %6080 = vmatprep.subr.mxu0 0.0
        %v6081 = vand.u32 %v1347, 4294901760
        %v6082 = vsub.f32 %v1347, %v6081
        %v6083 = vand.u32 %v6082, 4294901760
        %v6084 = vsub.f32 %v6082, %v6083
        %v6085 = vand.u32 %v6084, 4294901760
        %6086 = vmatpush1.xpose.msra.mxu0 %v6085
        %6087 = vmatprep.subr.mxu0 0.0
        %v6088 = vand.u32 %v1350, 4294901760
        %v6089 = vsub.f32 %v1350, %v6088
        %v6090 = vand.u32 %v6089, 4294901760
        %v6091 = vsub.f32 %v6089, %v6090
        %v6092 = vand.u32 %v6091, 4294901760
        %6093 = vmatpush1.xpose.msra.mxu0 %v6092
        %6094 = vmatprep.subr.mxu0 0.0
        %v6095 = vand.u32 %v1353, 4294901760
        %v6096 = vsub.f32 %v1353, %v6095
        %v6097 = vand.u32 %v6096, 4294901760
        %v6098 = vsub.f32 %v6096, %v6097
        %v6099 = vand.u32 %v6098, 4294901760
        %6100 = vmatpush1.xpose.msra.mxu0 %v6099
        %6101 = vmatprep.subr.mxu0 0.0
        %v6102 = vand.u32 %v1356, 4294901760
        %v6103 = vsub.f32 %v1356, %v6102
        %v6104 = vand.u32 %v6103, 4294901760
        %v6105 = vsub.f32 %v6103, %v6104
        %v6106 = vand.u32 %v6105, 4294901760
        %6107 = vmatpush1.xpose.msra.mxu0 %v6106
        %6108 = vmatprep.subr.mxu0 0.0
        %v6109 = vand.u32 %v1359, 4294901760
        %v6110 = vsub.f32 %v1359, %v6109
        %v6111 = vand.u32 %v6110, 4294901760
        %v6112 = vsub.f32 %v6110, %v6111
        %v6113 = vand.u32 %v6112, 4294901760
        %6114 = vmatpush1.xpose.msra.mxu0 %v6113
        %6115 = vmatprep.subr.mxu0 0.0
        %v6116 = vand.u32 %v1362, 4294901760
        %v6117 = vsub.f32 %v1362, %v6116
        %v6118 = vand.u32 %v6117, 4294901760
        %v6119 = vsub.f32 %v6117, %v6118
        %v6120 = vand.u32 %v6119, 4294901760
        %6121 = vmatpush1.xpose.msra.mxu0 %v6120
        %6122 = vmatprep.subr.mxu0 0.0
        %v6123 = vand.u32 %v1365, 4294901760
        %v6124 = vsub.f32 %v1365, %v6123
        %v6125 = vand.u32 %v6124, 4294901760
        %v6126 = vsub.f32 %v6124, %v6125
        %v6127 = vand.u32 %v6126, 4294901760
        %6128 = vmatpush1.xpose.msra.mxu0 %v6127
        %6129 = vmatprep.subr.mxu0 0.0
        %v6130 = vand.u32 %v1368, 4294901760
        %v6131 = vsub.f32 %v1368, %v6130
        %v6132 = vand.u32 %v6131, 4294901760
        %v6133 = vsub.f32 %v6131, %v6132
        %v6134 = vand.u32 %v6133, 4294901760
        %6135 = vmatpush1.xpose.msra.mxu0 %v6134
        %6136 = vmatprep.subr.mxu0 0.0
        %v6137 = vand.u32 %v1371, 4294901760
        %v6138 = vsub.f32 %v1371, %v6137
        %v6139 = vand.u32 %v6138, 4294901760
        %v6140 = vsub.f32 %v6138, %v6139
        %v6141 = vand.u32 %v6140, 4294901760
        %6142 = vmatpush1.xpose.msra.mxu0 %v6141
        %6143 = vmatprep.subr.mxu0 0.0
        %v6144 = vand.u32 %v1374, 4294901760
        %v6145 = vsub.f32 %v1374, %v6144
        %v6146 = vand.u32 %v6145, 4294901760
        %v6147 = vsub.f32 %v6145, %v6146
        %v6148 = vand.u32 %v6147, 4294901760
        %6149 = vmatpush1.xpose.msra.mxu0 %v6148
        %6150 = vmatprep.subr.mxu0 0.0
        %v6151 = vand.u32 %v1377, 4294901760
        %v6152 = vsub.f32 %v1377, %v6151
        %v6153 = vand.u32 %v6152, 4294901760
        %v6154 = vsub.f32 %v6152, %v6153
        %v6155 = vand.u32 %v6154, 4294901760
        %6156 = vmatpush1.xpose.msra.mxu0 %v6155
        %6157 = vmatprep.subr.mxu0 0.0
        %v6158 = vand.u32 %v1380, 4294901760
        %v6159 = vsub.f32 %v1380, %v6158
        %v6160 = vand.u32 %v6159, 4294901760
        %v6161 = vsub.f32 %v6159, %v6160
        %v6162 = vand.u32 %v6161, 4294901760
        %6163 = vmatpush1.xpose.msra.mxu0 %v6162
        %6164 = vmatprep.subr.mxu0 0.0
        %v6165 = vand.u32 %v1383, 4294901760
        %v6166 = vsub.f32 %v1383, %v6165
        %v6167 = vand.u32 %v6166, 4294901760
        %v6168 = vsub.f32 %v6166, %v6167
        %v6169 = vand.u32 %v6168, 4294901760
        %6170 = vmatpush1.xpose.msra.mxu0 %v6169
        %6171 = vmatprep.subr.mxu0 0.0
        %v6172 = vand.u32 %v1386, 4294901760
        %v6173 = vsub.f32 %v1386, %v6172
        %v6174 = vand.u32 %v6173, 4294901760
        %v6175 = vsub.f32 %v6173, %v6174
        %v6176 = vand.u32 %v6175, 4294901760
        %6177 = vmatpush1.xpose.msra.mxu0 %v6176
        %6178 = vmatprep.subr.mxu0 0.0
        %v6179 = vand.u32 %v1389, 4294901760
        %v6180 = vsub.f32 %v1389, %v6179
        %v6181 = vand.u32 %v6180, 4294901760
        %v6182 = vsub.f32 %v6180, %v6181
        %v6183 = vand.u32 %v6182, 4294901760
        %6184 = vmatpush1.xpose.msra.mxu0 %v6183
        %6185 = vmatprep.mubr.f32.mxu0 0.0
        %v6186 = vand.u32 %v5641, 4294901760
        %6187 = vmatmul.mubr.f32.gmra.mrb[0].mxu0 %v6186
        %v6188 = vpop.f32.mrb[0].mxu0
        %v6189 = vadd.f32 %v5792, %v6188
        %v6190 = vpop.f32.mrb[0].mxu0
        %v6191 = vadd.f32 %v5794, %v6190
        %6192 = vmatprep.mubr.f32.mxu0 0.0
        %v6193 = vand.u32 %v5644, 4294901760
        %6194 = vmatmul.mubr.f32.gmra.mrb[0].mxu0 %v6193
        %v6195 = vpop.f32.mrb[0].mxu0
        %v6196 = vadd.f32 %v5803, %v6195
        %v6197 = vpop.f32.mrb[0].mxu0
        %v6198 = vadd.f32 %v5805, %v6197
        %6199 = vmatprep.mubr.f32.mxu0 0.0
        %v6200 = vand.u32 %v5647, 4294901760
        %6201 = vmatmul.mubr.f32.gmra.mrb[0].mxu0 %v6200
        %v6202 = vpop.f32.mrb[0].mxu0
        %v6203 = vadd.f32 %v5814, %v6202
        %v6204 = vpop.f32.mrb[0].mxu0
        %v6205 = vadd.f32 %v5816, %v6204
        %6206 = vmatprep.mubr.f32.mxu0 0.0
        %v6207 = vand.u32 %v5650, 4294901760
        %6208 = vmatmul.mubr.f32.gmra.mrb[0].mxu0 %v6207
        %v6209 = vpop.f32.mrb[0].mxu0
        %v6210 = vadd.f32 %v5825, %v6209
        %v6211 = vpop.f32.mrb[0].mxu0
        %v6212 = vadd.f32 %v5827, %v6211
        %6213 = vmatprep.mubr.f32.mxu0 0.0
        %v6214 = vand.u32 %v5653, 4294901760
        %6215 = vmatmul.mubr.f32.gmra.mrb[0].mxu0 %v6214
        %v6216 = vpop.f32.mrb[0].mxu0
        %v6217 = vadd.f32 %v5836, %v6216
        %v6218 = vpop.f32.mrb[0].mxu0
        %v6219 = vadd.f32 %v5838, %v6218
        %6220 = vmatprep.mubr.f32.mxu0 0.0
        %v6221 = vand.u32 %v5656, 4294901760
        %6222 = vmatmul.mubr.f32.gmra.mrb[0].mxu0 %v6221
        %v6223 = vpop.f32.mrb[0].mxu0
        %v6224 = vadd.f32 %v5847, %v6223
        %v6225 = vpop.f32.mrb[0].mxu0
        %v6226 = vadd.f32 %v5849, %v6225
        %6227 = vmatprep.mubr.f32.mxu0 0.0
        %v6228 = vand.u32 %v5659, 4294901760
        %6229 = vmatmul.mubr.f32.gmra.mrb[0].mxu0 %v6228
        %v6230 = vpop.f32.mrb[0].mxu0
        %v6231 = vadd.f32 %v5858, %v6230
        %v6232 = vpop.f32.mrb[0].mxu0
        %v6233 = vadd.f32 %v5860, %v6232
        %6234 = vmatprep.mubr.f32.mxu0 0.0
        %v6235 = vand.u32 %v5662, 4294901760
        %6236 = vmatmul.mubr.f32.gmra.mrb[0].mxu0 %v6235
        %v6237 = vpop.f32.mrb[0].mxu0
        %v6238 = vadd.f32 %v5869, %v6237
        %v6239 = vpop.f32.mrb[0].mxu0
        %v6240 = vadd.f32 %v5871, %v6239
        %6241 = vmatprep.mubr.f32.mxu0 0.0
        %v6242 = vand.u32 %v5665, 4294901760
        %6243 = vmatmul.mubr.f32.gmra.mrb[0].mxu0 %v6242
        %v6244 = vpop.f32.mrb[0].mxu0
        %v6245 = vadd.f32 %v5880, %v6244
        %v6246 = vpop.f32.mrb[0].mxu0
        %v6247 = vadd.f32 %v5882, %v6246
        %6248 = vmatprep.mubr.f32.mxu0 0.0
        %v6249 = vand.u32 %v5668, 4294901760
        %6250 = vmatmul.mubr.f32.gmra.mrb[0].mxu0 %v6249
        %v6251 = vpop.f32.mrb[0].mxu0
        %v6252 = vadd.f32 %v5891, %v6251
        %v6253 = vpop.f32.mrb[0].mxu0
        %v6254 = vadd.f32 %v5893, %v6253
        %6255 = vmatprep.mubr.f32.mxu0 0.0
        %v6256 = vand.u32 %v5671, 4294901760
        %6257 = vmatmul.mubr.f32.gmra.mrb[0].mxu0 %v6256
        %v6258 = vpop.f32.mrb[0].mxu0
        %v6259 = vadd.f32 %v5902, %v6258
        %v6260 = vpop.f32.mrb[0].mxu0
        %v6261 = vadd.f32 %v5904, %v6260
        %6262 = vmatprep.mubr.f32.mxu0 0.0
        %v6263 = vand.u32 %v5674, 4294901760
        %6264 = vmatmul.mubr.f32.gmra.mrb[0].mxu0 %v6263
        %v6265 = vpop.f32.mrb[0].mxu0
        %v6266 = vadd.f32 %v5913, %v6265
        %v6267 = vpop.f32.mrb[0].mxu0
        %v6268 = vadd.f32 %v5915, %v6267
        %6269 = vmatprep.mubr.f32.mxu0 0.0
        %v6270 = vand.u32 %v5677, 4294901760
        %6271 = vmatmul.mubr.f32.gmra.mrb[0].mxu0 %v6270
        %v6272 = vpop.f32.mrb[0].mxu0
        %v6273 = vadd.f32 %v5924, %v6272
        %v6274 = vpop.f32.mrb[0].mxu0
        %v6275 = vadd.f32 %v5926, %v6274
        %6276 = vmatprep.mubr.f32.mxu0 0.0
        %v6277 = vand.u32 %v5680, 4294901760
        %6278 = vmatmul.mubr.f32.gmra.mrb[0].mxu0 %v6277
        %v6279 = vpop.f32.mrb[0].mxu0
        %v6280 = vadd.f32 %v5935, %v6279
        %v6281 = vpop.f32.mrb[0].mxu0
        %v6282 = vadd.f32 %v5937, %v6281
        %6283 = vmatprep.mubr.f32.mxu0 0.0
        %v6284 = vand.u32 %v5683, 4294901760
        %6285 = vmatmul.mubr.f32.gmra.mrb[0].mxu0 %v6284
        %v6286 = vpop.f32.mrb[0].mxu0
        %v6287 = vadd.f32 %v5946, %v6286
        %v6288 = vpop.f32.mrb[0].mxu0
        %v6289 = vadd.f32 %v5948, %v6288
        %6290 = vmatprep.mubr.f32.mxu0 0.0
        %v6291 = vand.u32 %v5686, 4294901760
        %6292 = vmatmul.mubr.f32.gmra.mrb[0].mxu0 %v6291
        %v6293 = vpop.f32.mrb[0].mxu0
        %v6294 = vadd.f32 %v5957, %v6293
        %v6295 = vpop.f32.mrb[0].mxu0
        %v6296 = vadd.f32 %v5959, %v6295
        %6297 = vdwg.mxu0
        %6298 = vmatprep.subr.mxu0 0.0
        %v6299 = vand.u32 %v1296, 4294901760
        %v6300 = vsub.f32 %v1296, %v6299
        %6301 = vmatpush1.xpose.msra.mxu0 %v6300
        %6302 = vmatprep.subr.mxu0 0.0
        %v6303 = vand.u32 %v1299, 4294901760
        %v6304 = vsub.f32 %v1299, %v6303
        %6305 = vmatpush1.xpose.msra.mxu0 %v6304
        %6306 = vmatprep.subr.mxu0 0.0
        %v6307 = vand.u32 %v1302, 4294901760
        %v6308 = vsub.f32 %v1302, %v6307
        %6309 = vmatpush1.xpose.msra.mxu0 %v6308
        %6310 = vmatprep.subr.mxu0 0.0
        %v6311 = vand.u32 %v1305, 4294901760
        %v6312 = vsub.f32 %v1305, %v6311
        %6313 = vmatpush1.xpose.msra.mxu0 %v6312
        %6314 = vmatprep.subr.mxu0 0.0
        %v6315 = vand.u32 %v1308, 4294901760
        %v6316 = vsub.f32 %v1308, %v6315
        %6317 = vmatpush1.xpose.msra.mxu0 %v6316
        %6318 = vmatprep.subr.mxu0 0.0
        %v6319 = vand.u32 %v1311, 4294901760
        %v6320 = vsub.f32 %v1311, %v6319
        %6321 = vmatpush1.xpose.msra.mxu0 %v6320
        %6322 = vmatprep.subr.mxu0 0.0
        %v6323 = vand.u32 %v1314, 4294901760
        %v6324 = vsub.f32 %v1314, %v6323
        %6325 = vmatpush1.xpose.msra.mxu0 %v6324
        %6326 = vmatprep.subr.mxu0 0.0
        %v6327 = vand.u32 %v1317, 4294901760
        %v6328 = vsub.f32 %v1317, %v6327
        %6329 = vmatpush1.xpose.msra.mxu0 %v6328
        %6330 = vmatprep.subr.mxu0 0.0
        %v6331 = vand.u32 %v1320, 4294901760
        %v6332 = vsub.f32 %v1320, %v6331
        %6333 = vmatpush1.xpose.msra.mxu0 %v6332
        %6334 = vmatprep.subr.mxu0 0.0
        %v6335 = vand.u32 %v1323, 4294901760
        %v6336 = vsub.f32 %v1323, %v6335
        %6337 = vmatpush1.xpose.msra.mxu0 %v6336
        %6338 = vmatprep.subr.mxu0 0.0
        %v6339 = vand.u32 %v1326, 4294901760
        %v6340 = vsub.f32 %v1326, %v6339
        %6341 = vmatpush1.xpose.msra.mxu0 %v6340
        %6342 = vmatprep.subr.mxu0 0.0
        %v6343 = vand.u32 %v1329, 4294901760
        %v6344 = vsub.f32 %v1329, %v6343
        %6345 = vmatpush1.xpose.msra.mxu0 %v6344
        %6346 = vmatprep.subr.mxu0 0.0
        %v6347 = vand.u32 %v1332, 4294901760
        %v6348 = vsub.f32 %v1332, %v6347
        %6349 = vmatpush1.xpose.msra.mxu0 %v6348
        %6350 = vmatprep.subr.mxu0 0.0
        %v6351 = vand.u32 %v1335, 4294901760
        %v6352 = vsub.f32 %v1335, %v6351
        %6353 = vmatpush1.xpose.msra.mxu0 %v6352
        %6354 = vmatprep.subr.mxu0 0.0
        %v6355 = vand.u32 %v1338, 4294901760
        %v6356 = vsub.f32 %v1338, %v6355
        %6357 = vmatpush1.xpose.msra.mxu0 %v6356
        %6358 = vmatprep.subr.mxu0 0.0
        %v6359 = vand.u32 %v1341, 4294901760
        %v6360 = vsub.f32 %v1341, %v6359
        %6361 = vmatpush1.xpose.msra.mxu0 %v6360
        %6362 = vmatprep.subr.mxu0 0.0
        %v6363 = vand.u32 %v1344, 4294901760
        %v6364 = vsub.f32 %v1344, %v6363
        %6365 = vmatpush1.xpose.msra.mxu0 %v6364
        %6366 = vmatprep.subr.mxu0 0.0
        %v6367 = vand.u32 %v1347, 4294901760
        %v6368 = vsub.f32 %v1347, %v6367
        %6369 = vmatpush1.xpose.msra.mxu0 %v6368
        %6370 = vmatprep.subr.mxu0 0.0
        %v6371 = vand.u32 %v1350, 4294901760
        %v6372 = vsub.f32 %v1350, %v6371
        %6373 = vmatpush1.xpose.msra.mxu0 %v6372
        %6374 = vmatprep.subr.mxu0 0.0
        %v6375 = vand.u32 %v1353, 4294901760
        %v6376 = vsub.f32 %v1353, %v6375
        %6377 = vmatpush1.xpose.msra.mxu0 %v6376
        %6378 = vmatprep.subr.mxu0 0.0
        %v6379 = vand.u32 %v1356, 4294901760
        %v6380 = vsub.f32 %v1356, %v6379
        %6381 = vmatpush1.xpose.msra.mxu0 %v6380
        %6382 = vmatprep.subr.mxu0 0.0
        %v6383 = vand.u32 %v1359, 4294901760
        %v6384 = vsub.f32 %v1359, %v6383
        %6385 = vmatpush1.xpose.msra.mxu0 %v6384
        %6386 = vmatprep.subr.mxu0 0.0
        %v6387 = vand.u32 %v1362, 4294901760
        %v6388 = vsub.f32 %v1362, %v6387
        %6389 = vmatpush1.xpose.msra.mxu0 %v6388
        %6390 = vmatprep.subr.mxu0 0.0
        %v6391 = vand.u32 %v1365, 4294901760
        %v6392 = vsub.f32 %v1365, %v6391
        %6393 = vmatpush1.xpose.msra.mxu0 %v6392
        %6394 = vmatprep.subr.mxu0 0.0
        %v6395 = vand.u32 %v1368, 4294901760
        %v6396 = vsub.f32 %v1368, %v6395
        %6397 = vmatpush1.xpose.msra.mxu0 %v6396
        %6398 = vmatprep.subr.mxu0 0.0
        %v6399 = vand.u32 %v1371, 4294901760
        %v6400 = vsub.f32 %v1371, %v6399
        %6401 = vmatpush1.xpose.msra.mxu0 %v6400
        %6402 = vmatprep.subr.mxu0 0.0
        %v6403 = vand.u32 %v1374, 4294901760
        %v6404 = vsub.f32 %v1374, %v6403
        %6405 = vmatpush1.xpose.msra.mxu0 %v6404
        %6406 = vmatprep.subr.mxu0 0.0
        %v6407 = vand.u32 %v1377, 4294901760
        %v6408 = vsub.f32 %v1377, %v6407
        %6409 = vmatpush1.xpose.msra.mxu0 %v6408
        %6410 = vmatprep.subr.mxu0 0.0
        %v6411 = vand.u32 %v1380, 4294901760
        %v6412 = vsub.f32 %v1380, %v6411
        %6413 = vmatpush1.xpose.msra.mxu0 %v6412
        %6414 = vmatprep.subr.mxu0 0.0
        %v6415 = vand.u32 %v1383, 4294901760
        %v6416 = vsub.f32 %v1383, %v6415
        %6417 = vmatpush1.xpose.msra.mxu0 %v6416
        %6418 = vmatprep.subr.mxu0 0.0
        %v6419 = vand.u32 %v1386, 4294901760
        %v6420 = vsub.f32 %v1386, %v6419
        %6421 = vmatpush1.xpose.msra.mxu0 %v6420
        %6422 = vmatprep.subr.mxu0 0.0
        %v6423 = vand.u32 %v1389, 4294901760
        %v6424 = vsub.f32 %v1389, %v6423
        %6425 = vmatpush1.xpose.msra.mxu0 %v6424
        %6426 = vmatprep.mubr.f32.mxu0 0.0
        %v6427 = vand.u32 %v5641, 4294901760
        %v6428 = vsub.f32 %v5641, %v6427
        %6429 = vmatmul.mubr.f32.gmra.mrb[0].mxu0 %v6428
        %v6430 = vpop.f32.mrb[0].mxu0
        %v6431 = vadd.f32 %v6189, %v6430
        %v6432 = vpop.f32.mrb[0].mxu0
        %v6433 = vadd.f32 %v6191, %v6432
        %6434 = vmatprep.mubr.f32.mxu0 0.0
        %v6435 = vand.u32 %v5644, 4294901760
        %v6436 = vsub.f32 %v5644, %v6435
        %6437 = vmatmul.mubr.f32.gmra.mrb[0].mxu0 %v6436
        %v6438 = vpop.f32.mrb[0].mxu0
        %v6439 = vadd.f32 %v6196, %v6438
        %v6440 = vpop.f32.mrb[0].mxu0
        %v6441 = vadd.f32 %v6198, %v6440
        %6442 = vmatprep.mubr.f32.mxu0 0.0
        %v6443 = vand.u32 %v5647, 4294901760
        %v6444 = vsub.f32 %v5647, %v6443
        %6445 = vmatmul.mubr.f32.gmra.mrb[0].mxu0 %v6444
        %v6446 = vpop.f32.mrb[0].mxu0
        %v6447 = vadd.f32 %v6203, %v6446
        %v6448 = vpop.f32.mrb[0].mxu0
        %v6449 = vadd.f32 %v6205, %v6448
        %6450 = vmatprep.mubr.f32.mxu0 0.0
        %v6451 = vand.u32 %v5650, 4294901760
        %v6452 = vsub.f32 %v5650, %v6451
        %6453 = vmatmul.mubr.f32.gmra.mrb[0].mxu0 %v6452
        %v6454 = vpop.f32.mrb[0].mxu0
        %v6455 = vadd.f32 %v6210, %v6454
        %v6456 = vpop.f32.mrb[0].mxu0
        %v6457 = vadd.f32 %v6212, %v6456
        %6458 = vmatprep.mubr.f32.mxu0 0.0
        %v6459 = vand.u32 %v5653, 4294901760
        %v6460 = vsub.f32 %v5653, %v6459
        %6461 = vmatmul.mubr.f32.gmra.mrb[0].mxu0 %v6460
        %v6462 = vpop.f32.mrb[0].mxu0
        %v6463 = vadd.f32 %v6217, %v6462
        %v6464 = vpop.f32.mrb[0].mxu0
        %v6465 = vadd.f32 %v6219, %v6464
        %6466 = vmatprep.mubr.f32.mxu0 0.0
        %v6467 = vand.u32 %v5656, 4294901760
        %v6468 = vsub.f32 %v5656, %v6467
        %6469 = vmatmul.mubr.f32.gmra.mrb[0].mxu0 %v6468
        %v6470 = vpop.f32.mrb[0].mxu0
        %v6471 = vadd.f32 %v6224, %v6470
        %v6472 = vpop.f32.mrb[0].mxu0
        %v6473 = vadd.f32 %v6226, %v6472
        %6474 = vmatprep.mubr.f32.mxu0 0.0
        %v6475 = vand.u32 %v5659, 4294901760
        %v6476 = vsub.f32 %v5659, %v6475
        %6477 = vmatmul.mubr.f32.gmra.mrb[0].mxu0 %v6476
        %v6478 = vpop.f32.mrb[0].mxu0
        %v6479 = vadd.f32 %v6231, %v6478
        %v6480 = vpop.f32.mrb[0].mxu0
        %v6481 = vadd.f32 %v6233, %v6480
        %6482 = vmatprep.mubr.f32.mxu0 0.0
        %v6483 = vand.u32 %v5662, 4294901760
        %v6484 = vsub.f32 %v5662, %v6483
        %6485 = vmatmul.mubr.f32.gmra.mrb[0].mxu0 %v6484
        %v6486 = vpop.f32.mrb[0].mxu0
        %v6487 = vadd.f32 %v6238, %v6486
        %v6488 = vpop.f32.mrb[0].mxu0
        %v6489 = vadd.f32 %v6240, %v6488
        %6490 = vmatprep.mubr.f32.mxu0 0.0
        %v6491 = vand.u32 %v5665, 4294901760
        %v6492 = vsub.f32 %v5665, %v6491
        %6493 = vmatmul.mubr.f32.gmra.mrb[0].mxu0 %v6492
        %v6494 = vpop.f32.mrb[0].mxu0
        %v6495 = vadd.f32 %v6245, %v6494
        %v6496 = vpop.f32.mrb[0].mxu0
        %v6497 = vadd.f32 %v6247, %v6496
        %6498 = vmatprep.mubr.f32.mxu0 0.0
        %v6499 = vand.u32 %v5668, 4294901760
        %v6500 = vsub.f32 %v5668, %v6499
        %6501 = vmatmul.mubr.f32.gmra.mrb[0].mxu0 %v6500
        %v6502 = vpop.f32.mrb[0].mxu0
        %v6503 = vadd.f32 %v6252, %v6502
        %v6504 = vpop.f32.mrb[0].mxu0
        %v6505 = vadd.f32 %v6254, %v6504
        %6506 = vmatprep.mubr.f32.mxu0 0.0
        %v6507 = vand.u32 %v5671, 4294901760
        %v6508 = vsub.f32 %v5671, %v6507
        %6509 = vmatmul.mubr.f32.gmra.mrb[0].mxu0 %v6508
        %v6510 = vpop.f32.mrb[0].mxu0
        %v6511 = vadd.f32 %v6259, %v6510
        %v6512 = vpop.f32.mrb[0].mxu0
        %v6513 = vadd.f32 %v6261, %v6512
        %6514 = vmatprep.mubr.f32.mxu0 0.0
        %v6515 = vand.u32 %v5674, 4294901760
        %v6516 = vsub.f32 %v5674, %v6515
        %6517 = vmatmul.mubr.f32.gmra.mrb[0].mxu0 %v6516
        %v6518 = vpop.f32.mrb[0].mxu0
        %v6519 = vadd.f32 %v6266, %v6518
        %v6520 = vpop.f32.mrb[0].mxu0
        %v6521 = vadd.f32 %v6268, %v6520
        %6522 = vmatprep.mubr.f32.mxu0 0.0
        %v6523 = vand.u32 %v5677, 4294901760
        %v6524 = vsub.f32 %v5677, %v6523
        %6525 = vmatmul.mubr.f32.gmra.mrb[0].mxu0 %v6524
        %v6526 = vpop.f32.mrb[0].mxu0
        %v6527 = vadd.f32 %v6273, %v6526
        %v6528 = vpop.f32.mrb[0].mxu0
        %v6529 = vadd.f32 %v6275, %v6528
        %6530 = vmatprep.mubr.f32.mxu0 0.0
        %v6531 = vand.u32 %v5680, 4294901760
        %v6532 = vsub.f32 %v5680, %v6531
        %6533 = vmatmul.mubr.f32.gmra.mrb[0].mxu0 %v6532
        %v6534 = vpop.f32.mrb[0].mxu0
        %v6535 = vadd.f32 %v6280, %v6534
        %v6536 = vpop.f32.mrb[0].mxu0
        %v6537 = vadd.f32 %v6282, %v6536
        %6538 = vmatprep.mubr.f32.mxu0 0.0
        %v6539 = vand.u32 %v5683, 4294901760
        %v6540 = vsub.f32 %v5683, %v6539
        %6541 = vmatmul.mubr.f32.gmra.mrb[0].mxu0 %v6540
        %v6542 = vpop.f32.mrb[0].mxu0
        %v6543 = vadd.f32 %v6287, %v6542
        %v6544 = vpop.f32.mrb[0].mxu0
        %v6545 = vadd.f32 %v6289, %v6544
        %6546 = vmatprep.mubr.f32.mxu0 0.0
        %v6547 = vand.u32 %v5686, 4294901760
        %v6548 = vsub.f32 %v5686, %v6547
        %6549 = vmatmul.mubr.f32.gmra.mrb[0].mxu0 %v6548
        %v6550 = vpop.f32.mrb[0].mxu0
        %v6551 = vadd.f32 %v6294, %v6550
        %v6552 = vpop.f32.mrb[0].mxu0
        %v6553 = vadd.f32 %v6296, %v6552
        %6554 = vdwg.mxu0
        %6555 = vmatprep.subr.mxu0 0.0
        %v6556 = vand.u32 %v1296, 4294901760
        %6557 = vmatpush1.xpose.msra.mxu0 %v6556
        %6558 = vmatprep.subr.mxu0 0.0
        %v6559 = vand.u32 %v1299, 4294901760
        %6560 = vmatpush1.xpose.msra.mxu0 %v6559
        %6561 = vmatprep.subr.mxu0 0.0
        %v6562 = vand.u32 %v1302, 4294901760
        %6563 = vmatpush1.xpose.msra.mxu0 %v6562
        %6564 = vmatprep.subr.mxu0 0.0
        %v6565 = vand.u32 %v1305, 4294901760
        %6566 = vmatpush1.xpose.msra.mxu0 %v6565
        %6567 = vmatprep.subr.mxu0 0.0
        %v6568 = vand.u32 %v1308, 4294901760
        %6569 = vmatpush1.xpose.msra.mxu0 %v6568
        %6570 = vmatprep.subr.mxu0 0.0
        %v6571 = vand.u32 %v1311, 4294901760
        %6572 = vmatpush1.xpose.msra.mxu0 %v6571
        %6573 = vmatprep.subr.mxu0 0.0
        %v6574 = vand.u32 %v1314, 4294901760
        %6575 = vmatpush1.xpose.msra.mxu0 %v6574
        %6576 = vmatprep.subr.mxu0 0.0
        %v6577 = vand.u32 %v1317, 4294901760
        %6578 = vmatpush1.xpose.msra.mxu0 %v6577
        %6579 = vmatprep.subr.mxu0 0.0
        %v6580 = vand.u32 %v1320, 4294901760
        %6581 = vmatpush1.xpose.msra.mxu0 %v6580
        %6582 = vmatprep.subr.mxu0 0.0
        %v6583 = vand.u32 %v1323, 4294901760
        %6584 = vmatpush1.xpose.msra.mxu0 %v6583
        %6585 = vmatprep.subr.mxu0 0.0
        %v6586 = vand.u32 %v1326, 4294901760
        %6587 = vmatpush1.xpose.msra.mxu0 %v6586
        %6588 = vmatprep.subr.mxu0 0.0
        %v6589 = vand.u32 %v1329, 4294901760
        %6590 = vmatpush1.xpose.msra.mxu0 %v6589
        %6591 = vmatprep.subr.mxu0 0.0
        %v6592 = vand.u32 %v1332, 4294901760
        %6593 = vmatpush1.xpose.msra.mxu0 %v6592
        %6594 = vmatprep.subr.mxu0 0.0
        %v6595 = vand.u32 %v1335, 4294901760
        %6596 = vmatpush1.xpose.msra.mxu0 %v6595
        %6597 = vmatprep.subr.mxu0 0.0
        %v6598 = vand.u32 %v1338, 4294901760
        %6599 = vmatpush1.xpose.msra.mxu0 %v6598
        %6600 = vmatprep.subr.mxu0 0.0
        %v6601 = vand.u32 %v1341, 4294901760
        %6602 = vmatpush1.xpose.msra.mxu0 %v6601
        %6603 = vmatprep.subr.mxu0 0.0
        %v6604 = vand.u32 %v1344, 4294901760
        %6605 = vmatpush1.xpose.msra.mxu0 %v6604
        %6606 = vmatprep.subr.mxu0 0.0
        %v6607 = vand.u32 %v1347, 4294901760
        %6608 = vmatpush1.xpose.msra.mxu0 %v6607
        %6609 = vmatprep.subr.mxu0 0.0
        %v6610 = vand.u32 %v1350, 4294901760
        %6611 = vmatpush1.xpose.msra.mxu0 %v6610
        %6612 = vmatprep.subr.mxu0 0.0
        %v6613 = vand.u32 %v1353, 4294901760
        %6614 = vmatpush1.xpose.msra.mxu0 %v6613
        %6615 = vmatprep.subr.mxu0 0.0
        %v6616 = vand.u32 %v1356, 4294901760
        %6617 = vmatpush1.xpose.msra.mxu0 %v6616
        %6618 = vmatprep.subr.mxu0 0.0
        %v6619 = vand.u32 %v1359, 4294901760
        %6620 = vmatpush1.xpose.msra.mxu0 %v6619
        %6621 = vmatprep.subr.mxu0 0.0
        %v6622 = vand.u32 %v1362, 4294901760
        %6623 = vmatpush1.xpose.msra.mxu0 %v6622
        %6624 = vmatprep.subr.mxu0 0.0
        %v6625 = vand.u32 %v1365, 4294901760
        %6626 = vmatpush1.xpose.msra.mxu0 %v6625
        %6627 = vmatprep.subr.mxu0 0.0
        %v6628 = vand.u32 %v1368, 4294901760
        %6629 = vmatpush1.xpose.msra.mxu0 %v6628
        %6630 = vmatprep.subr.mxu0 0.0
        %v6631 = vand.u32 %v1371, 4294901760
        %6632 = vmatpush1.xpose.msra.mxu0 %v6631
        %6633 = vmatprep.subr.mxu0 0.0
        %v6634 = vand.u32 %v1374, 4294901760
        %6635 = vmatpush1.xpose.msra.mxu0 %v6634
        %6636 = vmatprep.subr.mxu0 0.0
        %v6637 = vand.u32 %v1377, 4294901760
        %6638 = vmatpush1.xpose.msra.mxu0 %v6637
        %6639 = vmatprep.subr.mxu0 0.0
        %v6640 = vand.u32 %v1380, 4294901760
        %6641 = vmatpush1.xpose.msra.mxu0 %v6640
        %6642 = vmatprep.subr.mxu0 0.0
        %v6643 = vand.u32 %v1383, 4294901760
        %6644 = vmatpush1.xpose.msra.mxu0 %v6643
        %6645 = vmatprep.subr.mxu0 0.0
        %v6646 = vand.u32 %v1386, 4294901760
        %6647 = vmatpush1.xpose.msra.mxu0 %v6646
        %6648 = vmatprep.subr.mxu0 0.0
        %v6649 = vand.u32 %v1389, 4294901760
        %6650 = vmatpush1.xpose.msra.mxu0 %v6649
        %6651 = vmatprep.mubr.f32.mxu0 0.0
        %v6652 = vand.u32 %v5641, 4294901760
        %v6653 = vsub.f32 %v5641, %v6652
        %v6654 = vand.u32 %v6653, 4294901760
        %6655 = vmatmul.mubr.f32.gmra.mrb[0].mxu0 %v6654
        %v6656 = vpop.f32.mrb[0].mxu0
        %v6657 = vadd.f32 %v6431, %v6656
        %v6658 = vpop.f32.mrb[0].mxu0
        %v6659 = vadd.f32 %v6433, %v6658
        %6660 = vmatprep.mubr.f32.mxu0 0.0
        %v6661 = vand.u32 %v5644, 4294901760
        %v6662 = vsub.f32 %v5644, %v6661
        %v6663 = vand.u32 %v6662, 4294901760
        %6664 = vmatmul.mubr.f32.gmra.mrb[0].mxu0 %v6663
        %v6665 = vpop.f32.mrb[0].mxu0
        %v6666 = vadd.f32 %v6439, %v6665
        %v6667 = vpop.f32.mrb[0].mxu0
        %v6668 = vadd.f32 %v6441, %v6667
        %6669 = vmatprep.mubr.f32.mxu0 0.0
        %v6670 = vand.u32 %v5647, 4294901760
        %v6671 = vsub.f32 %v5647, %v6670
        %v6672 = vand.u32 %v6671, 4294901760
        %6673 = vmatmul.mubr.f32.gmra.mrb[0].mxu0 %v6672
        %v6674 = vpop.f32.mrb[0].mxu0
        %v6675 = vadd.f32 %v6447, %v6674
        %v6676 = vpop.f32.mrb[0].mxu0
        %v6677 = vadd.f32 %v6449, %v6676
        %6678 = vmatprep.mubr.f32.mxu0 0.0
        %v6679 = vand.u32 %v5650, 4294901760
        %v6680 = vsub.f32 %v5650, %v6679
        %v6681 = vand.u32 %v6680, 4294901760
        %6682 = vmatmul.mubr.f32.gmra.mrb[0].mxu0 %v6681
        %v6683 = vpop.f32.mrb[0].mxu0
        %v6684 = vadd.f32 %v6455, %v6683
        %v6685 = vpop.f32.mrb[0].mxu0
        %v6686 = vadd.f32 %v6457, %v6685
        %6687 = vmatprep.mubr.f32.mxu0 0.0
        %v6688 = vand.u32 %v5653, 4294901760
        %v6689 = vsub.f32 %v5653, %v6688
        %v6690 = vand.u32 %v6689, 4294901760
        %6691 = vmatmul.mubr.f32.gmra.mrb[0].mxu0 %v6690
        %v6692 = vpop.f32.mrb[0].mxu0
        %v6693 = vadd.f32 %v6463, %v6692
        %v6694 = vpop.f32.mrb[0].mxu0
        %v6695 = vadd.f32 %v6465, %v6694
        %6696 = vmatprep.mubr.f32.mxu0 0.0
        %v6697 = vand.u32 %v5656, 4294901760
        %v6698 = vsub.f32 %v5656, %v6697
        %v6699 = vand.u32 %v6698, 4294901760
        %6700 = vmatmul.mubr.f32.gmra.mrb[0].mxu0 %v6699
        %v6701 = vpop.f32.mrb[0].mxu0
        %v6702 = vadd.f32 %v6471, %v6701
        %v6703 = vpop.f32.mrb[0].mxu0
        %v6704 = vadd.f32 %v6473, %v6703
        %6705 = vmatprep.mubr.f32.mxu0 0.0
        %v6706 = vand.u32 %v5659, 4294901760
        %v6707 = vsub.f32 %v5659, %v6706
        %v6708 = vand.u32 %v6707, 4294901760
        %6709 = vmatmul.mubr.f32.gmra.mrb[0].mxu0 %v6708
        %v6710 = vpop.f32.mrb[0].mxu0
        %v6711 = vadd.f32 %v6479, %v6710
        %v6712 = vpop.f32.mrb[0].mxu0
        %v6713 = vadd.f32 %v6481, %v6712
        %6714 = vmatprep.mubr.f32.mxu0 0.0
        %v6715 = vand.u32 %v5662, 4294901760
        %v6716 = vsub.f32 %v5662, %v6715
        %v6717 = vand.u32 %v6716, 4294901760
        %6718 = vmatmul.mubr.f32.gmra.mrb[0].mxu0 %v6717
        %v6719 = vpop.f32.mrb[0].mxu0
        %v6720 = vadd.f32 %v6487, %v6719
        %v6721 = vpop.f32.mrb[0].mxu0
        %v6722 = vadd.f32 %v6489, %v6721
        %6723 = vmatprep.mubr.f32.mxu0 0.0
        %v6724 = vand.u32 %v5665, 4294901760
        %v6725 = vsub.f32 %v5665, %v6724
        %v6726 = vand.u32 %v6725, 4294901760
        %6727 = vmatmul.mubr.f32.gmra.mrb[0].mxu0 %v6726
        %v6728 = vpop.f32.mrb[0].mxu0
        %v6729 = vadd.f32 %v6495, %v6728
        %v6730 = vpop.f32.mrb[0].mxu0
        %v6731 = vadd.f32 %v6497, %v6730
        %6732 = vmatprep.mubr.f32.mxu0 0.0
        %v6733 = vand.u32 %v5668, 4294901760
        %v6734 = vsub.f32 %v5668, %v6733
        %v6735 = vand.u32 %v6734, 4294901760
        %6736 = vmatmul.mubr.f32.gmra.mrb[0].mxu0 %v6735
        %v6737 = vpop.f32.mrb[0].mxu0
        %v6738 = vadd.f32 %v6503, %v6737
        %v6739 = vpop.f32.mrb[0].mxu0
        %v6740 = vadd.f32 %v6505, %v6739
        %6741 = vmatprep.mubr.f32.mxu0 0.0
        %v6742 = vand.u32 %v5671, 4294901760
        %v6743 = vsub.f32 %v5671, %v6742
        %v6744 = vand.u32 %v6743, 4294901760
        %6745 = vmatmul.mubr.f32.gmra.mrb[0].mxu0 %v6744
        %v6746 = vpop.f32.mrb[0].mxu0
        %v6747 = vadd.f32 %v6511, %v6746
        %v6748 = vpop.f32.mrb[0].mxu0
        %v6749 = vadd.f32 %v6513, %v6748
        %6750 = vmatprep.mubr.f32.mxu0 0.0
        %v6751 = vand.u32 %v5674, 4294901760
        %v6752 = vsub.f32 %v5674, %v6751
        %v6753 = vand.u32 %v6752, 4294901760
        %6754 = vmatmul.mubr.f32.gmra.mrb[0].mxu0 %v6753
        %v6755 = vpop.f32.mrb[0].mxu0
        %v6756 = vadd.f32 %v6519, %v6755
        %v6757 = vpop.f32.mrb[0].mxu0
        %v6758 = vadd.f32 %v6521, %v6757
        %6759 = vmatprep.mubr.f32.mxu0 0.0
        %v6760 = vand.u32 %v5677, 4294901760
        %v6761 = vsub.f32 %v5677, %v6760
        %v6762 = vand.u32 %v6761, 4294901760
        %6763 = vmatmul.mubr.f32.gmra.mrb[0].mxu0 %v6762
        %v6764 = vpop.f32.mrb[0].mxu0
        %v6765 = vadd.f32 %v6527, %v6764
        %v6766 = vpop.f32.mrb[0].mxu0
        %v6767 = vadd.f32 %v6529, %v6766
        %6768 = vmatprep.mubr.f32.mxu0 0.0
        %v6769 = vand.u32 %v5680, 4294901760
        %v6770 = vsub.f32 %v5680, %v6769
        %v6771 = vand.u32 %v6770, 4294901760
        %6772 = vmatmul.mubr.f32.gmra.mrb[0].mxu0 %v6771
        %v6773 = vpop.f32.mrb[0].mxu0
        %v6774 = vadd.f32 %v6535, %v6773
        %v6775 = vpop.f32.mrb[0].mxu0
        %v6776 = vadd.f32 %v6537, %v6775
        %6777 = vmatprep.mubr.f32.mxu0 0.0
        %v6778 = vand.u32 %v5683, 4294901760
        %v6779 = vsub.f32 %v5683, %v6778
        %v6780 = vand.u32 %v6779, 4294901760
        %6781 = vmatmul.mubr.f32.gmra.mrb[0].mxu0 %v6780
        %v6782 = vpop.f32.mrb[0].mxu0
        %v6783 = vadd.f32 %v6543, %v6782
        %v6784 = vpop.f32.mrb[0].mxu0
        %v6785 = vadd.f32 %v6545, %v6784
        %6786 = vmatprep.mubr.f32.mxu0 0.0
        %v6787 = vand.u32 %v5686, 4294901760
        %v6788 = vsub.f32 %v5686, %v6787
        %v6789 = vand.u32 %v6788, 4294901760
        %6790 = vmatmul.mubr.f32.gmra.mrb[0].mxu0 %v6789
        %v6791 = vpop.f32.mrb[0].mxu0
        %v6792 = vadd.f32 %v6551, %v6791
        %v6793 = vpop.f32.mrb[0].mxu0
        %v6794 = vadd.f32 %v6553, %v6793
        %6795 = vdwg.mxu0
        %6796 = vmatprep.subr.mxu0 0.0
        %v6797 = vand.u32 %v1296, 4294901760
        %v6798 = vsub.f32 %v1296, %v6797
        %v6799 = vand.u32 %v6798, 4294901760
        %6800 = vmatpush1.xpose.msra.mxu0 %v6799
        %6801 = vmatprep.subr.mxu0 0.0
        %v6802 = vand.u32 %v1299, 4294901760
        %v6803 = vsub.f32 %v1299, %v6802
        %v6804 = vand.u32 %v6803, 4294901760
        %6805 = vmatpush1.xpose.msra.mxu0 %v6804
        %6806 = vmatprep.subr.mxu0 0.0
        %v6807 = vand.u32 %v1302, 4294901760
        %v6808 = vsub.f32 %v1302, %v6807
        %v6809 = vand.u32 %v6808, 4294901760
        %6810 = vmatpush1.xpose.msra.mxu0 %v6809
        %6811 = vmatprep.subr.mxu0 0.0
        %v6812 = vand.u32 %v1305, 4294901760
        %v6813 = vsub.f32 %v1305, %v6812
        %v6814 = vand.u32 %v6813, 4294901760
        %6815 = vmatpush1.xpose.msra.mxu0 %v6814
        %6816 = vmatprep.subr.mxu0 0.0
        %v6817 = vand.u32 %v1308, 4294901760
        %v6818 = vsub.f32 %v1308, %v6817
        %v6819 = vand.u32 %v6818, 4294901760
        %6820 = vmatpush1.xpose.msra.mxu0 %v6819
        %6821 = vmatprep.subr.mxu0 0.0
        %v6822 = vand.u32 %v1311, 4294901760
        %v6823 = vsub.f32 %v1311, %v6822
        %v6824 = vand.u32 %v6823, 4294901760
        %6825 = vmatpush1.xpose.msra.mxu0 %v6824
        %6826 = vmatprep.subr.mxu0 0.0
        %v6827 = vand.u32 %v1314, 4294901760
        %v6828 = vsub.f32 %v1314, %v6827
        %v6829 = vand.u32 %v6828, 4294901760
        %6830 = vmatpush1.xpose.msra.mxu0 %v6829
        %6831 = vmatprep.subr.mxu0 0.0
        %v6832 = vand.u32 %v1317, 4294901760
        %v6833 = vsub.f32 %v1317, %v6832
        %v6834 = vand.u32 %v6833, 4294901760
        %6835 = vmatpush1.xpose.msra.mxu0 %v6834
        %6836 = vmatprep.subr.mxu0 0.0
        %v6837 = vand.u32 %v1320, 4294901760
        %v6838 = vsub.f32 %v1320, %v6837
        %v6839 = vand.u32 %v6838, 4294901760
        %6840 = vmatpush1.xpose.msra.mxu0 %v6839
        %6841 = vmatprep.subr.mxu0 0.0
        %v6842 = vand.u32 %v1323, 4294901760
        %v6843 = vsub.f32 %v1323, %v6842
        %v6844 = vand.u32 %v6843, 4294901760
        %6845 = vmatpush1.xpose.msra.mxu0 %v6844
        %6846 = vmatprep.subr.mxu0 0.0
        %v6847 = vand.u32 %v1326, 4294901760
        %v6848 = vsub.f32 %v1326, %v6847
        %v6849 = vand.u32 %v6848, 4294901760
        %6850 = vmatpush1.xpose.msra.mxu0 %v6849
        %6851 = vmatprep.subr.mxu0 0.0
        %v6852 = vand.u32 %v1329, 4294901760
        %v6853 = vsub.f32 %v1329, %v6852
        %v6854 = vand.u32 %v6853, 4294901760
        %6855 = vmatpush1.xpose.msra.mxu0 %v6854
        %6856 = vmatprep.subr.mxu0 0.0
        %v6857 = vand.u32 %v1332, 4294901760
        %v6858 = vsub.f32 %v1332, %v6857
        %v6859 = vand.u32 %v6858, 4294901760
        %6860 = vmatpush1.xpose.msra.mxu0 %v6859
        %6861 = vmatprep.subr.mxu0 0.0
        %v6862 = vand.u32 %v1335, 4294901760
        %v6863 = vsub.f32 %v1335, %v6862
        %v6864 = vand.u32 %v6863, 4294901760
        %6865 = vmatpush1.xpose.msra.mxu0 %v6864
        %6866 = vmatprep.subr.mxu0 0.0
        %v6867 = vand.u32 %v1338, 4294901760
        %v6868 = vsub.f32 %v1338, %v6867
        %v6869 = vand.u32 %v6868, 4294901760
        %6870 = vmatpush1.xpose.msra.mxu0 %v6869
        %6871 = vmatprep.subr.mxu0 0.0
        %v6872 = vand.u32 %v1341, 4294901760
        %v6873 = vsub.f32 %v1341, %v6872
        %v6874 = vand.u32 %v6873, 4294901760
        %6875 = vmatpush1.xpose.msra.mxu0 %v6874
        %6876 = vmatprep.subr.mxu0 0.0
        %v6877 = vand.u32 %v1344, 4294901760
        %v6878 = vsub.f32 %v1344, %v6877
        %v6879 = vand.u32 %v6878, 4294901760
        %6880 = vmatpush1.xpose.msra.mxu0 %v6879
        %6881 = vmatprep.subr.mxu0 0.0
        %v6882 = vand.u32 %v1347, 4294901760
        %v6883 = vsub.f32 %v1347, %v6882
        %v6884 = vand.u32 %v6883, 4294901760
        %6885 = vmatpush1.xpose.msra.mxu0 %v6884
        %6886 = vmatprep.subr.mxu0 0.0
        %v6887 = vand.u32 %v1350, 4294901760
        %v6888 = vsub.f32 %v1350, %v6887
        %v6889 = vand.u32 %v6888, 4294901760
        %6890 = vmatpush1.xpose.msra.mxu0 %v6889
        %6891 = vmatprep.subr.mxu0 0.0
        %v6892 = vand.u32 %v1353, 4294901760
        %v6893 = vsub.f32 %v1353, %v6892
        %v6894 = vand.u32 %v6893, 4294901760
        %6895 = vmatpush1.xpose.msra.mxu0 %v6894
        %6896 = vmatprep.subr.mxu0 0.0
        %v6897 = vand.u32 %v1356, 4294901760
        %v6898 = vsub.f32 %v1356, %v6897
        %v6899 = vand.u32 %v6898, 4294901760
        %6900 = vmatpush1.xpose.msra.mxu0 %v6899
        %6901 = vmatprep.subr.mxu0 0.0
        %v6902 = vand.u32 %v1359, 4294901760
        %v6903 = vsub.f32 %v1359, %v6902
        %v6904 = vand.u32 %v6903, 4294901760
        %6905 = vmatpush1.xpose.msra.mxu0 %v6904
        %6906 = vmatprep.subr.mxu0 0.0
        %v6907 = vand.u32 %v1362, 4294901760
        %v6908 = vsub.f32 %v1362, %v6907
        %v6909 = vand.u32 %v6908, 4294901760
        %6910 = vmatpush1.xpose.msra.mxu0 %v6909
        %6911 = vmatprep.subr.mxu0 0.0
        %v6912 = vand.u32 %v1365, 4294901760
        %v6913 = vsub.f32 %v1365, %v6912
        %v6914 = vand.u32 %v6913, 4294901760
        %6915 = vmatpush1.xpose.msra.mxu0 %v6914
        %6916 = vmatprep.subr.mxu0 0.0
        %v6917 = vand.u32 %v1368, 4294901760
        %v6918 = vsub.f32 %v1368, %v6917
        %v6919 = vand.u32 %v6918, 4294901760
        %6920 = vmatpush1.xpose.msra.mxu0 %v6919
        %6921 = vmatprep.subr.mxu0 0.0
        %v6922 = vand.u32 %v1371, 4294901760
        %v6923 = vsub.f32 %v1371, %v6922
        %v6924 = vand.u32 %v6923, 4294901760
        %6925 = vmatpush1.xpose.msra.mxu0 %v6924
        %6926 = vmatprep.subr.mxu0 0.0
        %v6927 = vand.u32 %v1374, 4294901760
        %v6928 = vsub.f32 %v1374, %v6927
        %v6929 = vand.u32 %v6928, 4294901760
        %6930 = vmatpush1.xpose.msra.mxu0 %v6929
        %6931 = vmatprep.subr.mxu0 0.0
        %v6932 = vand.u32 %v1377, 4294901760
        %v6933 = vsub.f32 %v1377, %v6932
        %v6934 = vand.u32 %v6933, 4294901760
        %6935 = vmatpush1.xpose.msra.mxu0 %v6934
        %6936 = vmatprep.subr.mxu0 0.0
        %v6937 = vand.u32 %v1380, 4294901760
        %v6938 = vsub.f32 %v1380, %v6937
        %v6939 = vand.u32 %v6938, 4294901760
        %6940 = vmatpush1.xpose.msra.mxu0 %v6939
        %6941 = vmatprep.subr.mxu0 0.0
        %v6942 = vand.u32 %v1383, 4294901760
        %v6943 = vsub.f32 %v1383, %v6942
        %v6944 = vand.u32 %v6943, 4294901760
        %6945 = vmatpush1.xpose.msra.mxu0 %v6944
        %6946 = vmatprep.subr.mxu0 0.0
        %v6947 = vand.u32 %v1386, 4294901760
        %v6948 = vsub.f32 %v1386, %v6947
        %v6949 = vand.u32 %v6948, 4294901760
        %6950 = vmatpush1.xpose.msra.mxu0 %v6949
        %6951 = vmatprep.subr.mxu0 0.0
        %v6952 = vand.u32 %v1389, 4294901760
        %v6953 = vsub.f32 %v1389, %v6952
        %v6954 = vand.u32 %v6953, 4294901760
        %6955 = vmatpush1.xpose.msra.mxu0 %v6954
        %6956 = vmatprep.mubr.f32.mxu0 0.0
        %v6957 = vand.u32 %v5641, 4294901760
        %6958 = vmatmul.mubr.f32.gmra.mrb[0].mxu0 %v6957
        %v6959 = vpop.f32.mrb[0].mxu0
        %v6960 = vadd.f32 %v6657, %v6959
        %v6961 = vpop.f32.mrb[0].mxu0
        %v6962 = vadd.f32 %v6659, %v6961
        %6963 = vmatprep.mubr.f32.mxu0 0.0
        %v6964 = vand.u32 %v5644, 4294901760
        %6965 = vmatmul.mubr.f32.gmra.mrb[0].mxu0 %v6964
        %v6966 = vpop.f32.mrb[0].mxu0
        %v6967 = vadd.f32 %v6666, %v6966
        %v6968 = vpop.f32.mrb[0].mxu0
        %v6969 = vadd.f32 %v6668, %v6968
        %6970 = vmatprep.mubr.f32.mxu0 0.0
        %v6971 = vand.u32 %v5647, 4294901760
        %6972 = vmatmul.mubr.f32.gmra.mrb[0].mxu0 %v6971
        %v6973 = vpop.f32.mrb[0].mxu0
        %v6974 = vadd.f32 %v6675, %v6973
        %v6975 = vpop.f32.mrb[0].mxu0
        %v6976 = vadd.f32 %v6677, %v6975
        %6977 = vmatprep.mubr.f32.mxu0 0.0
        %v6978 = vand.u32 %v5650, 4294901760
        %6979 = vmatmul.mubr.f32.gmra.mrb[0].mxu0 %v6978
        %v6980 = vpop.f32.mrb[0].mxu0
        %v6981 = vadd.f32 %v6684, %v6980
        %v6982 = vpop.f32.mrb[0].mxu0
        %v6983 = vadd.f32 %v6686, %v6982
        %6984 = vmatprep.mubr.f32.mxu0 0.0
        %v6985 = vand.u32 %v5653, 4294901760
        %6986 = vmatmul.mubr.f32.gmra.mrb[0].mxu0 %v6985
        %v6987 = vpop.f32.mrb[0].mxu0
        %v6988 = vadd.f32 %v6693, %v6987
        %v6989 = vpop.f32.mrb[0].mxu0
        %v6990 = vadd.f32 %v6695, %v6989
        %6991 = vmatprep.mubr.f32.mxu0 0.0
        %v6992 = vand.u32 %v5656, 4294901760
        %6993 = vmatmul.mubr.f32.gmra.mrb[0].mxu0 %v6992
        %v6994 = vpop.f32.mrb[0].mxu0
        %v6995 = vadd.f32 %v6702, %v6994
        %v6996 = vpop.f32.mrb[0].mxu0
        %v6997 = vadd.f32 %v6704, %v6996
        %6998 = vmatprep.mubr.f32.mxu0 0.0
        %v6999 = vand.u32 %v5659, 4294901760
        %7000 = vmatmul.mubr.f32.gmra.mrb[0].mxu0 %v6999
        %v7001 = vpop.f32.mrb[0].mxu0
        %v7002 = vadd.f32 %v6711, %v7001
        %v7003 = vpop.f32.mrb[0].mxu0
        %v7004 = vadd.f32 %v6713, %v7003
        %7005 = vmatprep.mubr.f32.mxu0 0.0
        %v7006 = vand.u32 %v5662, 4294901760
        %7007 = vmatmul.mubr.f32.gmra.mrb[0].mxu0 %v7006
        %v7008 = vpop.f32.mrb[0].mxu0
        %v7009 = vadd.f32 %v6720, %v7008
        %v7010 = vpop.f32.mrb[0].mxu0
        %v7011 = vadd.f32 %v6722, %v7010
        %7012 = vmatprep.mubr.f32.mxu0 0.0
        %v7013 = vand.u32 %v5665, 4294901760
        %7014 = vmatmul.mubr.f32.gmra.mrb[0].mxu0 %v7013
        %v7015 = vpop.f32.mrb[0].mxu0
        %v7016 = vadd.f32 %v6729, %v7015
        %v7017 = vpop.f32.mrb[0].mxu0
        %v7018 = vadd.f32 %v6731, %v7017
        %7019 = vmatprep.mubr.f32.mxu0 0.0
        %v7020 = vand.u32 %v5668, 4294901760
        %7021 = vmatmul.mubr.f32.gmra.mrb[0].mxu0 %v7020
        %v7022 = vpop.f32.mrb[0].mxu0
        %v7023 = vadd.f32 %v6738, %v7022
        %v7024 = vpop.f32.mrb[0].mxu0
        %v7025 = vadd.f32 %v6740, %v7024
        %7026 = vmatprep.mubr.f32.mxu0 0.0
        %v7027 = vand.u32 %v5671, 4294901760
        %7028 = vmatmul.mubr.f32.gmra.mrb[0].mxu0 %v7027
        %v7029 = vpop.f32.mrb[0].mxu0
        %v7030 = vadd.f32 %v6747, %v7029
        %v7031 = vpop.f32.mrb[0].mxu0
        %v7032 = vadd.f32 %v6749, %v7031
        %7033 = vmatprep.mubr.f32.mxu0 0.0
        %v7034 = vand.u32 %v5674, 4294901760
        %7035 = vmatmul.mubr.f32.gmra.mrb[0].mxu0 %v7034
        %v7036 = vpop.f32.mrb[0].mxu0
        %v7037 = vadd.f32 %v6756, %v7036
        %v7038 = vpop.f32.mrb[0].mxu0
        %v7039 = vadd.f32 %v6758, %v7038
        %7040 = vmatprep.mubr.f32.mxu0 0.0
        %v7041 = vand.u32 %v5677, 4294901760
        %7042 = vmatmul.mubr.f32.gmra.mrb[0].mxu0 %v7041
        %v7043 = vpop.f32.mrb[0].mxu0
        %v7044 = vadd.f32 %v6765, %v7043
        %v7045 = vpop.f32.mrb[0].mxu0
        %v7046 = vadd.f32 %v6767, %v7045
        %7047 = vmatprep.mubr.f32.mxu0 0.0
        %v7048 = vand.u32 %v5680, 4294901760
        %7049 = vmatmul.mubr.f32.gmra.mrb[0].mxu0 %v7048
        %v7050 = vpop.f32.mrb[0].mxu0
        %v7051 = vadd.f32 %v6774, %v7050
        %v7052 = vpop.f32.mrb[0].mxu0
        %v7053 = vadd.f32 %v6776, %v7052
        %7054 = vmatprep.mubr.f32.mxu0 0.0
        %v7055 = vand.u32 %v5683, 4294901760
        %7056 = vmatmul.mubr.f32.gmra.mrb[0].mxu0 %v7055
        %v7057 = vpop.f32.mrb[0].mxu0
        %v7058 = vadd.f32 %v6783, %v7057
        %v7059 = vpop.f32.mrb[0].mxu0
        %v7060 = vadd.f32 %v6785, %v7059
        %7061 = vmatprep.mubr.f32.mxu0 0.0
        %v7062 = vand.u32 %v5686, 4294901760
        %7063 = vmatmul.mubr.f32.gmra.mrb[0].mxu0 %v7062
        %v7064 = vpop.f32.mrb[0].mxu0
        %v7065 = vadd.f32 %v6792, %v7064
        %v7066 = vpop.f32.mrb[0].mxu0
        %v7067 = vadd.f32 %v6794, %v7066
        %7068 = vdwg.mxu0
        %7069 = vmatprep.subr.mxu0 0.0
        %v7070 = vand.u32 %v1296, 4294901760
        %7071 = vmatpush1.xpose.msra.mxu0 %v7070
        %7072 = vmatprep.subr.mxu0 0.0
        %v7073 = vand.u32 %v1299, 4294901760
        %7074 = vmatpush1.xpose.msra.mxu0 %v7073
        %7075 = vmatprep.subr.mxu0 0.0
        %v7076 = vand.u32 %v1302, 4294901760
        %7077 = vmatpush1.xpose.msra.mxu0 %v7076
        %7078 = vmatprep.subr.mxu0 0.0
        %v7079 = vand.u32 %v1305, 4294901760
        %7080 = vmatpush1.xpose.msra.mxu0 %v7079
        %7081 = vmatprep.subr.mxu0 0.0
        %v7082 = vand.u32 %v1308, 4294901760
        %7083 = vmatpush1.xpose.msra.mxu0 %v7082
        %7084 = vmatprep.subr.mxu0 0.0
        %v7085 = vand.u32 %v1311, 4294901760
        %7086 = vmatpush1.xpose.msra.mxu0 %v7085
        %7087 = vmatprep.subr.mxu0 0.0
        %v7088 = vand.u32 %v1314, 4294901760
        %7089 = vmatpush1.xpose.msra.mxu0 %v7088
        %7090 = vmatprep.subr.mxu0 0.0
        %v7091 = vand.u32 %v1317, 4294901760
        %7092 = vmatpush1.xpose.msra.mxu0 %v7091
        %7093 = vmatprep.subr.mxu0 0.0
        %v7094 = vand.u32 %v1320, 4294901760
        %7095 = vmatpush1.xpose.msra.mxu0 %v7094
        %7096 = vmatprep.subr.mxu0 0.0
        %v7097 = vand.u32 %v1323, 4294901760
        %7098 = vmatpush1.xpose.msra.mxu0 %v7097
        %7099 = vmatprep.subr.mxu0 0.0
        %v7100 = vand.u32 %v1326, 4294901760
        %7101 = vmatpush1.xpose.msra.mxu0 %v7100
        %7102 = vmatprep.subr.mxu0 0.0
        %v7103 = vand.u32 %v1329, 4294901760
        %7104 = vmatpush1.xpose.msra.mxu0 %v7103
        %7105 = vmatprep.subr.mxu0 0.0
        %v7106 = vand.u32 %v1332, 4294901760
        %7107 = vmatpush1.xpose.msra.mxu0 %v7106
        %7108 = vmatprep.subr.mxu0 0.0
        %v7109 = vand.u32 %v1335, 4294901760
        %7110 = vmatpush1.xpose.msra.mxu0 %v7109
        %7111 = vmatprep.subr.mxu0 0.0
        %v7112 = vand.u32 %v1338, 4294901760
        %7113 = vmatpush1.xpose.msra.mxu0 %v7112
        %7114 = vmatprep.subr.mxu0 0.0
        %v7115 = vand.u32 %v1341, 4294901760
        %7116 = vmatpush1.xpose.msra.mxu0 %v7115
        %7117 = vmatprep.subr.mxu0 0.0
        %v7118 = vand.u32 %v1344, 4294901760
        %7119 = vmatpush1.xpose.msra.mxu0 %v7118
        %7120 = vmatprep.subr.mxu0 0.0
        %v7121 = vand.u32 %v1347, 4294901760
        %7122 = vmatpush1.xpose.msra.mxu0 %v7121
        %7123 = vmatprep.subr.mxu0 0.0
        %v7124 = vand.u32 %v1350, 4294901760
        %7125 = vmatpush1.xpose.msra.mxu0 %v7124
        %7126 = vmatprep.subr.mxu0 0.0
        %v7127 = vand.u32 %v1353, 4294901760
        %7128 = vmatpush1.xpose.msra.mxu0 %v7127
        %7129 = vmatprep.subr.mxu0 0.0
        %v7130 = vand.u32 %v1356, 4294901760
        %7131 = vmatpush1.xpose.msra.mxu0 %v7130
        %7132 = vmatprep.subr.mxu0 0.0
        %v7133 = vand.u32 %v1359, 4294901760
        %7134 = vmatpush1.xpose.msra.mxu0 %v7133
        %7135 = vmatprep.subr.mxu0 0.0
        %v7136 = vand.u32 %v1362, 4294901760
        %7137 = vmatpush1.xpose.msra.mxu0 %v7136
        %7138 = vmatprep.subr.mxu0 0.0
        %v7139 = vand.u32 %v1365, 4294901760
        %7140 = vmatpush1.xpose.msra.mxu0 %v7139
        %7141 = vmatprep.subr.mxu0 0.0
        %v7142 = vand.u32 %v1368, 4294901760
        %7143 = vmatpush1.xpose.msra.mxu0 %v7142
        %7144 = vmatprep.subr.mxu0 0.0
        %v7145 = vand.u32 %v1371, 4294901760
        %7146 = vmatpush1.xpose.msra.mxu0 %v7145
        %7147 = vmatprep.subr.mxu0 0.0
        %v7148 = vand.u32 %v1374, 4294901760
        %7149 = vmatpush1.xpose.msra.mxu0 %v7148
        %7150 = vmatprep.subr.mxu0 0.0
        %v7151 = vand.u32 %v1377, 4294901760
        %7152 = vmatpush1.xpose.msra.mxu0 %v7151
        %7153 = vmatprep.subr.mxu0 0.0
        %v7154 = vand.u32 %v1380, 4294901760
        %7155 = vmatpush1.xpose.msra.mxu0 %v7154
        %7156 = vmatprep.subr.mxu0 0.0
        %v7157 = vand.u32 %v1383, 4294901760
        %7158 = vmatpush1.xpose.msra.mxu0 %v7157
        %7159 = vmatprep.subr.mxu0 0.0
        %v7160 = vand.u32 %v1386, 4294901760
        %7161 = vmatpush1.xpose.msra.mxu0 %v7160
        %7162 = vmatprep.subr.mxu0 0.0
        %v7163 = vand.u32 %v1389, 4294901760
        %7164 = vmatpush1.xpose.msra.mxu0 %v7163
        %7165 = vmatprep.mubr.f32.mxu0 0.0
        %v7166 = vand.u32 %v5641, 4294901760
        %7167 = vmatmul.mubr.f32.gmra.mrb[0].mxu0 %v7166
        %v7168 = vpop.f32.mrb[0].mxu0
        %v7169 = vadd.f32 %v6960, %v7168
        %v7170 = vpop.f32.mrb[0].mxu0
        %v7171 = vadd.f32 %v6962, %v7170
        %7172 = vmatprep.mubr.f32.mxu0 0.0
        %v7173 = vand.u32 %v5644, 4294901760
        %7174 = vmatmul.mubr.f32.gmra.mrb[0].mxu0 %v7173
        %v7175 = vpop.f32.mrb[0].mxu0
        %v7176 = vadd.f32 %v6967, %v7175
        %v7177 = vpop.f32.mrb[0].mxu0
        %v7178 = vadd.f32 %v6969, %v7177
        %7179 = vmatprep.mubr.f32.mxu0 0.0
        %v7180 = vand.u32 %v5647, 4294901760
        %7181 = vmatmul.mubr.f32.gmra.mrb[0].mxu0 %v7180
        %v7182 = vpop.f32.mrb[0].mxu0
        %v7183 = vadd.f32 %v6974, %v7182
        %v7184 = vpop.f32.mrb[0].mxu0
        %v7185 = vadd.f32 %v6976, %v7184
        %7186 = vmatprep.mubr.f32.mxu0 0.0
        %v7187 = vand.u32 %v5650, 4294901760
        %7188 = vmatmul.mubr.f32.gmra.mrb[0].mxu0 %v7187
        %v7189 = vpop.f32.mrb[0].mxu0
        %v7190 = vadd.f32 %v6981, %v7189
        %v7191 = vpop.f32.mrb[0].mxu0
        %v7192 = vadd.f32 %v6983, %v7191
        %7193 = vmatprep.mubr.f32.mxu0 0.0
        %v7194 = vand.u32 %v5653, 4294901760
        %7195 = vmatmul.mubr.f32.gmra.mrb[0].mxu0 %v7194
        %v7196 = vpop.f32.mrb[0].mxu0
        %v7197 = vadd.f32 %v6988, %v7196
        %v7198 = vpop.f32.mrb[0].mxu0
        %v7199 = vadd.f32 %v6990, %v7198
        %7200 = vmatprep.mubr.f32.mxu0 0.0
        %v7201 = vand.u32 %v5656, 4294901760
        %7202 = vmatmul.mubr.f32.gmra.mrb[0].mxu0 %v7201
        %v7203 = vpop.f32.mrb[0].mxu0
        %v7204 = vadd.f32 %v6995, %v7203
        %v7205 = vpop.f32.mrb[0].mxu0
        %v7206 = vadd.f32 %v6997, %v7205
        %7207 = vmatprep.mubr.f32.mxu0 0.0
        %v7208 = vand.u32 %v5659, 4294901760
        %7209 = vmatmul.mubr.f32.gmra.mrb[0].mxu0 %v7208
        %v7210 = vpop.f32.mrb[0].mxu0
        %v7211 = vadd.f32 %v7002, %v7210
        %v7212 = vpop.f32.mrb[0].mxu0
        %v7213 = vadd.f32 %v7004, %v7212
        %7214 = vmatprep.mubr.f32.mxu0 0.0
        %v7215 = vand.u32 %v5662, 4294901760
        %7216 = vmatmul.mubr.f32.gmra.mrb[0].mxu0 %v7215
        %v7217 = vpop.f32.mrb[0].mxu0
        %v7218 = vadd.f32 %v7009, %v7217
        %v7219 = vpop.f32.mrb[0].mxu0
        %v7220 = vadd.f32 %v7011, %v7219
        %7221 = vmatprep.mubr.f32.mxu0 0.0
        %v7222 = vand.u32 %v5665, 4294901760
        %7223 = vmatmul.mubr.f32.gmra.mrb[0].mxu0 %v7222
        %v7224 = vpop.f32.mrb[0].mxu0
        %v7225 = vadd.f32 %v7016, %v7224
        %v7226 = vpop.f32.mrb[0].mxu0
        %v7227 = vadd.f32 %v7018, %v7226
        %7228 = vmatprep.mubr.f32.mxu0 0.0
        %v7229 = vand.u32 %v5668, 4294901760
        %7230 = vmatmul.mubr.f32.gmra.mrb[0].mxu0 %v7229
        %v7231 = vpop.f32.mrb[0].mxu0
        %v7232 = vadd.f32 %v7023, %v7231
        %v7233 = vpop.f32.mrb[0].mxu0
        %v7234 = vadd.f32 %v7025, %v7233
        %7235 = vmatprep.mubr.f32.mxu0 0.0
        %v7236 = vand.u32 %v5671, 4294901760
        %7237 = vmatmul.mubr.f32.gmra.mrb[0].mxu0 %v7236
        %v7238 = vpop.f32.mrb[0].mxu0
        %v7239 = vadd.f32 %v7030, %v7238
        %v7240 = vpop.f32.mrb[0].mxu0
        %v7241 = vadd.f32 %v7032, %v7240
        %7242 = vmatprep.mubr.f32.mxu0 0.0
        %v7243 = vand.u32 %v5674, 4294901760
        %7244 = vmatmul.mubr.f32.gmra.mrb[0].mxu0 %v7243
        %v7245 = vpop.f32.mrb[0].mxu0
        %v7246 = vadd.f32 %v7037, %v7245
        %v7247 = vpop.f32.mrb[0].mxu0
        %v7248 = vadd.f32 %v7039, %v7247
        %7249 = vmatprep.mubr.f32.mxu0 0.0
        %v7250 = vand.u32 %v5677, 4294901760
        %7251 = vmatmul.mubr.f32.gmra.mrb[0].mxu0 %v7250
        %v7252 = vpop.f32.mrb[0].mxu0
        %v7253 = vadd.f32 %v7044, %v7252
        %v7254 = vpop.f32.mrb[0].mxu0
        %v7255 = vadd.f32 %v7046, %v7254
        %7256 = vmatprep.mubr.f32.mxu0 0.0
        %v7257 = vand.u32 %v5680, 4294901760
        %7258 = vmatmul.mubr.f32.gmra.mrb[0].mxu0 %v7257
        %v7259 = vpop.f32.mrb[0].mxu0
        %v7260 = vadd.f32 %v7051, %v7259
        %v7261 = vpop.f32.mrb[0].mxu0
        %v7262 = vadd.f32 %v7053, %v7261
        %7263 = vmatprep.mubr.f32.mxu0 0.0
        %v7264 = vand.u32 %v5683, 4294901760
        %7265 = vmatmul.mubr.f32.gmra.mrb[0].mxu0 %v7264
        %v7266 = vpop.f32.mrb[0].mxu0
        %v7267 = vadd.f32 %v7058, %v7266
        %v7268 = vpop.f32.mrb[0].mxu0
        %v7269 = vadd.f32 %v7060, %v7268
        %7270 = vmatprep.mubr.f32.mxu0 0.0
        %v7271 = vand.u32 %v5686, 4294901760
        %7272 = vmatmul.mubr.f32.gmra.mrb[0].mxu0 %v7271
        %v7273 = vpop.f32.mrb[0].mxu0
        %v7274 = vadd.f32 %v7065, %v7273
        %v7275 = vpop.f32.mrb[0].mxu0
        %v7276 = vadd.f32 %v7067, %v7275
        %7277 = vdwg.mxu0
        %v7278 = vmul.f32 %v5624, %v5624
        %v7279 = vmul.f32 %v5625, %v5625
        %v7280 = vmul.f32 %v5626, %v5626
        %v7281 = vmul.f32 %v5627, %v5627
        %v7282 = vmul.f32 %v5628, %v5628
        %v7283 = vmul.f32 %v5629, %v5629
        %v7284 = vmul.f32 %v5630, %v5630
        %v7285 = vmul.f32 %v5631, %v5631
        %v7286 = vmul.f32 %v5632, %v5632
        %v7287 = vmul.f32 %v5633, %v5633
        %v7288 = vmul.f32 %v5634, %v5634
        %v7289 = vmul.f32 %v5635, %v5635
        %v7290 = vmul.f32 %v5636, %v5636
        %v7291 = vmul.f32 %v5637, %v5637
        %v7292 = vmul.f32 %v5638, %v5638
        %v7293 = vmul.f32 %v5639, %v5639
        %v7294 = vsel %vm1246, %v7278, 0.0
        %7295 = vadd.xlane.f32.xlu0 %v7294
        %v7296 = vpop.xlane.xlu0 %7295
        %v7297 = vsel %vm1246, %v7279, 0.0
        %7298 = vadd.xlane.f32.xlu0 %v7297
        %v7299 = vpop.xlane.xlu0 %7298
        %v7300 = vsel %vm1246, %v7280, 0.0
        %7301 = vadd.xlane.f32.xlu0 %v7300
        %v7302 = vpop.xlane.xlu0 %7301
        %v7303 = vsel %vm1246, %v7281, 0.0
        %7304 = vadd.xlane.f32.xlu0 %v7303
        %v7305 = vpop.xlane.xlu0 %7304
        %v7306 = vsel %vm1246, %v7282, 0.0
        %7307 = vadd.xlane.f32.xlu0 %v7306
        %v7308 = vpop.xlane.xlu0 %7307
        %v7309 = vsel %vm1246, %v7283, 0.0
        %7310 = vadd.xlane.f32.xlu0 %v7309
        %v7311 = vpop.xlane.xlu0 %7310
        %v7312 = vsel %vm1246, %v7284, 0.0
        %7313 = vadd.xlane.f32.xlu0 %v7312
        %v7314 = vpop.xlane.xlu0 %7313
        %v7315 = vsel %vm1246, %v7285, 0.0
        %7316 = vadd.xlane.f32.xlu0 %v7315
        %v7317 = vpop.xlane.xlu0 %7316
        %v7318 = vsel %vm1246, %v7286, 0.0
        %7319 = vadd.xlane.f32.xlu0 %v7318
        %v7320 = vpop.xlane.xlu0 %7319
        %v7321 = vsel %vm1246, %v7287, 0.0
        %7322 = vadd.xlane.f32.xlu0 %v7321
        %v7323 = vpop.xlane.xlu0 %7322
        %v7324 = vsel %vm1246, %v7288, 0.0
        %7325 = vadd.xlane.f32.xlu0 %v7324
        %v7326 = vpop.xlane.xlu0 %7325
        %v7327 = vsel %vm1246, %v7289, 0.0
        %7328 = vadd.xlane.f32.xlu0 %v7327
        %v7329 = vpop.xlane.xlu0 %7328
        %v7330 = vsel %vm1246, %v7290, 0.0
        %7331 = vadd.xlane.f32.xlu0 %v7330
        %v7332 = vpop.xlane.xlu0 %7331
        %v7333 = vsel %vm1246, %v7291, 0.0
        %7334 = vadd.xlane.f32.xlu0 %v7333
        %v7335 = vpop.xlane.xlu0 %7334
        %v7336 = vsel %vm1246, %v7292, 0.0
        %7337 = vadd.xlane.f32.xlu0 %v7336
        %v7338 = vpop.xlane.xlu0 %7337
        %v7339 = vsel %vm1246, %v7293, 0.0
        %7340 = vadd.xlane.f32.xlu0 %v7339
        %v7341 = vpop.xlane.xlu0 %7340
        %v7342 = vadd.f32 %v7296, %v3049
        %v7343 = vadd.f32 %v7296, %v3053
        %v7344 = vadd.f32 %v7299, %v3049
        %v7345 = vadd.f32 %v7299, %v3053
        %v7346 = vadd.f32 %v7302, %v3049
        %v7347 = vadd.f32 %v7302, %v3053
        %v7348 = vadd.f32 %v7305, %v3049
        %v7349 = vadd.f32 %v7305, %v3053
        %v7350 = vadd.f32 %v7308, %v3049
        %v7351 = vadd.f32 %v7308, %v3053
        %v7352 = vadd.f32 %v7311, %v3049
        %v7353 = vadd.f32 %v7311, %v3053
        %v7354 = vadd.f32 %v7314, %v3049
        %v7355 = vadd.f32 %v7314, %v3053
        %v7356 = vadd.f32 %v7317, %v3049
        %v7357 = vadd.f32 %v7317, %v3053
        %v7358 = vadd.f32 %v7320, %v3049
        %v7359 = vadd.f32 %v7320, %v3053
        %v7360 = vadd.f32 %v7323, %v3049
        %v7361 = vadd.f32 %v7323, %v3053
        %v7362 = vadd.f32 %v7326, %v3049
        %v7363 = vadd.f32 %v7326, %v3053
        %v7364 = vadd.f32 %v7329, %v3049
        %v7365 = vadd.f32 %v7329, %v3053
        %v7366 = vadd.f32 %v7332, %v3049
        %v7367 = vadd.f32 %v7332, %v3053
        %v7368 = vadd.f32 %v7335, %v3049
        %v7369 = vadd.f32 %v7335, %v3053
        %v7370 = vadd.f32 %v7338, %v3049
        %v7371 = vadd.f32 %v7338, %v3053
        %v7372 = vadd.f32 %v7341, %v3049
        %v7373 = vadd.f32 %v7341, %v3053
        %v7374 = vmul.f32 %v7169, 2.0
        %v7375 = vmul.f32 %v7171, 2.0
        %v7376 = vmul.f32 %v7176, 2.0
        %v7377 = vmul.f32 %v7178, 2.0
        %v7378 = vmul.f32 %v7183, 2.0
        %v7379 = vmul.f32 %v7185, 2.0
        %v7380 = vmul.f32 %v7190, 2.0
        %v7381 = vmul.f32 %v7192, 2.0
        %v7382 = vmul.f32 %v7197, 2.0
        %v7383 = vmul.f32 %v7199, 2.0
        %v7384 = vmul.f32 %v7204, 2.0
        %v7385 = vmul.f32 %v7206, 2.0
        %v7386 = vmul.f32 %v7211, 2.0
        %v7387 = vmul.f32 %v7213, 2.0
        %v7388 = vmul.f32 %v7218, 2.0
        %v7389 = vmul.f32 %v7220, 2.0
        %v7390 = vmul.f32 %v7225, 2.0
        %v7391 = vmul.f32 %v7227, 2.0
        %v7392 = vmul.f32 %v7232, 2.0
        %v7393 = vmul.f32 %v7234, 2.0
        %v7394 = vmul.f32 %v7239, 2.0
        %v7395 = vmul.f32 %v7241, 2.0
        %v7396 = vmul.f32 %v7246, 2.0
        %v7397 = vmul.f32 %v7248, 2.0
        %v7398 = vmul.f32 %v7253, 2.0
        %v7399 = vmul.f32 %v7255, 2.0
        %v7400 = vmul.f32 %v7260, 2.0
        %v7401 = vmul.f32 %v7262, 2.0
        %v7402 = vmul.f32 %v7267, 2.0
        %v7403 = vmul.f32 %v7269, 2.0
        %v7404 = vmul.f32 %v7274, 2.0
        %v7405 = vmul.f32 %v7276, 2.0
        %v7406 = vsub.f32 %v7342, %v7374
        %v7407 = vsub.f32 %v7343, %v7375
        %v7408 = vsub.f32 %v7344, %v7376
        %v7409 = vsub.f32 %v7345, %v7377
        %v7410 = vsub.f32 %v7346, %v7378
        %v7411 = vsub.f32 %v7347, %v7379
        %v7412 = vsub.f32 %v7348, %v7380
        %v7413 = vsub.f32 %v7349, %v7381
        %v7414 = vsub.f32 %v7350, %v7382
        %v7415 = vsub.f32 %v7351, %v7383
        %v7416 = vsub.f32 %v7352, %v7384
        %v7417 = vsub.f32 %v7353, %v7385
        %v7418 = vsub.f32 %v7354, %v7386
        %v7419 = vsub.f32 %v7355, %v7387
        %v7420 = vsub.f32 %v7356, %v7388
        %v7421 = vsub.f32 %v7357, %v7389
        %v7422 = vsub.f32 %v7358, %v7390
        %v7423 = vsub.f32 %v7359, %v7391
        %v7424 = vsub.f32 %v7360, %v7392
        %v7425 = vsub.f32 %v7361, %v7393
        %v7426 = vsub.f32 %v7362, %v7394
        %v7427 = vsub.f32 %v7363, %v7395
        %v7428 = vsub.f32 %v7364, %v7396
        %v7429 = vsub.f32 %v7365, %v7397
        %v7430 = vsub.f32 %v7366, %v7398
        %v7431 = vsub.f32 %v7367, %v7399
        %v7432 = vsub.f32 %v7368, %v7400
        %v7433 = vsub.f32 %v7369, %v7401
        %v7434 = vsub.f32 %v7370, %v7402
        %v7435 = vsub.f32 %v7371, %v7403
        %v7436 = vsub.f32 %v7372, %v7404
        %v7437 = vsub.f32 %v7373, %v7405
        %v7438 = vmax.f32 %v7406, 0.0
        %v7439 = vmax.f32 %v7407, 0.0
        %v7440 = vmax.f32 %v7408, 0.0
        %v7441 = vmax.f32 %v7409, 0.0
        %v7442 = vmax.f32 %v7410, 0.0
        %v7443 = vmax.f32 %v7411, 0.0
        %v7444 = vmax.f32 %v7412, 0.0
        %v7445 = vmax.f32 %v7413, 0.0
        %v7446 = vmax.f32 %v7414, 0.0
        %v7447 = vmax.f32 %v7415, 0.0
        %v7448 = vmax.f32 %v7416, 0.0
        %v7449 = vmax.f32 %v7417, 0.0
        %v7450 = vmax.f32 %v7418, 0.0
        %v7451 = vmax.f32 %v7419, 0.0
        %v7452 = vmax.f32 %v7420, 0.0
        %v7453 = vmax.f32 %v7421, 0.0
        %v7454 = vmax.f32 %v7422, 0.0
        %v7455 = vmax.f32 %v7423, 0.0
        %v7456 = vmax.f32 %v7424, 0.0
        %v7457 = vmax.f32 %v7425, 0.0
        %v7458 = vmax.f32 %v7426, 0.0
        %v7459 = vmax.f32 %v7427, 0.0
        %v7460 = vmax.f32 %v7428, 0.0
        %v7461 = vmax.f32 %v7429, 0.0
        %v7462 = vmax.f32 %v7430, 0.0
        %v7463 = vmax.f32 %v7431, 0.0
        %v7464 = vmax.f32 %v7432, 0.0
        %v7465 = vmax.f32 %v7433, 0.0
        %v7466 = vmax.f32 %v7434, 0.0
        %v7467 = vmax.f32 %v7435, 0.0
        %v7468 = vmax.f32 %v7436, 0.0
        %v7469 = vmax.f32 %v7437, 0.0
        %v7470 = vmul.f32 %v7438, -0.5
        %v7471 = vmul.f32 %v7439, -0.5
        %v7472 = vmul.f32 %v7440, -0.5
        %v7473 = vmul.f32 %v7441, -0.5
        %v7474 = vmul.f32 %v7442, -0.5
        %v7475 = vmul.f32 %v7443, -0.5
        %v7476 = vmul.f32 %v7444, -0.5
        %v7477 = vmul.f32 %v7445, -0.5
        %v7478 = vmul.f32 %v7446, -0.5
        %v7479 = vmul.f32 %v7447, -0.5
        %v7480 = vmul.f32 %v7448, -0.5
        %v7481 = vmul.f32 %v7449, -0.5
        %v7482 = vmul.f32 %v7450, -0.5
        %v7483 = vmul.f32 %v7451, -0.5
        %v7484 = vmul.f32 %v7452, -0.5
        %v7485 = vmul.f32 %v7453, -0.5
        %v7486 = vmul.f32 %v7454, -0.5
        %v7487 = vmul.f32 %v7455, -0.5
        %v7488 = vmul.f32 %v7456, -0.5
        %v7489 = vmul.f32 %v7457, -0.5
        %v7490 = vmul.f32 %v7458, -0.5
        %v7491 = vmul.f32 %v7459, -0.5
        %v7492 = vmul.f32 %v7460, -0.5
        %v7493 = vmul.f32 %v7461, -0.5
        %v7494 = vmul.f32 %v7462, -0.5
        %v7495 = vmul.f32 %v7463, -0.5
        %v7496 = vmul.f32 %v7464, -0.5
        %v7497 = vmul.f32 %v7465, -0.5
        %v7498 = vmul.f32 %v7466, -0.5
        %v7499 = vmul.f32 %v7467, -0.5
        %v7500 = vmul.f32 %v7468, -0.5
        %v7501 = vmul.f32 %v7469, -0.5
        %v7502 = vsub.f32 %v7470, 21.254097
        %v7503 = vsub.f32 %v7471, 21.254097
        %v7504 = vsub.f32 %v7472, 21.254097
        %v7505 = vsub.f32 %v7473, 21.254097
        %v7506 = vsub.f32 %v7474, 21.254097
        %v7507 = vsub.f32 %v7475, 21.254097
        %v7508 = vsub.f32 %v7476, 21.254097
        %v7509 = vsub.f32 %v7477, 21.254097
        %v7510 = vsub.f32 %v7478, 21.254097
        %v7511 = vsub.f32 %v7479, 21.254097
        %v7512 = vsub.f32 %v7480, 21.254097
        %v7513 = vsub.f32 %v7481, 21.254097
        %v7514 = vsub.f32 %v7482, 21.254097
        %v7515 = vsub.f32 %v7483, 21.254097
        %v7516 = vsub.f32 %v7484, 21.254097
        %v7517 = vsub.f32 %v7485, 21.254097
        %v7518 = vsub.f32 %v7486, 21.254097
        %v7519 = vsub.f32 %v7487, 21.254097
        %v7520 = vsub.f32 %v7488, 21.254097
        %v7521 = vsub.f32 %v7489, 21.254097
        %v7522 = vsub.f32 %v7490, 21.254097
        %v7523 = vsub.f32 %v7491, 21.254097
        %v7524 = vsub.f32 %v7492, 21.254097
        %v7525 = vsub.f32 %v7493, 21.254097
        %v7526 = vsub.f32 %v7494, 21.254097
        %v7527 = vsub.f32 %v7495, 21.254097
        %v7528 = vsub.f32 %v7496, 21.254097
        %v7529 = vsub.f32 %v7497, 21.254097
        %v7530 = vsub.f32 %v7498, 21.254097
        %v7531 = vsub.f32 %v7499, 21.254097
        %v7532 = vsub.f32 %v7500, 21.254097
        %v7533 = vsub.f32 %v7501, 21.254097
        %v7534 = vmax.f32 %v7502, %v7506
        %v7535 = vmax.f32 %v7504, %v7508
        %v7536 = vmax.f32 %v7534, %v7510
        %v7537 = vmax.f32 %v7535, %v7512
        %v7538 = vmax.f32 %v7536, %v7514
        %v7539 = vmax.f32 %v7537, %v7516
        %v7540 = vmax.f32 %v7538, %v7518
        %v7541 = vmax.f32 %v7539, %v7520
        %v7542 = vmax.f32 %v7540, %v7522
        %v7543 = vmax.f32 %v7541, %v7524
        %v7544 = vmax.f32 %v7542, %v7526
        %v7545 = vmax.f32 %v7543, %v7528
        %v7546 = vmax.f32 %v7544, %v7530
        %v7547 = vmax.f32 %v7545, %v7532
        %v7548 = vmax.f32 %v7546, %v7547
        %v7549 = vrot.slane %v7548, 4
        %v7550 = vmax.f32 %v7548, %v7549
        %v7551 = vrot.slane %v7550, 2
        %v7552 = vmax.f32 %v7550, %v7551
        %v7553 = vrot.slane %v7552, 1
        %v7554 = vmax.f32 %v7552, %v7553
        %v7555 = vmax.f32 %v7503, %v7507
        %v7556 = vmax.f32 %v7505, %v7509
        %v7557 = vmax.f32 %v7555, %v7511
        %v7558 = vmax.f32 %v7556, %v7513
        %v7559 = vmax.f32 %v7557, %v7515
        %v7560 = vmax.f32 %v7558, %v7517
        %v7561 = vmax.f32 %v7559, %v7519
        %v7562 = vmax.f32 %v7560, %v7521
        %v7563 = vmax.f32 %v7561, %v7523
        %v7564 = vmax.f32 %v7562, %v7525
        %v7565 = vmax.f32 %v7563, %v7527
        %v7566 = vmax.f32 %v7564, %v7529
        %v7567 = vmax.f32 %v7565, %v7531
        %v7568 = vmax.f32 %v7566, %v7533
        %v7569 = vmax.f32 %v7567, %v7568
        %v7570 = vrot.slane %v7569, 4
        %v7571 = vmax.f32 %v7569, %v7570
        %v7572 = vrot.slane %v7571, 2
        %v7573 = vmax.f32 %v7571, %v7572
        %v7574 = vrot.slane %v7573, 1
        %v7575 = vmax.f32 %v7573, %v7574
        %v7578 = vcombine.low %v7554, %v7575
        %v7580 = vunpack.c.l.s4 1966171168
        %v7581 = vunpack.c.0.s8 %v7580
        %v7582 = vlaneseq
        %v7583 = vshrl.u32 %v7582, 7
        %v7584 = vsub.s32 %v7581, %v7583
        %v7585 = vrot.slane %v7578, %v7584
        %v7587 = vunpack.c.l.s4 1966171168
        %v7588 = vunpack.c.0.s8 %v7587
        %v7589 = vlaneseq
        %v7590 = vshrl.u32 %v7589, 7
        %v7591 = vsub.s32 %v7588, %v7590
        %v7592 = vrot.slane %v7585, %v7591
        %v7594 = vmax.f32 %v5451, %v7592
        %v7595 = vsub.f32 %v5451, %v7594
        %v7596 = vmul.f32 %v7595, 1.442695
        %v7597 = vpow.pop %v7596
        %v7598 = vmul.f32 %v7597, %v5623
        %v7600 = vlaneseq
        %v7601 = vshrl.u32 %v7600, 7
        %v7602 = vsub.s32 0, %v7601
        %v7603 = vrot.slane %v7594, %v7602
        %v7604 = vlaneseq
        %v7605 = vshrl.u32 %v7604, 7
        %v7606 = vsub.s32 1, %v7605
        %v7607 = vrot.slane %v7594, %v7606
        %v7610 = vsub.f32 %v7502, %v7603
        %v7611 = vsub.f32 %v7503, %v7607
        %v7612 = vsub.f32 %v7504, %v7603
        %v7613 = vsub.f32 %v7505, %v7607
        %v7614 = vsub.f32 %v7506, %v7603
        %v7615 = vsub.f32 %v7507, %v7607
        %v7616 = vsub.f32 %v7508, %v7603
        %v7617 = vsub.f32 %v7509, %v7607
        %v7618 = vsub.f32 %v7510, %v7603
        %v7619 = vsub.f32 %v7511, %v7607
        %v7620 = vsub.f32 %v7512, %v7603
        %v7621 = vsub.f32 %v7513, %v7607
        %v7622 = vsub.f32 %v7514, %v7603
        %v7623 = vsub.f32 %v7515, %v7607
        %v7624 = vsub.f32 %v7516, %v7603
        %v7625 = vsub.f32 %v7517, %v7607
        %v7626 = vsub.f32 %v7518, %v7603
        %v7627 = vsub.f32 %v7519, %v7607
        %v7628 = vsub.f32 %v7520, %v7603
        %v7629 = vsub.f32 %v7521, %v7607
        %v7630 = vsub.f32 %v7522, %v7603
        %v7631 = vsub.f32 %v7523, %v7607
        %v7632 = vsub.f32 %v7524, %v7603
        %v7633 = vsub.f32 %v7525, %v7607
        %v7634 = vsub.f32 %v7526, %v7603
        %v7635 = vsub.f32 %v7527, %v7607
        %v7636 = vsub.f32 %v7528, %v7603
        %v7637 = vsub.f32 %v7529, %v7607
        %v7638 = vsub.f32 %v7530, %v7603
        %v7639 = vsub.f32 %v7531, %v7607
        %v7640 = vsub.f32 %v7532, %v7603
        %v7641 = vsub.f32 %v7533, %v7607
        %v7642 = vmul.f32 %v7610, 1.442695
        %v7643 = vpow.pop %v7642
        %v7644 = vmul.f32 %v7611, 1.442695
        %v7645 = vpow.pop %v7644
        %v7646 = vmul.f32 %v7612, 1.442695
        %v7647 = vpow.pop %v7646
        %v7648 = vmul.f32 %v7613, 1.442695
        %v7649 = vpow.pop %v7648
        %v7650 = vmul.f32 %v7614, 1.442695
        %v7651 = vpow.pop %v7650
        %v7652 = vmul.f32 %v7615, 1.442695
        %v7653 = vpow.pop %v7652
        %v7654 = vmul.f32 %v7616, 1.442695
        %v7655 = vpow.pop %v7654
        %v7656 = vmul.f32 %v7617, 1.442695
        %v7657 = vpow.pop %v7656
        %v7658 = vmul.f32 %v7618, 1.442695
        %v7659 = vpow.pop %v7658
        %v7660 = vmul.f32 %v7619, 1.442695
        %v7661 = vpow.pop %v7660
        %v7662 = vmul.f32 %v7620, 1.442695
        %v7663 = vpow.pop %v7662
        %v7664 = vmul.f32 %v7621, 1.442695
        %v7665 = vpow.pop %v7664
        %v7666 = vmul.f32 %v7622, 1.442695
        %v7667 = vpow.pop %v7666
        %v7668 = vmul.f32 %v7623, 1.442695
        %v7669 = vpow.pop %v7668
        %v7670 = vmul.f32 %v7624, 1.442695
        %v7671 = vpow.pop %v7670
        %v7672 = vmul.f32 %v7625, 1.442695
        %v7673 = vpow.pop %v7672
        %v7674 = vmul.f32 %v7626, 1.442695
        %v7675 = vpow.pop %v7674
        %v7676 = vmul.f32 %v7627, 1.442695
        %v7677 = vpow.pop %v7676
        %v7678 = vmul.f32 %v7628, 1.442695
        %v7679 = vpow.pop %v7678
        %v7680 = vmul.f32 %v7629, 1.442695
        %v7681 = vpow.pop %v7680
        %v7682 = vmul.f32 %v7630, 1.442695
        %v7683 = vpow.pop %v7682
        %v7684 = vmul.f32 %v7631, 1.442695
        %v7685 = vpow.pop %v7684
        %v7686 = vmul.f32 %v7632, 1.442695
        %v7687 = vpow.pop %v7686
        %v7688 = vmul.f32 %v7633, 1.442695
        %v7689 = vpow.pop %v7688
        %v7690 = vmul.f32 %v7634, 1.442695
        %v7691 = vpow.pop %v7690
        %v7692 = vmul.f32 %v7635, 1.442695
        %v7693 = vpow.pop %v7692
        %v7694 = vmul.f32 %v7636, 1.442695
        %v7695 = vpow.pop %v7694
        %v7696 = vmul.f32 %v7637, 1.442695
        %v7697 = vpow.pop %v7696
        %v7698 = vmul.f32 %v7638, 1.442695
        %v7699 = vpow.pop %v7698
        %v7700 = vmul.f32 %v7639, 1.442695
        %v7701 = vpow.pop %v7700
        %v7702 = vmul.f32 %v7640, 1.442695
        %v7703 = vpow.pop %v7702
        %v7704 = vmul.f32 %v7641, 1.442695
        %v7705 = vpow.pop %v7704
        %v7706 = vadd.f32 %v7643, %v7647
        %v7707 = vadd.f32 %v7706, %v7651
        %v7708 = vadd.f32 %v7707, %v7655
        %v7709 = vadd.f32 %v7708, %v7659
        %v7710 = vadd.f32 %v7709, %v7663
        %v7711 = vadd.f32 %v7710, %v7667
        %v7712 = vadd.f32 %v7711, %v7671
        %v7713 = vadd.f32 %v7712, %v7675
        %v7714 = vadd.f32 %v7713, %v7679
        %v7715 = vadd.f32 %v7714, %v7683
        %v7716 = vadd.f32 %v7715, %v7687
        %v7717 = vadd.f32 %v7716, %v7691
        %v7718 = vadd.f32 %v7717, %v7695
        %v7719 = vadd.f32 %v7718, %v7699
        %v7720 = vadd.f32 %v7719, %v7703
        %v7721 = vrot.slane %v7720, 4
        %v7722 = vadd.f32 %v7720, %v7721
        %v7723 = vrot.slane %v7722, 2
        %v7724 = vadd.f32 %v7722, %v7723
        %v7725 = vrot.slane %v7724, 1
        %v7726 = vadd.f32 %v7724, %v7725
        %v7727 = vadd.f32 %v7645, %v7649
        %v7728 = vadd.f32 %v7727, %v7653
        %v7729 = vadd.f32 %v7728, %v7657
        %v7730 = vadd.f32 %v7729, %v7661
        %v7731 = vadd.f32 %v7730, %v7665
        %v7732 = vadd.f32 %v7731, %v7669
        %v7733 = vadd.f32 %v7732, %v7673
        %v7734 = vadd.f32 %v7733, %v7677
        %v7735 = vadd.f32 %v7734, %v7681
        %v7736 = vadd.f32 %v7735, %v7685
        %v7737 = vadd.f32 %v7736, %v7689
        %v7738 = vadd.f32 %v7737, %v7693
        %v7739 = vadd.f32 %v7738, %v7697
        %v7740 = vadd.f32 %v7739, %v7701
        %v7741 = vadd.f32 %v7740, %v7705
        %v7742 = vrot.slane %v7741, 4
        %v7743 = vadd.f32 %v7741, %v7742
        %v7744 = vrot.slane %v7743, 2
        %v7745 = vadd.f32 %v7743, %v7744
        %v7746 = vrot.slane %v7745, 1
        %v7747 = vadd.f32 %v7745, %v7746
        %v7750 = vcombine.low %v7726, %v7747
        %v7752 = vunpack.c.l.s4 1966171168
        %v7753 = vunpack.c.0.s8 %v7752
        %v7754 = vlaneseq
        %v7755 = vshrl.u32 %v7754, 7
        %v7756 = vsub.s32 %v7753, %v7755
        %v7757 = vrot.slane %v7750, %v7756
        %v7759 = vunpack.c.l.s4 1966171168
        %v7760 = vunpack.c.0.s8 %v7759
        %v7761 = vlaneseq
        %v7762 = vshrl.u32 %v7761, 7
        %v7763 = vsub.s32 %v7760, %v7762
        %v7764 = vrot.slane %v7757, %v7763
        %v7766 = vadd.f32 %v7598, %v7764
        %v7767 = vld [vmem:[%s176 + $0x180] sm:$0xff]
        %v7768 = vld [vmem:[%s176 + $0x188] sm:$0xff]
        %v7769 = vld [vmem:[%s176 + $0x190] sm:$0xff]
        %v7770 = vld [vmem:[%s176 + $0x198] sm:$0xff]
        %v7771 = vld [vmem:[%s176 + $0x1a0] sm:$0xff]
        %v7772 = vld [vmem:[%s176 + $0x1a8] sm:$0xff]
        %v7773 = vld [vmem:[%s176 + $0x1b0] sm:$0xff]
        %v7774 = vld [vmem:[%s176 + $0x1b8] sm:$0xff]
        %v7775 = vld [vmem:[%s176 + $0x1c0] sm:$0xff]
        %v7776 = vld [vmem:[%s176 + $0x1c8] sm:$0xff]
        %v7777 = vld [vmem:[%s176 + $0x1d0] sm:$0xff]
        %v7778 = vld [vmem:[%s176 + $0x1d8] sm:$0xff]
        %v7779 = vld [vmem:[%s176 + $0x1e0] sm:$0xff]
        %v7780 = vld [vmem:[%s176 + $0x1e8] sm:$0xff]
        %v7781 = vld [vmem:[%s176 + $0x1f0] sm:$0xff]
        %v7782 = vld [vmem:[%s176 + $0x1f8] sm:$0xff]
        %v7784 = vsel %vm1246, %v7767, 0
        %v7787 = vsel %vm1246, %v7768, 0
        %v7790 = vsel %vm1246, %v7769, 0
        %v7793 = vsel %vm1246, %v7770, 0
        %v7796 = vsel %vm1246, %v7771, 0
        %v7799 = vsel %vm1246, %v7772, 0
        %v7802 = vsel %vm1246, %v7773, 0
        %v7805 = vsel %vm1246, %v7774, 0
        %v7808 = vsel %vm1246, %v7775, 0
        %v7811 = vsel %vm1246, %v7776, 0
        %v7814 = vsel %vm1246, %v7777, 0
        %v7817 = vsel %vm1246, %v7778, 0
        %v7820 = vsel %vm1246, %v7779, 0
        %v7823 = vsel %vm1246, %v7780, 0
        %v7826 = vsel %vm1246, %v7781, 0
        %v7829 = vsel %vm1246, %v7782, 0
        %7831 = vmatprep.subr.mxu0 0.0
        %v7832 = vand.u32 %v1296, 4294901760
        %7833 = vmatpush1.xpose.msra.mxu0 %v7832
        %7834 = vmatprep.subr.mxu0 0.0
        %v7835 = vand.u32 %v1299, 4294901760
        %7836 = vmatpush1.xpose.msra.mxu0 %v7835
        %7837 = vmatprep.subr.mxu0 0.0
        %v7838 = vand.u32 %v1302, 4294901760
        %7839 = vmatpush1.xpose.msra.mxu0 %v7838
        %7840 = vmatprep.subr.mxu0 0.0
        %v7841 = vand.u32 %v1305, 4294901760
        %7842 = vmatpush1.xpose.msra.mxu0 %v7841
        %7843 = vmatprep.subr.mxu0 0.0
        %v7844 = vand.u32 %v1308, 4294901760
        %7845 = vmatpush1.xpose.msra.mxu0 %v7844
        %7846 = vmatprep.subr.mxu0 0.0
        %v7847 = vand.u32 %v1311, 4294901760
        %7848 = vmatpush1.xpose.msra.mxu0 %v7847
        %7849 = vmatprep.subr.mxu0 0.0
        %v7850 = vand.u32 %v1314, 4294901760
        %7851 = vmatpush1.xpose.msra.mxu0 %v7850
        %7852 = vmatprep.subr.mxu0 0.0
        %v7853 = vand.u32 %v1317, 4294901760
        %7854 = vmatpush1.xpose.msra.mxu0 %v7853
        %7855 = vmatprep.subr.mxu0 0.0
        %v7856 = vand.u32 %v1320, 4294901760
        %7857 = vmatpush1.xpose.msra.mxu0 %v7856
        %7858 = vmatprep.subr.mxu0 0.0
        %v7859 = vand.u32 %v1323, 4294901760
        %7860 = vmatpush1.xpose.msra.mxu0 %v7859
        %7861 = vmatprep.subr.mxu0 0.0
        %v7862 = vand.u32 %v1326, 4294901760
        %7863 = vmatpush1.xpose.msra.mxu0 %v7862
        %7864 = vmatprep.subr.mxu0 0.0
        %v7865 = vand.u32 %v1329, 4294901760
        %7866 = vmatpush1.xpose.msra.mxu0 %v7865
        %7867 = vmatprep.subr.mxu0 0.0
        %v7868 = vand.u32 %v1332, 4294901760
        %7869 = vmatpush1.xpose.msra.mxu0 %v7868
        %7870 = vmatprep.subr.mxu0 0.0
        %v7871 = vand.u32 %v1335, 4294901760
        %7872 = vmatpush1.xpose.msra.mxu0 %v7871
        %7873 = vmatprep.subr.mxu0 0.0
        %v7874 = vand.u32 %v1338, 4294901760
        %7875 = vmatpush1.xpose.msra.mxu0 %v7874
        %7876 = vmatprep.subr.mxu0 0.0
        %v7877 = vand.u32 %v1341, 4294901760
        %7878 = vmatpush1.xpose.msra.mxu0 %v7877
        %7879 = vmatprep.subr.mxu0 0.0
        %v7880 = vand.u32 %v1344, 4294901760
        %7881 = vmatpush1.xpose.msra.mxu0 %v7880
        %7882 = vmatprep.subr.mxu0 0.0
        %v7883 = vand.u32 %v1347, 4294901760
        %7884 = vmatpush1.xpose.msra.mxu0 %v7883
        %7885 = vmatprep.subr.mxu0 0.0
        %v7886 = vand.u32 %v1350, 4294901760
        %7887 = vmatpush1.xpose.msra.mxu0 %v7886
        %7888 = vmatprep.subr.mxu0 0.0
        %v7889 = vand.u32 %v1353, 4294901760
        %7890 = vmatpush1.xpose.msra.mxu0 %v7889
        %7891 = vmatprep.subr.mxu0 0.0
        %v7892 = vand.u32 %v1356, 4294901760
        %7893 = vmatpush1.xpose.msra.mxu0 %v7892
        %7894 = vmatprep.subr.mxu0 0.0
        %v7895 = vand.u32 %v1359, 4294901760
        %7896 = vmatpush1.xpose.msra.mxu0 %v7895
        %7897 = vmatprep.subr.mxu0 0.0
        %v7898 = vand.u32 %v1362, 4294901760
        %7899 = vmatpush1.xpose.msra.mxu0 %v7898
        %7900 = vmatprep.subr.mxu0 0.0
        %v7901 = vand.u32 %v1365, 4294901760
        %7902 = vmatpush1.xpose.msra.mxu0 %v7901
        %7903 = vmatprep.subr.mxu0 0.0
        %v7904 = vand.u32 %v1368, 4294901760
        %7905 = vmatpush1.xpose.msra.mxu0 %v7904
        %7906 = vmatprep.subr.mxu0 0.0
        %v7907 = vand.u32 %v1371, 4294901760
        %7908 = vmatpush1.xpose.msra.mxu0 %v7907
        %7909 = vmatprep.subr.mxu0 0.0
        %v7910 = vand.u32 %v1374, 4294901760
        %7911 = vmatpush1.xpose.msra.mxu0 %v7910
        %7912 = vmatprep.subr.mxu0 0.0
        %v7913 = vand.u32 %v1377, 4294901760
        %7914 = vmatpush1.xpose.msra.mxu0 %v7913
        %7915 = vmatprep.subr.mxu0 0.0
        %v7916 = vand.u32 %v1380, 4294901760
        %7917 = vmatpush1.xpose.msra.mxu0 %v7916
        %7918 = vmatprep.subr.mxu0 0.0
        %v7919 = vand.u32 %v1383, 4294901760
        %7920 = vmatpush1.xpose.msra.mxu0 %v7919
        %7921 = vmatprep.subr.mxu0 0.0
        %v7922 = vand.u32 %v1386, 4294901760
        %7923 = vmatpush1.xpose.msra.mxu0 %v7922
        %7924 = vmatprep.subr.mxu0 0.0
        %v7925 = vand.u32 %v1389, 4294901760
        %7926 = vmatpush1.xpose.msra.mxu0 %v7925
        %7927 = vmatprep.mubr.f32.mxu0 0.0
        %v7928 = vand.u32 %v7784, 4294901760
        %v7929 = vsub.f32 %v7784, %v7928
        %v7930 = vand.u32 %v7929, 4294901760
        %v7931 = vsub.f32 %v7929, %v7930
        %v7932 = vand.u32 %v7931, 4294901760
        %7933 = vmatmul.mubr.f32.gmra.mrb[0].mxu0 %v7932
        %v7934 = vpop.f32.mrb[0].mxu0
        %v7935 = vadd.f32 0.0, %v7934
        %v7936 = vpop.f32.mrb[0].mxu0
        %v7937 = vadd.f32 0.0, %v7936
        %7938 = vmatprep.mubr.f32.mxu0 0.0
        %v7939 = vand.u32 %v7787, 4294901760
        %v7940 = vsub.f32 %v7787, %v7939
        %v7941 = vand.u32 %v7940, 4294901760
        %v7942 = vsub.f32 %v7940, %v7941
        %v7943 = vand.u32 %v7942, 4294901760
        %7944 = vmatmul.mubr.f32.gmra.mrb[0].mxu0 %v7943
        %v7945 = vpop.f32.mrb[0].mxu0
        %v7946 = vadd.f32 0.0, %v7945
        %v7947 = vpop.f32.mrb[0].mxu0
        %v7948 = vadd.f32 0.0, %v7947
        %7949 = vmatprep.mubr.f32.mxu0 0.0
        %v7950 = vand.u32 %v7790, 4294901760
        %v7951 = vsub.f32 %v7790, %v7950
        %v7952 = vand.u32 %v7951, 4294901760
        %v7953 = vsub.f32 %v7951, %v7952
        %v7954 = vand.u32 %v7953, 4294901760
        %7955 = vmatmul.mubr.f32.gmra.mrb[0].mxu0 %v7954
        %v7956 = vpop.f32.mrb[0].mxu0
        %v7957 = vadd.f32 0.0, %v7956
        %v7958 = vpop.f32.mrb[0].mxu0
        %v7959 = vadd.f32 0.0, %v7958
        %7960 = vmatprep.mubr.f32.mxu0 0.0
        %v7961 = vand.u32 %v7793, 4294901760
        %v7962 = vsub.f32 %v7793, %v7961
        %v7963 = vand.u32 %v7962, 4294901760
        %v7964 = vsub.f32 %v7962, %v7963
        %v7965 = vand.u32 %v7964, 4294901760
        %7966 = vmatmul.mubr.f32.gmra.mrb[0].mxu0 %v7965
        %v7967 = vpop.f32.mrb[0].mxu0
        %v7968 = vadd.f32 0.0, %v7967
        %v7969 = vpop.f32.mrb[0].mxu0
        %v7970 = vadd.f32 0.0, %v7969
        %7971 = vmatprep.mubr.f32.mxu0 0.0
        %v7972 = vand.u32 %v7796, 4294901760
        %v7973 = vsub.f32 %v7796, %v7972
        %v7974 = vand.u32 %v7973, 4294901760
        %v7975 = vsub.f32 %v7973, %v7974
        %v7976 = vand.u32 %v7975, 4294901760
        %7977 = vmatmul.mubr.f32.gmra.mrb[0].mxu0 %v7976
        %v7978 = vpop.f32.mrb[0].mxu0
        %v7979 = vadd.f32 0.0, %v7978
        %v7980 = vpop.f32.mrb[0].mxu0
        %v7981 = vadd.f32 0.0, %v7980
        %7982 = vmatprep.mubr.f32.mxu0 0.0
        %v7983 = vand.u32 %v7799, 4294901760
        %v7984 = vsub.f32 %v7799, %v7983
        %v7985 = vand.u32 %v7984, 4294901760
        %v7986 = vsub.f32 %v7984, %v7985
        %v7987 = vand.u32 %v7986, 4294901760
        %7988 = vmatmul.mubr.f32.gmra.mrb[0].mxu0 %v7987
        %v7989 = vpop.f32.mrb[0].mxu0
        %v7990 = vadd.f32 0.0, %v7989
        %v7991 = vpop.f32.mrb[0].mxu0
        %v7992 = vadd.f32 0.0, %v7991
        %7993 = vmatprep.mubr.f32.mxu0 0.0
        %v7994 = vand.u32 %v7802, 4294901760
        %v7995 = vsub.f32 %v7802, %v7994
        %v7996 = vand.u32 %v7995, 4294901760
        %v7997 = vsub.f32 %v7995, %v7996
        %v7998 = vand.u32 %v7997, 4294901760
        %7999 = vmatmul.mubr.f32.gmra.mrb[0].mxu0 %v7998
        %v8000 = vpop.f32.mrb[0].mxu0
        %v8001 = vadd.f32 0.0, %v8000
        %v8002 = vpop.f32.mrb[0].mxu0
        %v8003 = vadd.f32 0.0, %v8002
        %8004 = vmatprep.mubr.f32.mxu0 0.0
        %v8005 = vand.u32 %v7805, 4294901760
        %v8006 = vsub.f32 %v7805, %v8005
        %v8007 = vand.u32 %v8006, 4294901760
        %v8008 = vsub.f32 %v8006, %v8007
        %v8009 = vand.u32 %v8008, 4294901760
        %8010 = vmatmul.mubr.f32.gmra.mrb[0].mxu0 %v8009
        %v8011 = vpop.f32.mrb[0].mxu0
        %v8012 = vadd.f32 0.0, %v8011
        %v8013 = vpop.f32.mrb[0].mxu0
        %v8014 = vadd.f32 0.0, %v8013
        %8015 = vmatprep.mubr.f32.mxu0 0.0
        %v8016 = vand.u32 %v7808, 4294901760
        %v8017 = vsub.f32 %v7808, %v8016
        %v8018 = vand.u32 %v8017, 4294901760
        %v8019 = vsub.f32 %v8017, %v8018
        %v8020 = vand.u32 %v8019, 4294901760
        %8021 = vmatmul.mubr.f32.gmra.mrb[0].mxu0 %v8020
        %v8022 = vpop.f32.mrb[0].mxu0
        %v8023 = vadd.f32 0.0, %v8022
        %v8024 = vpop.f32.mrb[0].mxu0
        %v8025 = vadd.f32 0.0, %v8024
        %8026 = vmatprep.mubr.f32.mxu0 0.0
        %v8027 = vand.u32 %v7811, 4294901760
        %v8028 = vsub.f32 %v7811, %v8027
        %v8029 = vand.u32 %v8028, 4294901760
        %v8030 = vsub.f32 %v8028, %v8029
        %v8031 = vand.u32 %v8030, 4294901760
        %8032 = vmatmul.mubr.f32.gmra.mrb[0].mxu0 %v8031
        %v8033 = vpop.f32.mrb[0].mxu0
        %v8034 = vadd.f32 0.0, %v8033
        %v8035 = vpop.f32.mrb[0].mxu0
        %v8036 = vadd.f32 0.0, %v8035
        %8037 = vmatprep.mubr.f32.mxu0 0.0
        %v8038 = vand.u32 %v7814, 4294901760
        %v8039 = vsub.f32 %v7814, %v8038
        %v8040 = vand.u32 %v8039, 4294901760
        %v8041 = vsub.f32 %v8039, %v8040
        %v8042 = vand.u32 %v8041, 4294901760
        %8043 = vmatmul.mubr.f32.gmra.mrb[0].mxu0 %v8042
        %v8044 = vpop.f32.mrb[0].mxu0
        %v8045 = vadd.f32 0.0, %v8044
        %v8046 = vpop.f32.mrb[0].mxu0
        %v8047 = vadd.f32 0.0, %v8046
        %8048 = vmatprep.mubr.f32.mxu0 0.0
        %v8049 = vand.u32 %v7817, 4294901760
        %v8050 = vsub.f32 %v7817, %v8049
        %v8051 = vand.u32 %v8050, 4294901760
        %v8052 = vsub.f32 %v8050, %v8051
        %v8053 = vand.u32 %v8052, 4294901760
        %8054 = vmatmul.mubr.f32.gmra.mrb[0].mxu0 %v8053
        %v8055 = vpop.f32.mrb[0].mxu0
        %v8056 = vadd.f32 0.0, %v8055
        %v8057 = vpop.f32.mrb[0].mxu0
        %v8058 = vadd.f32 0.0, %v8057
        %8059 = vmatprep.mubr.f32.mxu0 0.0
        %v8060 = vand.u32 %v7820, 4294901760
        %v8061 = vsub.f32 %v7820, %v8060
        %v8062 = vand.u32 %v8061, 4294901760
        %v8063 = vsub.f32 %v8061, %v8062
        %v8064 = vand.u32 %v8063, 4294901760
        %8065 = vmatmul.mubr.f32.gmra.mrb[0].mxu0 %v8064
        %v8066 = vpop.f32.mrb[0].mxu0
        %v8067 = vadd.f32 0.0, %v8066
        %v8068 = vpop.f32.mrb[0].mxu0
        %v8069 = vadd.f32 0.0, %v8068
        %8070 = vmatprep.mubr.f32.mxu0 0.0
        %v8071 = vand.u32 %v7823, 4294901760
        %v8072 = vsub.f32 %v7823, %v8071
        %v8073 = vand.u32 %v8072, 4294901760
        %v8074 = vsub.f32 %v8072, %v8073
        %v8075 = vand.u32 %v8074, 4294901760
        %8076 = vmatmul.mubr.f32.gmra.mrb[0].mxu0 %v8075
        %v8077 = vpop.f32.mrb[0].mxu0
        %v8078 = vadd.f32 0.0, %v8077
        %v8079 = vpop.f32.mrb[0].mxu0
        %v8080 = vadd.f32 0.0, %v8079
        %8081 = vmatprep.mubr.f32.mxu0 0.0
        %v8082 = vand.u32 %v7826, 4294901760
        %v8083 = vsub.f32 %v7826, %v8082
        %v8084 = vand.u32 %v8083, 4294901760
        %v8085 = vsub.f32 %v8083, %v8084
        %v8086 = vand.u32 %v8085, 4294901760
        %8087 = vmatmul.mubr.f32.gmra.mrb[0].mxu0 %v8086
        %v8088 = vpop.f32.mrb[0].mxu0
        %v8089 = vadd.f32 0.0, %v8088
        %v8090 = vpop.f32.mrb[0].mxu0
        %v8091 = vadd.f32 0.0, %v8090
        %8092 = vmatprep.mubr.f32.mxu0 0.0
        %v8093 = vand.u32 %v7829, 4294901760
        %v8094 = vsub.f32 %v7829, %v8093
        %v8095 = vand.u32 %v8094, 4294901760
        %v8096 = vsub.f32 %v8094, %v8095
        %v8097 = vand.u32 %v8096, 4294901760
        %8098 = vmatmul.mubr.f32.gmra.mrb[0].mxu0 %v8097
        %v8099 = vpop.f32.mrb[0].mxu0
        %v8100 = vadd.f32 0.0, %v8099
        %v8101 = vpop.f32.mrb[0].mxu0
        %v8102 = vadd.f32 0.0, %v8101
        %8103 = vdwg.mxu0
        %8104 = vmatprep.subr.mxu0 0.0
        %v8105 = vand.u32 %v1296, 4294901760
        %v8106 = vsub.f32 %v1296, %v8105
        %v8107 = vand.u32 %v8106, 4294901760
        %v8108 = vsub.f32 %v8106, %v8107
        %v8109 = vand.u32 %v8108, 4294901760
        %8110 = vmatpush1.xpose.msra.mxu0 %v8109
        %8111 = vmatprep.subr.mxu0 0.0
        %v8112 = vand.u32 %v1299, 4294901760
        %v8113 = vsub.f32 %v1299, %v8112
        %v8114 = vand.u32 %v8113, 4294901760
        %v8115 = vsub.f32 %v8113, %v8114
        %v8116 = vand.u32 %v8115, 4294901760
        %8117 = vmatpush1.xpose.msra.mxu0 %v8116
        %8118 = vmatprep.subr.mxu0 0.0
        %v8119 = vand.u32 %v1302, 4294901760
        %v8120 = vsub.f32 %v1302, %v8119
        %v8121 = vand.u32 %v8120, 4294901760
        %v8122 = vsub.f32 %v8120, %v8121
        %v8123 = vand.u32 %v8122, 4294901760
        %8124 = vmatpush1.xpose.msra.mxu0 %v8123
        %8125 = vmatprep.subr.mxu0 0.0
        %v8126 = vand.u32 %v1305, 4294901760
        %v8127 = vsub.f32 %v1305, %v8126
        %v8128 = vand.u32 %v8127, 4294901760
        %v8129 = vsub.f32 %v8127, %v8128
        %v8130 = vand.u32 %v8129, 4294901760
        %8131 = vmatpush1.xpose.msra.mxu0 %v8130
        %8132 = vmatprep.subr.mxu0 0.0
        %v8133 = vand.u32 %v1308, 4294901760
        %v8134 = vsub.f32 %v1308, %v8133
        %v8135 = vand.u32 %v8134, 4294901760
        %v8136 = vsub.f32 %v8134, %v8135
        %v8137 = vand.u32 %v8136, 4294901760
        %8138 = vmatpush1.xpose.msra.mxu0 %v8137
        %8139 = vmatprep.subr.mxu0 0.0
        %v8140 = vand.u32 %v1311, 4294901760
        %v8141 = vsub.f32 %v1311, %v8140
        %v8142 = vand.u32 %v8141, 4294901760
        %v8143 = vsub.f32 %v8141, %v8142
        %v8144 = vand.u32 %v8143, 4294901760
        %8145 = vmatpush1.xpose.msra.mxu0 %v8144
        %8146 = vmatprep.subr.mxu0 0.0
        %v8147 = vand.u32 %v1314, 4294901760
        %v8148 = vsub.f32 %v1314, %v8147
        %v8149 = vand.u32 %v8148, 4294901760
        %v8150 = vsub.f32 %v8148, %v8149
        %v8151 = vand.u32 %v8150, 4294901760
        %8152 = vmatpush1.xpose.msra.mxu0 %v8151
        %8153 = vmatprep.subr.mxu0 0.0
        %v8154 = vand.u32 %v1317, 4294901760
        %v8155 = vsub.f32 %v1317, %v8154
        %v8156 = vand.u32 %v8155, 4294901760
        %v8157 = vsub.f32 %v8155, %v8156
        %v8158 = vand.u32 %v8157, 4294901760
        %8159 = vmatpush1.xpose.msra.mxu0 %v8158
        %8160 = vmatprep.subr.mxu0 0.0
        %v8161 = vand.u32 %v1320, 4294901760
        %v8162 = vsub.f32 %v1320, %v8161
        %v8163 = vand.u32 %v8162, 4294901760
        %v8164 = vsub.f32 %v8162, %v8163
        %v8165 = vand.u32 %v8164, 4294901760
        %8166 = vmatpush1.xpose.msra.mxu0 %v8165
        %8167 = vmatprep.subr.mxu0 0.0
        %v8168 = vand.u32 %v1323, 4294901760
        %v8169 = vsub.f32 %v1323, %v8168
        %v8170 = vand.u32 %v8169, 4294901760
        %v8171 = vsub.f32 %v8169, %v8170
        %v8172 = vand.u32 %v8171, 4294901760
        %8173 = vmatpush1.xpose.msra.mxu0 %v8172
        %8174 = vmatprep.subr.mxu0 0.0
        %v8175 = vand.u32 %v1326, 4294901760
        %v8176 = vsub.f32 %v1326, %v8175
        %v8177 = vand.u32 %v8176, 4294901760
        %v8178 = vsub.f32 %v8176, %v8177
        %v8179 = vand.u32 %v8178, 4294901760
        %8180 = vmatpush1.xpose.msra.mxu0 %v8179
        %8181 = vmatprep.subr.mxu0 0.0
        %v8182 = vand.u32 %v1329, 4294901760
        %v8183 = vsub.f32 %v1329, %v8182
        %v8184 = vand.u32 %v8183, 4294901760
        %v8185 = vsub.f32 %v8183, %v8184
        %v8186 = vand.u32 %v8185, 4294901760
        %8187 = vmatpush1.xpose.msra.mxu0 %v8186
        %8188 = vmatprep.subr.mxu0 0.0
        %v8189 = vand.u32 %v1332, 4294901760
        %v8190 = vsub.f32 %v1332, %v8189
        %v8191 = vand.u32 %v8190, 4294901760
        %v8192 = vsub.f32 %v8190, %v8191
        %v8193 = vand.u32 %v8192, 4294901760
        %8194 = vmatpush1.xpose.msra.mxu0 %v8193
        %8195 = vmatprep.subr.mxu0 0.0
        %v8196 = vand.u32 %v1335, 4294901760
        %v8197 = vsub.f32 %v1335, %v8196
        %v8198 = vand.u32 %v8197, 4294901760
        %v8199 = vsub.f32 %v8197, %v8198
        %v8200 = vand.u32 %v8199, 4294901760
        %8201 = vmatpush1.xpose.msra.mxu0 %v8200
        %8202 = vmatprep.subr.mxu0 0.0
        %v8203 = vand.u32 %v1338, 4294901760
        %v8204 = vsub.f32 %v1338, %v8203
        %v8205 = vand.u32 %v8204, 4294901760
        %v8206 = vsub.f32 %v8204, %v8205
        %v8207 = vand.u32 %v8206, 4294901760
        %8208 = vmatpush1.xpose.msra.mxu0 %v8207
        %8209 = vmatprep.subr.mxu0 0.0
        %v8210 = vand.u32 %v1341, 4294901760
        %v8211 = vsub.f32 %v1341, %v8210
        %v8212 = vand.u32 %v8211, 4294901760
        %v8213 = vsub.f32 %v8211, %v8212
        %v8214 = vand.u32 %v8213, 4294901760
        %8215 = vmatpush1.xpose.msra.mxu0 %v8214
        %8216 = vmatprep.subr.mxu0 0.0
        %v8217 = vand.u32 %v1344, 4294901760
        %v8218 = vsub.f32 %v1344, %v8217
        %v8219 = vand.u32 %v8218, 4294901760
        %v8220 = vsub.f32 %v8218, %v8219
        %v8221 = vand.u32 %v8220, 4294901760
        %8222 = vmatpush1.xpose.msra.mxu0 %v8221
        %8223 = vmatprep.subr.mxu0 0.0
        %v8224 = vand.u32 %v1347, 4294901760
        %v8225 = vsub.f32 %v1347, %v8224
        %v8226 = vand.u32 %v8225, 4294901760
        %v8227 = vsub.f32 %v8225, %v8226
        %v8228 = vand.u32 %v8227, 4294901760
        %8229 = vmatpush1.xpose.msra.mxu0 %v8228
        %8230 = vmatprep.subr.mxu0 0.0
        %v8231 = vand.u32 %v1350, 4294901760
        %v8232 = vsub.f32 %v1350, %v8231
        %v8233 = vand.u32 %v8232, 4294901760
        %v8234 = vsub.f32 %v8232, %v8233
        %v8235 = vand.u32 %v8234, 4294901760
        %8236 = vmatpush1.xpose.msra.mxu0 %v8235
        %8237 = vmatprep.subr.mxu0 0.0
        %v8238 = vand.u32 %v1353, 4294901760
        %v8239 = vsub.f32 %v1353, %v8238
        %v8240 = vand.u32 %v8239, 4294901760
        %v8241 = vsub.f32 %v8239, %v8240
        %v8242 = vand.u32 %v8241, 4294901760
        %8243 = vmatpush1.xpose.msra.mxu0 %v8242
        %8244 = vmatprep.subr.mxu0 0.0
        %v8245 = vand.u32 %v1356, 4294901760
        %v8246 = vsub.f32 %v1356, %v8245
        %v8247 = vand.u32 %v8246, 4294901760
        %v8248 = vsub.f32 %v8246, %v8247
        %v8249 = vand.u32 %v8248, 4294901760
        %8250 = vmatpush1.xpose.msra.mxu0 %v8249
        %8251 = vmatprep.subr.mxu0 0.0
        %v8252 = vand.u32 %v1359, 4294901760
        %v8253 = vsub.f32 %v1359, %v8252
        %v8254 = vand.u32 %v8253, 4294901760
        %v8255 = vsub.f32 %v8253, %v8254
        %v8256 = vand.u32 %v8255, 4294901760
        %8257 = vmatpush1.xpose.msra.mxu0 %v8256
        %8258 = vmatprep.subr.mxu0 0.0
        %v8259 = vand.u32 %v1362, 4294901760
        %v8260 = vsub.f32 %v1362, %v8259
        %v8261 = vand.u32 %v8260, 4294901760
        %v8262 = vsub.f32 %v8260, %v8261
        %v8263 = vand.u32 %v8262, 4294901760
        %8264 = vmatpush1.xpose.msra.mxu0 %v8263
        %8265 = vmatprep.subr.mxu0 0.0
        %v8266 = vand.u32 %v1365, 4294901760
        %v8267 = vsub.f32 %v1365, %v8266
        %v8268 = vand.u32 %v8267, 4294901760
        %v8269 = vsub.f32 %v8267, %v8268
        %v8270 = vand.u32 %v8269, 4294901760
        %8271 = vmatpush1.xpose.msra.mxu0 %v8270
        %8272 = vmatprep.subr.mxu0 0.0
        %v8273 = vand.u32 %v1368, 4294901760
        %v8274 = vsub.f32 %v1368, %v8273
        %v8275 = vand.u32 %v8274, 4294901760
        %v8276 = vsub.f32 %v8274, %v8275
        %v8277 = vand.u32 %v8276, 4294901760
        %8278 = vmatpush1.xpose.msra.mxu0 %v8277
        %8279 = vmatprep.subr.mxu0 0.0
        %v8280 = vand.u32 %v1371, 4294901760
        %v8281 = vsub.f32 %v1371, %v8280
        %v8282 = vand.u32 %v8281, 4294901760
        %v8283 = vsub.f32 %v8281, %v8282
        %v8284 = vand.u32 %v8283, 4294901760
        %8285 = vmatpush1.xpose.msra.mxu0 %v8284
        %8286 = vmatprep.subr.mxu0 0.0
        %v8287 = vand.u32 %v1374, 4294901760
        %v8288 = vsub.f32 %v1374, %v8287
        %v8289 = vand.u32 %v8288, 4294901760
        %v8290 = vsub.f32 %v8288, %v8289
        %v8291 = vand.u32 %v8290, 4294901760
        %8292 = vmatpush1.xpose.msra.mxu0 %v8291
        %8293 = vmatprep.subr.mxu0 0.0
        %v8294 = vand.u32 %v1377, 4294901760
        %v8295 = vsub.f32 %v1377, %v8294
        %v8296 = vand.u32 %v8295, 4294901760
        %v8297 = vsub.f32 %v8295, %v8296
        %v8298 = vand.u32 %v8297, 4294901760
        %8299 = vmatpush1.xpose.msra.mxu0 %v8298
        %8300 = vmatprep.subr.mxu0 0.0
        %v8301 = vand.u32 %v1380, 4294901760
        %v8302 = vsub.f32 %v1380, %v8301
        %v8303 = vand.u32 %v8302, 4294901760
        %v8304 = vsub.f32 %v8302, %v8303
        %v8305 = vand.u32 %v8304, 4294901760
        %8306 = vmatpush1.xpose.msra.mxu0 %v8305
        %8307 = vmatprep.subr.mxu0 0.0
        %v8308 = vand.u32 %v1383, 4294901760
        %v8309 = vsub.f32 %v1383, %v8308
        %v8310 = vand.u32 %v8309, 4294901760
        %v8311 = vsub.f32 %v8309, %v8310
        %v8312 = vand.u32 %v8311, 4294901760
        %8313 = vmatpush1.xpose.msra.mxu0 %v8312
        %8314 = vmatprep.subr.mxu0 0.0
        %v8315 = vand.u32 %v1386, 4294901760
        %v8316 = vsub.f32 %v1386, %v8315
        %v8317 = vand.u32 %v8316, 4294901760
        %v8318 = vsub.f32 %v8316, %v8317
        %v8319 = vand.u32 %v8318, 4294901760
        %8320 = vmatpush1.xpose.msra.mxu0 %v8319
        %8321 = vmatprep.subr.mxu0 0.0
        %v8322 = vand.u32 %v1389, 4294901760
        %v8323 = vsub.f32 %v1389, %v8322
        %v8324 = vand.u32 %v8323, 4294901760
        %v8325 = vsub.f32 %v8323, %v8324
        %v8326 = vand.u32 %v8325, 4294901760
        %8327 = vmatpush1.xpose.msra.mxu0 %v8326
        %8328 = vmatprep.mubr.f32.mxu0 0.0
        %v8329 = vand.u32 %v7784, 4294901760
        %8330 = vmatmul.mubr.f32.gmra.mrb[0].mxu0 %v8329
        %v8331 = vpop.f32.mrb[0].mxu0
        %v8332 = vadd.f32 %v7935, %v8331
        %v8333 = vpop.f32.mrb[0].mxu0
        %v8334 = vadd.f32 %v7937, %v8333
        %8335 = vmatprep.mubr.f32.mxu0 0.0
        %v8336 = vand.u32 %v7787, 4294901760
        %8337 = vmatmul.mubr.f32.gmra.mrb[0].mxu0 %v8336
        %v8338 = vpop.f32.mrb[0].mxu0
        %v8339 = vadd.f32 %v7946, %v8338
        %v8340 = vpop.f32.mrb[0].mxu0
        %v8341 = vadd.f32 %v7948, %v8340
        %8342 = vmatprep.mubr.f32.mxu0 0.0
        %v8343 = vand.u32 %v7790, 4294901760
        %8344 = vmatmul.mubr.f32.gmra.mrb[0].mxu0 %v8343
        %v8345 = vpop.f32.mrb[0].mxu0
        %v8346 = vadd.f32 %v7957, %v8345
        %v8347 = vpop.f32.mrb[0].mxu0
        %v8348 = vadd.f32 %v7959, %v8347
        %8349 = vmatprep.mubr.f32.mxu0 0.0
        %v8350 = vand.u32 %v7793, 4294901760
        %8351 = vmatmul.mubr.f32.gmra.mrb[0].mxu0 %v8350
        %v8352 = vpop.f32.mrb[0].mxu0
        %v8353 = vadd.f32 %v7968, %v8352
        %v8354 = vpop.f32.mrb[0].mxu0
        %v8355 = vadd.f32 %v7970, %v8354
        %8356 = vmatprep.mubr.f32.mxu0 0.0
        %v8357 = vand.u32 %v7796, 4294901760
        %8358 = vmatmul.mubr.f32.gmra.mrb[0].mxu0 %v8357
        %v8359 = vpop.f32.mrb[0].mxu0
        %v8360 = vadd.f32 %v7979, %v8359
        %v8361 = vpop.f32.mrb[0].mxu0
        %v8362 = vadd.f32 %v7981, %v8361
        %8363 = vmatprep.mubr.f32.mxu0 0.0
        %v8364 = vand.u32 %v7799, 4294901760
        %8365 = vmatmul.mubr.f32.gmra.mrb[0].mxu0 %v8364
        %v8366 = vpop.f32.mrb[0].mxu0
        %v8367 = vadd.f32 %v7990, %v8366
        %v8368 = vpop.f32.mrb[0].mxu0
        %v8369 = vadd.f32 %v7992, %v8368
        %8370 = vmatprep.mubr.f32.mxu0 0.0
        %v8371 = vand.u32 %v7802, 4294901760
        %8372 = vmatmul.mubr.f32.gmra.mrb[0].mxu0 %v8371
        %v8373 = vpop.f32.mrb[0].mxu0
        %v8374 = vadd.f32 %v8001, %v8373
        %v8375 = vpop.f32.mrb[0].mxu0
        %v8376 = vadd.f32 %v8003, %v8375
        %8377 = vmatprep.mubr.f32.mxu0 0.0
        %v8378 = vand.u32 %v7805, 4294901760
        %8379 = vmatmul.mubr.f32.gmra.mrb[0].mxu0 %v8378
        %v8380 = vpop.f32.mrb[0].mxu0
        %v8381 = vadd.f32 %v8012, %v8380
        %v8382 = vpop.f32.mrb[0].mxu0
        %v8383 = vadd.f32 %v8014, %v8382
        %8384 = vmatprep.mubr.f32.mxu0 0.0
        %v8385 = vand.u32 %v7808, 4294901760
        %8386 = vmatmul.mubr.f32.gmra.mrb[0].mxu0 %v8385
        %v8387 = vpop.f32.mrb[0].mxu0
        %v8388 = vadd.f32 %v8023, %v8387
        %v8389 = vpop.f32.mrb[0].mxu0
        %v8390 = vadd.f32 %v8025, %v8389
        %8391 = vmatprep.mubr.f32.mxu0 0.0
        %v8392 = vand.u32 %v7811, 4294901760
        %8393 = vmatmul.mubr.f32.gmra.mrb[0].mxu0 %v8392
        %v8394 = vpop.f32.mrb[0].mxu0
        %v8395 = vadd.f32 %v8034, %v8394
        %v8396 = vpop.f32.mrb[0].mxu0
        %v8397 = vadd.f32 %v8036, %v8396
        %8398 = vmatprep.mubr.f32.mxu0 0.0
        %v8399 = vand.u32 %v7814, 4294901760
        %8400 = vmatmul.mubr.f32.gmra.mrb[0].mxu0 %v8399
        %v8401 = vpop.f32.mrb[0].mxu0
        %v8402 = vadd.f32 %v8045, %v8401
        %v8403 = vpop.f32.mrb[0].mxu0
        %v8404 = vadd.f32 %v8047, %v8403
        %8405 = vmatprep.mubr.f32.mxu0 0.0
        %v8406 = vand.u32 %v7817, 4294901760
        %8407 = vmatmul.mubr.f32.gmra.mrb[0].mxu0 %v8406
        %v8408 = vpop.f32.mrb[0].mxu0
        %v8409 = vadd.f32 %v8056, %v8408
        %v8410 = vpop.f32.mrb[0].mxu0
        %v8411 = vadd.f32 %v8058, %v8410
        %8412 = vmatprep.mubr.f32.mxu0 0.0
        %v8413 = vand.u32 %v7820, 4294901760
        %8414 = vmatmul.mubr.f32.gmra.mrb[0].mxu0 %v8413
        %v8415 = vpop.f32.mrb[0].mxu0
        %v8416 = vadd.f32 %v8067, %v8415
        %v8417 = vpop.f32.mrb[0].mxu0
        %v8418 = vadd.f32 %v8069, %v8417
        %8419 = vmatprep.mubr.f32.mxu0 0.0
        %v8420 = vand.u32 %v7823, 4294901760
        %8421 = vmatmul.mubr.f32.gmra.mrb[0].mxu0 %v8420
        %v8422 = vpop.f32.mrb[0].mxu0
        %v8423 = vadd.f32 %v8078, %v8422
        %v8424 = vpop.f32.mrb[0].mxu0
        %v8425 = vadd.f32 %v8080, %v8424
        %8426 = vmatprep.mubr.f32.mxu0 0.0
        %v8427 = vand.u32 %v7826, 4294901760
        %8428 = vmatmul.mubr.f32.gmra.mrb[0].mxu0 %v8427
        %v8429 = vpop.f32.mrb[0].mxu0
        %v8430 = vadd.f32 %v8089, %v8429
        %v8431 = vpop.f32.mrb[0].mxu0
        %v8432 = vadd.f32 %v8091, %v8431
        %8433 = vmatprep.mubr.f32.mxu0 0.0
        %v8434 = vand.u32 %v7829, 4294901760
        %8435 = vmatmul.mubr.f32.gmra.mrb[0].mxu0 %v8434
        %v8436 = vpop.f32.mrb[0].mxu0
        %v8437 = vadd.f32 %v8100, %v8436
        %v8438 = vpop.f32.mrb[0].mxu0
        %v8439 = vadd.f32 %v8102, %v8438
        %8440 = vdwg.mxu0
        %8441 = vmatprep.subr.mxu0 0.0
        %v8442 = vand.u32 %v1296, 4294901760
        %v8443 = vsub.f32 %v1296, %v8442
        %8444 = vmatpush1.xpose.msra.mxu0 %v8443
        %8445 = vmatprep.subr.mxu0 0.0
        %v8446 = vand.u32 %v1299, 4294901760
        %v8447 = vsub.f32 %v1299, %v8446
        %8448 = vmatpush1.xpose.msra.mxu0 %v8447
        %8449 = vmatprep.subr.mxu0 0.0
        %v8450 = vand.u32 %v1302, 4294901760
        %v8451 = vsub.f32 %v1302, %v8450
        %8452 = vmatpush1.xpose.msra.mxu0 %v8451
        %8453 = vmatprep.subr.mxu0 0.0
        %v8454 = vand.u32 %v1305, 4294901760
        %v8455 = vsub.f32 %v1305, %v8454
        %8456 = vmatpush1.xpose.msra.mxu0 %v8455
        %8457 = vmatprep.subr.mxu0 0.0
        %v8458 = vand.u32 %v1308, 4294901760
        %v8459 = vsub.f32 %v1308, %v8458
        %8460 = vmatpush1.xpose.msra.mxu0 %v8459
        %8461 = vmatprep.subr.mxu0 0.0
        %v8462 = vand.u32 %v1311, 4294901760
        %v8463 = vsub.f32 %v1311, %v8462
        %8464 = vmatpush1.xpose.msra.mxu0 %v8463
        %8465 = vmatprep.subr.mxu0 0.0
        %v8466 = vand.u32 %v1314, 4294901760
        %v8467 = vsub.f32 %v1314, %v8466
        %8468 = vmatpush1.xpose.msra.mxu0 %v8467
        %8469 = vmatprep.subr.mxu0 0.0
        %v8470 = vand.u32 %v1317, 4294901760
        %v8471 = vsub.f32 %v1317, %v8470
        %8472 = vmatpush1.xpose.msra.mxu0 %v8471
        %8473 = vmatprep.subr.mxu0 0.0
        %v8474 = vand.u32 %v1320, 4294901760
        %v8475 = vsub.f32 %v1320, %v8474
        %8476 = vmatpush1.xpose.msra.mxu0 %v8475
        %8477 = vmatprep.subr.mxu0 0.0
        %v8478 = vand.u32 %v1323, 4294901760
        %v8479 = vsub.f32 %v1323, %v8478
        %8480 = vmatpush1.xpose.msra.mxu0 %v8479
        %8481 = vmatprep.subr.mxu0 0.0
        %v8482 = vand.u32 %v1326, 4294901760
        %v8483 = vsub.f32 %v1326, %v8482
        %8484 = vmatpush1.xpose.msra.mxu0 %v8483
        %8485 = vmatprep.subr.mxu0 0.0
        %v8486 = vand.u32 %v1329, 4294901760
        %v8487 = vsub.f32 %v1329, %v8486
        %8488 = vmatpush1.xpose.msra.mxu0 %v8487
        %8489 = vmatprep.subr.mxu0 0.0
        %v8490 = vand.u32 %v1332, 4294901760
        %v8491 = vsub.f32 %v1332, %v8490
        %8492 = vmatpush1.xpose.msra.mxu0 %v8491
        %8493 = vmatprep.subr.mxu0 0.0
        %v8494 = vand.u32 %v1335, 4294901760
        %v8495 = vsub.f32 %v1335, %v8494
        %8496 = vmatpush1.xpose.msra.mxu0 %v8495
        %8497 = vmatprep.subr.mxu0 0.0
        %v8498 = vand.u32 %v1338, 4294901760
        %v8499 = vsub.f32 %v1338, %v8498
        %8500 = vmatpush1.xpose.msra.mxu0 %v8499
        %8501 = vmatprep.subr.mxu0 0.0
        %v8502 = vand.u32 %v1341, 4294901760
        %v8503 = vsub.f32 %v1341, %v8502
        %8504 = vmatpush1.xpose.msra.mxu0 %v8503
        %8505 = vmatprep.subr.mxu0 0.0
        %v8506 = vand.u32 %v1344, 4294901760
        %v8507 = vsub.f32 %v1344, %v8506
        %8508 = vmatpush1.xpose.msra.mxu0 %v8507
        %8509 = vmatprep.subr.mxu0 0.0
        %v8510 = vand.u32 %v1347, 4294901760
        %v8511 = vsub.f32 %v1347, %v8510
        %8512 = vmatpush1.xpose.msra.mxu0 %v8511
        %8513 = vmatprep.subr.mxu0 0.0
        %v8514 = vand.u32 %v1350, 4294901760
        %v8515 = vsub.f32 %v1350, %v8514
        %8516 = vmatpush1.xpose.msra.mxu0 %v8515
        %8517 = vmatprep.subr.mxu0 0.0
        %v8518 = vand.u32 %v1353, 4294901760
        %v8519 = vsub.f32 %v1353, %v8518
        %8520 = vmatpush1.xpose.msra.mxu0 %v8519
        %8521 = vmatprep.subr.mxu0 0.0
        %v8522 = vand.u32 %v1356, 4294901760
        %v8523 = vsub.f32 %v1356, %v8522
        %8524 = vmatpush1.xpose.msra.mxu0 %v8523
        %8525 = vmatprep.subr.mxu0 0.0
        %v8526 = vand.u32 %v1359, 4294901760
        %v8527 = vsub.f32 %v1359, %v8526
        %8528 = vmatpush1.xpose.msra.mxu0 %v8527
        %8529 = vmatprep.subr.mxu0 0.0
        %v8530 = vand.u32 %v1362, 4294901760
        %v8531 = vsub.f32 %v1362, %v8530
        %8532 = vmatpush1.xpose.msra.mxu0 %v8531
        %8533 = vmatprep.subr.mxu0 0.0
        %v8534 = vand.u32 %v1365, 4294901760
        %v8535 = vsub.f32 %v1365, %v8534
        %8536 = vmatpush1.xpose.msra.mxu0 %v8535
        %8537 = vmatprep.subr.mxu0 0.0
        %v8538 = vand.u32 %v1368, 4294901760
        %v8539 = vsub.f32 %v1368, %v8538
        %8540 = vmatpush1.xpose.msra.mxu0 %v8539
        %8541 = vmatprep.subr.mxu0 0.0
        %v8542 = vand.u32 %v1371, 4294901760
        %v8543 = vsub.f32 %v1371, %v8542
        %8544 = vmatpush1.xpose.msra.mxu0 %v8543
        %8545 = vmatprep.subr.mxu0 0.0
        %v8546 = vand.u32 %v1374, 4294901760
        %v8547 = vsub.f32 %v1374, %v8546
        %8548 = vmatpush1.xpose.msra.mxu0 %v8547
        %8549 = vmatprep.subr.mxu0 0.0
        %v8550 = vand.u32 %v1377, 4294901760
        %v8551 = vsub.f32 %v1377, %v8550
        %8552 = vmatpush1.xpose.msra.mxu0 %v8551
        %8553 = vmatprep.subr.mxu0 0.0
        %v8554 = vand.u32 %v1380, 4294901760
        %v8555 = vsub.f32 %v1380, %v8554
        %8556 = vmatpush1.xpose.msra.mxu0 %v8555
        %8557 = vmatprep.subr.mxu0 0.0
        %v8558 = vand.u32 %v1383, 4294901760
        %v8559 = vsub.f32 %v1383, %v8558
        %8560 = vmatpush1.xpose.msra.mxu0 %v8559
        %8561 = vmatprep.subr.mxu0 0.0
        %v8562 = vand.u32 %v1386, 4294901760
        %v8563 = vsub.f32 %v1386, %v8562
        %8564 = vmatpush1.xpose.msra.mxu0 %v8563
        %8565 = vmatprep.subr.mxu0 0.0
        %v8566 = vand.u32 %v1389, 4294901760
        %v8567 = vsub.f32 %v1389, %v8566
        %8568 = vmatpush1.xpose.msra.mxu0 %v8567
        %8569 = vmatprep.mubr.f32.mxu0 0.0
        %v8570 = vand.u32 %v7784, 4294901760
        %v8571 = vsub.f32 %v7784, %v8570
        %8572 = vmatmul.mubr.f32.gmra.mrb[0].mxu0 %v8571
        %v8573 = vpop.f32.mrb[0].mxu0
        %v8574 = vadd.f32 %v8332, %v8573
        %v8575 = vpop.f32.mrb[0].mxu0
        %v8576 = vadd.f32 %v8334, %v8575
        %8577 = vmatprep.mubr.f32.mxu0 0.0
        %v8578 = vand.u32 %v7787, 4294901760
        %v8579 = vsub.f32 %v7787, %v8578
        %8580 = vmatmul.mubr.f32.gmra.mrb[0].mxu0 %v8579
        %v8581 = vpop.f32.mrb[0].mxu0
        %v8582 = vadd.f32 %v8339, %v8581
        %v8583 = vpop.f32.mrb[0].mxu0
        %v8584 = vadd.f32 %v8341, %v8583
        %8585 = vmatprep.mubr.f32.mxu0 0.0
        %v8586 = vand.u32 %v7790, 4294901760
        %v8587 = vsub.f32 %v7790, %v8586
        %8588 = vmatmul.mubr.f32.gmra.mrb[0].mxu0 %v8587
        %v8589 = vpop.f32.mrb[0].mxu0
        %v8590 = vadd.f32 %v8346, %v8589
        %v8591 = vpop.f32.mrb[0].mxu0
        %v8592 = vadd.f32 %v8348, %v8591
        %8593 = vmatprep.mubr.f32.mxu0 0.0
        %v8594 = vand.u32 %v7793, 4294901760
        %v8595 = vsub.f32 %v7793, %v8594
        %8596 = vmatmul.mubr.f32.gmra.mrb[0].mxu0 %v8595
        %v8597 = vpop.f32.mrb[0].mxu0
        %v8598 = vadd.f32 %v8353, %v8597
        %v8599 = vpop.f32.mrb[0].mxu0
        %v8600 = vadd.f32 %v8355, %v8599
        %8601 = vmatprep.mubr.f32.mxu0 0.0
        %v8602 = vand.u32 %v7796, 4294901760
        %v8603 = vsub.f32 %v7796, %v8602
        %8604 = vmatmul.mubr.f32.gmra.mrb[0].mxu0 %v8603
        %v8605 = vpop.f32.mrb[0].mxu0
        %v8606 = vadd.f32 %v8360, %v8605
        %v8607 = vpop.f32.mrb[0].mxu0
        %v8608 = vadd.f32 %v8362, %v8607
        %8609 = vmatprep.mubr.f32.mxu0 0.0
        %v8610 = vand.u32 %v7799, 4294901760
        %v8611 = vsub.f32 %v7799, %v8610
        %8612 = vmatmul.mubr.f32.gmra.mrb[0].mxu0 %v8611
        %v8613 = vpop.f32.mrb[0].mxu0
        %v8614 = vadd.f32 %v8367, %v8613
        %v8615 = vpop.f32.mrb[0].mxu0
        %v8616 = vadd.f32 %v8369, %v8615
        %8617 = vmatprep.mubr.f32.mxu0 0.0
        %v8618 = vand.u32 %v7802, 4294901760
        %v8619 = vsub.f32 %v7802, %v8618
        %8620 = vmatmul.mubr.f32.gmra.mrb[0].mxu0 %v8619
        %v8621 = vpop.f32.mrb[0].mxu0
        %v8622 = vadd.f32 %v8374, %v8621
        %v8623 = vpop.f32.mrb[0].mxu0
        %v8624 = vadd.f32 %v8376, %v8623
        %8625 = vmatprep.mubr.f32.mxu0 0.0
        %v8626 = vand.u32 %v7805, 4294901760
        %v8627 = vsub.f32 %v7805, %v8626
        %8628 = vmatmul.mubr.f32.gmra.mrb[0].mxu0 %v8627
        %v8629 = vpop.f32.mrb[0].mxu0
        %v8630 = vadd.f32 %v8381, %v8629
        %v8631 = vpop.f32.mrb[0].mxu0
        %v8632 = vadd.f32 %v8383, %v8631
        %8633 = vmatprep.mubr.f32.mxu0 0.0
        %v8634 = vand.u32 %v7808, 4294901760
        %v8635 = vsub.f32 %v7808, %v8634
        %8636 = vmatmul.mubr.f32.gmra.mrb[0].mxu0 %v8635
        %v8637 = vpop.f32.mrb[0].mxu0
        %v8638 = vadd.f32 %v8388, %v8637
        %v8639 = vpop.f32.mrb[0].mxu0
        %v8640 = vadd.f32 %v8390, %v8639
        %8641 = vmatprep.mubr.f32.mxu0 0.0
        %v8642 = vand.u32 %v7811, 4294901760
        %v8643 = vsub.f32 %v7811, %v8642
        %8644 = vmatmul.mubr.f32.gmra.mrb[0].mxu0 %v8643
        %v8645 = vpop.f32.mrb[0].mxu0
        %v8646 = vadd.f32 %v8395, %v8645
        %v8647 = vpop.f32.mrb[0].mxu0
        %v8648 = vadd.f32 %v8397, %v8647
        %8649 = vmatprep.mubr.f32.mxu0 0.0
        %v8650 = vand.u32 %v7814, 4294901760
        %v8651 = vsub.f32 %v7814, %v8650
        %8652 = vmatmul.mubr.f32.gmra.mrb[0].mxu0 %v8651
        %v8653 = vpop.f32.mrb[0].mxu0
        %v8654 = vadd.f32 %v8402, %v8653
        %v8655 = vpop.f32.mrb[0].mxu0
        %v8656 = vadd.f32 %v8404, %v8655
        %8657 = vmatprep.mubr.f32.mxu0 0.0
        %v8658 = vand.u32 %v7817, 4294901760
        %v8659 = vsub.f32 %v7817, %v8658
        %8660 = vmatmul.mubr.f32.gmra.mrb[0].mxu0 %v8659
        %v8661 = vpop.f32.mrb[0].mxu0
        %v8662 = vadd.f32 %v8409, %v8661
        %v8663 = vpop.f32.mrb[0].mxu0
        %v8664 = vadd.f32 %v8411, %v8663
        %8665 = vmatprep.mubr.f32.mxu0 0.0
        %v8666 = vand.u32 %v7820, 4294901760
        %v8667 = vsub.f32 %v7820, %v8666
        %8668 = vmatmul.mubr.f32.gmra.mrb[0].mxu0 %v8667
        %v8669 = vpop.f32.mrb[0].mxu0
        %v8670 = vadd.f32 %v8416, %v8669
        %v8671 = vpop.f32.mrb[0].mxu0
        %v8672 = vadd.f32 %v8418, %v8671
        %8673 = vmatprep.mubr.f32.mxu0 0.0
        %v8674 = vand.u32 %v7823, 4294901760
        %v8675 = vsub.f32 %v7823, %v8674
        %8676 = vmatmul.mubr.f32.gmra.mrb[0].mxu0 %v8675
        %v8677 = vpop.f32.mrb[0].mxu0
        %v8678 = vadd.f32 %v8423, %v8677
        %v8679 = vpop.f32.mrb[0].mxu0
        %v8680 = vadd.f32 %v8425, %v8679
        %8681 = vmatprep.mubr.f32.mxu0 0.0
        %v8682 = vand.u32 %v7826, 4294901760
        %v8683 = vsub.f32 %v7826, %v8682
        %8684 = vmatmul.mubr.f32.gmra.mrb[0].mxu0 %v8683
        %v8685 = vpop.f32.mrb[0].mxu0
        %v8686 = vadd.f32 %v8430, %v8685
        %v8687 = vpop.f32.mrb[0].mxu0
        %v8688 = vadd.f32 %v8432, %v8687
        %8689 = vmatprep.mubr.f32.mxu0 0.0
        %v8690 = vand.u32 %v7829, 4294901760
        %v8691 = vsub.f32 %v7829, %v8690
        %8692 = vmatmul.mubr.f32.gmra.mrb[0].mxu0 %v8691
        %v8693 = vpop.f32.mrb[0].mxu0
        %v8694 = vadd.f32 %v8437, %v8693
        %v8695 = vpop.f32.mrb[0].mxu0
        %v8696 = vadd.f32 %v8439, %v8695
        %8697 = vdwg.mxu0
        %8698 = vmatprep.subr.mxu0 0.0
        %v8699 = vand.u32 %v1296, 4294901760
        %8700 = vmatpush1.xpose.msra.mxu0 %v8699
        %8701 = vmatprep.subr.mxu0 0.0
        %v8702 = vand.u32 %v1299, 4294901760
        %8703 = vmatpush1.xpose.msra.mxu0 %v8702
        %8704 = vmatprep.subr.mxu0 0.0
        %v8705 = vand.u32 %v1302, 4294901760
        %8706 = vmatpush1.xpose.msra.mxu0 %v8705
        %8707 = vmatprep.subr.mxu0 0.0
        %v8708 = vand.u32 %v1305, 4294901760
        %8709 = vmatpush1.xpose.msra.mxu0 %v8708
        %8710 = vmatprep.subr.mxu0 0.0
        %v8711 = vand.u32 %v1308, 4294901760
        %8712 = vmatpush1.xpose.msra.mxu0 %v8711
        %8713 = vmatprep.subr.mxu0 0.0
        %v8714 = vand.u32 %v1311, 4294901760
        %8715 = vmatpush1.xpose.msra.mxu0 %v8714
        %8716 = vmatprep.subr.mxu0 0.0
        %v8717 = vand.u32 %v1314, 4294901760
        %8718 = vmatpush1.xpose.msra.mxu0 %v8717
        %8719 = vmatprep.subr.mxu0 0.0
        %v8720 = vand.u32 %v1317, 4294901760
        %8721 = vmatpush1.xpose.msra.mxu0 %v8720
        %8722 = vmatprep.subr.mxu0 0.0
        %v8723 = vand.u32 %v1320, 4294901760
        %8724 = vmatpush1.xpose.msra.mxu0 %v8723
        %8725 = vmatprep.subr.mxu0 0.0
        %v8726 = vand.u32 %v1323, 4294901760
        %8727 = vmatpush1.xpose.msra.mxu0 %v8726
        %8728 = vmatprep.subr.mxu0 0.0
        %v8729 = vand.u32 %v1326, 4294901760
        %8730 = vmatpush1.xpose.msra.mxu0 %v8729
        %8731 = vmatprep.subr.mxu0 0.0
        %v8732 = vand.u32 %v1329, 4294901760
        %8733 = vmatpush1.xpose.msra.mxu0 %v8732
        %8734 = vmatprep.subr.mxu0 0.0
        %v8735 = vand.u32 %v1332, 4294901760
        %8736 = vmatpush1.xpose.msra.mxu0 %v8735
        %8737 = vmatprep.subr.mxu0 0.0
        %v8738 = vand.u32 %v1335, 4294901760
        %8739 = vmatpush1.xpose.msra.mxu0 %v8738
        %8740 = vmatprep.subr.mxu0 0.0
        %v8741 = vand.u32 %v1338, 4294901760
        %8742 = vmatpush1.xpose.msra.mxu0 %v8741
        %8743 = vmatprep.subr.mxu0 0.0
        %v8744 = vand.u32 %v1341, 4294901760
        %8745 = vmatpush1.xpose.msra.mxu0 %v8744
        %8746 = vmatprep.subr.mxu0 0.0
        %v8747 = vand.u32 %v1344, 4294901760
        %8748 = vmatpush1.xpose.msra.mxu0 %v8747
        %8749 = vmatprep.subr.mxu0 0.0
        %v8750 = vand.u32 %v1347, 4294901760
        %8751 = vmatpush1.xpose.msra.mxu0 %v8750
        %8752 = vmatprep.subr.mxu0 0.0
        %v8753 = vand.u32 %v1350, 4294901760
        %8754 = vmatpush1.xpose.msra.mxu0 %v8753
        %8755 = vmatprep.subr.mxu0 0.0
        %v8756 = vand.u32 %v1353, 4294901760
        %8757 = vmatpush1.xpose.msra.mxu0 %v8756
        %8758 = vmatprep.subr.mxu0 0.0
        %v8759 = vand.u32 %v1356, 4294901760
        %8760 = vmatpush1.xpose.msra.mxu0 %v8759
        %8761 = vmatprep.subr.mxu0 0.0
        %v8762 = vand.u32 %v1359, 4294901760
        %8763 = vmatpush1.xpose.msra.mxu0 %v8762
        %8764 = vmatprep.subr.mxu0 0.0
        %v8765 = vand.u32 %v1362, 4294901760
        %8766 = vmatpush1.xpose.msra.mxu0 %v8765
        %8767 = vmatprep.subr.mxu0 0.0
        %v8768 = vand.u32 %v1365, 4294901760
        %8769 = vmatpush1.xpose.msra.mxu0 %v8768
        %8770 = vmatprep.subr.mxu0 0.0
        %v8771 = vand.u32 %v1368, 4294901760
        %8772 = vmatpush1.xpose.msra.mxu0 %v8771
        %8773 = vmatprep.subr.mxu0 0.0
        %v8774 = vand.u32 %v1371, 4294901760
        %8775 = vmatpush1.xpose.msra.mxu0 %v8774
        %8776 = vmatprep.subr.mxu0 0.0
        %v8777 = vand.u32 %v1374, 4294901760
        %8778 = vmatpush1.xpose.msra.mxu0 %v8777
        %8779 = vmatprep.subr.mxu0 0.0
        %v8780 = vand.u32 %v1377, 4294901760
        %8781 = vmatpush1.xpose.msra.mxu0 %v8780
        %8782 = vmatprep.subr.mxu0 0.0
        %v8783 = vand.u32 %v1380, 4294901760
        %8784 = vmatpush1.xpose.msra.mxu0 %v8783
        %8785 = vmatprep.subr.mxu0 0.0
        %v8786 = vand.u32 %v1383, 4294901760
        %8787 = vmatpush1.xpose.msra.mxu0 %v8786
        %8788 = vmatprep.subr.mxu0 0.0
        %v8789 = vand.u32 %v1386, 4294901760
        %8790 = vmatpush1.xpose.msra.mxu0 %v8789
        %8791 = vmatprep.subr.mxu0 0.0
        %v8792 = vand.u32 %v1389, 4294901760
        %8793 = vmatpush1.xpose.msra.mxu0 %v8792
        %8794 = vmatprep.mubr.f32.mxu0 0.0
        %v8795 = vand.u32 %v7784, 4294901760
        %v8796 = vsub.f32 %v7784, %v8795
        %v8797 = vand.u32 %v8796, 4294901760
        %8798 = vmatmul.mubr.f32.gmra.mrb[0].mxu0 %v8797
        %v8799 = vpop.f32.mrb[0].mxu0
        %v8800 = vadd.f32 %v8574, %v8799
        %v8801 = vpop.f32.mrb[0].mxu0
        %v8802 = vadd.f32 %v8576, %v8801
        %8803 = vmatprep.mubr.f32.mxu0 0.0
        %v8804 = vand.u32 %v7787, 4294901760
        %v8805 = vsub.f32 %v7787, %v8804
        %v8806 = vand.u32 %v8805, 4294901760
        %8807 = vmatmul.mubr.f32.gmra.mrb[0].mxu0 %v8806
        %v8808 = vpop.f32.mrb[0].mxu0
        %v8809 = vadd.f32 %v8582, %v8808
        %v8810 = vpop.f32.mrb[0].mxu0
        %v8811 = vadd.f32 %v8584, %v8810
        %8812 = vmatprep.mubr.f32.mxu0 0.0
        %v8813 = vand.u32 %v7790, 4294901760
        %v8814 = vsub.f32 %v7790, %v8813
        %v8815 = vand.u32 %v8814, 4294901760
        %8816 = vmatmul.mubr.f32.gmra.mrb[0].mxu0 %v8815
        %v8817 = vpop.f32.mrb[0].mxu0
        %v8818 = vadd.f32 %v8590, %v8817
        %v8819 = vpop.f32.mrb[0].mxu0
        %v8820 = vadd.f32 %v8592, %v8819
        %8821 = vmatprep.mubr.f32.mxu0 0.0
        %v8822 = vand.u32 %v7793, 4294901760
        %v8823 = vsub.f32 %v7793, %v8822
        %v8824 = vand.u32 %v8823, 4294901760
        %8825 = vmatmul.mubr.f32.gmra.mrb[0].mxu0 %v8824
        %v8826 = vpop.f32.mrb[0].mxu0
        %v8827 = vadd.f32 %v8598, %v8826
        %v8828 = vpop.f32.mrb[0].mxu0
        %v8829 = vadd.f32 %v8600, %v8828
        %8830 = vmatprep.mubr.f32.mxu0 0.0
        %v8831 = vand.u32 %v7796, 4294901760
        %v8832 = vsub.f32 %v7796, %v8831
        %v8833 = vand.u32 %v8832, 4294901760
        %8834 = vmatmul.mubr.f32.gmra.mrb[0].mxu0 %v8833
        %v8835 = vpop.f32.mrb[0].mxu0
        %v8836 = vadd.f32 %v8606, %v8835
        %v8837 = vpop.f32.mrb[0].mxu0
        %v8838 = vadd.f32 %v8608, %v8837
        %8839 = vmatprep.mubr.f32.mxu0 0.0
        %v8840 = vand.u32 %v7799, 4294901760
        %v8841 = vsub.f32 %v7799, %v8840
        %v8842 = vand.u32 %v8841, 4294901760
        %8843 = vmatmul.mubr.f32.gmra.mrb[0].mxu0 %v8842
        %v8844 = vpop.f32.mrb[0].mxu0
        %v8845 = vadd.f32 %v8614, %v8844
        %v8846 = vpop.f32.mrb[0].mxu0
        %v8847 = vadd.f32 %v8616, %v8846
        %8848 = vmatprep.mubr.f32.mxu0 0.0
        %v8849 = vand.u32 %v7802, 4294901760
        %v8850 = vsub.f32 %v7802, %v8849
        %v8851 = vand.u32 %v8850, 4294901760
        %8852 = vmatmul.mubr.f32.gmra.mrb[0].mxu0 %v8851
        %v8853 = vpop.f32.mrb[0].mxu0
        %v8854 = vadd.f32 %v8622, %v8853
        %v8855 = vpop.f32.mrb[0].mxu0
        %v8856 = vadd.f32 %v8624, %v8855
        %8857 = vmatprep.mubr.f32.mxu0 0.0
        %v8858 = vand.u32 %v7805, 4294901760
        %v8859 = vsub.f32 %v7805, %v8858
        %v8860 = vand.u32 %v8859, 4294901760
        %8861 = vmatmul.mubr.f32.gmra.mrb[0].mxu0 %v8860
        %v8862 = vpop.f32.mrb[0].mxu0
        %v8863 = vadd.f32 %v8630, %v8862
        %v8864 = vpop.f32.mrb[0].mxu0
        %v8865 = vadd.f32 %v8632, %v8864
        %8866 = vmatprep.mubr.f32.mxu0 0.0
        %v8867 = vand.u32 %v7808, 4294901760
        %v8868 = vsub.f32 %v7808, %v8867
        %v8869 = vand.u32 %v8868, 4294901760
        %8870 = vmatmul.mubr.f32.gmra.mrb[0].mxu0 %v8869
        %v8871 = vpop.f32.mrb[0].mxu0
        %v8872 = vadd.f32 %v8638, %v8871
        %v8873 = vpop.f32.mrb[0].mxu0
        %v8874 = vadd.f32 %v8640, %v8873
        %8875 = vmatprep.mubr.f32.mxu0 0.0
        %v8876 = vand.u32 %v7811, 4294901760
        %v8877 = vsub.f32 %v7811, %v8876
        %v8878 = vand.u32 %v8877, 4294901760
        %8879 = vmatmul.mubr.f32.gmra.mrb[0].mxu0 %v8878
        %v8880 = vpop.f32.mrb[0].mxu0
        %v8881 = vadd.f32 %v8646, %v8880
        %v8882 = vpop.f32.mrb[0].mxu0
        %v8883 = vadd.f32 %v8648, %v8882
        %8884 = vmatprep.mubr.f32.mxu0 0.0
        %v8885 = vand.u32 %v7814, 4294901760
        %v8886 = vsub.f32 %v7814, %v8885
        %v8887 = vand.u32 %v8886, 4294901760
        %8888 = vmatmul.mubr.f32.gmra.mrb[0].mxu0 %v8887
        %v8889 = vpop.f32.mrb[0].mxu0
        %v8890 = vadd.f32 %v8654, %v8889
        %v8891 = vpop.f32.mrb[0].mxu0
        %v8892 = vadd.f32 %v8656, %v8891
        %8893 = vmatprep.mubr.f32.mxu0 0.0
        %v8894 = vand.u32 %v7817, 4294901760
        %v8895 = vsub.f32 %v7817, %v8894
        %v8896 = vand.u32 %v8895, 4294901760
        %8897 = vmatmul.mubr.f32.gmra.mrb[0].mxu0 %v8896
        %v8898 = vpop.f32.mrb[0].mxu0
        %v8899 = vadd.f32 %v8662, %v8898
        %v8900 = vpop.f32.mrb[0].mxu0
        %v8901 = vadd.f32 %v8664, %v8900
        %8902 = vmatprep.mubr.f32.mxu0 0.0
        %v8903 = vand.u32 %v7820, 4294901760
        %v8904 = vsub.f32 %v7820, %v8903
        %v8905 = vand.u32 %v8904, 4294901760
        %8906 = vmatmul.mubr.f32.gmra.mrb[0].mxu0 %v8905
        %v8907 = vpop.f32.mrb[0].mxu0
        %v8908 = vadd.f32 %v8670, %v8907
        %v8909 = vpop.f32.mrb[0].mxu0
        %v8910 = vadd.f32 %v8672, %v8909
        %8911 = vmatprep.mubr.f32.mxu0 0.0
        %v8912 = vand.u32 %v7823, 4294901760
        %v8913 = vsub.f32 %v7823, %v8912
        %v8914 = vand.u32 %v8913, 4294901760
        %8915 = vmatmul.mubr.f32.gmra.mrb[0].mxu0 %v8914
        %v8916 = vpop.f32.mrb[0].mxu0
        %v8917 = vadd.f32 %v8678, %v8916
        %v8918 = vpop.f32.mrb[0].mxu0
        %v8919 = vadd.f32 %v8680, %v8918
        %8920 = vmatprep.mubr.f32.mxu0 0.0
        %v8921 = vand.u32 %v7826, 4294901760
        %v8922 = vsub.f32 %v7826, %v8921
        %v8923 = vand.u32 %v8922, 4294901760
        %8924 = vmatmul.mubr.f32.gmra.mrb[0].mxu0 %v8923
        %v8925 = vpop.f32.mrb[0].mxu0
        %v8926 = vadd.f32 %v8686, %v8925
        %v8927 = vpop.f32.mrb[0].mxu0
        %v8928 = vadd.f32 %v8688, %v8927
        %8929 = vmatprep.mubr.f32.mxu0 0.0
        %v8930 = vand.u32 %v7829, 4294901760
        %v8931 = vsub.f32 %v7829, %v8930
        %v8932 = vand.u32 %v8931, 4294901760
        %8933 = vmatmul.mubr.f32.gmra.mrb[0].mxu0 %v8932
        %v8934 = vpop.f32.mrb[0].mxu0
        %v8935 = vadd.f32 %v8694, %v8934
        %v8936 = vpop.f32.mrb[0].mxu0
        %v8937 = vadd.f32 %v8696, %v8936
        %8938 = vdwg.mxu0
        %8939 = vmatprep.subr.mxu0 0.0
        %v8940 = vand.u32 %v1296, 4294901760
        %v8941 = vsub.f32 %v1296, %v8940
        %v8942 = vand.u32 %v8941, 4294901760
        %8943 = vmatpush1.xpose.msra.mxu0 %v8942
        %8944 = vmatprep.subr.mxu0 0.0
        %v8945 = vand.u32 %v1299, 4294901760
        %v8946 = vsub.f32 %v1299, %v8945
        %v8947 = vand.u32 %v8946, 4294901760
        %8948 = vmatpush1.xpose.msra.mxu0 %v8947
        %8949 = vmatprep.subr.mxu0 0.0
        %v8950 = vand.u32 %v1302, 4294901760
        %v8951 = vsub.f32 %v1302, %v8950
        %v8952 = vand.u32 %v8951, 4294901760
        %8953 = vmatpush1.xpose.msra.mxu0 %v8952
        %8954 = vmatprep.subr.mxu0 0.0
        %v8955 = vand.u32 %v1305, 4294901760
        %v8956 = vsub.f32 %v1305, %v8955
        %v8957 = vand.u32 %v8956, 4294901760
        %8958 = vmatpush1.xpose.msra.mxu0 %v8957
        %8959 = vmatprep.subr.mxu0 0.0
        %v8960 = vand.u32 %v1308, 4294901760
        %v8961 = vsub.f32 %v1308, %v8960
        %v8962 = vand.u32 %v8961, 4294901760
        %8963 = vmatpush1.xpose.msra.mxu0 %v8962
        %8964 = vmatprep.subr.mxu0 0.0
        %v8965 = vand.u32 %v1311, 4294901760
        %v8966 = vsub.f32 %v1311, %v8965
        %v8967 = vand.u32 %v8966, 4294901760
        %8968 = vmatpush1.xpose.msra.mxu0 %v8967
        %8969 = vmatprep.subr.mxu0 0.0
        %v8970 = vand.u32 %v1314, 4294901760
        %v8971 = vsub.f32 %v1314, %v8970
        %v8972 = vand.u32 %v8971, 4294901760
        %8973 = vmatpush1.xpose.msra.mxu0 %v8972
        %8974 = vmatprep.subr.mxu0 0.0
        %v8975 = vand.u32 %v1317, 4294901760
        %v8976 = vsub.f32 %v1317, %v8975
        %v8977 = vand.u32 %v8976, 4294901760
        %8978 = vmatpush1.xpose.msra.mxu0 %v8977
        %8979 = vmatprep.subr.mxu0 0.0
        %v8980 = vand.u32 %v1320, 4294901760
        %v8981 = vsub.f32 %v1320, %v8980
        %v8982 = vand.u32 %v8981, 4294901760
        %8983 = vmatpush1.xpose.msra.mxu0 %v8982
        %8984 = vmatprep.subr.mxu0 0.0
        %v8985 = vand.u32 %v1323, 4294901760
        %v8986 = vsub.f32 %v1323, %v8985
        %v8987 = vand.u32 %v8986, 4294901760
        %8988 = vmatpush1.xpose.msra.mxu0 %v8987
        %8989 = vmatprep.subr.mxu0 0.0
        %v8990 = vand.u32 %v1326, 4294901760
        %v8991 = vsub.f32 %v1326, %v8990
        %v8992 = vand.u32 %v8991, 4294901760
        %8993 = vmatpush1.xpose.msra.mxu0 %v8992
        %8994 = vmatprep.subr.mxu0 0.0
        %v8995 = vand.u32 %v1329, 4294901760
        %v8996 = vsub.f32 %v1329, %v8995
        %v8997 = vand.u32 %v8996, 4294901760
        %8998 = vmatpush1.xpose.msra.mxu0 %v8997
        %8999 = vmatprep.subr.mxu0 0.0
        %v9000 = vand.u32 %v1332, 4294901760
        %v9001 = vsub.f32 %v1332, %v9000
        %v9002 = vand.u32 %v9001, 4294901760
        %9003 = vmatpush1.xpose.msra.mxu0 %v9002
        %9004 = vmatprep.subr.mxu0 0.0
        %v9005 = vand.u32 %v1335, 4294901760
        %v9006 = vsub.f32 %v1335, %v9005
        %v9007 = vand.u32 %v9006, 4294901760
        %9008 = vmatpush1.xpose.msra.mxu0 %v9007
        %9009 = vmatprep.subr.mxu0 0.0
        %v9010 = vand.u32 %v1338, 4294901760
        %v9011 = vsub.f32 %v1338, %v9010
        %v9012 = vand.u32 %v9011, 4294901760
        %9013 = vmatpush1.xpose.msra.mxu0 %v9012
        %9014 = vmatprep.subr.mxu0 0.0
        %v9015 = vand.u32 %v1341, 4294901760
        %v9016 = vsub.f32 %v1341, %v9015
        %v9017 = vand.u32 %v9016, 4294901760
        %9018 = vmatpush1.xpose.msra.mxu0 %v9017
        %9019 = vmatprep.subr.mxu0 0.0
        %v9020 = vand.u32 %v1344, 4294901760
        %v9021 = vsub.f32 %v1344, %v9020
        %v9022 = vand.u32 %v9021, 4294901760
        %9023 = vmatpush1.xpose.msra.mxu0 %v9022
        %9024 = vmatprep.subr.mxu0 0.0
        %v9025 = vand.u32 %v1347, 4294901760
        %v9026 = vsub.f32 %v1347, %v9025
        %v9027 = vand.u32 %v9026, 4294901760
        %9028 = vmatpush1.xpose.msra.mxu0 %v9027
        %9029 = vmatprep.subr.mxu0 0.0
        %v9030 = vand.u32 %v1350, 4294901760
        %v9031 = vsub.f32 %v1350, %v9030
        %v9032 = vand.u32 %v9031, 4294901760
        %9033 = vmatpush1.xpose.msra.mxu0 %v9032
        %9034 = vmatprep.subr.mxu0 0.0
        %v9035 = vand.u32 %v1353, 4294901760
        %v9036 = vsub.f32 %v1353, %v9035
        %v9037 = vand.u32 %v9036, 4294901760
        %9038 = vmatpush1.xpose.msra.mxu0 %v9037
        %9039 = vmatprep.subr.mxu0 0.0
        %v9040 = vand.u32 %v1356, 4294901760
        %v9041 = vsub.f32 %v1356, %v9040
        %v9042 = vand.u32 %v9041, 4294901760
        %9043 = vmatpush1.xpose.msra.mxu0 %v9042
        %9044 = vmatprep.subr.mxu0 0.0
        %v9045 = vand.u32 %v1359, 4294901760
        %v9046 = vsub.f32 %v1359, %v9045
        %v9047 = vand.u32 %v9046, 4294901760
        %9048 = vmatpush1.xpose.msra.mxu0 %v9047
        %9049 = vmatprep.subr.mxu0 0.0
        %v9050 = vand.u32 %v1362, 4294901760
        %v9051 = vsub.f32 %v1362, %v9050
        %v9052 = vand.u32 %v9051, 4294901760
        %9053 = vmatpush1.xpose.msra.mxu0 %v9052
        %9054 = vmatprep.subr.mxu0 0.0
        %v9055 = vand.u32 %v1365, 4294901760
        %v9056 = vsub.f32 %v1365, %v9055
        %v9057 = vand.u32 %v9056, 4294901760
        %9058 = vmatpush1.xpose.msra.mxu0 %v9057
        %9059 = vmatprep.subr.mxu0 0.0
        %v9060 = vand.u32 %v1368, 4294901760
        %v9061 = vsub.f32 %v1368, %v9060
        %v9062 = vand.u32 %v9061, 4294901760
        %9063 = vmatpush1.xpose.msra.mxu0 %v9062
        %9064 = vmatprep.subr.mxu0 0.0
        %v9065 = vand.u32 %v1371, 4294901760
        %v9066 = vsub.f32 %v1371, %v9065
        %v9067 = vand.u32 %v9066, 4294901760
        %9068 = vmatpush1.xpose.msra.mxu0 %v9067
        %9069 = vmatprep.subr.mxu0 0.0
        %v9070 = vand.u32 %v1374, 4294901760
        %v9071 = vsub.f32 %v1374, %v9070
        %v9072 = vand.u32 %v9071, 4294901760
        %9073 = vmatpush1.xpose.msra.mxu0 %v9072
        %9074 = vmatprep.subr.mxu0 0.0
        %v9075 = vand.u32 %v1377, 4294901760
        %v9076 = vsub.f32 %v1377, %v9075
        %v9077 = vand.u32 %v9076, 4294901760
        %9078 = vmatpush1.xpose.msra.mxu0 %v9077
        %9079 = vmatprep.subr.mxu0 0.0
        %v9080 = vand.u32 %v1380, 4294901760
        %v9081 = vsub.f32 %v1380, %v9080
        %v9082 = vand.u32 %v9081, 4294901760
        %9083 = vmatpush1.xpose.msra.mxu0 %v9082
        %9084 = vmatprep.subr.mxu0 0.0
        %v9085 = vand.u32 %v1383, 4294901760
        %v9086 = vsub.f32 %v1383, %v9085
        %v9087 = vand.u32 %v9086, 4294901760
        %9088 = vmatpush1.xpose.msra.mxu0 %v9087
        %9089 = vmatprep.subr.mxu0 0.0
        %v9090 = vand.u32 %v1386, 4294901760
        %v9091 = vsub.f32 %v1386, %v9090
        %v9092 = vand.u32 %v9091, 4294901760
        %9093 = vmatpush1.xpose.msra.mxu0 %v9092
        %9094 = vmatprep.subr.mxu0 0.0
        %v9095 = vand.u32 %v1389, 4294901760
        %v9096 = vsub.f32 %v1389, %v9095
        %v9097 = vand.u32 %v9096, 4294901760
        %9098 = vmatpush1.xpose.msra.mxu0 %v9097
        %9099 = vmatprep.mubr.f32.mxu0 0.0
        %v9100 = vand.u32 %v7784, 4294901760
        %9101 = vmatmul.mubr.f32.gmra.mrb[0].mxu0 %v9100
        %v9102 = vpop.f32.mrb[0].mxu0
        %v9103 = vadd.f32 %v8800, %v9102
        %v9104 = vpop.f32.mrb[0].mxu0
        %v9105 = vadd.f32 %v8802, %v9104
        %9106 = vmatprep.mubr.f32.mxu0 0.0
        %v9107 = vand.u32 %v7787, 4294901760
        %9108 = vmatmul.mubr.f32.gmra.mrb[0].mxu0 %v9107
        %v9109 = vpop.f32.mrb[0].mxu0
        %v9110 = vadd.f32 %v8809, %v9109
        %v9111 = vpop.f32.mrb[0].mxu0
        %v9112 = vadd.f32 %v8811, %v9111
        %9113 = vmatprep.mubr.f32.mxu0 0.0
        %v9114 = vand.u32 %v7790, 4294901760
        %9115 = vmatmul.mubr.f32.gmra.mrb[0].mxu0 %v9114
        %v9116 = vpop.f32.mrb[0].mxu0
        %v9117 = vadd.f32 %v8818, %v9116
        %v9118 = vpop.f32.mrb[0].mxu0
        %v9119 = vadd.f32 %v8820, %v9118
        %9120 = vmatprep.mubr.f32.mxu0 0.0
        %v9121 = vand.u32 %v7793, 4294901760
        %9122 = vmatmul.mubr.f32.gmra.mrb[0].mxu0 %v9121
        %v9123 = vpop.f32.mrb[0].mxu0
        %v9124 = vadd.f32 %v8827, %v9123
        %v9125 = vpop.f32.mrb[0].mxu0
        %v9126 = vadd.f32 %v8829, %v9125
        %9127 = vmatprep.mubr.f32.mxu0 0.0
        %v9128 = vand.u32 %v7796, 4294901760
        %9129 = vmatmul.mubr.f32.gmra.mrb[0].mxu0 %v9128
        %v9130 = vpop.f32.mrb[0].mxu0
        %v9131 = vadd.f32 %v8836, %v9130
        %v9132 = vpop.f32.mrb[0].mxu0
        %v9133 = vadd.f32 %v8838, %v9132
        %9134 = vmatprep.mubr.f32.mxu0 0.0
        %v9135 = vand.u32 %v7799, 4294901760
        %9136 = vmatmul.mubr.f32.gmra.mrb[0].mxu0 %v9135
        %v9137 = vpop.f32.mrb[0].mxu0
        %v9138 = vadd.f32 %v8845, %v9137
        %v9139 = vpop.f32.mrb[0].mxu0
        %v9140 = vadd.f32 %v8847, %v9139
        %9141 = vmatprep.mubr.f32.mxu0 0.0
        %v9142 = vand.u32 %v7802, 4294901760
        %9143 = vmatmul.mubr.f32.gmra.mrb[0].mxu0 %v9142
        %v9144 = vpop.f32.mrb[0].mxu0
        %v9145 = vadd.f32 %v8854, %v9144
        %v9146 = vpop.f32.mrb[0].mxu0
        %v9147 = vadd.f32 %v8856, %v9146
        %9148 = vmatprep.mubr.f32.mxu0 0.0
        %v9149 = vand.u32 %v7805, 4294901760
        %9150 = vmatmul.mubr.f32.gmra.mrb[0].mxu0 %v9149
        %v9151 = vpop.f32.mrb[0].mxu0
        %v9152 = vadd.f32 %v8863, %v9151
        %v9153 = vpop.f32.mrb[0].mxu0
        %v9154 = vadd.f32 %v8865, %v9153
        %9155 = vmatprep.mubr.f32.mxu0 0.0
        %v9156 = vand.u32 %v7808, 4294901760
        %9157 = vmatmul.mubr.f32.gmra.mrb[0].mxu0 %v9156
        %v9158 = vpop.f32.mrb[0].mxu0
        %v9159 = vadd.f32 %v8872, %v9158
        %v9160 = vpop.f32.mrb[0].mxu0
        %v9161 = vadd.f32 %v8874, %v9160
        %9162 = vmatprep.mubr.f32.mxu0 0.0
        %v9163 = vand.u32 %v7811, 4294901760
        %9164 = vmatmul.mubr.f32.gmra.mrb[0].mxu0 %v9163
        %v9165 = vpop.f32.mrb[0].mxu0
        %v9166 = vadd.f32 %v8881, %v9165
        %v9167 = vpop.f32.mrb[0].mxu0
        %v9168 = vadd.f32 %v8883, %v9167
        %9169 = vmatprep.mubr.f32.mxu0 0.0
        %v9170 = vand.u32 %v7814, 4294901760
        %9171 = vmatmul.mubr.f32.gmra.mrb[0].mxu0 %v9170
        %v9172 = vpop.f32.mrb[0].mxu0
        %v9173 = vadd.f32 %v8890, %v9172
        %v9174 = vpop.f32.mrb[0].mxu0
        %v9175 = vadd.f32 %v8892, %v9174
        %9176 = vmatprep.mubr.f32.mxu0 0.0
        %v9177 = vand.u32 %v7817, 4294901760
        %9178 = vmatmul.mubr.f32.gmra.mrb[0].mxu0 %v9177
        %v9179 = vpop.f32.mrb[0].mxu0
        %v9180 = vadd.f32 %v8899, %v9179
        %v9181 = vpop.f32.mrb[0].mxu0
        %v9182 = vadd.f32 %v8901, %v9181
        %9183 = vmatprep.mubr.f32.mxu0 0.0
        %v9184 = vand.u32 %v7820, 4294901760
        %9185 = vmatmul.mubr.f32.gmra.mrb[0].mxu0 %v9184
        %v9186 = vpop.f32.mrb[0].mxu0
        %v9187 = vadd.f32 %v8908, %v9186
        %v9188 = vpop.f32.mrb[0].mxu0
        %v9189 = vadd.f32 %v8910, %v9188
        %9190 = vmatprep.mubr.f32.mxu0 0.0
        %v9191 = vand.u32 %v7823, 4294901760
        %9192 = vmatmul.mubr.f32.gmra.mrb[0].mxu0 %v9191
        %v9193 = vpop.f32.mrb[0].mxu0
        %v9194 = vadd.f32 %v8917, %v9193
        %v9195 = vpop.f32.mrb[0].mxu0
        %v9196 = vadd.f32 %v8919, %v9195
        %9197 = vmatprep.mubr.f32.mxu0 0.0
        %v9198 = vand.u32 %v7826, 4294901760
        %9199 = vmatmul.mubr.f32.gmra.mrb[0].mxu0 %v9198
        %v9200 = vpop.f32.mrb[0].mxu0
        %v9201 = vadd.f32 %v8926, %v9200
        %v9202 = vpop.f32.mrb[0].mxu0
        %v9203 = vadd.f32 %v8928, %v9202
        %9204 = vmatprep.mubr.f32.mxu0 0.0
        %v9205 = vand.u32 %v7829, 4294901760
        %9206 = vmatmul.mubr.f32.gmra.mrb[0].mxu0 %v9205
        %v9207 = vpop.f32.mrb[0].mxu0
        %v9208 = vadd.f32 %v8935, %v9207
        %v9209 = vpop.f32.mrb[0].mxu0
        %v9210 = vadd.f32 %v8937, %v9209
        %9211 = vdwg.mxu0
        %9212 = vmatprep.subr.mxu0 0.0
        %v9213 = vand.u32 %v1296, 4294901760
        %9214 = vmatpush1.xpose.msra.mxu0 %v9213
        %9215 = vmatprep.subr.mxu0 0.0
        %v9216 = vand.u32 %v1299, 4294901760
        %9217 = vmatpush1.xpose.msra.mxu0 %v9216
        %9218 = vmatprep.subr.mxu0 0.0
        %v9219 = vand.u32 %v1302, 4294901760
        %9220 = vmatpush1.xpose.msra.mxu0 %v9219
        %9221 = vmatprep.subr.mxu0 0.0
        %v9222 = vand.u32 %v1305, 4294901760
        %9223 = vmatpush1.xpose.msra.mxu0 %v9222
        %9224 = vmatprep.subr.mxu0 0.0
        %v9225 = vand.u32 %v1308, 4294901760
        %9226 = vmatpush1.xpose.msra.mxu0 %v9225
        %9227 = vmatprep.subr.mxu0 0.0
        %v9228 = vand.u32 %v1311, 4294901760
        %9229 = vmatpush1.xpose.msra.mxu0 %v9228
        %9230 = vmatprep.subr.mxu0 0.0
        %v9231 = vand.u32 %v1314, 4294901760
        %9232 = vmatpush1.xpose.msra.mxu0 %v9231
        %9233 = vmatprep.subr.mxu0 0.0
        %v9234 = vand.u32 %v1317, 4294901760
        %9235 = vmatpush1.xpose.msra.mxu0 %v9234
        %9236 = vmatprep.subr.mxu0 0.0
        %v9237 = vand.u32 %v1320, 4294901760
        %9238 = vmatpush1.xpose.msra.mxu0 %v9237
        %9239 = vmatprep.subr.mxu0 0.0
        %v9240 = vand.u32 %v1323, 4294901760
        %9241 = vmatpush1.xpose.msra.mxu0 %v9240
        %9242 = vmatprep.subr.mxu0 0.0
        %v9243 = vand.u32 %v1326, 4294901760
        %9244 = vmatpush1.xpose.msra.mxu0 %v9243
        %9245 = vmatprep.subr.mxu0 0.0
        %v9246 = vand.u32 %v1329, 4294901760
        %9247 = vmatpush1.xpose.msra.mxu0 %v9246
        %9248 = vmatprep.subr.mxu0 0.0
        %v9249 = vand.u32 %v1332, 4294901760
        %9250 = vmatpush1.xpose.msra.mxu0 %v9249
        %9251 = vmatprep.subr.mxu0 0.0
        %v9252 = vand.u32 %v1335, 4294901760
        %9253 = vmatpush1.xpose.msra.mxu0 %v9252
        %9254 = vmatprep.subr.mxu0 0.0
        %v9255 = vand.u32 %v1338, 4294901760
        %9256 = vmatpush1.xpose.msra.mxu0 %v9255
        %9257 = vmatprep.subr.mxu0 0.0
        %v9258 = vand.u32 %v1341, 4294901760
        %9259 = vmatpush1.xpose.msra.mxu0 %v9258
        %9260 = vmatprep.subr.mxu0 0.0
        %v9261 = vand.u32 %v1344, 4294901760
        %9262 = vmatpush1.xpose.msra.mxu0 %v9261
        %9263 = vmatprep.subr.mxu0 0.0
        %v9264 = vand.u32 %v1347, 4294901760
        %9265 = vmatpush1.xpose.msra.mxu0 %v9264
        %9266 = vmatprep.subr.mxu0 0.0
        %v9267 = vand.u32 %v1350, 4294901760
        %9268 = vmatpush1.xpose.msra.mxu0 %v9267
        %9269 = vmatprep.subr.mxu0 0.0
        %v9270 = vand.u32 %v1353, 4294901760
        %9271 = vmatpush1.xpose.msra.mxu0 %v9270
        %9272 = vmatprep.subr.mxu0 0.0
        %v9273 = vand.u32 %v1356, 4294901760
        %9274 = vmatpush1.xpose.msra.mxu0 %v9273
        %9275 = vmatprep.subr.mxu0 0.0
        %v9276 = vand.u32 %v1359, 4294901760
        %9277 = vmatpush1.xpose.msra.mxu0 %v9276
        %9278 = vmatprep.subr.mxu0 0.0
        %v9279 = vand.u32 %v1362, 4294901760
        %9280 = vmatpush1.xpose.msra.mxu0 %v9279
        %9281 = vmatprep.subr.mxu0 0.0
        %v9282 = vand.u32 %v1365, 4294901760
        %9283 = vmatpush1.xpose.msra.mxu0 %v9282
        %9284 = vmatprep.subr.mxu0 0.0
        %v9285 = vand.u32 %v1368, 4294901760
        %9286 = vmatpush1.xpose.msra.mxu0 %v9285
        %9287 = vmatprep.subr.mxu0 0.0
        %v9288 = vand.u32 %v1371, 4294901760
        %9289 = vmatpush1.xpose.msra.mxu0 %v9288
        %9290 = vmatprep.subr.mxu0 0.0
        %v9291 = vand.u32 %v1374, 4294901760
        %9292 = vmatpush1.xpose.msra.mxu0 %v9291
        %9293 = vmatprep.subr.mxu0 0.0
        %v9294 = vand.u32 %v1377, 4294901760
        %9295 = vmatpush1.xpose.msra.mxu0 %v9294
        %9296 = vmatprep.subr.mxu0 0.0
        %v9297 = vand.u32 %v1380, 4294901760
        %9298 = vmatpush1.xpose.msra.mxu0 %v9297
        %9299 = vmatprep.subr.mxu0 0.0
        %v9300 = vand.u32 %v1383, 4294901760
        %9301 = vmatpush1.xpose.msra.mxu0 %v9300
        %9302 = vmatprep.subr.mxu0 0.0
        %v9303 = vand.u32 %v1386, 4294901760
        %9304 = vmatpush1.xpose.msra.mxu0 %v9303
        %9305 = vmatprep.subr.mxu0 0.0
        %v9306 = vand.u32 %v1389, 4294901760
        %9307 = vmatpush1.xpose.msra.mxu0 %v9306
        %9308 = vmatprep.mubr.f32.mxu0 0.0
        %v9309 = vand.u32 %v7784, 4294901760
        %9310 = vmatmul.mubr.f32.gmra.mrb[0].mxu0 %v9309
        %v9311 = vpop.f32.mrb[0].mxu0
        %v9312 = vadd.f32 %v9103, %v9311
        %v9313 = vpop.f32.mrb[0].mxu0
        %v9314 = vadd.f32 %v9105, %v9313
        %9315 = vmatprep.mubr.f32.mxu0 0.0
        %v9316 = vand.u32 %v7787, 4294901760
        %9317 = vmatmul.mubr.f32.gmra.mrb[0].mxu0 %v9316
        %v9318 = vpop.f32.mrb[0].mxu0
        %v9319 = vadd.f32 %v9110, %v9318
        %v9320 = vpop.f32.mrb[0].mxu0
        %v9321 = vadd.f32 %v9112, %v9320
        %9322 = vmatprep.mubr.f32.mxu0 0.0
        %v9323 = vand.u32 %v7790, 4294901760
        %9324 = vmatmul.mubr.f32.gmra.mrb[0].mxu0 %v9323
        %v9325 = vpop.f32.mrb[0].mxu0
        %v9326 = vadd.f32 %v9117, %v9325
        %v9327 = vpop.f32.mrb[0].mxu0
        %v9328 = vadd.f32 %v9119, %v9327
        %9329 = vmatprep.mubr.f32.mxu0 0.0
        %v9330 = vand.u32 %v7793, 4294901760
        %9331 = vmatmul.mubr.f32.gmra.mrb[0].mxu0 %v9330
        %v9332 = vpop.f32.mrb[0].mxu0
        %v9333 = vadd.f32 %v9124, %v9332
        %v9334 = vpop.f32.mrb[0].mxu0
        %v9335 = vadd.f32 %v9126, %v9334
        %9336 = vmatprep.mubr.f32.mxu0 0.0
        %v9337 = vand.u32 %v7796, 4294901760
        %9338 = vmatmul.mubr.f32.gmra.mrb[0].mxu0 %v9337
        %v9339 = vpop.f32.mrb[0].mxu0
        %v9340 = vadd.f32 %v9131, %v9339
        %v9341 = vpop.f32.mrb[0].mxu0
        %v9342 = vadd.f32 %v9133, %v9341
        %9343 = vmatprep.mubr.f32.mxu0 0.0
        %v9344 = vand.u32 %v7799, 4294901760
        %9345 = vmatmul.mubr.f32.gmra.mrb[0].mxu0 %v9344
        %v9346 = vpop.f32.mrb[0].mxu0
        %v9347 = vadd.f32 %v9138, %v9346
        %v9348 = vpop.f32.mrb[0].mxu0
        %v9349 = vadd.f32 %v9140, %v9348
        %9350 = vmatprep.mubr.f32.mxu0 0.0
        %v9351 = vand.u32 %v7802, 4294901760
        %9352 = vmatmul.mubr.f32.gmra.mrb[0].mxu0 %v9351
        %v9353 = vpop.f32.mrb[0].mxu0
        %v9354 = vadd.f32 %v9145, %v9353
        %v9355 = vpop.f32.mrb[0].mxu0
        %v9356 = vadd.f32 %v9147, %v9355
        %9357 = vmatprep.mubr.f32.mxu0 0.0
        %v9358 = vand.u32 %v7805, 4294901760
        %9359 = vmatmul.mubr.f32.gmra.mrb[0].mxu0 %v9358
        %v9360 = vpop.f32.mrb[0].mxu0
        %v9361 = vadd.f32 %v9152, %v9360
        %v9362 = vpop.f32.mrb[0].mxu0
        %v9363 = vadd.f32 %v9154, %v9362
        %9364 = vmatprep.mubr.f32.mxu0 0.0
        %v9365 = vand.u32 %v7808, 4294901760
        %9366 = vmatmul.mubr.f32.gmra.mrb[0].mxu0 %v9365
        %v9367 = vpop.f32.mrb[0].mxu0
        %v9368 = vadd.f32 %v9159, %v9367
        %v9369 = vpop.f32.mrb[0].mxu0
        %v9370 = vadd.f32 %v9161, %v9369
        %9371 = vmatprep.mubr.f32.mxu0 0.0
        %v9372 = vand.u32 %v7811, 4294901760
        %9373 = vmatmul.mubr.f32.gmra.mrb[0].mxu0 %v9372
        %v9374 = vpop.f32.mrb[0].mxu0
        %v9375 = vadd.f32 %v9166, %v9374
        %v9376 = vpop.f32.mrb[0].mxu0
        %v9377 = vadd.f32 %v9168, %v9376
        %9378 = vmatprep.mubr.f32.mxu0 0.0
        %v9379 = vand.u32 %v7814, 4294901760
        %9380 = vmatmul.mubr.f32.gmra.mrb[0].mxu0 %v9379
        %v9381 = vpop.f32.mrb[0].mxu0
        %v9382 = vadd.f32 %v9173, %v9381
        %v9383 = vpop.f32.mrb[0].mxu0
        %v9384 = vadd.f32 %v9175, %v9383
        %9385 = vmatprep.mubr.f32.mxu0 0.0
        %v9386 = vand.u32 %v7817, 4294901760
        %9387 = vmatmul.mubr.f32.gmra.mrb[0].mxu0 %v9386
        %v9388 = vpop.f32.mrb[0].mxu0
        %v9389 = vadd.f32 %v9180, %v9388
        %v9390 = vpop.f32.mrb[0].mxu0
        %v9391 = vadd.f32 %v9182, %v9390
        %9392 = vmatprep.mubr.f32.mxu0 0.0
        %v9393 = vand.u32 %v7820, 4294901760
        %9394 = vmatmul.mubr.f32.gmra.mrb[0].mxu0 %v9393
        %v9395 = vpop.f32.mrb[0].mxu0
        %v9396 = vadd.f32 %v9187, %v9395
        %v9397 = vpop.f32.mrb[0].mxu0
        %v9398 = vadd.f32 %v9189, %v9397
        %9399 = vmatprep.mubr.f32.mxu0 0.0
        %v9400 = vand.u32 %v7823, 4294901760
        %9401 = vmatmul.mubr.f32.gmra.mrb[0].mxu0 %v9400
        %v9402 = vpop.f32.mrb[0].mxu0
        %v9403 = vadd.f32 %v9194, %v9402
        %v9404 = vpop.f32.mrb[0].mxu0
        %v9405 = vadd.f32 %v9196, %v9404
        %9406 = vmatprep.mubr.f32.mxu0 0.0
        %v9407 = vand.u32 %v7826, 4294901760
        %9408 = vmatmul.mubr.f32.gmra.mrb[0].mxu0 %v9407
        %v9409 = vpop.f32.mrb[0].mxu0
        %v9410 = vadd.f32 %v9201, %v9409
        %v9411 = vpop.f32.mrb[0].mxu0
        %v9412 = vadd.f32 %v9203, %v9411
        %9413 = vmatprep.mubr.f32.mxu0 0.0
        %v9414 = vand.u32 %v7829, 4294901760
        %9415 = vmatmul.mubr.f32.gmra.mrb[0].mxu0 %v9414
        %v9416 = vpop.f32.mrb[0].mxu0
        %v9417 = vadd.f32 %v9208, %v9416
        %v9418 = vpop.f32.mrb[0].mxu0
        %v9419 = vadd.f32 %v9210, %v9418
        %9420 = vdwg.mxu0
        %v9421 = vmul.f32 %v7767, %v7767
        %v9422 = vmul.f32 %v7768, %v7768
        %v9423 = vmul.f32 %v7769, %v7769
        %v9424 = vmul.f32 %v7770, %v7770
        %v9425 = vmul.f32 %v7771, %v7771
        %v9426 = vmul.f32 %v7772, %v7772
        %v9427 = vmul.f32 %v7773, %v7773
        %v9428 = vmul.f32 %v7774, %v7774
        %v9429 = vmul.f32 %v7775, %v7775
        %v9430 = vmul.f32 %v7776, %v7776
        %v9431 = vmul.f32 %v7777, %v7777
        %v9432 = vmul.f32 %v7778, %v7778
        %v9433 = vmul.f32 %v7779, %v7779
        %v9434 = vmul.f32 %v7780, %v7780
        %v9435 = vmul.f32 %v7781, %v7781
        %v9436 = vmul.f32 %v7782, %v7782
        %v9437 = vsel %vm1246, %v9421, 0.0
        %9438 = vadd.xlane.f32.xlu0 %v9437
        %v9439 = vpop.xlane.xlu0 %9438
        %v9440 = vsel %vm1246, %v9422, 0.0
        %9441 = vadd.xlane.f32.xlu0 %v9440
        %v9442 = vpop.xlane.xlu0 %9441
        %v9443 = vsel %vm1246, %v9423, 0.0
        %9444 = vadd.xlane.f32.xlu0 %v9443
        %v9445 = vpop.xlane.xlu0 %9444
        %v9446 = vsel %vm1246, %v9424, 0.0
        %9447 = vadd.xlane.f32.xlu0 %v9446
        %v9448 = vpop.xlane.xlu0 %9447
        %v9449 = vsel %vm1246, %v9425, 0.0
        %9450 = vadd.xlane.f32.xlu0 %v9449
        %v9451 = vpop.xlane.xlu0 %9450
        %v9452 = vsel %vm1246, %v9426, 0.0
        %9453 = vadd.xlane.f32.xlu0 %v9452
        %v9454 = vpop.xlane.xlu0 %9453
        %v9455 = vsel %vm1246, %v9427, 0.0
        %9456 = vadd.xlane.f32.xlu0 %v9455
        %v9457 = vpop.xlane.xlu0 %9456
        %v9458 = vsel %vm1246, %v9428, 0.0
        %9459 = vadd.xlane.f32.xlu0 %v9458
        %v9460 = vpop.xlane.xlu0 %9459
        %v9461 = vsel %vm1246, %v9429, 0.0
        %9462 = vadd.xlane.f32.xlu0 %v9461
        %v9463 = vpop.xlane.xlu0 %9462
        %v9464 = vsel %vm1246, %v9430, 0.0
        %9465 = vadd.xlane.f32.xlu0 %v9464
        %v9466 = vpop.xlane.xlu0 %9465
        %v9467 = vsel %vm1246, %v9431, 0.0
        %9468 = vadd.xlane.f32.xlu0 %v9467
        %v9469 = vpop.xlane.xlu0 %9468
        %v9470 = vsel %vm1246, %v9432, 0.0
        %9471 = vadd.xlane.f32.xlu0 %v9470
        %v9472 = vpop.xlane.xlu0 %9471
        %v9473 = vsel %vm1246, %v9433, 0.0
        %9474 = vadd.xlane.f32.xlu0 %v9473
        %v9475 = vpop.xlane.xlu0 %9474
        %v9476 = vsel %vm1246, %v9434, 0.0
        %9477 = vadd.xlane.f32.xlu0 %v9476
        %v9478 = vpop.xlane.xlu0 %9477
        %v9479 = vsel %vm1246, %v9435, 0.0
        %9480 = vadd.xlane.f32.xlu0 %v9479
        %v9481 = vpop.xlane.xlu0 %9480
        %v9482 = vsel %vm1246, %v9436, 0.0
        %9483 = vadd.xlane.f32.xlu0 %v9482
        %v9484 = vpop.xlane.xlu0 %9483
        %v9485 = vadd.f32 %v9439, %v3049
        %v9486 = vadd.f32 %v9439, %v3053
        %v9487 = vadd.f32 %v9442, %v3049
        %v9488 = vadd.f32 %v9442, %v3053
        %v9489 = vadd.f32 %v9445, %v3049
        %v9490 = vadd.f32 %v9445, %v3053
        %v9491 = vadd.f32 %v9448, %v3049
        %v9492 = vadd.f32 %v9448, %v3053
        %v9493 = vadd.f32 %v9451, %v3049
        %v9494 = vadd.f32 %v9451, %v3053
        %v9495 = vadd.f32 %v9454, %v3049
        %v9496 = vadd.f32 %v9454, %v3053
        %v9497 = vadd.f32 %v9457, %v3049
        %v9498 = vadd.f32 %v9457, %v3053
        %v9499 = vadd.f32 %v9460, %v3049
        %v9500 = vadd.f32 %v9460, %v3053
        %v9501 = vadd.f32 %v9463, %v3049
        %v9502 = vadd.f32 %v9463, %v3053
        %v9503 = vadd.f32 %v9466, %v3049
        %v9504 = vadd.f32 %v9466, %v3053
        %v9505 = vadd.f32 %v9469, %v3049
        %v9506 = vadd.f32 %v9469, %v3053
        %v9507 = vadd.f32 %v9472, %v3049
        %v9508 = vadd.f32 %v9472, %v3053
        %v9509 = vadd.f32 %v9475, %v3049
        %v9510 = vadd.f32 %v9475, %v3053
        %v9511 = vadd.f32 %v9478, %v3049
        %v9512 = vadd.f32 %v9478, %v3053
        %v9513 = vadd.f32 %v9481, %v3049
        %v9514 = vadd.f32 %v9481, %v3053
        %v9515 = vadd.f32 %v9484, %v3049
        %v9516 = vadd.f32 %v9484, %v3053
        %v9517 = vmul.f32 %v9312, 2.0
        %v9518 = vmul.f32 %v9314, 2.0
        %v9519 = vmul.f32 %v9319, 2.0
        %v9520 = vmul.f32 %v9321, 2.0
        %v9521 = vmul.f32 %v9326, 2.0
        %v9522 = vmul.f32 %v9328, 2.0
        %v9523 = vmul.f32 %v9333, 2.0
        %v9524 = vmul.f32 %v9335, 2.0
        %v9525 = vmul.f32 %v9340, 2.0
        %v9526 = vmul.f32 %v9342, 2.0
        %v9527 = vmul.f32 %v9347, 2.0
        %v9528 = vmul.f32 %v9349, 2.0
        %v9529 = vmul.f32 %v9354, 2.0
        %v9530 = vmul.f32 %v9356, 2.0
        %v9531 = vmul.f32 %v9361, 2.0
        %v9532 = vmul.f32 %v9363, 2.0
        %v9533 = vmul.f32 %v9368, 2.0
        %v9534 = vmul.f32 %v9370, 2.0
        %v9535 = vmul.f32 %v9375, 2.0
        %v9536 = vmul.f32 %v9377, 2.0
        %v9537 = vmul.f32 %v9382, 2.0
        %v9538 = vmul.f32 %v9384, 2.0
        %v9539 = vmul.f32 %v9389, 2.0
        %v9540 = vmul.f32 %v9391, 2.0
        %v9541 = vmul.f32 %v9396, 2.0
        %v9542 = vmul.f32 %v9398, 2.0
        %v9543 = vmul.f32 %v9403, 2.0
        %v9544 = vmul.f32 %v9405, 2.0
        %v9545 = vmul.f32 %v9410, 2.0
        %v9546 = vmul.f32 %v9412, 2.0
        %v9547 = vmul.f32 %v9417, 2.0
        %v9548 = vmul.f32 %v9419, 2.0
        %v9549 = vsub.f32 %v9485, %v9517
        %v9550 = vsub.f32 %v9486, %v9518
        %v9551 = vsub.f32 %v9487, %v9519
        %v9552 = vsub.f32 %v9488, %v9520
        %v9553 = vsub.f32 %v9489, %v9521
        %v9554 = vsub.f32 %v9490, %v9522
        %v9555 = vsub.f32 %v9491, %v9523
        %v9556 = vsub.f32 %v9492, %v9524
        %v9557 = vsub.f32 %v9493, %v9525
        %v9558 = vsub.f32 %v9494, %v9526
        %v9559 = vsub.f32 %v9495, %v9527
        %v9560 = vsub.f32 %v9496, %v9528
        %v9561 = vsub.f32 %v9497, %v9529
        %v9562 = vsub.f32 %v9498, %v9530
        %v9563 = vsub.f32 %v9499, %v9531
        %v9564 = vsub.f32 %v9500, %v9532
        %v9565 = vsub.f32 %v9501, %v9533
        %v9566 = vsub.f32 %v9502, %v9534
        %v9567 = vsub.f32 %v9503, %v9535
        %v9568 = vsub.f32 %v9504, %v9536
        %v9569 = vsub.f32 %v9505, %v9537
        %v9570 = vsub.f32 %v9506, %v9538
        %v9571 = vsub.f32 %v9507, %v9539
        %v9572 = vsub.f32 %v9508, %v9540
        %v9573 = vsub.f32 %v9509, %v9541
        %v9574 = vsub.f32 %v9510, %v9542
        %v9575 = vsub.f32 %v9511, %v9543
        %v9576 = vsub.f32 %v9512, %v9544
        %v9577 = vsub.f32 %v9513, %v9545
        %v9578 = vsub.f32 %v9514, %v9546
        %v9579 = vsub.f32 %v9515, %v9547
        %v9580 = vsub.f32 %v9516, %v9548
        %v9581 = vmax.f32 %v9549, 0.0
        %v9582 = vmax.f32 %v9550, 0.0
        %v9583 = vmax.f32 %v9551, 0.0
        %v9584 = vmax.f32 %v9552, 0.0
        %v9585 = vmax.f32 %v9553, 0.0
        %v9586 = vmax.f32 %v9554, 0.0
        %v9587 = vmax.f32 %v9555, 0.0
        %v9588 = vmax.f32 %v9556, 0.0
        %v9589 = vmax.f32 %v9557, 0.0
        %v9590 = vmax.f32 %v9558, 0.0
        %v9591 = vmax.f32 %v9559, 0.0
        %v9592 = vmax.f32 %v9560, 0.0
        %v9593 = vmax.f32 %v9561, 0.0
        %v9594 = vmax.f32 %v9562, 0.0
        %v9595 = vmax.f32 %v9563, 0.0
        %v9596 = vmax.f32 %v9564, 0.0
        %v9597 = vmax.f32 %v9565, 0.0
        %v9598 = vmax.f32 %v9566, 0.0
        %v9599 = vmax.f32 %v9567, 0.0
        %v9600 = vmax.f32 %v9568, 0.0
        %v9601 = vmax.f32 %v9569, 0.0
        %v9602 = vmax.f32 %v9570, 0.0
        %v9603 = vmax.f32 %v9571, 0.0
        %v9604 = vmax.f32 %v9572, 0.0
        %v9605 = vmax.f32 %v9573, 0.0
        %v9606 = vmax.f32 %v9574, 0.0
        %v9607 = vmax.f32 %v9575, 0.0
        %v9608 = vmax.f32 %v9576, 0.0
        %v9609 = vmax.f32 %v9577, 0.0
        %v9610 = vmax.f32 %v9578, 0.0
        %v9611 = vmax.f32 %v9579, 0.0
        %v9612 = vmax.f32 %v9580, 0.0
        %v9613 = vmul.f32 %v9581, -0.5
        %v9614 = vmul.f32 %v9582, -0.5
        %v9615 = vmul.f32 %v9583, -0.5
        %v9616 = vmul.f32 %v9584, -0.5
        %v9617 = vmul.f32 %v9585, -0.5
        %v9618 = vmul.f32 %v9586, -0.5
        %v9619 = vmul.f32 %v9587, -0.5
        %v9620 = vmul.f32 %v9588, -0.5
        %v9621 = vmul.f32 %v9589, -0.5
        %v9622 = vmul.f32 %v9590, -0.5
        %v9623 = vmul.f32 %v9591, -0.5
        %v9624 = vmul.f32 %v9592, -0.5
        %v9625 = vmul.f32 %v9593, -0.5
        %v9626 = vmul.f32 %v9594, -0.5
        %v9627 = vmul.f32 %v9595, -0.5
        %v9628 = vmul.f32 %v9596, -0.5
        %v9629 = vmul.f32 %v9597, -0.5
        %v9630 = vmul.f32 %v9598, -0.5
        %v9631 = vmul.f32 %v9599, -0.5
        %v9632 = vmul.f32 %v9600, -0.5
        %v9633 = vmul.f32 %v9601, -0.5
        %v9634 = vmul.f32 %v9602, -0.5
        %v9635 = vmul.f32 %v9603, -0.5
        %v9636 = vmul.f32 %v9604, -0.5
        %v9637 = vmul.f32 %v9605, -0.5
        %v9638 = vmul.f32 %v9606, -0.5
        %v9639 = vmul.f32 %v9607, -0.5
        %v9640 = vmul.f32 %v9608, -0.5
        %v9641 = vmul.f32 %v9609, -0.5
        %v9642 = vmul.f32 %v9610, -0.5
        %v9643 = vmul.f32 %v9611, -0.5
        %v9644 = vmul.f32 %v9612, -0.5
        %v9645 = vsub.f32 %v9613, 21.254097
        %v9646 = vsub.f32 %v9614, 21.254097
        %v9647 = vsub.f32 %v9615, 21.254097
        %v9648 = vsub.f32 %v9616, 21.254097
        %v9649 = vsub.f32 %v9617, 21.254097
        %v9650 = vsub.f32 %v9618, 21.254097
        %v9651 = vsub.f32 %v9619, 21.254097
        %v9652 = vsub.f32 %v9620, 21.254097
        %v9653 = vsub.f32 %v9621, 21.254097
        %v9654 = vsub.f32 %v9622, 21.254097
        %v9655 = vsub.f32 %v9623, 21.254097
        %v9656 = vsub.f32 %v9624, 21.254097
        %v9657 = vsub.f32 %v9625, 21.254097
        %v9658 = vsub.f32 %v9626, 21.254097
        %v9659 = vsub.f32 %v9627, 21.254097
        %v9660 = vsub.f32 %v9628, 21.254097
        %v9661 = vsub.f32 %v9629, 21.254097
        %v9662 = vsub.f32 %v9630, 21.254097
        %v9663 = vsub.f32 %v9631, 21.254097
        %v9664 = vsub.f32 %v9632, 21.254097
        %v9665 = vsub.f32 %v9633, 21.254097
        %v9666 = vsub.f32 %v9634, 21.254097
        %v9667 = vsub.f32 %v9635, 21.254097
        %v9668 = vsub.f32 %v9636, 21.254097
        %v9669 = vsub.f32 %v9637, 21.254097
        %v9670 = vsub.f32 %v9638, 21.254097
        %v9671 = vsub.f32 %v9639, 21.254097
        %v9672 = vsub.f32 %v9640, 21.254097
        %v9673 = vsub.f32 %v9641, 21.254097
        %v9674 = vsub.f32 %v9642, 21.254097
        %v9675 = vsub.f32 %v9643, 21.254097
        %v9676 = vsub.f32 %v9644, 21.254097
        %v9677 = vmax.f32 %v9645, %v9649
        %v9678 = vmax.f32 %v9647, %v9651
        %v9679 = vmax.f32 %v9677, %v9653
        %v9680 = vmax.f32 %v9678, %v9655
        %v9681 = vmax.f32 %v9679, %v9657
        %v9682 = vmax.f32 %v9680, %v9659
        %v9683 = vmax.f32 %v9681, %v9661
        %v9684 = vmax.f32 %v9682, %v9663
        %v9685 = vmax.f32 %v9683, %v9665
        %v9686 = vmax.f32 %v9684, %v9667
        %v9687 = vmax.f32 %v9685, %v9669
        %v9688 = vmax.f32 %v9686, %v9671
        %v9689 = vmax.f32 %v9687, %v9673
        %v9690 = vmax.f32 %v9688, %v9675
        %v9691 = vmax.f32 %v9689, %v9690
        %v9692 = vrot.slane %v9691, 4
        %v9693 = vmax.f32 %v9691, %v9692
        %v9694 = vrot.slane %v9693, 2
        %v9695 = vmax.f32 %v9693, %v9694
        %v9696 = vrot.slane %v9695, 1
        %v9697 = vmax.f32 %v9695, %v9696
        %v9698 = vmax.f32 %v9646, %v9650
        %v9699 = vmax.f32 %v9648, %v9652
        %v9700 = vmax.f32 %v9698, %v9654
        %v9701 = vmax.f32 %v9699, %v9656
        %v9702 = vmax.f32 %v9700, %v9658
        %v9703 = vmax.f32 %v9701, %v9660
        %v9704 = vmax.f32 %v9702, %v9662
        %v9705 = vmax.f32 %v9703, %v9664
        %v9706 = vmax.f32 %v9704, %v9666
        %v9707 = vmax.f32 %v9705, %v9668
        %v9708 = vmax.f32 %v9706, %v9670
        %v9709 = vmax.f32 %v9707, %v9672
        %v9710 = vmax.f32 %v9708, %v9674
        %v9711 = vmax.f32 %v9709, %v9676
        %v9712 = vmax.f32 %v9710, %v9711
        %v9713 = vrot.slane %v9712, 4
        %v9714 = vmax.f32 %v9712, %v9713
        %v9715 = vrot.slane %v9714, 2
        %v9716 = vmax.f32 %v9714, %v9715
        %v9717 = vrot.slane %v9716, 1
        %v9718 = vmax.f32 %v9716, %v9717
        %v9721 = vcombine.low %v9697, %v9718
        %v9723 = vunpack.c.l.s4 1966171168
        %v9724 = vunpack.c.0.s8 %v9723
        %v9725 = vlaneseq
        %v9726 = vshrl.u32 %v9725, 7
        %v9727 = vsub.s32 %v9724, %v9726
        %v9728 = vrot.slane %v9721, %v9727
        %v9730 = vunpack.c.l.s4 1966171168
        %v9731 = vunpack.c.0.s8 %v9730
        %v9732 = vlaneseq
        %v9733 = vshrl.u32 %v9732, 7
        %v9734 = vsub.s32 %v9731, %v9733
        %v9735 = vrot.slane %v9728, %v9734
        %v9737 = vmax.f32 %v7594, %v9735
        %v9738 = vsub.f32 %v7594, %v9737
        %v9739 = vmul.f32 %v9738, 1.442695
        %v9740 = vpow.pop %v9739
        %v9741 = vmul.f32 %v9740, %v7766
        %v9743 = vlaneseq
        %v9744 = vshrl.u32 %v9743, 7
        %v9745 = vsub.s32 0, %v9744
        %v9746 = vrot.slane %v9737, %v9745
        %v9747 = vlaneseq
        %v9748 = vshrl.u32 %v9747, 7
        %v9749 = vsub.s32 1, %v9748
        %v9750 = vrot.slane %v9737, %v9749
        %v9753 = vsub.f32 %v9645, %v9746
        %v9754 = vsub.f32 %v9646, %v9750
        %v9755 = vsub.f32 %v9647, %v9746
        %v9756 = vsub.f32 %v9648, %v9750
        %v9757 = vsub.f32 %v9649, %v9746
        %v9758 = vsub.f32 %v9650, %v9750
        %v9759 = vsub.f32 %v9651, %v9746
        %v9760 = vsub.f32 %v9652, %v9750
        %v9761 = vsub.f32 %v9653, %v9746
        %v9762 = vsub.f32 %v9654, %v9750
        %v9763 = vsub.f32 %v9655, %v9746
        %v9764 = vsub.f32 %v9656, %v9750
        %v9765 = vsub.f32 %v9657, %v9746
        %v9766 = vsub.f32 %v9658, %v9750
        %v9767 = vsub.f32 %v9659, %v9746
        %v9768 = vsub.f32 %v9660, %v9750
        %v9769 = vsub.f32 %v9661, %v9746
        %v9770 = vsub.f32 %v9662, %v9750
        %v9771 = vsub.f32 %v9663, %v9746
        %v9772 = vsub.f32 %v9664, %v9750
        %v9773 = vsub.f32 %v9665, %v9746
        %v9774 = vsub.f32 %v9666, %v9750
        %v9775 = vsub.f32 %v9667, %v9746
        %v9776 = vsub.f32 %v9668, %v9750
        %v9777 = vsub.f32 %v9669, %v9746
        %v9778 = vsub.f32 %v9670, %v9750
        %v9779 = vsub.f32 %v9671, %v9746
        %v9780 = vsub.f32 %v9672, %v9750
        %v9781 = vsub.f32 %v9673, %v9746
        %v9782 = vsub.f32 %v9674, %v9750
        %v9783 = vsub.f32 %v9675, %v9746
        %v9784 = vsub.f32 %v9676, %v9750
        %v9785 = vmul.f32 %v9753, 1.442695
        %v9786 = vpow.pop %v9785
        %v9787 = vmul.f32 %v9754, 1.442695
        %v9788 = vpow.pop %v9787
        %v9789 = vmul.f32 %v9755, 1.442695
        %v9790 = vpow.pop %v9789
        %v9791 = vmul.f32 %v9756, 1.442695
        %v9792 = vpow.pop %v9791
        %v9793 = vmul.f32 %v9757, 1.442695
        %v9794 = vpow.pop %v9793
        %v9795 = vmul.f32 %v9758, 1.442695
        %v9796 = vpow.pop %v9795
        %v9797 = vmul.f32 %v9759, 1.442695
        %v9798 = vpow.pop %v9797
        %v9799 = vmul.f32 %v9760, 1.442695
        %v9800 = vpow.pop %v9799
        %v9801 = vmul.f32 %v9761, 1.442695
        %v9802 = vpow.pop %v9801
        %v9803 = vmul.f32 %v9762, 1.442695
        %v9804 = vpow.pop %v9803
        %v9805 = vmul.f32 %v9763, 1.442695
        %v9806 = vpow.pop %v9805
        %v9807 = vmul.f32 %v9764, 1.442695
        %v9808 = vpow.pop %v9807
        %v9809 = vmul.f32 %v9765, 1.442695
        %v9810 = vpow.pop %v9809
        %v9811 = vmul.f32 %v9766, 1.442695
        %v9812 = vpow.pop %v9811
        %v9813 = vmul.f32 %v9767, 1.442695
        %v9814 = vpow.pop %v9813
        %v9815 = vmul.f32 %v9768, 1.442695
        %v9816 = vpow.pop %v9815
        %v9817 = vmul.f32 %v9769, 1.442695
        %v9818 = vpow.pop %v9817
        %v9819 = vmul.f32 %v9770, 1.442695
        %v9820 = vpow.pop %v9819
        %v9821 = vmul.f32 %v9771, 1.442695
        %v9822 = vpow.pop %v9821
        %v9823 = vmul.f32 %v9772, 1.442695
        %v9824 = vpow.pop %v9823
        %v9825 = vmul.f32 %v9773, 1.442695
        %v9826 = vpow.pop %v9825
        %v9827 = vmul.f32 %v9774, 1.442695
        %v9828 = vpow.pop %v9827
        %v9829 = vmul.f32 %v9775, 1.442695
        %v9830 = vpow.pop %v9829
        %v9831 = vmul.f32 %v9776, 1.442695
        %v9832 = vpow.pop %v9831
        %v9833 = vmul.f32 %v9777, 1.442695
        %v9834 = vpow.pop %v9833
        %v9835 = vmul.f32 %v9778, 1.442695
        %v9836 = vpow.pop %v9835
        %v9837 = vmul.f32 %v9779, 1.442695
        %v9838 = vpow.pop %v9837
        %v9839 = vmul.f32 %v9780, 1.442695
        %v9840 = vpow.pop %v9839
        %v9841 = vmul.f32 %v9781, 1.442695
        %v9842 = vpow.pop %v9841
        %v9843 = vmul.f32 %v9782, 1.442695
        %v9844 = vpow.pop %v9843
        %v9845 = vmul.f32 %v9783, 1.442695
        %v9846 = vpow.pop %v9845
        %v9847 = vmul.f32 %v9784, 1.442695
        %v9848 = vpow.pop %v9847
        %v9849 = vadd.f32 %v9786, %v9790
        %v9850 = vadd.f32 %v9849, %v9794
        %v9851 = vadd.f32 %v9850, %v9798
        %v9852 = vadd.f32 %v9851, %v9802
        %v9853 = vadd.f32 %v9852, %v9806
        %v9854 = vadd.f32 %v9853, %v9810
        %v9855 = vadd.f32 %v9854, %v9814
        %v9856 = vadd.f32 %v9855, %v9818
        %v9857 = vadd.f32 %v9856, %v9822
        %v9858 = vadd.f32 %v9857, %v9826
        %v9859 = vadd.f32 %v9858, %v9830
        %v9860 = vadd.f32 %v9859, %v9834
        %v9861 = vadd.f32 %v9860, %v9838
        %v9862 = vadd.f32 %v9861, %v9842
        %v9863 = vadd.f32 %v9862, %v9846
        %v9864 = vrot.slane %v9863, 4
        %v9865 = vadd.f32 %v9863, %v9864
        %v9866 = vrot.slane %v9865, 2
        %v9867 = vadd.f32 %v9865, %v9866
        %v9868 = vrot.slane %v9867, 1
        %v9869 = vadd.f32 %v9867, %v9868
        %v9870 = vadd.f32 %v9788, %v9792
        %v9871 = vadd.f32 %v9870, %v9796
        %v9872 = vadd.f32 %v9871, %v9800
        %v9873 = vadd.f32 %v9872, %v9804
        %v9874 = vadd.f32 %v9873, %v9808
        %v9875 = vadd.f32 %v9874, %v9812
        %v9876 = vadd.f32 %v9875, %v9816
        %v9877 = vadd.f32 %v9876, %v9820
        %v9878 = vadd.f32 %v9877, %v9824
        %v9879 = vadd.f32 %v9878, %v9828
        %v9880 = vadd.f32 %v9879, %v9832
        %v9881 = vadd.f32 %v9880, %v9836
        %v9882 = vadd.f32 %v9881, %v9840
        %v9883 = vadd.f32 %v9882, %v9844
        %v9884 = vadd.f32 %v9883, %v9848
        %v9885 = vrot.slane %v9884, 4
        %v9886 = vadd.f32 %v9884, %v9885
        %v9887 = vrot.slane %v9886, 2
        %v9888 = vadd.f32 %v9886, %v9887
        %v9889 = vrot.slane %v9888, 1
        %v9890 = vadd.f32 %v9888, %v9889
        %v9893 = vcombine.low %v9869, %v9890
        %v9895 = vunpack.c.l.s4 1966171168
        %v9896 = vunpack.c.0.s8 %v9895
        %v9897 = vlaneseq
        %v9898 = vshrl.u32 %v9897, 7
        %v9899 = vsub.s32 %v9896, %v9898
        %v9900 = vrot.slane %v9893, %v9899
        %v9902 = vunpack.c.l.s4 1966171168
        %v9903 = vunpack.c.0.s8 %v9902
        %v9904 = vlaneseq
        %v9905 = vshrl.u32 %v9904, 7
        %v9906 = vsub.s32 %v9903, %v9905
        %v9907 = vrot.slane %v9900, %v9906
        %v9909 = vadd.f32 %v9741, %v9907
        %v9910 = vlaneseq
        %vm9911 = vcmp.ge.s32.totalorder %v9910, 0
        %vm9912 = vcmp.lt.s32.totalorder %v9910, 256
        %vm9913 = vmand %vm9911, %vm9912
        %9914 = vst.msk [vmem:[#allocation2] sm:$0x3] %vm9913, %v9737
        %9915 = vst.msk [vmem:[#allocation3] sm:$0x3] %vm9913, %v9909
        %p9916 = scmp.eq.s32.totalorder %s21, 1
        // Predicated region
        $region33: #{tpu_custom_call.1} parent=27 // pred_check
          %p9917 = pneg %p9916
        $region34: #{tpu_custom_call.1} parent=27 // pred_check_branch
          %9919 = sbr.rel (%p9917) target = $region36
        $region35: #{tpu_custom_call.1} parent=27 // pred_region
          %v9920 = vlog2.pop %v9909
          %v9921 = vmul.f32 %v9920, 0.6931472
          %v9922 = vadd.f32 %v9737, %v9921
          %9923 = vst.msk [vmem:[%s165] sm:$0x3] %vm9913, %v9922
        $region36: #{tpu_custom_call.1} parent=27 // pred_fallthru
          _
        %s9924 = sand.u32 %s88, 1
        %s9925 = scalar_lea.sflag [#allocation6], %s9924
        %s9926 = sand.u32 %s88, 1
        %s9927 = smul.addr %s9926, 2
        %s9928 = scalar_lea.vmem [#allocation5], %s9927
        // Predicated region
        $region37: #{tpu_custom_call.1} parent=27 // pred_check
          %p9929 = pneg %p98
        $region38: #{tpu_custom_call.1} parent=27 // pred_check_branch
          %9931 = sbr.rel (%p9929) target = $region40
        $region39: #{tpu_custom_call.1} parent=27 // pred_region
          %s9932 = smul.u32 2, %s20
          %s9934 = ssub.s32 32, 32
          %9935 = vsyncadd %s9925, %s9934
          %s9936 = smul.addr %s9932, 16
          %s9937 = scalar_lea.hbm %s2, %s9936
          %s9939 = sshll.u32 %s9928, 4
          %s9940 = int_to_ptr.vmem [resolvable:$true] %s9939
          %9942 = dma.vmem_to_hbm [thread:$0]  %s9940, 32, %s9937, %s9925
        $region40: #{tpu_custom_call.1} parent=27 // pred_fallthru
          _
      $region28: #{tpu_custom_call.1} parent=5 // pred_fallthru
        _
      %p9943 = scmp.le.s32.totalorder 2, %s11
      // Predicated region
      $region41: #{tpu_custom_call.1} parent=5 // pred_check
        %p9944 = pneg %p9943
      $region42: #{tpu_custom_call.1} parent=5 // pred_check_branch
        %9946 = sbr.rel (%p9944) target = $region44
      $region43: #{tpu_custom_call.1} parent=5 // pred_region
        %s9947 = ssub.s32 %s11, 2
        // Predicated region
        $region45: #{tpu_custom_call.1} parent=43 // pred_check
          %p9948 = pneg %p104
        $region46: #{tpu_custom_call.1} parent=43 // pred_check_branch
          %9950 = sbr.rel (%p9948) target = $region48
        $region47: #{tpu_custom_call.1} parent=43 // pred_region
          %s9951 = sand.u32 %s89, 1
          %s9952 = scalar_lea.sflag [#allocation6], %s9951
          %s9953 = sand.u32 %s89, 1
          %s9954 = smul.addr %s9953, 2
          %s9955 = scalar_lea.vmem [#allocation5], %s9954
          %9956 = dma.done %s9952, 32
        $region48: #{tpu_custom_call.1} parent=43 // pred_fallthru
          _
      $region44: #{tpu_custom_call.1} parent=5 // pred_fallthru
        _
    $region6: #{tpu_custom_call.1} parent=1 // loop_footer
      %s15 = sadd.s32 1, %s11
    $region7: #{tpu_custom_call.1} parent=1 // loop_footer_branch
      %10 = sbr.rel target = $region3
    $region8: #{tpu_custom_call.1} parent=1 // loop_exit
      _
    %9957 = vsyncpa [#allocation6], 1
    %s9958 = scalar_lea.sflag [#allocation6], 1
    %9959 = vsyncpa %s9958, 1

</llo_original>
